<compile_context>
chip_gen: v7x
topology: tpu7x:2x2x1
jax: 0.10.0
libtpu: 0.0.40
codegen_flags: <defaults>
</compile_context>

<pallas_src>
import functools

import jax
import jax.numpy as jnp
import numpy as np
from jax.experimental import pallas as pl
from jax.experimental.pallas import tpu as pltpu


# ---------------------------------------------------------------------------
# In-kernel helpers
# ---------------------------------------------------------------------------
def _conv_kxk_fold(slab, w_ref, b_ref, *, mp, wp, pad, k, guard):
    """kxk 'SAME' conv on a guarded, spatially padded, row-flattened slab.

    slab: (mtot, c) f32 value; rows [guard, guard+mp) hold the padded (hp, wp) grid flattened
    row-major; the 2*guard guard rows hold zeros (or values that only influence border outputs,
    which are masked / cropped downstream).  Taps are folded into the contraction dim: one bf16
    MXU dot with K = k*k*c instead of k*k separate dots.
    """
    if k == 1:
        lhs = slab[guard:guard + mp, :]
    else:
        mrows = mp + 2 * pad * wp
        g0 = guard - pad * wp - pad
        # kx fold (2 of k slices unaligned), covering enough rows for the ky shifts below.
        xkx = jnp.concatenate(
            [slab[g0 + kx:g0 + kx + mrows, :] for kx in range(k)], axis=-1)
        # ky fold: starts are multiples of wp (wp is a multiple of 8 -> aligned slices).
        lhs = jnp.concatenate(
            [xkx[ky * wp:ky * wp + mp, :] for ky in range(k)], axis=-1)
    out = jnp.dot(lhs.astype(jnp.bfloat16), w_ref[...],
                  preferred_element_type=jnp.float32)
    return out + b_ref[...]


def _bottleneck_pair(slab, maskb, w1_ref, b1_ref, w2_ref, b2_ref, w3_ref, b3_ref, *, geo):
    """Fused G||H Bottleneck pair on a shared guarded input slab -> (mp, 2*cm) f32."""
    c1 = _conv_kxk_fold(slab, w1_ref, b1_ref, **geo)
    c1 = jnp.where(c1 >= 0.0, c1, 0.2 * c1)                     # LeakyReLU(0.2)

    c2 = jnp.dot(c1.astype(jnp.bfloat16), w2_ref[...],
                 preferred_element_type=jnp.float32) + b2_ref[...]
    c2 = jnp.where(c2 >= 0.0, c2, 0.2 * c2)

    # conv3 reads zero outside the true h*w interior: where-mask (NaN-safe) + zero guard blocks.
    c2 = jnp.where(maskb, c2, 0.0)
    guard = geo["guard"]
    if guard > 0:
        zg = jnp.zeros((guard, c2.shape[-1]), jnp.float32)
        c2 = jnp.concatenate([zg, c2, zg], axis=0)
    return _conv_kxk_fold(c2, w3_ref, b3_ref, **geo)


def _coupling_kernel(x_ref, mask_ref,
                     w1f_ref, b1f_ref, w2f_ref, b2f_ref, w3f_ref, b3f_ref,
                     w1s_ref, b1s_ref, w2s_ref, b2s_ref, w3s_ref, b3s_ref,
                     y_ref, *, mp, wp, pad, k, guard, s1, s2, clamp, rev):
    geo = dict(mp=mp, wp=wp, pad=pad, k=k, guard=guard)
    C = s1 + s2
    if not rev:
        a_lo, ca = s1, s2          # stage-1 active  = x2
        p_lo, cp = 0, s1           # stage-1 passive = x1 ; mid = y1
    else:
        a_lo, ca = 0, s1           # stage-1 active  = x1
        p_lo, cp = s1, s2          # stage-1 passive = x2 ; mid = y2

    maskb = mask_ref[...] > 0.5                                  # (mp, 1) interior mask
    xall = x_ref[0]                                              # (mtot, C) f32, loaded once
    x_act_g = xall[:, a_lo:a_lo + ca]                            # guarded active slab
    x_act = x_act_g[guard:guard + mp, :]                         # interior active (stage-2 passive)
    x_pas = xall[guard:guard + mp, p_lo:p_lo + cp]               # interior passive (stage-1)

    # ---- stage 1: G||H pair (first weight set) + coupling epilogue -> mid (stays in VMEM) ----
    c3 = _bottleneck_pair(x_act_g, maskb,
                          w1f_ref, b1f_ref, w2f_ref, b2f_ref, w3f_ref, b3f_ref, geo=geo)
    t = clamp * jnp.tanh(0.5 * c3[:, :cp])                       # 2*sigmoid(g)-1 == tanh(g/2)
    h = c3[:, cp:]
    mid = x_pas * jnp.exp(t) + h if not rev else (x_pas - h) * jnp.exp(-t)

    # ---- stage 2: G||H pair (second weight set) on mid + coupling epilogue with stage-1 active ----
    mid_slab = jnp.where(maskb, mid, 0.0)
    if guard > 0:
        zg = jnp.zeros((guard, cp), jnp.float32)
        mid_slab = jnp.concatenate([zg, mid_slab, zg], axis=0)
    c3 = _bottleneck_pair(mid_slab, maskb,
                          w1s_ref, b1s_ref, w2s_ref, b2s_ref, w3s_ref, b3s_ref, geo=geo)
    t = clamp * jnp.tanh(0.5 * c3[:, :ca])
    h = c3[:, ca:]
    out = x_act * jnp.exp(t) + h if not rev else (x_act - h) * jnp.exp(-t)

    # ---- single full-width store: channels [0:s1]=y1, [s1:C]=y2 ----
    y1, y2 = (mid, out) if not rev else (out, mid)
    y_ref[0] = jnp.concatenate([y1, y2], axis=-1).astype(y_ref.dtype)


# ---------------------------------------------------------------------------
# Weight fusion (done ONCE, outside the jitted forward)
# ---------------------------------------------------------------------------
def _fuse_gh_folded(p_g, p_h):
    """Fuse the G/H bottlenecks that share an input; fold conv taps into the contraction dim."""
    k, _, cin, cm = p_g["w1"].shape
    f32, bf = jnp.float32, jnp.bfloat16

    # conv1: shared input -> concat along Cout (first cm = G branch, last cm = H branch).
    w1 = jnp.concatenate([p_g["w1"], p_h["w1"]], axis=-1)                       # (k,k,cin,2cm)
    w1 = w1.reshape(k * k * cin, 2 * cm).astype(bf)
    b1 = jnp.concatenate([p_g["b1"], p_h["b1"]], axis=-1).astype(f32)

    # conv2 (1x1): block-diagonal so the two branches stay independent (2cm must fit one MXU tile).
    w2g = p_g["w2"].reshape(cm, cm)
    w2h = p_h["w2"].reshape(cm, cm)
    z = jnp.zeros((cm, cm), f32)
    w2 = jnp.concatenate([jnp.concatenate([w2g, z], axis=1),
                          jnp.concatenate([z, w2h], axis=1)], axis=0).astype(bf)
    b2 = jnp.concatenate([p_g["b2"], p_h["b2"]], axis=-1).astype(f32)

    # conv3 (kxk): per-tap block-diagonal, taps folded into the contraction dim.
    zt = jnp.zeros((k, k, cm, cm), f32)
    w3 = jnp.concatenate([jnp.concatenate([p_g["w3"], zt], axis=3),
                          jnp.concatenate([zt, p_h["w3"]], axis=3)], axis=2)     # (k,k,2cm,2cm)
    w3 = w3.reshape(k * k * 2 * cm, 2 * cm).astype(bf)
    b3 = jnp.concatenate([p_g["b3"], p_h["b3"]], axis=-1).astype(f32)
    return {"w1": w1, "b1": b1, "w2": w2, "b2": b2, "w3": w3, "b3": b3}


def prepare_coupling_params(params):
    """Build both fused weight sets once per parameter set (hoisted out of the jitted forward)."""
    return {"A": _fuse_gh_folded(params["G2"], params["H2"]),   # acts on x2 / y2, outputs width s1
            "B": _fuse_gh_folded(params["G1"], params["H1"])}   # acts on x1 / y1, outputs width s2


# ---------------------------------------------------------------------------
# CouplingLayer forward (NCHW in / NCHW out, matching the PyTorch module)
# ---------------------------------------------------------------------------
def _build_mask(hp, wp, h, w, pad):
    rr = np.arange(hp)[:, None]
    cc = np.arange(wp)[None, :]
    m = (rr >= pad) & (rr < pad + h) & (cc >= pad) & (cc < pad + w)
    return jnp.asarray(m.astype(np.float32).reshape(hp * wp, 1))


@functools.partial(jax.jit, static_argnames=("ksize", "clamp", "rev"))
def coupling_layer_forward(x_nchw, fused, *, ksize, clamp=1.0, rev=False):
    fA, fB = fused["A"], fused["B"]
    s1 = fA["b1"].shape[1] // 2                      # split_len1
    s2 = fB["b1"].shape[1] // 2                      # split_len2
    n, C, h, w = x_nchw.shape
    assert C == s1 + s2
    k = ksize
    pad = (k - 1) // 2
    hp = h + 2 * pad
    wp = -(-(w + 2 * pad) // 8) * 8                  # row stride padded to a multiple of 8
    mp = hp * wp
    guard = (-(-(pad * (wp + 1)) // 8) * 8) if pad > 0 else 0
    mtot = mp + 2 * guard

    # Single pad / flatten / guard of the whole x (both halves ride along: one HBM pass total).
    x = jnp.transpose(x_nchw, (0, 2, 3, 1))                                   # NCHW -> NHWC
    x = jnp.pad(x, ((0, 0), (pad, pad), (pad, wp - w - pad), (0, 0)))
    x = x.reshape(n, mp, C)
    x = jnp.pad(x, ((0, 0), (guard, guard), (0, 0)))                          # (n, mtot, C)

    mask = _build_mask(hp, wp, h, w, pad)                                     # compile-time const

    first, second = (fA, fB) if not rev else (fB, fA)
    wlist = [first["w1"], first["b1"], first["w2"], first["b2"], first["w3"], first["b3"],
             second["w1"], second["b1"], second["w2"], second["b2"], second["w3"], second["b3"]]

    kern = functools.partial(_coupling_kernel, mp=mp, wp=wp, pad=pad, k=k, guard=guard,
                             s1=s1, s2=s2, clamp=float(clamp), rev=bool(rev))

    y = pl.pallas_call(
        kern,
        out_shape=jax.ShapeDtypeStruct((n, mp, C), jnp.float32),
        grid_spec=pltpu.PrefetchScalarGridSpec(
            num_scalar_prefetch=0,
            grid=(n,),
            in_specs=[pl.BlockSpec((1, mtot, C), lambda i: (i, 0, 0)),        # guarded input
                      pl.BlockSpec((mp, 1), lambda i: (0, 0))]                # interior mask
                     + [pl.BlockSpec(a.shape, lambda i: (0, 0)) for a in wlist],
            out_specs=pl.BlockSpec((1, mp, C), lambda i: (i, 0, 0)),
        ),
        compiler_params=pltpu.CompilerParams(
            dimension_semantics=("parallel",),
            vmem_limit_bytes=32 * 1024 * 1024),
    )(x, mask, *wlist)

    y = y.reshape(n, hp, wp, C)[:, pad:pad + h, pad:pad + w, :]               # crop border
    return jnp.transpose(y, (0, 3, 1, 2))                                     # NHWC -> NCHW


# ---------------------------------------------------------------------------
# Deterministic synthetic parameter init (shapes from the PyTorch __init__)
# ---------------------------------------------------------------------------
def init_bottleneck_params(key, cin, cout, k):
    k1, k2, k3, k4, k5, k6 = jax.random.split(key, 6)
    std1 = 0.1 * np.sqrt(2.0 / ((cin + cout) * k * k))       # ~ xavier_normal * 0.1
    std2 = 0.1 * np.sqrt(2.0 / (cout + cout))
    # NOTE: the PyTorch module zero-initializes conv3 (scale=0); a small nonzero deterministic
    # init is used instead so the conv3 / coupling path is actually exercised by the test.
    std3 = 0.05 * np.sqrt(2.0 / (cout * k * k))
    return {
        "w1": std1 * jax.random.normal(k1, (k, k, cin, cout), jnp.float32),
        "b1": 0.01 * jax.random.normal(k2, (1, cout), jnp.float32),
        "w2": std2 * jax.random.normal(k3, (1, 1, cout, cout), jnp.float32),
        "b2": 0.01 * jax.random.normal(k4, (1, cout), jnp.float32),
        "w3": std3 * jax.random.normal(k5, (k, k, cout, cout), jnp.float32),
        "b3": 0.01 * jax.random.normal(k6, (1, cout), jnp.float32),
    }


# ---------------------------------------------------------------------------
# Pure-JAX reference (for correctness check)
# ---------------------------------------------------------------------------
def _conv_ref(x, w, b):
    out = jax.lax.conv_general_dilated(
        x, w, window_strides=(1, 1), padding="SAME",
        dimension_numbers=("NHWC", "HWIO", "NHWC"),
        precision=jax.lax.Precision.HIGHEST)
    return out + b.reshape(1, 1, 1, -1)


def _bottleneck_ref(x, p):
    lrelu = lambda v: jnp.where(v >= 0, v, 0.2 * v)
    c1 = lrelu(_conv_ref(x, p["w1"], p["b1"]))
    c2 = lrelu(_conv_ref(c1, p["w2"], p["b2"]))
    return _conv_ref(c2, p["w3"], p["b3"])


def _coupling_ref(x_nchw, params, clamp=1.0, rev=False):
    s1 = params["G1"]["w1"].shape[2]
    s2 = params["G2"]["w1"].shape[2]
    x = jnp.transpose(x_nchw, (0, 2, 3, 1))
    x1, x2 = x[..., :s1], x[..., s1:s1 + s2]
    e = lambda g: jnp.exp(clamp * (2.0 * jax.nn.sigmoid(g) - 1.0))
    if not rev:
        y1 = x1 * e(_bottleneck_ref(x2, params["G2"])) + _bottleneck_ref(x2, params["H2"])
        y2 = x2 * e(_bottleneck_ref(y1, params["G1"])) + _bottleneck_ref(y1, params["H1"])
    else:
        y2 = (x2 - _bottleneck_ref(x1, params["H1"])) / e(_bottleneck_ref(x1, params["G1"]))
        y1 = (x1 - _bottleneck_ref(y2, params["H2"])) / e(_bottleneck_ref(y2, params["G2"]))
    return jnp.transpose(jnp.concatenate([y1, y2], -1), (0, 3, 1, 2))


# ---------------------------------------------------------------------------
if __name__ == "__main__":
    key = jax.random.PRNGKey(0)
    kx_, kg1, kg2, kh1, kh2 = jax.random.split(key, 5)

    split1, split2 = 2, 2          # total channels = 4
    ksz = 3
    n, hgt, wid = 2, 16, 16
    clamp = 1.0

    x = jax.random.normal(kx_, (n, split1 + split2, hgt, wid), jnp.float32)

    params = {
        "G1": init_bottleneck_params(kg1, split1, split2, ksz),
        "G2": init_bottleneck_params(kg2, split2, split1, ksz),
        "H1": init_bottleneck_params(kh1, split1, split2, ksz),
        "H2": init_bottleneck_params(kh2, split2, split1, ksz),
    }

    fused = prepare_coupling_params(params)      # weight fusion hoisted out of the jitted forward

    y_fwd = jax.block_until_ready(
        coupling_layer_forward(x, fused, ksize=ksz, clamp=clamp, rev=False))
    y_rev = jax.block_until_ready(
        coupling_layer_forward(x, fused, ksize=ksz, clamp=clamp, rev=True))

    ref_fwd = _coupling_ref(x, params, clamp, rev=False)
    ref_rev = _coupling_ref(x, params, clamp, rev=True)

    np.testing.assert_allclose(np.asarray(y_fwd), np.asarray(ref_fwd), rtol=1e-3, atol=1e-3)
    np.testing.assert_allclose(np.asarray(y_rev), np.asarray(ref_rev), rtol=1e-3, atol=1e-3)

    print("KERNEL_OK")
</pallas_src>

<mosaic_0001>
module attributes {stable_mosaic.version = 11 : i64} {
  func.func @_coupling_kernel(%arg0: i32, %arg1: memref<1x496x4xf32, #tpu.memory_space<vmem>>, %arg2: memref<432x1xf32, #tpu.memory_space<vmem>>, %arg3: memref<18x4xbf16, #tpu.memory_space<vmem>>, %arg4: memref<1x4xf32, #tpu.memory_space<vmem>>, %arg5: memref<4x4xbf16, #tpu.memory_space<vmem>>, %arg6: memref<1x4xf32, #tpu.memory_space<vmem>>, %arg7: memref<36x4xbf16, #tpu.memory_space<vmem>>, %arg8: memref<1x4xf32, #tpu.memory_space<vmem>>, %arg9: memref<18x4xbf16, #tpu.memory_space<vmem>>, %arg10: memref<1x4xf32, #tpu.memory_space<vmem>>, %arg11: memref<4x4xbf16, #tpu.memory_space<vmem>>, %arg12: memref<1x4xf32, #tpu.memory_space<vmem>>, %arg13: memref<36x4xbf16, #tpu.memory_space<vmem>>, %arg14: memref<1x4xf32, #tpu.memory_space<vmem>>, %arg15: memref<1x432x4xf32, #tpu.memory_space<vmem>>) attributes {dimension_semantics = [#tpu.dimension_semantics<parallel>], iteration_bounds = array<i64: 2>, scalar_prefetch = 0 : i64, scratch_operands = 0 : i64, tpu.core_type = #tpu.core_type<tc>, window_params = [{transform_indices = @transform_0, window_bounds = array<i64: 1, 496, 4>}, {pipeline_mode = #tpu.pipeline_mode<synchronous>, transform_indices = @transform_1, window_bounds = array<i64: 432, 1>}, {pipeline_mode = #tpu.pipeline_mode<synchronous>, transform_indices = @transform_2, window_bounds = array<i64: 18, 4>}, {pipeline_mode = #tpu.pipeline_mode<synchronous>, transform_indices = @transform_3, window_bounds = array<i64: 1, 4>}, {pipeline_mode = #tpu.pipeline_mode<synchronous>, transform_indices = @transform_4, window_bounds = array<i64: 4, 4>}, {pipeline_mode = #tpu.pipeline_mode<synchronous>, transform_indices = @transform_5, window_bounds = array<i64: 1, 4>}, {pipeline_mode = #tpu.pipeline_mode<synchronous>, transform_indices = @transform_6, window_bounds = array<i64: 36, 4>}, {pipeline_mode = #tpu.pipeline_mode<synchronous>, transform_indices = @transform_7, window_bounds = array<i64: 1, 4>}, {pipeline_mode = #tpu.pipeline_mode<synchronous>, transform_indices = @transform_8, window_bounds = array<i64: 18, 4>}, {pipeline_mode = #tpu.pipeline_mode<synchronous>, transform_indices = @transform_9, window_bounds = array<i64: 1, 4>}, {pipeline_mode = #tpu.pipeline_mode<synchronous>, transform_indices = @transform_10, window_bounds = array<i64: 4, 4>}, {pipeline_mode = #tpu.pipeline_mode<synchronous>, transform_indices = @transform_11, window_bounds = array<i64: 1, 4>}, {pipeline_mode = #tpu.pipeline_mode<synchronous>, transform_indices = @transform_12, window_bounds = array<i64: 36, 4>}, {pipeline_mode = #tpu.pipeline_mode<synchronous>, transform_indices = @transform_13, window_bounds = array<i64: 1, 4>}, {transform_indices = @transform_14, window_bounds = array<i64: 1, 432, 4>}]} {
    %c0 = arith.constant 0 : index
    %c0_0 = arith.constant 0 : index
    %0 = vector.load %arg2[%c0, %c0_0] : memref<432x1xf32, #tpu.memory_space<vmem>>, vector<432x1xf32>
    %cst = arith.constant 5.000000e-01 : f32
    %1 = vector.broadcast %cst : f32 to vector<432x1xf32>
    %2 = arith.cmpf ogt, %0, %1 : vector<432x1xf32>
    %c0_1 = arith.constant 0 : index
    %c0_2 = arith.constant 0 : index
    %c0_3 = arith.constant 0 : index
    %3 = vector.load %arg1[%c0_1, %c0_2, %c0_3] : memref<1x496x4xf32, #tpu.memory_space<vmem>>, vector<1x496x4xf32>
    %4 = vector.shape_cast %3 : vector<1x496x4xf32> to vector<496x4xf32>
    %5 = vector.extract_strided_slice %4 {offsets = [0, 2], sizes = [496, 2], strides = [1, 1]} : vector<496x4xf32> to vector<496x2xf32>
    %6 = vector.extract_strided_slice %5 {offsets = [32, 0], sizes = [432, 2], strides = [1, 1]} : vector<496x2xf32> to vector<432x2xf32>
    %7 = vector.extract_strided_slice %4 {offsets = [32, 0], sizes = [432, 2], strides = [1, 1]} : vector<496x4xf32> to vector<432x2xf32>
    %8 = vector.extract_strided_slice %5 {offsets = [7, 0], sizes = [480, 2], strides = [1, 1]} : vector<496x2xf32> to vector<480x2xf32>
    %9 = vector.extract_strided_slice %5 {offsets = [8, 0], sizes = [480, 2], strides = [1, 1]} : vector<496x2xf32> to vector<480x2xf32>
    %10 = vector.extract_strided_slice %5 {offsets = [9, 0], sizes = [480, 2], strides = [1, 1]} : vector<496x2xf32> to vector<480x2xf32>
    %11 = tpu.concatenate %8, %9, %10 in 1 : vector<480x2xf32>, vector<480x2xf32>, vector<480x2xf32> -> vector<480x6xf32>
    %12 = vector.extract_strided_slice %11 {offsets = [0, 0], sizes = [432, 6], strides = [1, 1]} : vector<480x6xf32> to vector<432x6xf32>
    %13 = vector.extract_strided_slice %11 {offsets = [24, 0], sizes = [432, 6], strides = [1, 1]} : vector<480x6xf32> to vector<432x6xf32>
    %14 = vector.extract_strided_slice %11 {offsets = [48, 0], sizes = [432, 6], strides = [1, 1]} : vector<480x6xf32> to vector<432x6xf32>
    %15 = tpu.concatenate %12, %13, %14 in 1 : vector<432x6xf32>, vector<432x6xf32>, vector<432x6xf32> -> vector<432x18xf32>
    %16 = arith.truncf %15 : vector<432x18xf32> to vector<432x18xbf16>
    %c0_4 = arith.constant 0 : index
    %c0_5 = arith.constant 0 : index
    %17 = vector.load %arg3[%c0_4, %c0_5] : memref<18x4xbf16, #tpu.memory_space<vmem>>, vector<18x4xbf16>
    %cst_6 = arith.constant dense<0.000000e+00> : vector<432x4xf32>
    %18 = tpu.matmul %16, %17, %cst_6 {dimension_numbers = #tpu.dot_dimension_numbers<[1], [0], [0], [1], [0, 0, 1, 1], [], []>} : vector<432x18xbf16>, vector<18x4xbf16>, vector<432x4xf32> -> vector<432x4xf32>
    %c0_7 = arith.constant 0 : index
    %c0_8 = arith.constant 0 : index
    %19 = vector.load %arg4[%c0_7, %c0_8] : memref<1x4xf32, #tpu.memory_space<vmem>>, vector<1x4xf32>
    %20 = vector.broadcast %19 : vector<1x4xf32> to vector<432x4xf32>
    %21 = arith.addf %18, %20 : vector<432x4xf32>
    %cst_9 = arith.constant 0.000000e+00 : f32
    %22 = vector.broadcast %cst_9 : f32 to vector<432x4xf32>
    %23 = arith.cmpf oge, %21, %22 : vector<432x4xf32>
    %cst_10 = arith.constant 2.000000e-01 : f32
    %24 = vector.broadcast %cst_10 : f32 to vector<432x4xf32>
    %25 = arith.mulf %24, %21 : vector<432x4xf32>
    %26 = arith.select %23, %21, %25 : vector<432x4xi1>, vector<432x4xf32>
    %27 = arith.truncf %26 : vector<432x4xf32> to vector<432x4xbf16>
    %c0_11 = arith.constant 0 : index
    %c0_12 = arith.constant 0 : index
    %28 = vector.load %arg5[%c0_11, %c0_12] : memref<4x4xbf16, #tpu.memory_space<vmem>>, vector<4x4xbf16>
    %cst_13 = arith.constant dense<0.000000e+00> : vector<432x4xf32>
    %29 = tpu.matmul %27, %28, %cst_13 {dimension_numbers = #tpu.dot_dimension_numbers<[1], [0], [0], [1], [0, 0, 1, 1], [], []>} : vector<432x4xbf16>, vector<4x4xbf16>, vector<432x4xf32> -> vector<432x4xf32>
    %c0_14 = arith.constant 0 : index
    %c0_15 = arith.constant 0 : index
    %30 = vector.load %arg6[%c0_14, %c0_15] : memref<1x4xf32, #tpu.memory_space<vmem>>, vector<1x4xf32>
    %31 = vector.broadcast %30 : vector<1x4xf32> to vector<432x4xf32>
    %32 = arith.addf %29, %31 : vector<432x4xf32>
    %cst_16 = arith.constant 0.000000e+00 : f32
    %33 = vector.broadcast %cst_16 : f32 to vector<432x4xf32>
    %34 = arith.cmpf oge, %32, %33 : vector<432x4xf32>
    %cst_17 = arith.constant 2.000000e-01 : f32
    %35 = vector.broadcast %cst_17 : f32 to vector<432x4xf32>
    %36 = arith.mulf %35, %32 : vector<432x4xf32>
    %37 = arith.select %34, %32, %36 : vector<432x4xi1>, vector<432x4xf32>
    %cst_18 = arith.constant 0.000000e+00 : f32
    %38 = vector.shape_cast %2 : vector<432x1xi1> to vector<432x1xi1>
    %39 = vector.broadcast %38 : vector<432x1xi1> to vector<432x4xi1>
    %40 = vector.broadcast %cst_18 : f32 to vector<432x4xf32>
    %41 = arith.select %39, %37, %40 : vector<432x4xi1>, vector<432x4xf32>
    %cst_19 = arith.constant 0.000000e+00 : f32
    %42 = vector.broadcast %cst_19 : f32 to vector<32x4xf32>
    %43 = tpu.concatenate %42, %41, %42 in 0 : vector<32x4xf32>, vector<432x4xf32>, vector<32x4xf32> -> vector<496x4xf32>
    %44 = vector.extract_strided_slice %43 {offsets = [7, 0], sizes = [480, 4], strides = [1, 1]} : vector<496x4xf32> to vector<480x4xf32>
    %45 = vector.extract_strided_slice %43 {offsets = [8, 0], sizes = [480, 4], strides = [1, 1]} : vector<496x4xf32> to vector<480x4xf32>
    %46 = vector.extract_strided_slice %43 {offsets = [9, 0], sizes = [480, 4], strides = [1, 1]} : vector<496x4xf32> to vector<480x4xf32>
    %47 = tpu.concatenate %44, %45, %46 in 1 : vector<480x4xf32>, vector<480x4xf32>, vector<480x4xf32> -> vector<480x12xf32>
    %48 = vector.extract_strided_slice %47 {offsets = [0, 0], sizes = [432, 12], strides = [1, 1]} : vector<480x12xf32> to vector<432x12xf32>
    %49 = vector.extract_strided_slice %47 {offsets = [24, 0], sizes = [432, 12], strides = [1, 1]} : vector<480x12xf32> to vector<432x12xf32>
    %50 = vector.extract_strided_slice %47 {offsets = [48, 0], sizes = [432, 12], strides = [1, 1]} : vector<480x12xf32> to vector<432x12xf32>
    %51 = tpu.concatenate %48, %49, %50 in 1 : vector<432x12xf32>, vector<432x12xf32>, vector<432x12xf32> -> vector<432x36xf32>
    %52 = arith.truncf %51 : vector<432x36xf32> to vector<432x36xbf16>
    %c0_20 = arith.constant 0 : index
    %c0_21 = arith.constant 0 : index
    %53 = vector.load %arg7[%c0_20, %c0_21] : memref<36x4xbf16, #tpu.memory_space<vmem>>, vector<36x4xbf16>
    %cst_22 = arith.constant dense<0.000000e+00> : vector<432x4xf32>
    %54 = tpu.matmul %52, %53, %cst_22 {dimension_numbers = #tpu.dot_dimension_numbers<[1], [0], [0], [1], [0, 0, 1, 1], [], []>} : vector<432x36xbf16>, vector<36x4xbf16>, vector<432x4xf32> -> vector<432x4xf32>
    %c0_23 = arith.constant 0 : index
    %c0_24 = arith.constant 0 : index
    %55 = vector.load %arg8[%c0_23, %c0_24] : memref<1x4xf32, #tpu.memory_space<vmem>>, vector<1x4xf32>
    %56 = vector.broadcast %55 : vector<1x4xf32> to vector<432x4xf32>
    %57 = arith.addf %54, %56 : vector<432x4xf32>
    %58 = vector.extract_strided_slice %57 {offsets = [0, 0], sizes = [432, 2], strides = [1, 1]} : vector<432x4xf32> to vector<432x2xf32>
    %cst_25 = arith.constant 5.000000e-01 : f32
    %59 = vector.broadcast %cst_25 : f32 to vector<432x2xf32>
    %60 = arith.mulf %59, %58 : vector<432x2xf32>
    %61 = math.tanh %60 : vector<432x2xf32>
    %cst_26 = arith.constant 1.000000e+00 : f32
    %62 = vector.broadcast %cst_26 : f32 to vector<432x2xf32>
    %63 = arith.mulf %62, %61 : vector<432x2xf32>
    %64 = vector.extract_strided_slice %57 {offsets = [0, 2], sizes = [432, 2], strides = [1, 1]} : vector<432x4xf32> to vector<432x2xf32>
    %65 = math.exp %63 : vector<432x2xf32>
    %66 = arith.mulf %7, %65 : vector<432x2xf32>
    %67 = arith.addf %66, %64 : vector<432x2xf32>
    %cst_27 = arith.constant 0.000000e+00 : f32
    %68 = vector.shape_cast %2 : vector<432x1xi1> to vector<432x1xi1>
    %69 = vector.broadcast %68 : vector<432x1xi1> to vector<432x2xi1>
    %70 = vector.broadcast %cst_27 : f32 to vector<432x2xf32>
    %71 = arith.select %69, %67, %70 : vector<432x2xi1>, vector<432x2xf32>
    %cst_28 = arith.constant 0.000000e+00 : f32
    %72 = vector.broadcast %cst_28 : f32 to vector<32x2xf32>
    %73 = tpu.concatenate %72, %71, %72 in 0 : vector<32x2xf32>, vector<432x2xf32>, vector<32x2xf32> -> vector<496x2xf32>
    %74 = vector.extract_strided_slice %73 {offsets = [7, 0], sizes = [480, 2], strides = [1, 1]} : vector<496x2xf32> to vector<480x2xf32>
    %75 = vector.extract_strided_slice %73 {offsets = [8, 0], sizes = [480, 2], strides = [1, 1]} : vector<496x2xf32> to vector<480x2xf32>
    %76 = vector.extract_strided_slice %73 {offsets = [9, 0], sizes = [480, 2], strides = [1, 1]} : vector<496x2xf32> to vector<480x2xf32>
    %77 = tpu.concatenate %74, %75, %76 in 1 : vector<480x2xf32>, vector<480x2xf32>, vector<480x2xf32> -> vector<480x6xf32>
    %78 = vector.extract_strided_slice %77 {offsets = [0, 0], sizes = [432, 6], strides = [1, 1]} : vector<480x6xf32> to vector<432x6xf32>
    %79 = vector.extract_strided_slice %77 {offsets = [24, 0], sizes = [432, 6], strides = [1, 1]} : vector<480x6xf32> to vector<432x6xf32>
    %80 = vector.extract_strided_slice %77 {offsets = [48, 0], sizes = [432, 6], strides = [1, 1]} : vector<480x6xf32> to vector<432x6xf32>
    %81 = tpu.concatenate %78, %79, %80 in 1 : vector<432x6xf32>, vector<432x6xf32>, vector<432x6xf32> -> vector<432x18xf32>
    %82 = arith.truncf %81 : vector<432x18xf32> to vector<432x18xbf16>
    %c0_29 = arith.constant 0 : index
    %c0_30 = arith.constant 0 : index
    %83 = vector.load %arg9[%c0_29, %c0_30] : memref<18x4xbf16, #tpu.memory_space<vmem>>, vector<18x4xbf16>
    %cst_31 = arith.constant dense<0.000000e+00> : vector<432x4xf32>
    %84 = tpu.matmul %82, %83, %cst_31 {dimension_numbers = #tpu.dot_dimension_numbers<[1], [0], [0], [1], [0, 0, 1, 1], [], []>} : vector<432x18xbf16>, vector<18x4xbf16>, vector<432x4xf32> -> vector<432x4xf32>
    %c0_32 = arith.constant 0 : index
    %c0_33 = arith.constant 0 : index
    %85 = vector.load %arg10[%c0_32, %c0_33] : memref<1x4xf32, #tpu.memory_space<vmem>>, vector<1x4xf32>
    %86 = vector.broadcast %85 : vector<1x4xf32> to vector<432x4xf32>
    %87 = arith.addf %84, %86 : vector<432x4xf32>
    %cst_34 = arith.constant 0.000000e+00 : f32
    %88 = vector.broadcast %cst_34 : f32 to vector<432x4xf32>
    %89 = arith.cmpf oge, %87, %88 : vector<432x4xf32>
    %cst_35 = arith.constant 2.000000e-01 : f32
    %90 = vector.broadcast %cst_35 : f32 to vector<432x4xf32>
    %91 = arith.mulf %90, %87 : vector<432x4xf32>
    %92 = arith.select %89, %87, %91 : vector<432x4xi1>, vector<432x4xf32>
    %93 = arith.truncf %92 : vector<432x4xf32> to vector<432x4xbf16>
    %c0_36 = arith.constant 0 : index
    %c0_37 = arith.constant 0 : index
    %94 = vector.load %arg11[%c0_36, %c0_37] : memref<4x4xbf16, #tpu.memory_space<vmem>>, vector<4x4xbf16>
    %cst_38 = arith.constant dense<0.000000e+00> : vector<432x4xf32>
    %95 = tpu.matmul %93, %94, %cst_38 {dimension_numbers = #tpu.dot_dimension_numbers<[1], [0], [0], [1], [0, 0, 1, 1], [], []>} : vector<432x4xbf16>, vector<4x4xbf16>, vector<432x4xf32> -> vector<432x4xf32>
    %c0_39 = arith.constant 0 : index
    %c0_40 = arith.constant 0 : index
    %96 = vector.load %arg12[%c0_39, %c0_40] : memref<1x4xf32, #tpu.memory_space<vmem>>, vector<1x4xf32>
    %97 = vector.broadcast %96 : vector<1x4xf32> to vector<432x4xf32>
    %98 = arith.addf %95, %97 : vector<432x4xf32>
    %cst_41 = arith.constant 0.000000e+00 : f32
    %99 = vector.broadcast %cst_41 : f32 to vector<432x4xf32>
    %100 = arith.cmpf oge, %98, %99 : vector<432x4xf32>
    %cst_42 = arith.constant 2.000000e-01 : f32
    %101 = vector.broadcast %cst_42 : f32 to vector<432x4xf32>
    %102 = arith.mulf %101, %98 : vector<432x4xf32>
    %103 = arith.select %100, %98, %102 : vector<432x4xi1>, vector<432x4xf32>
    %cst_43 = arith.constant 0.000000e+00 : f32
    %104 = vector.shape_cast %2 : vector<432x1xi1> to vector<432x1xi1>
    %105 = vector.broadcast %104 : vector<432x1xi1> to vector<432x4xi1>
    %106 = vector.broadcast %cst_43 : f32 to vector<432x4xf32>
    %107 = arith.select %105, %103, %106 : vector<432x4xi1>, vector<432x4xf32>
    %cst_44 = arith.constant 0.000000e+00 : f32
    %108 = vector.broadcast %cst_44 : f32 to vector<32x4xf32>
    %109 = tpu.concatenate %108, %107, %108 in 0 : vector<32x4xf32>, vector<432x4xf32>, vector<32x4xf32> -> vector<496x4xf32>
    %110 = vector.extract_strided_slice %109 {offsets = [7, 0], sizes = [480, 4], strides = [1, 1]} : vector<496x4xf32> to vector<480x4xf32>
    %111 = vector.extract_strided_slice %109 {offsets = [8, 0], sizes = [480, 4], strides = [1, 1]} : vector<496x4xf32> to vector<480x4xf32>
    %112 = vector.extract_strided_slice %109 {offsets = [9, 0], sizes = [480, 4], strides = [1, 1]} : vector<496x4xf32> to vector<480x4xf32>
    %113 = tpu.concatenate %110, %111, %112 in 1 : vector<480x4xf32>, vector<480x4xf32>, vector<480x4xf32> -> vector<480x12xf32>
    %114 = vector.extract_strided_slice %113 {offsets = [0, 0], sizes = [432, 12], strides = [1, 1]} : vector<480x12xf32> to vector<432x12xf32>
    %115 = vector.extract_strided_slice %113 {offsets = [24, 0], sizes = [432, 12], strides = [1, 1]} : vector<480x12xf32> to vector<432x12xf32>
    %116 = vector.extract_strided_slice %113 {offsets = [48, 0], sizes = [432, 12], strides = [1, 1]} : vector<480x12xf32> to vector<432x12xf32>
    %117 = tpu.concatenate %114, %115, %116 in 1 : vector<432x12xf32>, vector<432x12xf32>, vector<432x12xf32> -> vector<432x36xf32>
    %118 = arith.truncf %117 : vector<432x36xf32> to vector<432x36xbf16>
    %c0_45 = arith.constant 0 : index
    %c0_46 = arith.constant 0 : index
    %119 = vector.load %arg13[%c0_45, %c0_46] : memref<36x4xbf16, #tpu.memory_space<vmem>>, vector<36x4xbf16>
    %cst_47 = arith.constant dense<0.000000e+00> : vector<432x4xf32>
    %120 = tpu.matmul %118, %119, %cst_47 {dimension_numbers = #tpu.dot_dimension_numbers<[1], [0], [0], [1], [0, 0, 1, 1], [], []>} : vector<432x36xbf16>, vector<36x4xbf16>, vector<432x4xf32> -> vector<432x4xf32>
    %c0_48 = arith.constant 0 : index
    %c0_49 = arith.constant 0 : index
    %121 = vector.load %arg14[%c0_48, %c0_49] : memref<1x4xf32, #tpu.memory_space<vmem>>, vector<1x4xf32>
    %122 = vector.broadcast %121 : vector<1x4xf32> to vector<432x4xf32>
    %123 = arith.addf %120, %122 : vector<432x4xf32>
    %124 = vector.extract_strided_slice %123 {offsets = [0, 0], sizes = [432, 2], strides = [1, 1]} : vector<432x4xf32> to vector<432x2xf32>
    %cst_50 = arith.constant 5.000000e-01 : f32
    %125 = vector.broadcast %cst_50 : f32 to vector<432x2xf32>
    %126 = arith.mulf %125, %124 : vector<432x2xf32>
    %127 = math.tanh %126 : vector<432x2xf32>
    %cst_51 = arith.constant 1.000000e+00 : f32
    %128 = vector.broadcast %cst_51 : f32 to vector<432x2xf32>
    %129 = arith.mulf %128, %127 : vector<432x2xf32>
    %130 = vector.extract_strided_slice %123 {offsets = [0, 2], sizes = [432, 2], strides = [1, 1]} : vector<432x4xf32> to vector<432x2xf32>
    %131 = math.exp %129 : vector<432x2xf32>
    %132 = arith.mulf %6, %131 : vector<432x2xf32>
    %133 = arith.addf %132, %130 : vector<432x2xf32>
    %134 = tpu.concatenate %67, %133 in 1 : vector<432x2xf32>, vector<432x2xf32> -> vector<432x4xf32>
    %c0_52 = arith.constant 0 : index
    %c0_53 = arith.constant 0 : index
    %c0_54 = arith.constant 0 : index
    %135 = vector.load %arg15[%c0_52, %c0_53, %c0_54] : memref<1x432x4xf32, #tpu.memory_space<vmem>>, vector<1x432x4xf32>
    %136 = vector.shape_cast %135 : vector<1x432x4xf32> to vector<432x4xf32>
    %137 = vector.shape_cast %134 : vector<432x4xf32> to vector<1x432x4xf32>
    tpu.vector_store %arg15[%c0_52, %c0_53, %c0_54], %137 {strides = array<i32>} : memref<1x432x4xf32, #tpu.memory_space<vmem>>, vector<1x432x4xf32>,
    return
  }
  func.func @transform_0(%arg0: i32) -> (i32, i32, i32) {
    %c0_i32 = arith.constant 0 : i32
    %c0_i32_0 = arith.constant 0 : i32
    %c0_i32_1 = arith.constant 0 : i32
    return %arg0, %c0_i32, %c0_i32_0 : i32, i32, i32
  }
  func.func @transform_1(%arg0: i32) -> (i32, i32) {
    %c0_i32 = arith.constant 0 : i32
    %c0_i32_0 = arith.constant 0 : i32
    %c0_i32_1 = arith.constant 0 : i32
    return %c0_i32, %c0_i32_0 : i32, i32
  }
  func.func @transform_2(%arg0: i32) -> (i32, i32) {
    %c0_i32 = arith.constant 0 : i32
    %c0_i32_0 = arith.constant 0 : i32
    %c0_i32_1 = arith.constant 0 : i32
    return %c0_i32, %c0_i32_0 : i32, i32
  }
  func.func @transform_3(%arg0: i32) -> (i32, i32) {
    %c0_i32 = arith.constant 0 : i32
    %c0_i32_0 = arith.constant 0 : i32
    %c0_i32_1 = arith.constant 0 : i32
    return %c0_i32, %c0_i32_0 : i32, i32
  }
  func.func @transform_4(%arg0: i32) -> (i32, i32) {
    %c0_i32 = arith.constant 0 : i32
    %c0_i32_0 = arith.constant 0 : i32
    %c0_i32_1 = arith.constant 0 : i32
    return %c0_i32, %c0_i32_0 : i32, i32
  }
  func.func @transform_5(%arg0: i32) -> (i32, i32) {
    %c0_i32 = arith.constant 0 : i32
    %c0_i32_0 = arith.constant 0 : i32
    %c0_i32_1 = arith.constant 0 : i32
    return %c0_i32, %c0_i32_0 : i32, i32
  }
  func.func @transform_6(%arg0: i32) -> (i32, i32) {
    %c0_i32 = arith.constant 0 : i32
    %c0_i32_0 = arith.constant 0 : i32
    %c0_i32_1 = arith.constant 0 : i32
    return %c0_i32, %c0_i32_0 : i32, i32
  }
  func.func @transform_7(%arg0: i32) -> (i32, i32) {
    %c0_i32 = arith.constant 0 : i32
    %c0_i32_0 = arith.constant 0 : i32
    %c0_i32_1 = arith.constant 0 : i32
    return %c0_i32, %c0_i32_0 : i32, i32
  }
  func.func @transform_8(%arg0: i32) -> (i32, i32) {
    %c0_i32 = arith.constant 0 : i32
    %c0_i32_0 = arith.constant 0 : i32
    %c0_i32_1 = arith.constant 0 : i32
    return %c0_i32, %c0_i32_0 : i32, i32
  }
  func.func @transform_9(%arg0: i32) -> (i32, i32) {
    %c0_i32 = arith.constant 0 : i32
    %c0_i32_0 = arith.constant 0 : i32
    %c0_i32_1 = arith.constant 0 : i32
    return %c0_i32, %c0_i32_0 : i32, i32
  }
  func.func @transform_10(%arg0: i32) -> (i32, i32) {
    %c0_i32 = arith.constant 0 : i32
    %c0_i32_0 = arith.constant 0 : i32
    %c0_i32_1 = arith.constant 0 : i32
    return %c0_i32, %c0_i32_0 : i32, i32
  }
  func.func @transform_11(%arg0: i32) -> (i32, i32) {
    %c0_i32 = arith.constant 0 : i32
    %c0_i32_0 = arith.constant 0 : i32
    %c0_i32_1 = arith.constant 0 : i32
    return %c0_i32, %c0_i32_0 : i32, i32
  }
  func.func @transform_12(%arg0: i32) -> (i32, i32) {
    %c0_i32 = arith.constant 0 : i32
    %c0_i32_0 = arith.constant 0 : i32
    %c0_i32_1 = arith.constant 0 : i32
    return %c0_i32, %c0_i32_0 : i32, i32
  }
  func.func @transform_13(%arg0: i32) -> (i32, i32) {
    %c0_i32 = arith.constant 0 : i32
    %c0_i32_0 = arith.constant 0 : i32
    %c0_i32_1 = arith.constant 0 : i32
    return %c0_i32, %c0_i32_0 : i32, i32
  }
  func.func @transform_14(%arg0: i32) -> (i32, i32, i32) {
    %c0_i32 = arith.constant 0 : i32
    %c0_i32_0 = arith.constant 0 : i32
    %c0_i32_1 = arith.constant 0 : i32
    return %arg0, %c0_i32, %c0_i32_0 : i32, i32, i32
  }
}

</mosaic_0001>

<llo_original>
// kernel: coupling_layer_forward.1
$region0: #{coupling_layer_forward.1}
  #allocation0 [shape = 'u32[]', space=smem, size = 0x4, offset = 0x4, fixed_abs, tag = 'smem constant byte address 0x4 - core index']
  #allocation1 [shape = 'u32[144,128]{1,0:T(1,128)}', space=vmem, size = 0x12000, scoped, tag = 'internal scratch']
  %s0 = inlined_call_operand.vmem [shape: f32[2,496,4], index: 0, kind: input, shape index: {}]
  %s1 = inlined_call_operand.vmem [shape: f32[432,1], index: 1, kind: input, shape index: {}]
  %s2 = inlined_call_operand.vmem [shape: bf16[18,4], index: 2, kind: input, shape index: {}]
  %s3 = inlined_call_operand.vmem [shape: f32[1,4], index: 3, kind: input, shape index: {}]
  %s4 = inlined_call_operand.vmem [shape: bf16[4,4], index: 4, kind: input, shape index: {}]
  %s5 = inlined_call_operand.vmem [shape: f32[1,4], index: 5, kind: input, shape index: {}]
  %s6 = inlined_call_operand.vmem [shape: bf16[36,4], index: 6, kind: input, shape index: {}]
  %s7 = inlined_call_operand.vmem [shape: f32[1,4], index: 7, kind: input, shape index: {}]
  %s8 = inlined_call_operand.vmem [shape: bf16[18,4], index: 8, kind: input, shape index: {}]
  %s9 = inlined_call_operand.vmem [shape: f32[1,4], index: 9, kind: input, shape index: {}]
  %s10 = inlined_call_operand.vmem [shape: bf16[4,4], index: 10, kind: input, shape index: {}]
  %s11 = inlined_call_operand.vmem [shape: f32[1,4], index: 11, kind: input, shape index: {}]
  %s12 = inlined_call_operand.vmem [shape: bf16[36,4], index: 12, kind: input, shape index: {}]
  %s13 = inlined_call_operand.vmem [shape: f32[1,4], index: 13, kind: input, shape index: {}]
  %s14 = inlined_call_operand.vmem [shape: f32[2,432,4], index: 14, kind: output, shape index: {}]
  %s15 = sld [smem:[#allocation0]]
  $region89: #{coupling_layer_forward.1} parent=0
    _
  %s17 = ssub.s32 1, %s15
  %s18 = scalar_select 0, %s17, %s15
  loop: start=0, step=1, limit=4
  $region2: #{coupling_layer_forward.1} parent=0 // loop_pre_header
    _
  $region3: #{coupling_layer_forward.1} parent=0 // loop_header
    %s20 = sphi 0, %s24
    %p21 = scmp.ge.s32.totalorder %s20, 4
    %s30 = sphi 0, %s32
    %s33 = sphi 0, %s30
    %s34 = sphi 0, %s33
    %s50 = sphi 0, %s34
    %s54 = sphi 0, %s54
    %s56 = sphi 0, %s54
    %s57 = sphi 0, %s56
    %s71 = sphi 0, %s57
    %s75 = sphi 0, %s75
    %s77 = sphi 0, %s75
    %s78 = sphi 0, %s77
    %s92 = sphi 0, %s78
    %s96 = sphi 0, %s96
    %s98 = sphi 0, %s96
    %s99 = sphi 0, %s98
    %s113 = sphi 0, %s99
    %s117 = sphi 0, %s117
    %s119 = sphi 0, %s117
    %s120 = sphi 0, %s119
    %s134 = sphi 0, %s120
    %s138 = sphi 0, %s138
    %s140 = sphi 0, %s138
    %s141 = sphi 0, %s140
    %s155 = sphi 0, %s141
    %s159 = sphi 0, %s159
    %s161 = sphi 0, %s159
    %s162 = sphi 0, %s161
    %s176 = sphi 0, %s162
    %s180 = sphi 0, %s180
    %s182 = sphi 0, %s180
    %s183 = sphi 0, %s182
    %s197 = sphi 0, %s183
    %s201 = sphi 0, %s201
    %s203 = sphi 0, %s201
    %s204 = sphi 0, %s203
    %s218 = sphi 0, %s204
    %s222 = sphi 0, %s222
    %s224 = sphi 0, %s222
    %s225 = sphi 0, %s224
    %s239 = sphi 0, %s225
    %s243 = sphi 0, %s243
    %s245 = sphi 0, %s243
    %s246 = sphi 0, %s245
    %s260 = sphi 0, %s246
    %s264 = sphi 0, %s264
    %s266 = sphi 0, %s264
    %s267 = sphi 0, %s266
    %s281 = sphi 0, %s267
    %s285 = sphi 0, %s285
    %s287 = sphi 0, %s285
    %s288 = sphi 0, %s287
    %s302 = sphi 0, %s288
    %s306 = sphi 0, %s306
    %s308 = sphi 0, %s306
    %s309 = sphi 0, %s308
    %s323 = sphi 0, %s309
    %s329 = sphi 0, %s331
    %s332 = sphi 0, %s329
    %s333 = sphi 0, %s332
    %s349 = sphi 0, %s333
  $region4: #{coupling_layer_forward.1} parent=0 // loop_header_branch
    %23 = sbr.rel (%p21) target = $region8
  $region5: #{coupling_layer_forward.1} parent=0 // loop_body
    %s25 = ssub.s32 %s20, 1
    %s26 = ssub.s32 %s20, 2
    %s27 = sadd.s32 %s20, 1
    %s28 = ssub.s32 %s20, %s27
    %p29 = scmp.eq.s32.totalorder %s28, 0
    %s31 = sadd.s32 %s30, 1
    %s32 = scalar_select %p29, %s30, %s31
    %p35 = pneg %p29
    %p36 = scmp.eq.s32.totalorder %s20, 1
    %p37 = por %p35, %p36
    %p38 = scmp.ne.s32.totalorder %s30, %s33
    %p39 = scmp.eq.s32.totalorder %s20, 0
    %p40 = por %p38, %p39
    %p41 = scmp.ne.s32.totalorder %s30, %s33
    %p42 = scmp.eq.s32.totalorder %s25, 1
    %p43 = por %p41, %p42
    %p44 = scmp.ne.s32.totalorder %s33, %s34
    %p45 = scmp.eq.s32.totalorder %s25, 0
    %p46 = por %p44, %p45
    %p47 = scmp.ne.s32.totalorder %s33, %s34
    %p48 = scmp.eq.s32.totalorder %s26, 1
    %p49 = por %p47, %p48
    %p51 = scmp.ne.s32.totalorder %s34, %s50
    %p52 = scmp.eq.s32.totalorder %s26, 0
    %p53 = por %p51, %p52
    %s55 = sadd.s32 %s54, 1
    %p58 = scmp.eq.s32.totalorder %s20, 1
    %p59 = scmp.ne.s32.totalorder %s54, %s56
    %p60 = scmp.eq.s32.totalorder %s20, 0
    %p61 = por %p59, %p60
    %p62 = scmp.ne.s32.totalorder %s54, %s56
    %p63 = scmp.eq.s32.totalorder %s25, 1
    %p64 = por %p62, %p63
    %p65 = scmp.ne.s32.totalorder %s56, %s57
    %p66 = scmp.eq.s32.totalorder %s25, 0
    %p67 = por %p65, %p66
    %p68 = scmp.ne.s32.totalorder %s56, %s57
    %p69 = scmp.eq.s32.totalorder %s26, 1
    %p70 = por %p68, %p69
    %p72 = scmp.ne.s32.totalorder %s57, %s71
    %p73 = scmp.eq.s32.totalorder %s26, 0
    %p74 = por %p72, %p73
    %s76 = sadd.s32 %s75, 1
    %p79 = scmp.eq.s32.totalorder %s20, 1
    %p80 = scmp.ne.s32.totalorder %s75, %s77
    %p81 = scmp.eq.s32.totalorder %s20, 0
    %p82 = por %p80, %p81
    %p83 = scmp.ne.s32.totalorder %s75, %s77
    %p84 = scmp.eq.s32.totalorder %s25, 1
    %p85 = por %p83, %p84
    %p86 = scmp.ne.s32.totalorder %s77, %s78
    %p87 = scmp.eq.s32.totalorder %s25, 0
    %p88 = por %p86, %p87
    %p89 = scmp.ne.s32.totalorder %s77, %s78
    %p90 = scmp.eq.s32.totalorder %s26, 1
    %p91 = por %p89, %p90
    %p93 = scmp.ne.s32.totalorder %s78, %s92
    %p94 = scmp.eq.s32.totalorder %s26, 0
    %p95 = por %p93, %p94
    %s97 = sadd.s32 %s96, 1
    %p100 = scmp.eq.s32.totalorder %s20, 1
    %p101 = scmp.ne.s32.totalorder %s96, %s98
    %p102 = scmp.eq.s32.totalorder %s20, 0
    %p103 = por %p101, %p102
    %p104 = scmp.ne.s32.totalorder %s96, %s98
    %p105 = scmp.eq.s32.totalorder %s25, 1
    %p106 = por %p104, %p105
    %p107 = scmp.ne.s32.totalorder %s98, %s99
    %p108 = scmp.eq.s32.totalorder %s25, 0
    %p109 = por %p107, %p108
    %p110 = scmp.ne.s32.totalorder %s98, %s99
    %p111 = scmp.eq.s32.totalorder %s26, 1
    %p112 = por %p110, %p111
    %p114 = scmp.ne.s32.totalorder %s99, %s113
    %p115 = scmp.eq.s32.totalorder %s26, 0
    %p116 = por %p114, %p115
    %s118 = sadd.s32 %s117, 1
    %p121 = scmp.eq.s32.totalorder %s20, 1
    %p122 = scmp.ne.s32.totalorder %s117, %s119
    %p123 = scmp.eq.s32.totalorder %s20, 0
    %p124 = por %p122, %p123
    %p125 = scmp.ne.s32.totalorder %s117, %s119
    %p126 = scmp.eq.s32.totalorder %s25, 1
    %p127 = por %p125, %p126
    %p128 = scmp.ne.s32.totalorder %s119, %s120
    %p129 = scmp.eq.s32.totalorder %s25, 0
    %p130 = por %p128, %p129
    %p131 = scmp.ne.s32.totalorder %s119, %s120
    %p132 = scmp.eq.s32.totalorder %s26, 1
    %p133 = por %p131, %p132
    %p135 = scmp.ne.s32.totalorder %s120, %s134
    %p136 = scmp.eq.s32.totalorder %s26, 0
    %p137 = por %p135, %p136
    %s139 = sadd.s32 %s138, 1
    %p142 = scmp.eq.s32.totalorder %s20, 1
    %p143 = scmp.ne.s32.totalorder %s138, %s140
    %p144 = scmp.eq.s32.totalorder %s20, 0
    %p145 = por %p143, %p144
    %p146 = scmp.ne.s32.totalorder %s138, %s140
    %p147 = scmp.eq.s32.totalorder %s25, 1
    %p148 = por %p146, %p147
    %p149 = scmp.ne.s32.totalorder %s140, %s141
    %p150 = scmp.eq.s32.totalorder %s25, 0
    %p151 = por %p149, %p150
    %p152 = scmp.ne.s32.totalorder %s140, %s141
    %p153 = scmp.eq.s32.totalorder %s26, 1
    %p154 = por %p152, %p153
    %p156 = scmp.ne.s32.totalorder %s141, %s155
    %p157 = scmp.eq.s32.totalorder %s26, 0
    %p158 = por %p156, %p157
    %s160 = sadd.s32 %s159, 1
    %p163 = scmp.eq.s32.totalorder %s20, 1
    %p164 = scmp.ne.s32.totalorder %s159, %s161
    %p165 = scmp.eq.s32.totalorder %s20, 0
    %p166 = por %p164, %p165
    %p167 = scmp.ne.s32.totalorder %s159, %s161
    %p168 = scmp.eq.s32.totalorder %s25, 1
    %p169 = por %p167, %p168
    %p170 = scmp.ne.s32.totalorder %s161, %s162
    %p171 = scmp.eq.s32.totalorder %s25, 0
    %p172 = por %p170, %p171
    %p173 = scmp.ne.s32.totalorder %s161, %s162
    %p174 = scmp.eq.s32.totalorder %s26, 1
    %p175 = por %p173, %p174
    %p177 = scmp.ne.s32.totalorder %s162, %s176
    %p178 = scmp.eq.s32.totalorder %s26, 0
    %p179 = por %p177, %p178
    %s181 = sadd.s32 %s180, 1
    %p184 = scmp.eq.s32.totalorder %s20, 1
    %p185 = scmp.ne.s32.totalorder %s180, %s182
    %p186 = scmp.eq.s32.totalorder %s20, 0
    %p187 = por %p185, %p186
    %p188 = scmp.ne.s32.totalorder %s180, %s182
    %p189 = scmp.eq.s32.totalorder %s25, 1
    %p190 = por %p188, %p189
    %p191 = scmp.ne.s32.totalorder %s182, %s183
    %p192 = scmp.eq.s32.totalorder %s25, 0
    %p193 = por %p191, %p192
    %p194 = scmp.ne.s32.totalorder %s182, %s183
    %p195 = scmp.eq.s32.totalorder %s26, 1
    %p196 = por %p194, %p195
    %p198 = scmp.ne.s32.totalorder %s183, %s197
    %p199 = scmp.eq.s32.totalorder %s26, 0
    %p200 = por %p198, %p199
    %s202 = sadd.s32 %s201, 1
    %p205 = scmp.eq.s32.totalorder %s20, 1
    %p206 = scmp.ne.s32.totalorder %s201, %s203
    %p207 = scmp.eq.s32.totalorder %s20, 0
    %p208 = por %p206, %p207
    %p209 = scmp.ne.s32.totalorder %s201, %s203
    %p210 = scmp.eq.s32.totalorder %s25, 1
    %p211 = por %p209, %p210
    %p212 = scmp.ne.s32.totalorder %s203, %s204
    %p213 = scmp.eq.s32.totalorder %s25, 0
    %p214 = por %p212, %p213
    %p215 = scmp.ne.s32.totalorder %s203, %s204
    %p216 = scmp.eq.s32.totalorder %s26, 1
    %p217 = por %p215, %p216
    %p219 = scmp.ne.s32.totalorder %s204, %s218
    %p220 = scmp.eq.s32.totalorder %s26, 0
    %p221 = por %p219, %p220
    %s223 = sadd.s32 %s222, 1
    %p226 = scmp.eq.s32.totalorder %s20, 1
    %p227 = scmp.ne.s32.totalorder %s222, %s224
    %p228 = scmp.eq.s32.totalorder %s20, 0
    %p229 = por %p227, %p228
    %p230 = scmp.ne.s32.totalorder %s222, %s224
    %p231 = scmp.eq.s32.totalorder %s25, 1
    %p232 = por %p230, %p231
    %p233 = scmp.ne.s32.totalorder %s224, %s225
    %p234 = scmp.eq.s32.totalorder %s25, 0
    %p235 = por %p233, %p234
    %p236 = scmp.ne.s32.totalorder %s224, %s225
    %p237 = scmp.eq.s32.totalorder %s26, 1
    %p238 = por %p236, %p237
    %p240 = scmp.ne.s32.totalorder %s225, %s239
    %p241 = scmp.eq.s32.totalorder %s26, 0
    %p242 = por %p240, %p241
    %s244 = sadd.s32 %s243, 1
    %p247 = scmp.eq.s32.totalorder %s20, 1
    %p248 = scmp.ne.s32.totalorder %s243, %s245
    %p249 = scmp.eq.s32.totalorder %s20, 0
    %p250 = por %p248, %p249
    %p251 = scmp.ne.s32.totalorder %s243, %s245
    %p252 = scmp.eq.s32.totalorder %s25, 1
    %p253 = por %p251, %p252
    %p254 = scmp.ne.s32.totalorder %s245, %s246
    %p255 = scmp.eq.s32.totalorder %s25, 0
    %p256 = por %p254, %p255
    %p257 = scmp.ne.s32.totalorder %s245, %s246
    %p258 = scmp.eq.s32.totalorder %s26, 1
    %p259 = por %p257, %p258
    %p261 = scmp.ne.s32.totalorder %s246, %s260
    %p262 = scmp.eq.s32.totalorder %s26, 0
    %p263 = por %p261, %p262
    %s265 = sadd.s32 %s264, 1
    %p268 = scmp.eq.s32.totalorder %s20, 1
    %p269 = scmp.ne.s32.totalorder %s264, %s266
    %p270 = scmp.eq.s32.totalorder %s20, 0
    %p271 = por %p269, %p270
    %p272 = scmp.ne.s32.totalorder %s264, %s266
    %p273 = scmp.eq.s32.totalorder %s25, 1
    %p274 = por %p272, %p273
    %p275 = scmp.ne.s32.totalorder %s266, %s267
    %p276 = scmp.eq.s32.totalorder %s25, 0
    %p277 = por %p275, %p276
    %p278 = scmp.ne.s32.totalorder %s266, %s267
    %p279 = scmp.eq.s32.totalorder %s26, 1
    %p280 = por %p278, %p279
    %p282 = scmp.ne.s32.totalorder %s267, %s281
    %p283 = scmp.eq.s32.totalorder %s26, 0
    %p284 = por %p282, %p283
    %s286 = sadd.s32 %s285, 1
    %p289 = scmp.eq.s32.totalorder %s20, 1
    %p290 = scmp.ne.s32.totalorder %s285, %s287
    %p291 = scmp.eq.s32.totalorder %s20, 0
    %p292 = por %p290, %p291
    %p293 = scmp.ne.s32.totalorder %s285, %s287
    %p294 = scmp.eq.s32.totalorder %s25, 1
    %p295 = por %p293, %p294
    %p296 = scmp.ne.s32.totalorder %s287, %s288
    %p297 = scmp.eq.s32.totalorder %s25, 0
    %p298 = por %p296, %p297
    %p299 = scmp.ne.s32.totalorder %s287, %s288
    %p300 = scmp.eq.s32.totalorder %s26, 1
    %p301 = por %p299, %p300
    %p303 = scmp.ne.s32.totalorder %s288, %s302
    %p304 = scmp.eq.s32.totalorder %s26, 0
    %p305 = por %p303, %p304
    %s307 = sadd.s32 %s306, 1
    %p310 = scmp.eq.s32.totalorder %s20, 1
    %p311 = scmp.ne.s32.totalorder %s306, %s308
    %p312 = scmp.eq.s32.totalorder %s20, 0
    %p313 = por %p311, %p312
    %p314 = scmp.ne.s32.totalorder %s306, %s308
    %p315 = scmp.eq.s32.totalorder %s25, 1
    %p316 = por %p314, %p315
    %p317 = scmp.ne.s32.totalorder %s308, %s309
    %p318 = scmp.eq.s32.totalorder %s25, 0
    %p319 = por %p317, %p318
    %p320 = scmp.ne.s32.totalorder %s308, %s309
    %p321 = scmp.eq.s32.totalorder %s26, 1
    %p322 = por %p320, %p321
    %p324 = scmp.ne.s32.totalorder %s309, %s323
    %p325 = scmp.eq.s32.totalorder %s26, 0
    %p326 = por %p324, %p325
    %s327 = ssub.s32 %s20, %s27
    %p328 = scmp.eq.s32.totalorder %s327, 0
    %s330 = sadd.s32 %s329, 1
    %s331 = scalar_select %p328, %s329, %s330
    %p334 = pneg %p328
    %p335 = scmp.eq.s32.totalorder %s20, 1
    %p336 = por %p334, %p335
    %p337 = scmp.ne.s32.totalorder %s329, %s332
    %p338 = scmp.eq.s32.totalorder %s20, 0
    %p339 = por %p337, %p338
    %p340 = scmp.ne.s32.totalorder %s329, %s332
    %p341 = scmp.eq.s32.totalorder %s25, 1
    %p342 = por %p340, %p341
    %p343 = scmp.ne.s32.totalorder %s332, %s333
    %p344 = scmp.eq.s32.totalorder %s25, 0
    %p345 = por %p343, %p344
    %p346 = scmp.ne.s32.totalorder %s332, %s333
    %p347 = scmp.eq.s32.totalorder %s26, 1
    %p348 = por %p346, %p347
    %p350 = scmp.ne.s32.totalorder %s333, %s349
    %p351 = scmp.eq.s32.totalorder %s26, 0
    %p352 = por %p350, %p351
    %p353 = scmp.le.s32.totalorder 1, %s20
    %p354 = scmp.lt.s32.totalorder %s20, 3
    %p355 = pnand %p353, %p354
    %p356 = pneg %p355
    // Predicated region
    $region9: #{coupling_layer_forward.1} parent=5 // pred_check
      _
    $region10: #{coupling_layer_forward.1} parent=5 // pred_check_branch
      %358 = sbr.rel (%p355) target = $region12
    $region11: #{coupling_layer_forward.1} parent=5 // pred_region
      %s359 = ssub.s32 %s20, 1
      // Predicated region
      $region13: #{coupling_layer_forward.1} parent=11 // pred_check
        %p360 = pneg %p67
      $region14: #{coupling_layer_forward.1} parent=11 // pred_check_branch
        %362 = sbr.rel (%p360) target = $region16
      $region15: #{coupling_layer_forward.1} parent=11 // pred_region
        _
      $region16: #{coupling_layer_forward.1} parent=11 // pred_fallthru
        _
      // Predicated region
      $region17: #{coupling_layer_forward.1} parent=11 // pred_check
        %p363 = pneg %p88
      $region18: #{coupling_layer_forward.1} parent=11 // pred_check_branch
        %365 = sbr.rel (%p363) target = $region20
      $region19: #{coupling_layer_forward.1} parent=11 // pred_region
        _
      $region20: #{coupling_layer_forward.1} parent=11 // pred_fallthru
        _
      // Predicated region
      $region21: #{coupling_layer_forward.1} parent=11 // pred_check
        %p366 = pneg %p109
      $region22: #{coupling_layer_forward.1} parent=11 // pred_check_branch
        %368 = sbr.rel (%p366) target = $region24
      $region23: #{coupling_layer_forward.1} parent=11 // pred_region
        _
      $region24: #{coupling_layer_forward.1} parent=11 // pred_fallthru
        _
      // Predicated region
      $region25: #{coupling_layer_forward.1} parent=11 // pred_check
        %p369 = pneg %p130
      $region26: #{coupling_layer_forward.1} parent=11 // pred_check_branch
        %371 = sbr.rel (%p369) target = $region28
      $region27: #{coupling_layer_forward.1} parent=11 // pred_region
        _
      $region28: #{coupling_layer_forward.1} parent=11 // pred_fallthru
        _
      // Predicated region
      $region29: #{coupling_layer_forward.1} parent=11 // pred_check
        %p372 = pneg %p151
      $region30: #{coupling_layer_forward.1} parent=11 // pred_check_branch
        %374 = sbr.rel (%p372) target = $region32
      $region31: #{coupling_layer_forward.1} parent=11 // pred_region
        _
      $region32: #{coupling_layer_forward.1} parent=11 // pred_fallthru
        _
      // Predicated region
      $region33: #{coupling_layer_forward.1} parent=11 // pred_check
        %p375 = pneg %p172
      $region34: #{coupling_layer_forward.1} parent=11 // pred_check_branch
        %377 = sbr.rel (%p375) target = $region36
      $region35: #{coupling_layer_forward.1} parent=11 // pred_region
        _
      $region36: #{coupling_layer_forward.1} parent=11 // pred_fallthru
        _
      // Predicated region
      $region37: #{coupling_layer_forward.1} parent=11 // pred_check
        %p378 = pneg %p193
      $region38: #{coupling_layer_forward.1} parent=11 // pred_check_branch
        %380 = sbr.rel (%p378) target = $region40
      $region39: #{coupling_layer_forward.1} parent=11 // pred_region
        _
      $region40: #{coupling_layer_forward.1} parent=11 // pred_fallthru
        _
      // Predicated region
      $region41: #{coupling_layer_forward.1} parent=11 // pred_check
        %p381 = pneg %p214
      $region42: #{coupling_layer_forward.1} parent=11 // pred_check_branch
        %383 = sbr.rel (%p381) target = $region44
      $region43: #{coupling_layer_forward.1} parent=11 // pred_region
        _
      $region44: #{coupling_layer_forward.1} parent=11 // pred_fallthru
        _
      // Predicated region
      $region45: #{coupling_layer_forward.1} parent=11 // pred_check
        %p384 = pneg %p235
      $region46: #{coupling_layer_forward.1} parent=11 // pred_check_branch
        %386 = sbr.rel (%p384) target = $region48
      $region47: #{coupling_layer_forward.1} parent=11 // pred_region
        _
      $region48: #{coupling_layer_forward.1} parent=11 // pred_fallthru
        _
      // Predicated region
      $region49: #{coupling_layer_forward.1} parent=11 // pred_check
        %p387 = pneg %p256
      $region50: #{coupling_layer_forward.1} parent=11 // pred_check_branch
        %389 = sbr.rel (%p387) target = $region52
      $region51: #{coupling_layer_forward.1} parent=11 // pred_region
        _
      $region52: #{coupling_layer_forward.1} parent=11 // pred_fallthru
        _
      // Predicated region
      $region53: #{coupling_layer_forward.1} parent=11 // pred_check
        %p390 = pneg %p277
      $region54: #{coupling_layer_forward.1} parent=11 // pred_check_branch
        %392 = sbr.rel (%p390) target = $region56
      $region55: #{coupling_layer_forward.1} parent=11 // pred_region
        _
      $region56: #{coupling_layer_forward.1} parent=11 // pred_fallthru
        _
      // Predicated region
      $region57: #{coupling_layer_forward.1} parent=11 // pred_check
        %p393 = pneg %p298
      $region58: #{coupling_layer_forward.1} parent=11 // pred_check_branch
        %395 = sbr.rel (%p393) target = $region60
      $region59: #{coupling_layer_forward.1} parent=11 // pred_region
        _
      $region60: #{coupling_layer_forward.1} parent=11 // pred_fallthru
        _
      // Predicated region
      $region61: #{coupling_layer_forward.1} parent=11 // pred_check
        %p396 = pneg %p319
      $region62: #{coupling_layer_forward.1} parent=11 // pred_check_branch
        %398 = sbr.rel (%p396) target = $region64
      $region63: #{coupling_layer_forward.1} parent=11 // pred_region
        _
      $region64: #{coupling_layer_forward.1} parent=11 // pred_fallthru
        _
    $region12: #{coupling_layer_forward.1} parent=5 // pred_fallthru
      _
    %p399 = scmp.lt.s32.totalorder %s20, 2
    // Predicated region
    $region65: #{coupling_layer_forward.1} parent=5 // pred_check
      %p400 = pneg %p399
    $region66: #{coupling_layer_forward.1} parent=5 // pred_check_branch
      %402 = sbr.rel (%p400) target = $region68
    $region67: #{coupling_layer_forward.1} parent=5 // pred_region
      // Predicated region
      $region69: #{coupling_layer_forward.1} parent=67 // pred_check
        %p403 = pneg %p40
      $region70: #{coupling_layer_forward.1} parent=67 // pred_check_branch
        %405 = sbr.rel (%p403) target = $region72
      $region71: #{coupling_layer_forward.1} parent=67 // pred_region
        %p406 = scmp.lt.s32.totalorder %s20, 1
        %s407 = scalar_select %p406, %s20, 1
        %s408 = smul.addr %s407, 62
        %s409 = smul.addr %s408, 8
        %s410 = scalar_lea.vmem %s0, %s409
      $region72: #{coupling_layer_forward.1} parent=67 // pred_fallthru
        _
    $region68: #{coupling_layer_forward.1} parent=5 // pred_fallthru
      _
    %p411 = scmp.le.s32.totalorder 1, %s20
    %p412 = scmp.lt.s32.totalorder %s20, 3
    %p413 = pnand %p411, %p412
    %p414 = pneg %p413
    // Predicated region
    $region73: #{coupling_layer_forward.1} parent=5 // pred_check
      _
    $region74: #{coupling_layer_forward.1} parent=5 // pred_check_branch
      %416 = sbr.rel (%p413) target = $region76
    $region75: #{coupling_layer_forward.1} parent=5 // pred_region
      %s417 = ssub.s32 %s20, 1
      %p418 = scmp.lt.s32.totalorder %s25, 1
      %s419 = scalar_select %p418, %s25, 1
      %s420 = smul.addr %s419, 62
      %s421 = smul.addr %s420, 8
      %s422 = scalar_lea.vmem %s0, %s421
      %p423 = pneg %p46
      %p424 = pneg %p43
      %p425 = pneg %p67
      %p426 = pneg %p64
      %p427 = pneg %p88
      %p428 = pneg %p85
      %p429 = pneg %p109
      %p430 = pneg %p106
      %p431 = pneg %p130
      %p432 = pneg %p127
      %p433 = pneg %p151
      %p434 = pneg %p148
      %p435 = pneg %p172
      %p436 = pneg %p169
      %p437 = pneg %p193
      %p438 = pneg %p190
      %p439 = pneg %p214
      %p440 = pneg %p211
      %p441 = pneg %p235
      %p442 = pneg %p232
      %p443 = pneg %p256
      %p444 = pneg %p253
      %p445 = pneg %p277
      %p446 = pneg %p274
      %p447 = pneg %p298
      %p448 = pneg %p295
      %p449 = pneg %p319
      %p450 = pneg %p316
      %p451 = pneg %p345
      %p452 = pneg %p342
      %p453 = scmp.lt.s32.totalorder %s25, 1
      %s454 = scalar_select %p453, %s25, 1
      %s455 = smul.addr %s454, 54
      %s456 = smul.addr %s455, 8
      %s457 = scalar_lea.vmem %s14, %s456
      %p458 = scmp.lt.s32.totalorder %s25, 1
      %s459 = scalar_select %p458, %s25, 1
      %s460 = smul.addr %s459, 62
      %s461 = smul.addr %s460, 8
      %s462 = scalar_lea.vmem %s0, %s461
      %p463 = scmp.lt.s32.totalorder %s25, 1
      %s464 = scalar_select %p463, %s25, 1
      %s465 = smul.addr %s464, 54
      %s466 = smul.addr %s465, 8
      %s467 = scalar_lea.vmem %s14, %s466
      %v469 = vld [vmem:[%s1] sm:$0xff]
      %v470 = vld [vmem:[%s1 + $0x8] sm:$0xff]
      %v471 = vld [vmem:[%s1 + $0x10] sm:$0xff]
      %v472 = vld [vmem:[%s1 + $0x18] sm:$0xff]
      %v473 = vld [vmem:[%s1 + $0x20] sm:$0xff]
      %v474 = vld [vmem:[%s1 + $0x28] sm:$0xff]
      %v475 = vld [vmem:[%s1 + $0x30] sm:$0xff]
      %v476 = vld [vmem:[%s1 + $0x38] sm:$0xff]
      %v477 = vld [vmem:[%s1 + $0x40] sm:$0xff]
      %v478 = vld [vmem:[%s1 + $0x48] sm:$0xff]
      %v479 = vld [vmem:[%s1 + $0x50] sm:$0xff]
      %v480 = vld [vmem:[%s1 + $0x58] sm:$0xff]
      %v481 = vld [vmem:[%s1 + $0x60] sm:$0xff]
      %v482 = vld [vmem:[%s1 + $0x68] sm:$0xff]
      %v483 = vld [vmem:[%s1 + $0x70] sm:$0xff]
      %v484 = vld [vmem:[%s1 + $0x78] sm:$0xff]
      %v485 = vld [vmem:[%s1 + $0x80] sm:$0xff]
      %v486 = vld [vmem:[%s1 + $0x88] sm:$0xff]
      %v487 = vld [vmem:[%s1 + $0x90] sm:$0xff]
      %v488 = vld [vmem:[%s1 + $0x98] sm:$0xff]
      %v489 = vld [vmem:[%s1 + $0xa0] sm:$0xff]
      %v490 = vld [vmem:[%s1 + $0xa8] sm:$0xff]
      %v491 = vld [vmem:[%s1 + $0xb0] sm:$0xff]
      %v492 = vld [vmem:[%s1 + $0xb8] sm:$0xff]
      %v493 = vld [vmem:[%s1 + $0xc0] sm:$0xff]
      %v494 = vld [vmem:[%s1 + $0xc8] sm:$0xff]
      %v495 = vld [vmem:[%s1 + $0xd0] sm:$0xff]
      %v496 = vld [vmem:[%s1 + $0xd8] sm:$0xff]
      %v497 = vld [vmem:[%s1 + $0xe0] sm:$0xff]
      %v498 = vld [vmem:[%s1 + $0xe8] sm:$0xff]
      %v499 = vld [vmem:[%s1 + $0xf0] sm:$0xff]
      %v500 = vld [vmem:[%s1 + $0xf8] sm:$0xff]
      %v501 = vld [vmem:[%s1 + $0x100] sm:$0xff]
      %v502 = vld [vmem:[%s1 + $0x108] sm:$0xff]
      %v503 = vld [vmem:[%s1 + $0x110] sm:$0xff]
      %v504 = vld [vmem:[%s1 + $0x118] sm:$0xff]
      %v505 = vld [vmem:[%s1 + $0x120] sm:$0xff]
      %v506 = vld [vmem:[%s1 + $0x128] sm:$0xff]
      %v507 = vld [vmem:[%s1 + $0x130] sm:$0xff]
      %v508 = vld [vmem:[%s1 + $0x138] sm:$0xff]
      %v509 = vld [vmem:[%s1 + $0x140] sm:$0xff]
      %v510 = vld [vmem:[%s1 + $0x148] sm:$0xff]
      %v511 = vld [vmem:[%s1 + $0x150] sm:$0xff]
      %v512 = vld [vmem:[%s1 + $0x158] sm:$0xff]
      %v513 = vld [vmem:[%s1 + $0x160] sm:$0xff]
      %v514 = vld [vmem:[%s1 + $0x168] sm:$0xff]
      %v515 = vld [vmem:[%s1 + $0x170] sm:$0xff]
      %v516 = vld [vmem:[%s1 + $0x178] sm:$0xff]
      %v517 = vld [vmem:[%s1 + $0x180] sm:$0xff]
      %v518 = vld [vmem:[%s1 + $0x188] sm:$0xff]
      %v519 = vld [vmem:[%s1 + $0x190] sm:$0xff]
      %v520 = vld [vmem:[%s1 + $0x198] sm:$0xff]
      %v521 = vld [vmem:[%s1 + $0x1a0] sm:$0xff]
      %v522 = vld [vmem:[%s1 + $0x1a8] sm:$0xff]
      %vm523 = vcmp.gt.f32.partialorder %v469, 0.5
      %vm524 = vcmp.gt.f32.partialorder %v470, 0.5
      %vm525 = vcmp.gt.f32.partialorder %v471, 0.5
      %vm526 = vcmp.gt.f32.partialorder %v472, 0.5
      %vm527 = vcmp.gt.f32.partialorder %v473, 0.5
      %vm528 = vcmp.gt.f32.partialorder %v474, 0.5
      %vm529 = vcmp.gt.f32.partialorder %v475, 0.5
      %vm530 = vcmp.gt.f32.partialorder %v476, 0.5
      %vm531 = vcmp.gt.f32.partialorder %v477, 0.5
      %vm532 = vcmp.gt.f32.partialorder %v478, 0.5
      %vm533 = vcmp.gt.f32.partialorder %v479, 0.5
      %vm534 = vcmp.gt.f32.partialorder %v480, 0.5
      %vm535 = vcmp.gt.f32.partialorder %v481, 0.5
      %vm536 = vcmp.gt.f32.partialorder %v482, 0.5
      %vm537 = vcmp.gt.f32.partialorder %v483, 0.5
      %vm538 = vcmp.gt.f32.partialorder %v484, 0.5
      %vm539 = vcmp.gt.f32.partialorder %v485, 0.5
      %vm540 = vcmp.gt.f32.partialorder %v486, 0.5
      %vm541 = vcmp.gt.f32.partialorder %v487, 0.5
      %vm542 = vcmp.gt.f32.partialorder %v488, 0.5
      %vm543 = vcmp.gt.f32.partialorder %v489, 0.5
      %vm544 = vcmp.gt.f32.partialorder %v490, 0.5
      %vm545 = vcmp.gt.f32.partialorder %v491, 0.5
      %vm546 = vcmp.gt.f32.partialorder %v492, 0.5
      %vm547 = vcmp.gt.f32.partialorder %v493, 0.5
      %vm548 = vcmp.gt.f32.partialorder %v494, 0.5
      %vm549 = vcmp.gt.f32.partialorder %v495, 0.5
      %vm550 = vcmp.gt.f32.partialorder %v496, 0.5
      %vm551 = vcmp.gt.f32.partialorder %v497, 0.5
      %vm552 = vcmp.gt.f32.partialorder %v498, 0.5
      %vm553 = vcmp.gt.f32.partialorder %v499, 0.5
      %vm554 = vcmp.gt.f32.partialorder %v500, 0.5
      %vm555 = vcmp.gt.f32.partialorder %v501, 0.5
      %vm556 = vcmp.gt.f32.partialorder %v502, 0.5
      %vm557 = vcmp.gt.f32.partialorder %v503, 0.5
      %vm558 = vcmp.gt.f32.partialorder %v504, 0.5
      %vm559 = vcmp.gt.f32.partialorder %v505, 0.5
      %vm560 = vcmp.gt.f32.partialorder %v506, 0.5
      %vm561 = vcmp.gt.f32.partialorder %v507, 0.5
      %vm562 = vcmp.gt.f32.partialorder %v508, 0.5
      %vm563 = vcmp.gt.f32.partialorder %v509, 0.5
      %vm564 = vcmp.gt.f32.partialorder %v510, 0.5
      %vm565 = vcmp.gt.f32.partialorder %v511, 0.5
      %vm566 = vcmp.gt.f32.partialorder %v512, 0.5
      %vm567 = vcmp.gt.f32.partialorder %v513, 0.5
      %vm568 = vcmp.gt.f32.partialorder %v514, 0.5
      %vm569 = vcmp.gt.f32.partialorder %v515, 0.5
      %vm570 = vcmp.gt.f32.partialorder %v516, 0.5
      %vm571 = vcmp.gt.f32.partialorder %v517, 0.5
      %vm572 = vcmp.gt.f32.partialorder %v518, 0.5
      %vm573 = vcmp.gt.f32.partialorder %v519, 0.5
      %vm574 = vcmp.gt.f32.partialorder %v520, 0.5
      %vm575 = vcmp.gt.f32.partialorder %v521, 0.5
      %vm576 = vcmp.gt.f32.partialorder %v522, 0.5
      %v577 = vld [vmem:[%s462] sm:$0xff]
      %v578 = vld [vmem:[%s462 + $0x8] sm:$0xff]
      %v579 = vld [vmem:[%s462 + $0x10] sm:$0xff]
      %v580 = vld [vmem:[%s462 + $0x18] sm:$0xff]
      %v581 = vld [vmem:[%s462 + $0x20] sm:$0xff]
      %v582 = vld [vmem:[%s462 + $0x28] sm:$0xff]
      %v583 = vld [vmem:[%s462 + $0x30] sm:$0xff]
      %v584 = vld [vmem:[%s462 + $0x38] sm:$0xff]
      %v585 = vld [vmem:[%s462 + $0x40] sm:$0xff]
      %v586 = vld [vmem:[%s462 + $0x48] sm:$0xff]
      %v587 = vld [vmem:[%s462 + $0x50] sm:$0xff]
      %v588 = vld [vmem:[%s462 + $0x58] sm:$0xff]
      %v589 = vld [vmem:[%s462 + $0x60] sm:$0xff]
      %v590 = vld [vmem:[%s462 + $0x68] sm:$0xff]
      %v591 = vld [vmem:[%s462 + $0x70] sm:$0xff]
      %v592 = vld [vmem:[%s462 + $0x78] sm:$0xff]
      %v593 = vld [vmem:[%s462 + $0x80] sm:$0xff]
      %v594 = vld [vmem:[%s462 + $0x88] sm:$0xff]
      %v595 = vld [vmem:[%s462 + $0x90] sm:$0xff]
      %v596 = vld [vmem:[%s462 + $0x98] sm:$0xff]
      %v597 = vld [vmem:[%s462 + $0xa0] sm:$0xff]
      %v598 = vld [vmem:[%s462 + $0xa8] sm:$0xff]
      %v599 = vld [vmem:[%s462 + $0xb0] sm:$0xff]
      %v600 = vld [vmem:[%s462 + $0xb8] sm:$0xff]
      %v601 = vld [vmem:[%s462 + $0xc0] sm:$0xff]
      %v602 = vld [vmem:[%s462 + $0xc8] sm:$0xff]
      %v603 = vld [vmem:[%s462 + $0xd0] sm:$0xff]
      %v604 = vld [vmem:[%s462 + $0xd8] sm:$0xff]
      %v605 = vld [vmem:[%s462 + $0xe0] sm:$0xff]
      %v606 = vld [vmem:[%s462 + $0xe8] sm:$0xff]
      %v607 = vld [vmem:[%s462 + $0xf0] sm:$0xff]
      %v608 = vld [vmem:[%s462 + $0xf8] sm:$0xff]
      %v609 = vld [vmem:[%s462 + $0x100] sm:$0xff]
      %v610 = vld [vmem:[%s462 + $0x108] sm:$0xff]
      %v611 = vld [vmem:[%s462 + $0x110] sm:$0xff]
      %v612 = vld [vmem:[%s462 + $0x118] sm:$0xff]
      %v613 = vld [vmem:[%s462 + $0x120] sm:$0xff]
      %v614 = vld [vmem:[%s462 + $0x128] sm:$0xff]
      %v615 = vld [vmem:[%s462 + $0x130] sm:$0xff]
      %v616 = vld [vmem:[%s462 + $0x138] sm:$0xff]
      %v617 = vld [vmem:[%s462 + $0x140] sm:$0xff]
      %v618 = vld [vmem:[%s462 + $0x148] sm:$0xff]
      %v619 = vld [vmem:[%s462 + $0x150] sm:$0xff]
      %v620 = vld [vmem:[%s462 + $0x158] sm:$0xff]
      %v621 = vld [vmem:[%s462 + $0x160] sm:$0xff]
      %v622 = vld [vmem:[%s462 + $0x168] sm:$0xff]
      %v623 = vld [vmem:[%s462 + $0x170] sm:$0xff]
      %v624 = vld [vmem:[%s462 + $0x178] sm:$0xff]
      %v625 = vld [vmem:[%s462 + $0x180] sm:$0xff]
      %v626 = vld [vmem:[%s462 + $0x188] sm:$0xff]
      %v627 = vld [vmem:[%s462 + $0x190] sm:$0xff]
      %v628 = vld [vmem:[%s462 + $0x198] sm:$0xff]
      %v629 = vld [vmem:[%s462 + $0x1a0] sm:$0xff]
      %v630 = vld [vmem:[%s462 + $0x1a8] sm:$0xff]
      %v631 = vld [vmem:[%s462 + $0x1b0] sm:$0xff]
      %v632 = vld [vmem:[%s462 + $0x1b8] sm:$0xff]
      %v633 = vld [vmem:[%s462 + $0x1c0] sm:$0xff]
      %v634 = vld [vmem:[%s462 + $0x1c8] sm:$0xff]
      %v635 = vld [vmem:[%s462 + $0x1d0] sm:$0xff]
      %v636 = vld [vmem:[%s462 + $0x1d8] sm:$0xff]
      %v637 = vld [vmem:[%s462 + $0x1e0] sm:$0xff]
      %v638 = vld [vmem:[%s462 + $0x1e8] sm:$0xff]
      %700 = vrot.lane.b32.xlu0 %v577, 126
      %v701 = vpop.permute.xlu0 %700
      %702 = vrot.lane.b32.xlu0 %v578, 126
      %v703 = vpop.permute.xlu0 %702
      %704 = vrot.lane.b32.xlu0 %v579, 126
      %v705 = vpop.permute.xlu0 %704
      %706 = vrot.lane.b32.xlu0 %v580, 126
      %v707 = vpop.permute.xlu0 %706
      %708 = vrot.lane.b32.xlu0 %v581, 126
      %v709 = vpop.permute.xlu0 %708
      %710 = vrot.lane.b32.xlu0 %v582, 126
      %v711 = vpop.permute.xlu0 %710
      %712 = vrot.lane.b32.xlu0 %v583, 126
      %v713 = vpop.permute.xlu0 %712
      %714 = vrot.lane.b32.xlu0 %v584, 126
      %v715 = vpop.permute.xlu0 %714
      %716 = vrot.lane.b32.xlu0 %v585, 126
      %v717 = vpop.permute.xlu0 %716
      %718 = vrot.lane.b32.xlu0 %v586, 126
      %v719 = vpop.permute.xlu0 %718
      %720 = vrot.lane.b32.xlu0 %v587, 126
      %v721 = vpop.permute.xlu0 %720
      %722 = vrot.lane.b32.xlu0 %v588, 126
      %v723 = vpop.permute.xlu0 %722
      %724 = vrot.lane.b32.xlu0 %v589, 126
      %v725 = vpop.permute.xlu0 %724
      %726 = vrot.lane.b32.xlu0 %v590, 126
      %v727 = vpop.permute.xlu0 %726
      %728 = vrot.lane.b32.xlu0 %v591, 126
      %v729 = vpop.permute.xlu0 %728
      %730 = vrot.lane.b32.xlu0 %v592, 126
      %v731 = vpop.permute.xlu0 %730
      %732 = vrot.lane.b32.xlu0 %v593, 126
      %v733 = vpop.permute.xlu0 %732
      %734 = vrot.lane.b32.xlu0 %v594, 126
      %v735 = vpop.permute.xlu0 %734
      %736 = vrot.lane.b32.xlu0 %v595, 126
      %v737 = vpop.permute.xlu0 %736
      %738 = vrot.lane.b32.xlu0 %v596, 126
      %v739 = vpop.permute.xlu0 %738
      %740 = vrot.lane.b32.xlu0 %v597, 126
      %v741 = vpop.permute.xlu0 %740
      %742 = vrot.lane.b32.xlu0 %v598, 126
      %v743 = vpop.permute.xlu0 %742
      %744 = vrot.lane.b32.xlu0 %v599, 126
      %v745 = vpop.permute.xlu0 %744
      %746 = vrot.lane.b32.xlu0 %v600, 126
      %v747 = vpop.permute.xlu0 %746
      %748 = vrot.lane.b32.xlu0 %v601, 126
      %v749 = vpop.permute.xlu0 %748
      %750 = vrot.lane.b32.xlu0 %v602, 126
      %v751 = vpop.permute.xlu0 %750
      %752 = vrot.lane.b32.xlu0 %v603, 126
      %v753 = vpop.permute.xlu0 %752
      %754 = vrot.lane.b32.xlu0 %v604, 126
      %v755 = vpop.permute.xlu0 %754
      %756 = vrot.lane.b32.xlu0 %v605, 126
      %v757 = vpop.permute.xlu0 %756
      %758 = vrot.lane.b32.xlu0 %v606, 126
      %v759 = vpop.permute.xlu0 %758
      %760 = vrot.lane.b32.xlu0 %v607, 126
      %v761 = vpop.permute.xlu0 %760
      %762 = vrot.lane.b32.xlu0 %v608, 126
      %v763 = vpop.permute.xlu0 %762
      %764 = vrot.lane.b32.xlu0 %v609, 126
      %v765 = vpop.permute.xlu0 %764
      %766 = vrot.lane.b32.xlu0 %v610, 126
      %v767 = vpop.permute.xlu0 %766
      %768 = vrot.lane.b32.xlu0 %v611, 126
      %v769 = vpop.permute.xlu0 %768
      %770 = vrot.lane.b32.xlu0 %v612, 126
      %v771 = vpop.permute.xlu0 %770
      %772 = vrot.lane.b32.xlu0 %v613, 126
      %v773 = vpop.permute.xlu0 %772
      %774 = vrot.lane.b32.xlu0 %v614, 126
      %v775 = vpop.permute.xlu0 %774
      %776 = vrot.lane.b32.xlu0 %v615, 126
      %v777 = vpop.permute.xlu0 %776
      %778 = vrot.lane.b32.xlu0 %v616, 126
      %v779 = vpop.permute.xlu0 %778
      %780 = vrot.lane.b32.xlu0 %v617, 126
      %v781 = vpop.permute.xlu0 %780
      %782 = vrot.lane.b32.xlu0 %v618, 126
      %v783 = vpop.permute.xlu0 %782
      %784 = vrot.lane.b32.xlu0 %v619, 126
      %v785 = vpop.permute.xlu0 %784
      %786 = vrot.lane.b32.xlu0 %v620, 126
      %v787 = vpop.permute.xlu0 %786
      %788 = vrot.lane.b32.xlu0 %v621, 126
      %v789 = vpop.permute.xlu0 %788
      %790 = vrot.lane.b32.xlu0 %v622, 126
      %v791 = vpop.permute.xlu0 %790
      %792 = vrot.lane.b32.xlu0 %v623, 126
      %v793 = vpop.permute.xlu0 %792
      %794 = vrot.lane.b32.xlu0 %v624, 126
      %v795 = vpop.permute.xlu0 %794
      %796 = vrot.lane.b32.xlu0 %v625, 126
      %v797 = vpop.permute.xlu0 %796
      %798 = vrot.lane.b32.xlu0 %v626, 126
      %v799 = vpop.permute.xlu0 %798
      %800 = vrot.lane.b32.xlu0 %v627, 126
      %v801 = vpop.permute.xlu0 %800
      %802 = vrot.lane.b32.xlu0 %v628, 126
      %v803 = vpop.permute.xlu0 %802
      %804 = vrot.lane.b32.xlu0 %v629, 126
      %v805 = vpop.permute.xlu0 %804
      %806 = vrot.lane.b32.xlu0 %v630, 126
      %v807 = vpop.permute.xlu0 %806
      %808 = vrot.lane.b32.xlu0 %v631, 126
      %v809 = vpop.permute.xlu0 %808
      %810 = vrot.lane.b32.xlu0 %v632, 126
      %v811 = vpop.permute.xlu0 %810
      %812 = vrot.lane.b32.xlu0 %v633, 126
      %v813 = vpop.permute.xlu0 %812
      %814 = vrot.lane.b32.xlu0 %v634, 126
      %v815 = vpop.permute.xlu0 %814
      %816 = vrot.lane.b32.xlu0 %v635, 126
      %v817 = vpop.permute.xlu0 %816
      %818 = vrot.lane.b32.xlu0 %v636, 126
      %v819 = vpop.permute.xlu0 %818
      %820 = vrot.lane.b32.xlu0 %v637, 126
      %v821 = vpop.permute.xlu0 %820
      %vm883 = vcmask 1046528
      %v884 = vrot.slane %v578, 1
      %v885 = vrot.slane %v579, 1
      %v886 = vsel %vm883, %v884, %v885
      %v887 = vrot.slane %v580, 1
      %v888 = vsel %vm883, %v885, %v887
      %v889 = vrot.slane %v581, 1
      %v890 = vsel %vm883, %v887, %v889
      %v891 = vrot.slane %v582, 1
      %v892 = vsel %vm883, %v889, %v891
      %v893 = vrot.slane %v583, 1
      %v894 = vsel %vm883, %v891, %v893
      %v895 = vrot.slane %v584, 1
      %v896 = vsel %vm883, %v893, %v895
      %v897 = vrot.slane %v585, 1
      %v898 = vsel %vm883, %v895, %v897
      %v899 = vrot.slane %v586, 1
      %v900 = vsel %vm883, %v897, %v899
      %v901 = vrot.slane %v587, 1
      %v902 = vsel %vm883, %v899, %v901
      %v903 = vrot.slane %v588, 1
      %v904 = vsel %vm883, %v901, %v903
      %v905 = vrot.slane %v589, 1
      %v906 = vsel %vm883, %v903, %v905
      %v907 = vrot.slane %v590, 1
      %v908 = vsel %vm883, %v905, %v907
      %v909 = vrot.slane %v591, 1
      %v910 = vsel %vm883, %v907, %v909
      %v911 = vrot.slane %v592, 1
      %v912 = vsel %vm883, %v909, %v911
      %v913 = vrot.slane %v593, 1
      %v914 = vsel %vm883, %v911, %v913
      %v915 = vrot.slane %v594, 1
      %v916 = vsel %vm883, %v913, %v915
      %v917 = vrot.slane %v595, 1
      %v918 = vsel %vm883, %v915, %v917
      %v919 = vrot.slane %v596, 1
      %v920 = vsel %vm883, %v917, %v919
      %v921 = vrot.slane %v597, 1
      %v922 = vsel %vm883, %v919, %v921
      %v923 = vrot.slane %v598, 1
      %v924 = vsel %vm883, %v921, %v923
      %v925 = vrot.slane %v599, 1
      %v926 = vsel %vm883, %v923, %v925
      %v927 = vrot.slane %v600, 1
      %v928 = vsel %vm883, %v925, %v927
      %v929 = vrot.slane %v601, 1
      %v930 = vsel %vm883, %v927, %v929
      %v931 = vrot.slane %v602, 1
      %v932 = vsel %vm883, %v929, %v931
      %v933 = vrot.slane %v603, 1
      %v934 = vsel %vm883, %v931, %v933
      %v935 = vrot.slane %v604, 1
      %v936 = vsel %vm883, %v933, %v935
      %v937 = vrot.slane %v605, 1
      %v938 = vsel %vm883, %v935, %v937
      %v939 = vrot.slane %v606, 1
      %v940 = vsel %vm883, %v937, %v939
      %v941 = vrot.slane %v607, 1
      %v942 = vsel %vm883, %v939, %v941
      %v943 = vrot.slane %v608, 1
      %v944 = vsel %vm883, %v941, %v943
      %v945 = vrot.slane %v609, 1
      %v946 = vsel %vm883, %v943, %v945
      %v947 = vrot.slane %v610, 1
      %v948 = vsel %vm883, %v945, %v947
      %v949 = vrot.slane %v611, 1
      %v950 = vsel %vm883, %v947, %v949
      %v951 = vrot.slane %v612, 1
      %v952 = vsel %vm883, %v949, %v951
      %v953 = vrot.slane %v613, 1
      %v954 = vsel %vm883, %v951, %v953
      %v955 = vrot.slane %v614, 1
      %v956 = vsel %vm883, %v953, %v955
      %v957 = vrot.slane %v615, 1
      %v958 = vsel %vm883, %v955, %v957
      %v959 = vrot.slane %v616, 1
      %v960 = vsel %vm883, %v957, %v959
      %v961 = vrot.slane %v617, 1
      %v962 = vsel %vm883, %v959, %v961
      %v963 = vrot.slane %v618, 1
      %v964 = vsel %vm883, %v961, %v963
      %v965 = vrot.slane %v619, 1
      %v966 = vsel %vm883, %v963, %v965
      %v967 = vrot.slane %v620, 1
      %v968 = vsel %vm883, %v965, %v967
      %v969 = vrot.slane %v621, 1
      %v970 = vsel %vm883, %v967, %v969
      %v971 = vrot.slane %v622, 1
      %v972 = vsel %vm883, %v969, %v971
      %v973 = vrot.slane %v623, 1
      %v974 = vsel %vm883, %v971, %v973
      %v975 = vrot.slane %v624, 1
      %v976 = vsel %vm883, %v973, %v975
      %v977 = vrot.slane %v625, 1
      %v978 = vsel %vm883, %v975, %v977
      %v979 = vrot.slane %v626, 1
      %v980 = vsel %vm883, %v977, %v979
      %v981 = vrot.slane %v627, 1
      %v982 = vsel %vm883, %v979, %v981
      %v983 = vrot.slane %v628, 1
      %v984 = vsel %vm883, %v981, %v983
      %v985 = vrot.slane %v629, 1
      %v986 = vsel %vm883, %v983, %v985
      %v987 = vrot.slane %v630, 1
      %v988 = vsel %vm883, %v985, %v987
      %v989 = vrot.slane %v631, 1
      %v990 = vsel %vm883, %v987, %v989
      %v991 = vrot.slane %v632, 1
      %v992 = vsel %vm883, %v989, %v991
      %v993 = vrot.slane %v633, 1
      %v994 = vsel %vm883, %v991, %v993
      %v995 = vrot.slane %v634, 1
      %v996 = vsel %vm883, %v993, %v995
      %v997 = vrot.slane %v635, 1
      %v998 = vsel %vm883, %v995, %v997
      %v999 = vrot.slane %v636, 1
      %v1000 = vsel %vm883, %v997, %v999
      %v1001 = vrot.slane %v637, 1
      %v1002 = vsel %vm883, %v999, %v1001
      %vm1065 = vcmask 1045504
      %v1066 = vrot.slane %v578, 2
      %v1067 = vrot.slane %v579, 2
      %v1068 = vsel %vm1065, %v1066, %v1067
      %v1069 = vrot.slane %v580, 2
      %v1070 = vsel %vm1065, %v1067, %v1069
      %v1071 = vrot.slane %v581, 2
      %v1072 = vsel %vm1065, %v1069, %v1071
      %v1073 = vrot.slane %v582, 2
      %v1074 = vsel %vm1065, %v1071, %v1073
      %v1075 = vrot.slane %v583, 2
      %v1076 = vsel %vm1065, %v1073, %v1075
      %v1077 = vrot.slane %v584, 2
      %v1078 = vsel %vm1065, %v1075, %v1077
      %v1079 = vrot.slane %v585, 2
      %v1080 = vsel %vm1065, %v1077, %v1079
      %v1081 = vrot.slane %v586, 2
      %v1082 = vsel %vm1065, %v1079, %v1081
      %v1083 = vrot.slane %v587, 2
      %v1084 = vsel %vm1065, %v1081, %v1083
      %v1085 = vrot.slane %v588, 2
      %v1086 = vsel %vm1065, %v1083, %v1085
      %v1087 = vrot.slane %v589, 2
      %v1088 = vsel %vm1065, %v1085, %v1087
      %v1089 = vrot.slane %v590, 2
      %v1090 = vsel %vm1065, %v1087, %v1089
      %v1091 = vrot.slane %v591, 2
      %v1092 = vsel %vm1065, %v1089, %v1091
      %v1093 = vrot.slane %v592, 2
      %v1094 = vsel %vm1065, %v1091, %v1093
      %v1095 = vrot.slane %v593, 2
      %v1096 = vsel %vm1065, %v1093, %v1095
      %v1097 = vrot.slane %v594, 2
      %v1098 = vsel %vm1065, %v1095, %v1097
      %v1099 = vrot.slane %v595, 2
      %v1100 = vsel %vm1065, %v1097, %v1099
      %v1101 = vrot.slane %v596, 2
      %v1102 = vsel %vm1065, %v1099, %v1101
      %v1103 = vrot.slane %v597, 2
      %v1104 = vsel %vm1065, %v1101, %v1103
      %v1105 = vrot.slane %v598, 2
      %v1106 = vsel %vm1065, %v1103, %v1105
      %v1107 = vrot.slane %v599, 2
      %v1108 = vsel %vm1065, %v1105, %v1107
      %v1109 = vrot.slane %v600, 2
      %v1110 = vsel %vm1065, %v1107, %v1109
      %v1111 = vrot.slane %v601, 2
      %v1112 = vsel %vm1065, %v1109, %v1111
      %v1113 = vrot.slane %v602, 2
      %v1114 = vsel %vm1065, %v1111, %v1113
      %v1115 = vrot.slane %v603, 2
      %v1116 = vsel %vm1065, %v1113, %v1115
      %v1117 = vrot.slane %v604, 2
      %v1118 = vsel %vm1065, %v1115, %v1117
      %v1119 = vrot.slane %v605, 2
      %v1120 = vsel %vm1065, %v1117, %v1119
      %v1121 = vrot.slane %v606, 2
      %v1122 = vsel %vm1065, %v1119, %v1121
      %v1123 = vrot.slane %v607, 2
      %v1124 = vsel %vm1065, %v1121, %v1123
      %v1125 = vrot.slane %v608, 2
      %v1126 = vsel %vm1065, %v1123, %v1125
      %v1127 = vrot.slane %v609, 2
      %v1128 = vsel %vm1065, %v1125, %v1127
      %v1129 = vrot.slane %v610, 2
      %v1130 = vsel %vm1065, %v1127, %v1129
      %v1131 = vrot.slane %v611, 2
      %v1132 = vsel %vm1065, %v1129, %v1131
      %v1133 = vrot.slane %v612, 2
      %v1134 = vsel %vm1065, %v1131, %v1133
      %v1135 = vrot.slane %v613, 2
      %v1136 = vsel %vm1065, %v1133, %v1135
      %v1137 = vrot.slane %v614, 2
      %v1138 = vsel %vm1065, %v1135, %v1137
      %v1139 = vrot.slane %v615, 2
      %v1140 = vsel %vm1065, %v1137, %v1139
      %v1141 = vrot.slane %v616, 2
      %v1142 = vsel %vm1065, %v1139, %v1141
      %v1143 = vrot.slane %v617, 2
      %v1144 = vsel %vm1065, %v1141, %v1143
      %v1145 = vrot.slane %v618, 2
      %v1146 = vsel %vm1065, %v1143, %v1145
      %v1147 = vrot.slane %v619, 2
      %v1148 = vsel %vm1065, %v1145, %v1147
      %v1149 = vrot.slane %v620, 2
      %v1150 = vsel %vm1065, %v1147, %v1149
      %v1151 = vrot.slane %v621, 2
      %v1152 = vsel %vm1065, %v1149, %v1151
      %v1153 = vrot.slane %v622, 2
      %v1154 = vsel %vm1065, %v1151, %v1153
      %v1155 = vrot.slane %v623, 2
      %v1156 = vsel %vm1065, %v1153, %v1155
      %v1157 = vrot.slane %v624, 2
      %v1158 = vsel %vm1065, %v1155, %v1157
      %v1159 = vrot.slane %v625, 2
      %v1160 = vsel %vm1065, %v1157, %v1159
      %v1161 = vrot.slane %v626, 2
      %v1162 = vsel %vm1065, %v1159, %v1161
      %v1163 = vrot.slane %v627, 2
      %v1164 = vsel %vm1065, %v1161, %v1163
      %v1165 = vrot.slane %v628, 2
      %v1166 = vsel %vm1065, %v1163, %v1165
      %v1167 = vrot.slane %v629, 2
      %v1168 = vsel %vm1065, %v1165, %v1167
      %v1169 = vrot.slane %v630, 2
      %v1170 = vsel %vm1065, %v1167, %v1169
      %v1171 = vrot.slane %v631, 2
      %v1172 = vsel %vm1065, %v1169, %v1171
      %v1173 = vrot.slane %v632, 2
      %v1174 = vsel %vm1065, %v1171, %v1173
      %v1175 = vrot.slane %v633, 2
      %v1176 = vsel %vm1065, %v1173, %v1175
      %v1177 = vrot.slane %v634, 2
      %v1178 = vsel %vm1065, %v1175, %v1177
      %v1179 = vrot.slane %v635, 2
      %v1180 = vsel %vm1065, %v1177, %v1179
      %v1181 = vrot.slane %v636, 2
      %v1182 = vsel %vm1065, %v1179, %v1181
      %v1183 = vrot.slane %v637, 2
      %v1184 = vsel %vm1065, %v1181, %v1183
      %v1185 = vrot.slane %v638, 2
      %v1186 = vsel %vm1065, %v1183, %v1185
      %1187 = vrot.lane.b32.xlu0 %v1066, 2
      %v1188 = vpop.permute.xlu0 %1187
      %1189 = vrot.lane.b32.xlu0 %v1068, 2
      %v1190 = vpop.permute.xlu0 %1189
      %1191 = vrot.lane.b32.xlu0 %v1070, 2
      %v1192 = vpop.permute.xlu0 %1191
      %1193 = vrot.lane.b32.xlu0 %v1072, 2
      %v1194 = vpop.permute.xlu0 %1193
      %1195 = vrot.lane.b32.xlu0 %v1074, 2
      %v1196 = vpop.permute.xlu0 %1195
      %1197 = vrot.lane.b32.xlu0 %v1076, 2
      %v1198 = vpop.permute.xlu0 %1197
      %1199 = vrot.lane.b32.xlu0 %v1078, 2
      %v1200 = vpop.permute.xlu0 %1199
      %1201 = vrot.lane.b32.xlu0 %v1080, 2
      %v1202 = vpop.permute.xlu0 %1201
      %1203 = vrot.lane.b32.xlu0 %v1082, 2
      %v1204 = vpop.permute.xlu0 %1203
      %1205 = vrot.lane.b32.xlu0 %v1084, 2
      %v1206 = vpop.permute.xlu0 %1205
      %1207 = vrot.lane.b32.xlu0 %v1086, 2
      %v1208 = vpop.permute.xlu0 %1207
      %1209 = vrot.lane.b32.xlu0 %v1088, 2
      %v1210 = vpop.permute.xlu0 %1209
      %1211 = vrot.lane.b32.xlu0 %v1090, 2
      %v1212 = vpop.permute.xlu0 %1211
      %1213 = vrot.lane.b32.xlu0 %v1092, 2
      %v1214 = vpop.permute.xlu0 %1213
      %1215 = vrot.lane.b32.xlu0 %v1094, 2
      %v1216 = vpop.permute.xlu0 %1215
      %1217 = vrot.lane.b32.xlu0 %v1096, 2
      %v1218 = vpop.permute.xlu0 %1217
      %1219 = vrot.lane.b32.xlu0 %v1098, 2
      %v1220 = vpop.permute.xlu0 %1219
      %1221 = vrot.lane.b32.xlu0 %v1100, 2
      %v1222 = vpop.permute.xlu0 %1221
      %1223 = vrot.lane.b32.xlu0 %v1102, 2
      %v1224 = vpop.permute.xlu0 %1223
      %1225 = vrot.lane.b32.xlu0 %v1104, 2
      %v1226 = vpop.permute.xlu0 %1225
      %1227 = vrot.lane.b32.xlu0 %v1106, 2
      %v1228 = vpop.permute.xlu0 %1227
      %1229 = vrot.lane.b32.xlu0 %v1108, 2
      %v1230 = vpop.permute.xlu0 %1229
      %1231 = vrot.lane.b32.xlu0 %v1110, 2
      %v1232 = vpop.permute.xlu0 %1231
      %1233 = vrot.lane.b32.xlu0 %v1112, 2
      %v1234 = vpop.permute.xlu0 %1233
      %1235 = vrot.lane.b32.xlu0 %v1114, 2
      %v1236 = vpop.permute.xlu0 %1235
      %1237 = vrot.lane.b32.xlu0 %v1116, 2
      %v1238 = vpop.permute.xlu0 %1237
      %1239 = vrot.lane.b32.xlu0 %v1118, 2
      %v1240 = vpop.permute.xlu0 %1239
      %1241 = vrot.lane.b32.xlu0 %v1120, 2
      %v1242 = vpop.permute.xlu0 %1241
      %1243 = vrot.lane.b32.xlu0 %v1122, 2
      %v1244 = vpop.permute.xlu0 %1243
      %1245 = vrot.lane.b32.xlu0 %v1124, 2
      %v1246 = vpop.permute.xlu0 %1245
      %1247 = vrot.lane.b32.xlu0 %v1126, 2
      %v1248 = vpop.permute.xlu0 %1247
      %1249 = vrot.lane.b32.xlu0 %v1128, 2
      %v1250 = vpop.permute.xlu0 %1249
      %1251 = vrot.lane.b32.xlu0 %v1130, 2
      %v1252 = vpop.permute.xlu0 %1251
      %1253 = vrot.lane.b32.xlu0 %v1132, 2
      %v1254 = vpop.permute.xlu0 %1253
      %1255 = vrot.lane.b32.xlu0 %v1134, 2
      %v1256 = vpop.permute.xlu0 %1255
      %1257 = vrot.lane.b32.xlu0 %v1136, 2
      %v1258 = vpop.permute.xlu0 %1257
      %1259 = vrot.lane.b32.xlu0 %v1138, 2
      %v1260 = vpop.permute.xlu0 %1259
      %1261 = vrot.lane.b32.xlu0 %v1140, 2
      %v1262 = vpop.permute.xlu0 %1261
      %1263 = vrot.lane.b32.xlu0 %v1142, 2
      %v1264 = vpop.permute.xlu0 %1263
      %1265 = vrot.lane.b32.xlu0 %v1144, 2
      %v1266 = vpop.permute.xlu0 %1265
      %1267 = vrot.lane.b32.xlu0 %v1146, 2
      %v1268 = vpop.permute.xlu0 %1267
      %1269 = vrot.lane.b32.xlu0 %v1148, 2
      %v1270 = vpop.permute.xlu0 %1269
      %1271 = vrot.lane.b32.xlu0 %v1150, 2
      %v1272 = vpop.permute.xlu0 %1271
      %1273 = vrot.lane.b32.xlu0 %v1152, 2
      %v1274 = vpop.permute.xlu0 %1273
      %1275 = vrot.lane.b32.xlu0 %v1154, 2
      %v1276 = vpop.permute.xlu0 %1275
      %1277 = vrot.lane.b32.xlu0 %v1156, 2
      %v1278 = vpop.permute.xlu0 %1277
      %1279 = vrot.lane.b32.xlu0 %v1158, 2
      %v1280 = vpop.permute.xlu0 %1279
      %1281 = vrot.lane.b32.xlu0 %v1160, 2
      %v1282 = vpop.permute.xlu0 %1281
      %1283 = vrot.lane.b32.xlu0 %v1162, 2
      %v1284 = vpop.permute.xlu0 %1283
      %1285 = vrot.lane.b32.xlu0 %v1164, 2
      %v1286 = vpop.permute.xlu0 %1285
      %1287 = vrot.lane.b32.xlu0 %v1166, 2
      %v1288 = vpop.permute.xlu0 %1287
      %1289 = vrot.lane.b32.xlu0 %v1168, 2
      %v1290 = vpop.permute.xlu0 %1289
      %1291 = vrot.lane.b32.xlu0 %v1170, 2
      %v1292 = vpop.permute.xlu0 %1291
      %1293 = vrot.lane.b32.xlu0 %v1172, 2
      %v1294 = vpop.permute.xlu0 %1293
      %1295 = vrot.lane.b32.xlu0 %v1174, 2
      %v1296 = vpop.permute.xlu0 %1295
      %1297 = vrot.lane.b32.xlu0 %v1176, 2
      %v1298 = vpop.permute.xlu0 %1297
      %1299 = vrot.lane.b32.xlu0 %v1178, 2
      %v1300 = vpop.permute.xlu0 %1299
      %1301 = vrot.lane.b32.xlu0 %v1180, 2
      %v1302 = vpop.permute.xlu0 %1301
      %1303 = vrot.lane.b32.xlu0 %v1182, 2
      %v1304 = vpop.permute.xlu0 %1303
      %1305 = vrot.lane.b32.xlu0 %v1184, 2
      %v1306 = vpop.permute.xlu0 %1305
      %1307 = vrot.lane.b32.xlu0 %v1186, 2
      %v1308 = vpop.permute.xlu0 %1307
      %vm1370 = vcmask 15360
      %v1371 = vsel %vm1370, %v701, %v884
      %v1372 = vsel %vm1370, %v703, %v886
      %v1373 = vsel %vm1370, %v705, %v888
      %v1374 = vsel %vm1370, %v707, %v890
      %v1375 = vsel %vm1370, %v709, %v892
      %v1376 = vsel %vm1370, %v711, %v894
      %v1377 = vsel %vm1370, %v713, %v896
      %v1378 = vsel %vm1370, %v715, %v898
      %v1379 = vsel %vm1370, %v717, %v900
      %v1380 = vsel %vm1370, %v719, %v902
      %v1381 = vsel %vm1370, %v721, %v904
      %v1382 = vsel %vm1370, %v723, %v906
      %v1383 = vsel %vm1370, %v725, %v908
      %v1384 = vsel %vm1370, %v727, %v910
      %v1385 = vsel %vm1370, %v729, %v912
      %v1386 = vsel %vm1370, %v731, %v914
      %v1387 = vsel %vm1370, %v733, %v916
      %v1388 = vsel %vm1370, %v735, %v918
      %v1389 = vsel %vm1370, %v737, %v920
      %v1390 = vsel %vm1370, %v739, %v922
      %v1391 = vsel %vm1370, %v741, %v924
      %v1392 = vsel %vm1370, %v743, %v926
      %v1393 = vsel %vm1370, %v745, %v928
      %v1394 = vsel %vm1370, %v747, %v930
      %v1395 = vsel %vm1370, %v749, %v932
      %v1396 = vsel %vm1370, %v751, %v934
      %v1397 = vsel %vm1370, %v753, %v936
      %v1398 = vsel %vm1370, %v755, %v938
      %v1399 = vsel %vm1370, %v757, %v940
      %v1400 = vsel %vm1370, %v759, %v942
      %v1401 = vsel %vm1370, %v761, %v944
      %v1402 = vsel %vm1370, %v763, %v946
      %v1403 = vsel %vm1370, %v765, %v948
      %v1404 = vsel %vm1370, %v767, %v950
      %v1405 = vsel %vm1370, %v769, %v952
      %v1406 = vsel %vm1370, %v771, %v954
      %v1407 = vsel %vm1370, %v773, %v956
      %v1408 = vsel %vm1370, %v775, %v958
      %v1409 = vsel %vm1370, %v777, %v960
      %v1410 = vsel %vm1370, %v779, %v962
      %v1411 = vsel %vm1370, %v781, %v964
      %v1412 = vsel %vm1370, %v783, %v966
      %v1413 = vsel %vm1370, %v785, %v968
      %v1414 = vsel %vm1370, %v787, %v970
      %v1415 = vsel %vm1370, %v789, %v972
      %v1416 = vsel %vm1370, %v791, %v974
      %v1417 = vsel %vm1370, %v793, %v976
      %v1418 = vsel %vm1370, %v795, %v978
      %v1419 = vsel %vm1370, %v797, %v980
      %v1420 = vsel %vm1370, %v799, %v982
      %v1421 = vsel %vm1370, %v801, %v984
      %v1422 = vsel %vm1370, %v803, %v986
      %v1423 = vsel %vm1370, %v805, %v988
      %v1424 = vsel %vm1370, %v807, %v990
      %v1425 = vsel %vm1370, %v809, %v992
      %v1426 = vsel %vm1370, %v811, %v994
      %v1427 = vsel %vm1370, %v813, %v996
      %v1428 = vsel %vm1370, %v815, %v998
      %v1429 = vsel %vm1370, %v817, %v1000
      %v1430 = vsel %vm1370, %v819, %v1002
      %v1431 = vsel %vm1370, %v821, %v1001
      %vm1432 = vcmask 31744
      %v1433 = vsel %vm1432, %v1371, %v1188
      %v1434 = vsel %vm1432, %v1372, %v1190
      %v1435 = vsel %vm1432, %v1373, %v1192
      %v1436 = vsel %vm1432, %v1374, %v1194
      %v1437 = vsel %vm1432, %v1375, %v1196
      %v1438 = vsel %vm1432, %v1376, %v1198
      %v1439 = vsel %vm1432, %v1377, %v1200
      %v1440 = vsel %vm1432, %v1378, %v1202
      %v1441 = vsel %vm1432, %v1379, %v1204
      %v1442 = vsel %vm1432, %v1380, %v1206
      %v1443 = vsel %vm1432, %v1381, %v1208
      %v1444 = vsel %vm1432, %v1382, %v1210
      %v1445 = vsel %vm1432, %v1383, %v1212
      %v1446 = vsel %vm1432, %v1384, %v1214
      %v1447 = vsel %vm1432, %v1385, %v1216
      %v1448 = vsel %vm1432, %v1386, %v1218
      %v1449 = vsel %vm1432, %v1387, %v1220
      %v1450 = vsel %vm1432, %v1388, %v1222
      %v1451 = vsel %vm1432, %v1389, %v1224
      %v1452 = vsel %vm1432, %v1390, %v1226
      %v1453 = vsel %vm1432, %v1391, %v1228
      %v1454 = vsel %vm1432, %v1392, %v1230
      %v1455 = vsel %vm1432, %v1393, %v1232
      %v1456 = vsel %vm1432, %v1394, %v1234
      %v1457 = vsel %vm1432, %v1395, %v1236
      %v1458 = vsel %vm1432, %v1396, %v1238
      %v1459 = vsel %vm1432, %v1397, %v1240
      %v1460 = vsel %vm1432, %v1398, %v1242
      %v1461 = vsel %vm1432, %v1399, %v1244
      %v1462 = vsel %vm1432, %v1400, %v1246
      %v1463 = vsel %vm1432, %v1401, %v1248
      %v1464 = vsel %vm1432, %v1402, %v1250
      %v1465 = vsel %vm1432, %v1403, %v1252
      %v1466 = vsel %vm1432, %v1404, %v1254
      %v1467 = vsel %vm1432, %v1405, %v1256
      %v1468 = vsel %vm1432, %v1406, %v1258
      %v1469 = vsel %vm1432, %v1407, %v1260
      %v1470 = vsel %vm1432, %v1408, %v1262
      %v1471 = vsel %vm1432, %v1409, %v1264
      %v1472 = vsel %vm1432, %v1410, %v1266
      %v1473 = vsel %vm1432, %v1411, %v1268
      %v1474 = vsel %vm1432, %v1412, %v1270
      %v1475 = vsel %vm1432, %v1413, %v1272
      %v1476 = vsel %vm1432, %v1414, %v1274
      %v1477 = vsel %vm1432, %v1415, %v1276
      %v1478 = vsel %vm1432, %v1416, %v1278
      %v1479 = vsel %vm1432, %v1417, %v1280
      %v1480 = vsel %vm1432, %v1418, %v1282
      %v1481 = vsel %vm1432, %v1419, %v1284
      %v1482 = vsel %vm1432, %v1420, %v1286
      %v1483 = vsel %vm1432, %v1421, %v1288
      %v1484 = vsel %vm1432, %v1422, %v1290
      %v1485 = vsel %vm1432, %v1423, %v1292
      %v1486 = vsel %vm1432, %v1424, %v1294
      %v1487 = vsel %vm1432, %v1425, %v1296
      %v1488 = vsel %vm1432, %v1426, %v1298
      %v1489 = vsel %vm1432, %v1427, %v1300
      %v1490 = vsel %vm1432, %v1428, %v1302
      %v1491 = vsel %vm1432, %v1429, %v1304
      %v1492 = vsel %vm1432, %v1430, %v1306
      %v1493 = vsel %vm1432, %v1431, %v1308
      %1549 = vrot.lane.b32.xlu0 %v1436, 6
      %v1550 = vpop.permute.xlu0 %1549
      %1551 = vrot.lane.b32.xlu0 %v1437, 6
      %v1552 = vpop.permute.xlu0 %1551
      %1553 = vrot.lane.b32.xlu0 %v1438, 6
      %v1554 = vpop.permute.xlu0 %1553
      %1555 = vrot.lane.b32.xlu0 %v1439, 6
      %v1556 = vpop.permute.xlu0 %1555
      %1557 = vrot.lane.b32.xlu0 %v1440, 6
      %v1558 = vpop.permute.xlu0 %1557
      %1559 = vrot.lane.b32.xlu0 %v1441, 6
      %v1560 = vpop.permute.xlu0 %1559
      %1561 = vrot.lane.b32.xlu0 %v1442, 6
      %v1562 = vpop.permute.xlu0 %1561
      %1563 = vrot.lane.b32.xlu0 %v1443, 6
      %v1564 = vpop.permute.xlu0 %1563
      %1565 = vrot.lane.b32.xlu0 %v1444, 6
      %v1566 = vpop.permute.xlu0 %1565
      %1567 = vrot.lane.b32.xlu0 %v1445, 6
      %v1568 = vpop.permute.xlu0 %1567
      %1569 = vrot.lane.b32.xlu0 %v1446, 6
      %v1570 = vpop.permute.xlu0 %1569
      %1571 = vrot.lane.b32.xlu0 %v1447, 6
      %v1572 = vpop.permute.xlu0 %1571
      %1573 = vrot.lane.b32.xlu0 %v1448, 6
      %v1574 = vpop.permute.xlu0 %1573
      %1575 = vrot.lane.b32.xlu0 %v1449, 6
      %v1576 = vpop.permute.xlu0 %1575
      %1577 = vrot.lane.b32.xlu0 %v1450, 6
      %v1578 = vpop.permute.xlu0 %1577
      %1579 = vrot.lane.b32.xlu0 %v1451, 6
      %v1580 = vpop.permute.xlu0 %1579
      %1581 = vrot.lane.b32.xlu0 %v1452, 6
      %v1582 = vpop.permute.xlu0 %1581
      %1583 = vrot.lane.b32.xlu0 %v1453, 6
      %v1584 = vpop.permute.xlu0 %1583
      %1585 = vrot.lane.b32.xlu0 %v1454, 6
      %v1586 = vpop.permute.xlu0 %1585
      %1587 = vrot.lane.b32.xlu0 %v1455, 6
      %v1588 = vpop.permute.xlu0 %1587
      %1589 = vrot.lane.b32.xlu0 %v1456, 6
      %v1590 = vpop.permute.xlu0 %1589
      %1591 = vrot.lane.b32.xlu0 %v1457, 6
      %v1592 = vpop.permute.xlu0 %1591
      %1593 = vrot.lane.b32.xlu0 %v1458, 6
      %v1594 = vpop.permute.xlu0 %1593
      %1595 = vrot.lane.b32.xlu0 %v1459, 6
      %v1596 = vpop.permute.xlu0 %1595
      %1597 = vrot.lane.b32.xlu0 %v1460, 6
      %v1598 = vpop.permute.xlu0 %1597
      %1599 = vrot.lane.b32.xlu0 %v1461, 6
      %v1600 = vpop.permute.xlu0 %1599
      %1601 = vrot.lane.b32.xlu0 %v1462, 6
      %v1602 = vpop.permute.xlu0 %1601
      %1603 = vrot.lane.b32.xlu0 %v1463, 6
      %v1604 = vpop.permute.xlu0 %1603
      %1605 = vrot.lane.b32.xlu0 %v1464, 6
      %v1606 = vpop.permute.xlu0 %1605
      %1607 = vrot.lane.b32.xlu0 %v1465, 6
      %v1608 = vpop.permute.xlu0 %1607
      %1609 = vrot.lane.b32.xlu0 %v1466, 6
      %v1610 = vpop.permute.xlu0 %1609
      %1611 = vrot.lane.b32.xlu0 %v1467, 6
      %v1612 = vpop.permute.xlu0 %1611
      %1613 = vrot.lane.b32.xlu0 %v1468, 6
      %v1614 = vpop.permute.xlu0 %1613
      %1615 = vrot.lane.b32.xlu0 %v1469, 6
      %v1616 = vpop.permute.xlu0 %1615
      %1617 = vrot.lane.b32.xlu0 %v1470, 6
      %v1618 = vpop.permute.xlu0 %1617
      %1619 = vrot.lane.b32.xlu0 %v1471, 6
      %v1620 = vpop.permute.xlu0 %1619
      %1621 = vrot.lane.b32.xlu0 %v1472, 6
      %v1622 = vpop.permute.xlu0 %1621
      %1623 = vrot.lane.b32.xlu0 %v1473, 6
      %v1624 = vpop.permute.xlu0 %1623
      %1625 = vrot.lane.b32.xlu0 %v1474, 6
      %v1626 = vpop.permute.xlu0 %1625
      %1627 = vrot.lane.b32.xlu0 %v1475, 6
      %v1628 = vpop.permute.xlu0 %1627
      %1629 = vrot.lane.b32.xlu0 %v1476, 6
      %v1630 = vpop.permute.xlu0 %1629
      %1631 = vrot.lane.b32.xlu0 %v1477, 6
      %v1632 = vpop.permute.xlu0 %1631
      %1633 = vrot.lane.b32.xlu0 %v1478, 6
      %v1634 = vpop.permute.xlu0 %1633
      %1635 = vrot.lane.b32.xlu0 %v1479, 6
      %v1636 = vpop.permute.xlu0 %1635
      %1637 = vrot.lane.b32.xlu0 %v1480, 6
      %v1638 = vpop.permute.xlu0 %1637
      %1639 = vrot.lane.b32.xlu0 %v1481, 6
      %v1640 = vpop.permute.xlu0 %1639
      %1641 = vrot.lane.b32.xlu0 %v1482, 6
      %v1642 = vpop.permute.xlu0 %1641
      %1643 = vrot.lane.b32.xlu0 %v1483, 6
      %v1644 = vpop.permute.xlu0 %1643
      %1645 = vrot.lane.b32.xlu0 %v1484, 6
      %v1646 = vpop.permute.xlu0 %1645
      %1647 = vrot.lane.b32.xlu0 %v1485, 6
      %v1648 = vpop.permute.xlu0 %1647
      %1649 = vrot.lane.b32.xlu0 %v1486, 6
      %v1650 = vpop.permute.xlu0 %1649
      %1651 = vrot.lane.b32.xlu0 %v1487, 6
      %v1652 = vpop.permute.xlu0 %1651
      %1653 = vrot.lane.b32.xlu0 %v1488, 6
      %v1654 = vpop.permute.xlu0 %1653
      %1655 = vrot.lane.b32.xlu0 %v1489, 6
      %v1656 = vpop.permute.xlu0 %1655
      %1657 = vrot.lane.b32.xlu0 %v1490, 6
      %v1658 = vpop.permute.xlu0 %1657
      %1717 = vrot.lane.b32.xlu0 %v1439, 12
      %v1718 = vpop.permute.xlu0 %1717
      %1719 = vrot.lane.b32.xlu0 %v1440, 12
      %v1720 = vpop.permute.xlu0 %1719
      %1721 = vrot.lane.b32.xlu0 %v1441, 12
      %v1722 = vpop.permute.xlu0 %1721
      %1723 = vrot.lane.b32.xlu0 %v1442, 12
      %v1724 = vpop.permute.xlu0 %1723
      %1725 = vrot.lane.b32.xlu0 %v1443, 12
      %v1726 = vpop.permute.xlu0 %1725
      %1727 = vrot.lane.b32.xlu0 %v1444, 12
      %v1728 = vpop.permute.xlu0 %1727
      %1729 = vrot.lane.b32.xlu0 %v1445, 12
      %v1730 = vpop.permute.xlu0 %1729
      %1731 = vrot.lane.b32.xlu0 %v1446, 12
      %v1732 = vpop.permute.xlu0 %1731
      %1733 = vrot.lane.b32.xlu0 %v1447, 12
      %v1734 = vpop.permute.xlu0 %1733
      %1735 = vrot.lane.b32.xlu0 %v1448, 12
      %v1736 = vpop.permute.xlu0 %1735
      %1737 = vrot.lane.b32.xlu0 %v1449, 12
      %v1738 = vpop.permute.xlu0 %1737
      %1739 = vrot.lane.b32.xlu0 %v1450, 12
      %v1740 = vpop.permute.xlu0 %1739
      %1741 = vrot.lane.b32.xlu0 %v1451, 12
      %v1742 = vpop.permute.xlu0 %1741
      %1743 = vrot.lane.b32.xlu0 %v1452, 12
      %v1744 = vpop.permute.xlu0 %1743
      %1745 = vrot.lane.b32.xlu0 %v1453, 12
      %v1746 = vpop.permute.xlu0 %1745
      %1747 = vrot.lane.b32.xlu0 %v1454, 12
      %v1748 = vpop.permute.xlu0 %1747
      %1749 = vrot.lane.b32.xlu0 %v1455, 12
      %v1750 = vpop.permute.xlu0 %1749
      %1751 = vrot.lane.b32.xlu0 %v1456, 12
      %v1752 = vpop.permute.xlu0 %1751
      %1753 = vrot.lane.b32.xlu0 %v1457, 12
      %v1754 = vpop.permute.xlu0 %1753
      %1755 = vrot.lane.b32.xlu0 %v1458, 12
      %v1756 = vpop.permute.xlu0 %1755
      %1757 = vrot.lane.b32.xlu0 %v1459, 12
      %v1758 = vpop.permute.xlu0 %1757
      %1759 = vrot.lane.b32.xlu0 %v1460, 12
      %v1760 = vpop.permute.xlu0 %1759
      %1761 = vrot.lane.b32.xlu0 %v1461, 12
      %v1762 = vpop.permute.xlu0 %1761
      %1763 = vrot.lane.b32.xlu0 %v1462, 12
      %v1764 = vpop.permute.xlu0 %1763
      %1765 = vrot.lane.b32.xlu0 %v1463, 12
      %v1766 = vpop.permute.xlu0 %1765
      %1767 = vrot.lane.b32.xlu0 %v1464, 12
      %v1768 = vpop.permute.xlu0 %1767
      %1769 = vrot.lane.b32.xlu0 %v1465, 12
      %v1770 = vpop.permute.xlu0 %1769
      %1771 = vrot.lane.b32.xlu0 %v1466, 12
      %v1772 = vpop.permute.xlu0 %1771
      %1773 = vrot.lane.b32.xlu0 %v1467, 12
      %v1774 = vpop.permute.xlu0 %1773
      %1775 = vrot.lane.b32.xlu0 %v1468, 12
      %v1776 = vpop.permute.xlu0 %1775
      %1777 = vrot.lane.b32.xlu0 %v1469, 12
      %v1778 = vpop.permute.xlu0 %1777
      %1779 = vrot.lane.b32.xlu0 %v1470, 12
      %v1780 = vpop.permute.xlu0 %1779
      %1781 = vrot.lane.b32.xlu0 %v1471, 12
      %v1782 = vpop.permute.xlu0 %1781
      %1783 = vrot.lane.b32.xlu0 %v1472, 12
      %v1784 = vpop.permute.xlu0 %1783
      %1785 = vrot.lane.b32.xlu0 %v1473, 12
      %v1786 = vpop.permute.xlu0 %1785
      %1787 = vrot.lane.b32.xlu0 %v1474, 12
      %v1788 = vpop.permute.xlu0 %1787
      %1789 = vrot.lane.b32.xlu0 %v1475, 12
      %v1790 = vpop.permute.xlu0 %1789
      %1791 = vrot.lane.b32.xlu0 %v1476, 12
      %v1792 = vpop.permute.xlu0 %1791
      %1793 = vrot.lane.b32.xlu0 %v1477, 12
      %v1794 = vpop.permute.xlu0 %1793
      %1795 = vrot.lane.b32.xlu0 %v1478, 12
      %v1796 = vpop.permute.xlu0 %1795
      %1797 = vrot.lane.b32.xlu0 %v1479, 12
      %v1798 = vpop.permute.xlu0 %1797
      %1799 = vrot.lane.b32.xlu0 %v1480, 12
      %v1800 = vpop.permute.xlu0 %1799
      %1801 = vrot.lane.b32.xlu0 %v1481, 12
      %v1802 = vpop.permute.xlu0 %1801
      %1803 = vrot.lane.b32.xlu0 %v1482, 12
      %v1804 = vpop.permute.xlu0 %1803
      %1805 = vrot.lane.b32.xlu0 %v1483, 12
      %v1806 = vpop.permute.xlu0 %1805
      %1807 = vrot.lane.b32.xlu0 %v1484, 12
      %v1808 = vpop.permute.xlu0 %1807
      %1809 = vrot.lane.b32.xlu0 %v1485, 12
      %v1810 = vpop.permute.xlu0 %1809
      %1811 = vrot.lane.b32.xlu0 %v1486, 12
      %v1812 = vpop.permute.xlu0 %1811
      %1813 = vrot.lane.b32.xlu0 %v1487, 12
      %v1814 = vpop.permute.xlu0 %1813
      %1815 = vrot.lane.b32.xlu0 %v1488, 12
      %v1816 = vpop.permute.xlu0 %1815
      %1817 = vrot.lane.b32.xlu0 %v1489, 12
      %v1818 = vpop.permute.xlu0 %1817
      %1819 = vrot.lane.b32.xlu0 %v1490, 12
      %v1820 = vpop.permute.xlu0 %1819
      %1821 = vrot.lane.b32.xlu0 %v1491, 12
      %v1822 = vpop.permute.xlu0 %1821
      %1823 = vrot.lane.b32.xlu0 %v1492, 12
      %v1824 = vpop.permute.xlu0 %1823
      %1825 = vrot.lane.b32.xlu0 %v1493, 12
      %v1826 = vpop.permute.xlu0 %1825
      %vm1882 = vcmask 48128
      %v1883 = vsel %vm1882, %v1433, %v1550
      %v1884 = vsel %vm1882, %v1434, %v1552
      %v1885 = vsel %vm1882, %v1435, %v1554
      %v1886 = vsel %vm1882, %v1436, %v1556
      %v1887 = vsel %vm1882, %v1437, %v1558
      %v1888 = vsel %vm1882, %v1438, %v1560
      %v1889 = vsel %vm1882, %v1439, %v1562
      %v1890 = vsel %vm1882, %v1440, %v1564
      %v1891 = vsel %vm1882, %v1441, %v1566
      %v1892 = vsel %vm1882, %v1442, %v1568
      %v1893 = vsel %vm1882, %v1443, %v1570
      %v1894 = vsel %vm1882, %v1444, %v1572
      %v1895 = vsel %vm1882, %v1445, %v1574
      %v1896 = vsel %vm1882, %v1446, %v1576
      %v1897 = vsel %vm1882, %v1447, %v1578
      %v1898 = vsel %vm1882, %v1448, %v1580
      %v1899 = vsel %vm1882, %v1449, %v1582
      %v1900 = vsel %vm1882, %v1450, %v1584
      %v1901 = vsel %vm1882, %v1451, %v1586
      %v1902 = vsel %vm1882, %v1452, %v1588
      %v1903 = vsel %vm1882, %v1453, %v1590
      %v1904 = vsel %vm1882, %v1454, %v1592
      %v1905 = vsel %vm1882, %v1455, %v1594
      %v1906 = vsel %vm1882, %v1456, %v1596
      %v1907 = vsel %vm1882, %v1457, %v1598
      %v1908 = vsel %vm1882, %v1458, %v1600
      %v1909 = vsel %vm1882, %v1459, %v1602
      %v1910 = vsel %vm1882, %v1460, %v1604
      %v1911 = vsel %vm1882, %v1461, %v1606
      %v1912 = vsel %vm1882, %v1462, %v1608
      %v1913 = vsel %vm1882, %v1463, %v1610
      %v1914 = vsel %vm1882, %v1464, %v1612
      %v1915 = vsel %vm1882, %v1465, %v1614
      %v1916 = vsel %vm1882, %v1466, %v1616
      %v1917 = vsel %vm1882, %v1467, %v1618
      %v1918 = vsel %vm1882, %v1468, %v1620
      %v1919 = vsel %vm1882, %v1469, %v1622
      %v1920 = vsel %vm1882, %v1470, %v1624
      %v1921 = vsel %vm1882, %v1471, %v1626
      %v1922 = vsel %vm1882, %v1472, %v1628
      %v1923 = vsel %vm1882, %v1473, %v1630
      %v1924 = vsel %vm1882, %v1474, %v1632
      %v1925 = vsel %vm1882, %v1475, %v1634
      %v1926 = vsel %vm1882, %v1476, %v1636
      %v1927 = vsel %vm1882, %v1477, %v1638
      %v1928 = vsel %vm1882, %v1478, %v1640
      %v1929 = vsel %vm1882, %v1479, %v1642
      %v1930 = vsel %vm1882, %v1480, %v1644
      %v1931 = vsel %vm1882, %v1481, %v1646
      %v1932 = vsel %vm1882, %v1482, %v1648
      %v1933 = vsel %vm1882, %v1483, %v1650
      %v1934 = vsel %vm1882, %v1484, %v1652
      %v1935 = vsel %vm1882, %v1485, %v1654
      %v1936 = vsel %vm1882, %v1486, %v1656
      %v1937 = vsel %vm1882, %v1487, %v1658
      %vm1938 = vcmask 97280
      %v1939 = vsel %vm1938, %v1883, %v1718
      %v1940 = vsel %vm1938, %v1884, %v1720
      %v1941 = vsel %vm1938, %v1885, %v1722
      %v1942 = vsel %vm1938, %v1886, %v1724
      %v1943 = vsel %vm1938, %v1887, %v1726
      %v1944 = vsel %vm1938, %v1888, %v1728
      %v1945 = vsel %vm1938, %v1889, %v1730
      %v1946 = vsel %vm1938, %v1890, %v1732
      %v1947 = vsel %vm1938, %v1891, %v1734
      %v1948 = vsel %vm1938, %v1892, %v1736
      %v1949 = vsel %vm1938, %v1893, %v1738
      %v1950 = vsel %vm1938, %v1894, %v1740
      %v1951 = vsel %vm1938, %v1895, %v1742
      %v1952 = vsel %vm1938, %v1896, %v1744
      %v1953 = vsel %vm1938, %v1897, %v1746
      %v1954 = vsel %vm1938, %v1898, %v1748
      %v1955 = vsel %vm1938, %v1899, %v1750
      %v1956 = vsel %vm1938, %v1900, %v1752
      %v1957 = vsel %vm1938, %v1901, %v1754
      %v1958 = vsel %vm1938, %v1902, %v1756
      %v1959 = vsel %vm1938, %v1903, %v1758
      %v1960 = vsel %vm1938, %v1904, %v1760
      %v1961 = vsel %vm1938, %v1905, %v1762
      %v1962 = vsel %vm1938, %v1906, %v1764
      %v1963 = vsel %vm1938, %v1907, %v1766
      %v1964 = vsel %vm1938, %v1908, %v1768
      %v1965 = vsel %vm1938, %v1909, %v1770
      %v1966 = vsel %vm1938, %v1910, %v1772
      %v1967 = vsel %vm1938, %v1911, %v1774
      %v1968 = vsel %vm1938, %v1912, %v1776
      %v1969 = vsel %vm1938, %v1913, %v1778
      %v1970 = vsel %vm1938, %v1914, %v1780
      %v1971 = vsel %vm1938, %v1915, %v1782
      %v1972 = vsel %vm1938, %v1916, %v1784
      %v1973 = vsel %vm1938, %v1917, %v1786
      %v1974 = vsel %vm1938, %v1918, %v1788
      %v1975 = vsel %vm1938, %v1919, %v1790
      %v1976 = vsel %vm1938, %v1920, %v1792
      %v1977 = vsel %vm1938, %v1921, %v1794
      %v1978 = vsel %vm1938, %v1922, %v1796
      %v1979 = vsel %vm1938, %v1923, %v1798
      %v1980 = vsel %vm1938, %v1924, %v1800
      %v1981 = vsel %vm1938, %v1925, %v1802
      %v1982 = vsel %vm1938, %v1926, %v1804
      %v1983 = vsel %vm1938, %v1927, %v1806
      %v1984 = vsel %vm1938, %v1928, %v1808
      %v1985 = vsel %vm1938, %v1929, %v1810
      %v1986 = vsel %vm1938, %v1930, %v1812
      %v1987 = vsel %vm1938, %v1931, %v1814
      %v1988 = vsel %vm1938, %v1932, %v1816
      %v1989 = vsel %vm1938, %v1933, %v1818
      %v1990 = vsel %vm1938, %v1934, %v1820
      %v1991 = vsel %vm1938, %v1935, %v1822
      %v1992 = vsel %vm1938, %v1936, %v1824
      %v1993 = vsel %vm1938, %v1937, %v1826
      %v1994 = vpack.c.bf16 %v1940, %v1939
      %v1995 = vpack.c.bf16 %v1942, %v1941
      %v1996 = vpack.c.bf16 %v1944, %v1943
      %v1997 = vpack.c.bf16 %v1946, %v1945
      %v1998 = vpack.c.bf16 %v1948, %v1947
      %v1999 = vpack.c.bf16 %v1950, %v1949
      %v2000 = vpack.c.bf16 %v1952, %v1951
      %v2001 = vpack.c.bf16 %v1954, %v1953
      %v2002 = vpack.c.bf16 %v1956, %v1955
      %v2003 = vpack.c.bf16 %v1958, %v1957
      %v2004 = vpack.c.bf16 %v1960, %v1959
      %v2005 = vpack.c.bf16 %v1962, %v1961
      %v2006 = vpack.c.bf16 %v1964, %v1963
      %v2007 = vpack.c.bf16 %v1966, %v1965
      %v2008 = vpack.c.bf16 %v1968, %v1967
      %v2009 = vpack.c.bf16 %v1970, %v1969
      %v2010 = vpack.c.bf16 %v1972, %v1971
      %v2011 = vpack.c.bf16 %v1974, %v1973
      %v2012 = vpack.c.bf16 %v1976, %v1975
      %v2013 = vpack.c.bf16 %v1978, %v1977
      %v2014 = vpack.c.bf16 %v1980, %v1979
      %v2015 = vpack.c.bf16 %v1982, %v1981
      %v2016 = vpack.c.bf16 %v1984, %v1983
      %v2017 = vpack.c.bf16 %v1986, %v1985
      %v2018 = vpack.c.bf16 %v1988, %v1987
      %v2019 = vpack.c.bf16 %v1990, %v1989
      %v2020 = vpack.c.bf16 %v1992, %v1991
      %v2021 = vpack.c.bf16 %v1993, %v1993
      %v2022 = vld [vmem:[%s2] sm:$0xf]
      %v2023 = vld [vmem:[%s2 + $0x4] sm:$0xf]
      %v2024 = vld [vmem:[%s2 + $0x8] sm:$0x1]
      %v2025 = vld [vmem:[%s3] sm:$0x1]
      %v2027 = vlaneseq
      %v2028 = vshrl.u32 %v2027, 7
      %v2029 = vsub.s32 0, %v2028
      %v2030 = vrot.slane %v2025, %v2029
      %vm2032 = vsmask.f32 4352
      %v2034 = vshrl.u32 %v1994, 16
      %v2036 = vrot.slane %v2034, 3
      %v2037 = vshll.u32 %v1994, 16
      %v2039 = vrot.slane %v2037, 4
      %v2040 = vor.u32 %v2036, %v2039
      %v2042 = vshrl.u32 %v1995, 16
      %v2044 = vrot.slane %v2042, 3
      %v2045 = vshll.u32 %v1995, 16
      %v2047 = vrot.slane %v2045, 4
      %v2048 = vor.u32 %v2044, %v2047
      %v2049 = vsel %vm2032, %v2040, %v2048
      %v2051 = vshrl.u32 %v1996, 16
      %v2053 = vrot.slane %v2051, 3
      %v2054 = vshll.u32 %v1996, 16
      %v2056 = vrot.slane %v2054, 4
      %v2057 = vor.u32 %v2053, %v2056
      %v2058 = vsel %vm2032, %v2048, %v2057
      %v2060 = vshrl.u32 %v1997, 16
      %v2062 = vrot.slane %v2060, 3
      %v2063 = vshll.u32 %v1997, 16
      %v2065 = vrot.slane %v2063, 4
      %v2066 = vor.u32 %v2062, %v2065
      %v2067 = vsel %vm2032, %v2057, %v2066
      %v2069 = vshrl.u32 %v1998, 16
      %v2071 = vrot.slane %v2069, 3
      %v2072 = vshll.u32 %v1998, 16
      %v2074 = vrot.slane %v2072, 4
      %v2075 = vor.u32 %v2071, %v2074
      %v2076 = vsel %vm2032, %v2066, %v2075
      %v2078 = vshrl.u32 %v1999, 16
      %v2080 = vrot.slane %v2078, 3
      %v2081 = vshll.u32 %v1999, 16
      %v2083 = vrot.slane %v2081, 4
      %v2084 = vor.u32 %v2080, %v2083
      %v2085 = vsel %vm2032, %v2075, %v2084
      %v2087 = vshrl.u32 %v2000, 16
      %v2089 = vrot.slane %v2087, 3
      %v2090 = vshll.u32 %v2000, 16
      %v2092 = vrot.slane %v2090, 4
      %v2093 = vor.u32 %v2089, %v2092
      %v2094 = vsel %vm2032, %v2084, %v2093
      %v2096 = vshrl.u32 %v2001, 16
      %v2098 = vrot.slane %v2096, 3
      %v2099 = vshll.u32 %v2001, 16
      %v2101 = vrot.slane %v2099, 4
      %v2102 = vor.u32 %v2098, %v2101
      %v2103 = vsel %vm2032, %v2093, %v2102
      %v2105 = vshrl.u32 %v2002, 16
      %v2107 = vrot.slane %v2105, 3
      %v2108 = vshll.u32 %v2002, 16
      %v2110 = vrot.slane %v2108, 4
      %v2111 = vor.u32 %v2107, %v2110
      %v2112 = vsel %vm2032, %v2102, %v2111
      %v2114 = vshrl.u32 %v2003, 16
      %v2116 = vrot.slane %v2114, 3
      %v2117 = vshll.u32 %v2003, 16
      %v2119 = vrot.slane %v2117, 4
      %v2120 = vor.u32 %v2116, %v2119
      %v2121 = vsel %vm2032, %v2111, %v2120
      %v2123 = vshrl.u32 %v2004, 16
      %v2125 = vrot.slane %v2123, 3
      %v2126 = vshll.u32 %v2004, 16
      %v2128 = vrot.slane %v2126, 4
      %v2129 = vor.u32 %v2125, %v2128
      %v2130 = vsel %vm2032, %v2120, %v2129
      %v2132 = vshrl.u32 %v2005, 16
      %v2134 = vrot.slane %v2132, 3
      %v2135 = vshll.u32 %v2005, 16
      %v2137 = vrot.slane %v2135, 4
      %v2138 = vor.u32 %v2134, %v2137
      %v2139 = vsel %vm2032, %v2129, %v2138
      %v2141 = vshrl.u32 %v2006, 16
      %v2143 = vrot.slane %v2141, 3
      %v2144 = vshll.u32 %v2006, 16
      %v2146 = vrot.slane %v2144, 4
      %v2147 = vor.u32 %v2143, %v2146
      %v2148 = vsel %vm2032, %v2138, %v2147
      %v2150 = vshrl.u32 %v2007, 16
      %v2152 = vrot.slane %v2150, 3
      %v2153 = vshll.u32 %v2007, 16
      %v2155 = vrot.slane %v2153, 4
      %v2156 = vor.u32 %v2152, %v2155
      %v2157 = vsel %vm2032, %v2147, %v2156
      %v2159 = vshrl.u32 %v2008, 16
      %v2161 = vrot.slane %v2159, 3
      %v2162 = vshll.u32 %v2008, 16
      %v2164 = vrot.slane %v2162, 4
      %v2165 = vor.u32 %v2161, %v2164
      %v2166 = vsel %vm2032, %v2156, %v2165
      %v2168 = vshrl.u32 %v2009, 16
      %v2170 = vrot.slane %v2168, 3
      %v2171 = vshll.u32 %v2009, 16
      %v2173 = vrot.slane %v2171, 4
      %v2174 = vor.u32 %v2170, %v2173
      %v2175 = vsel %vm2032, %v2165, %v2174
      %v2177 = vshrl.u32 %v2010, 16
      %v2179 = vrot.slane %v2177, 3
      %v2180 = vshll.u32 %v2010, 16
      %v2182 = vrot.slane %v2180, 4
      %v2183 = vor.u32 %v2179, %v2182
      %v2184 = vsel %vm2032, %v2174, %v2183
      %v2186 = vshrl.u32 %v2011, 16
      %v2188 = vrot.slane %v2186, 3
      %v2189 = vshll.u32 %v2011, 16
      %v2191 = vrot.slane %v2189, 4
      %v2192 = vor.u32 %v2188, %v2191
      %v2193 = vsel %vm2032, %v2183, %v2192
      %v2195 = vshrl.u32 %v2012, 16
      %v2197 = vrot.slane %v2195, 3
      %v2198 = vshll.u32 %v2012, 16
      %v2200 = vrot.slane %v2198, 4
      %v2201 = vor.u32 %v2197, %v2200
      %v2202 = vsel %vm2032, %v2192, %v2201
      %v2204 = vshrl.u32 %v2013, 16
      %v2206 = vrot.slane %v2204, 3
      %v2207 = vshll.u32 %v2013, 16
      %v2209 = vrot.slane %v2207, 4
      %v2210 = vor.u32 %v2206, %v2209
      %v2211 = vsel %vm2032, %v2201, %v2210
      %v2213 = vshrl.u32 %v2014, 16
      %v2215 = vrot.slane %v2213, 3
      %v2216 = vshll.u32 %v2014, 16
      %v2218 = vrot.slane %v2216, 4
      %v2219 = vor.u32 %v2215, %v2218
      %v2220 = vsel %vm2032, %v2210, %v2219
      %v2222 = vshrl.u32 %v2015, 16
      %v2224 = vrot.slane %v2222, 3
      %v2225 = vshll.u32 %v2015, 16
      %v2227 = vrot.slane %v2225, 4
      %v2228 = vor.u32 %v2224, %v2227
      %v2229 = vsel %vm2032, %v2219, %v2228
      %v2231 = vshrl.u32 %v2016, 16
      %v2233 = vrot.slane %v2231, 3
      %v2234 = vshll.u32 %v2016, 16
      %v2236 = vrot.slane %v2234, 4
      %v2237 = vor.u32 %v2233, %v2236
      %v2238 = vsel %vm2032, %v2228, %v2237
      %v2240 = vshrl.u32 %v2017, 16
      %v2242 = vrot.slane %v2240, 3
      %v2243 = vshll.u32 %v2017, 16
      %v2245 = vrot.slane %v2243, 4
      %v2246 = vor.u32 %v2242, %v2245
      %v2247 = vsel %vm2032, %v2237, %v2246
      %v2249 = vshrl.u32 %v2018, 16
      %v2251 = vrot.slane %v2249, 3
      %v2252 = vshll.u32 %v2018, 16
      %v2254 = vrot.slane %v2252, 4
      %v2255 = vor.u32 %v2251, %v2254
      %v2256 = vsel %vm2032, %v2246, %v2255
      %v2258 = vshrl.u32 %v2019, 16
      %v2260 = vrot.slane %v2258, 3
      %v2261 = vshll.u32 %v2019, 16
      %v2263 = vrot.slane %v2261, 4
      %v2264 = vor.u32 %v2260, %v2263
      %v2265 = vsel %vm2032, %v2255, %v2264
      %v2267 = vshrl.u32 %v2020, 16
      %v2269 = vrot.slane %v2267, 3
      %v2270 = vshll.u32 %v2020, 16
      %v2272 = vrot.slane %v2270, 4
      %v2273 = vor.u32 %v2269, %v2272
      %v2274 = vsel %vm2032, %v2264, %v2273
      %v2276 = vshrl.u32 %v2021, 16
      %v2278 = vrot.slane %v2276, 3
      %v2279 = vshll.u32 %v2021, 16
      %v2281 = vrot.slane %v2279, 4
      %v2282 = vor.u32 %v2278, %v2281
      %v2283 = vsel %vm2032, %v2273, %v2282
      %v2287 = vunpack.c.l.b16 %v2022
      %v2288 = vunpack.c.l.b16 %v2023
      %v2289 = vunpack.c.l.b16 %v2024
      %v2290 = vpack.c.b16 %v2288, %v2287
      %v2291 = vpack.c.b16 %v2289, %v2289
      %vm2293 = vcmask 146432
      %v2295 = vsel %vm2293, %v2049, 0
      %v2298 = vsel %vm2293, %v2058, 0
      %v2301 = vsel %vm2293, %v2067, 0
      %v2304 = vsel %vm2293, %v2076, 0
      %v2307 = vsel %vm2293, %v2085, 0
      %v2310 = vsel %vm2293, %v2094, 0
      %v2313 = vsel %vm2293, %v2103, 0
      %v2316 = vsel %vm2293, %v2112, 0
      %v2319 = vsel %vm2293, %v2121, 0
      %v2322 = vsel %vm2293, %v2130, 0
      %v2325 = vsel %vm2293, %v2139, 0
      %v2328 = vsel %vm2293, %v2148, 0
      %v2331 = vsel %vm2293, %v2157, 0
      %v2334 = vsel %vm2293, %v2166, 0
      %v2337 = vsel %vm2293, %v2175, 0
      %v2340 = vsel %vm2293, %v2184, 0
      %v2343 = vsel %vm2293, %v2193, 0
      %v2346 = vsel %vm2293, %v2202, 0
      %v2349 = vsel %vm2293, %v2211, 0
      %v2352 = vsel %vm2293, %v2220, 0
      %v2355 = vsel %vm2293, %v2229, 0
      %v2358 = vsel %vm2293, %v2238, 0
      %v2361 = vsel %vm2293, %v2247, 0
      %v2364 = vsel %vm2293, %v2256, 0
      %v2367 = vsel %vm2293, %v2265, 0
      %v2370 = vsel %vm2293, %v2274, 0
      %v2373 = vsel %vm2293, %v2283, 0
      %vm2375 = vcmask 1040384
      %v2377 = vsel %vm2375, %v2291, 0
      %2379 = vmatprep.subr.bf16.mxu0 0
      %2380 = vmatpush1.bf16.msra.mxu0 %v2290
      %2381 = vmatprep.subr.bf16.mxu0 0
      %2382 = vmatpush1.bf16.msra.mxu0 %v2377
      %2383 = vmatprep.subr.bf16.mxu0 0
      %2384 = vmatpush1.bf16.msra.mxu0 0
      %2385 = vmatprep.subr.bf16.mxu0 0
      %2386 = vmatpush1.bf16.msra.mxu0 0
      %2387 = vmatprep.subr.bf16.mxu0 0
      %2388 = vmatpush1.bf16.msra.mxu0 0
      %2389 = vmatprep.subr.bf16.mxu0 0
      %2390 = vmatpush1.bf16.msra.mxu0 0
      %2391 = vmatprep.subr.bf16.mxu0 0
      %2392 = vmatpush1.bf16.msra.mxu0 0
      %2393 = vmatprep.subr.bf16.mxu0 0
      %2394 = vmatpush1.bf16.msra.mxu0 0
      %2395 = vmatprep.subr.bf16.mxu0 0
      %2396 = vmatpush1.bf16.msra.mxu0 0
      %2397 = vmatprep.subr.bf16.mxu0 0
      %2398 = vmatpush1.bf16.msra.mxu0 0
      %2399 = vmatprep.subr.bf16.mxu0 0
      %2400 = vmatpush1.bf16.msra.mxu0 0
      %2401 = vmatprep.subr.bf16.mxu0 0
      %2402 = vmatpush1.bf16.msra.mxu0 0
      %2403 = vmatprep.subr.bf16.mxu0 0
      %2404 = vmatpush1.bf16.msra.mxu0 0
      %2405 = vmatprep.subr.bf16.mxu0 0
      %2406 = vmatpush1.bf16.msra.mxu0 0
      %2407 = vmatprep.subr.bf16.mxu0 0
      %2408 = vmatpush1.bf16.msra.mxu0 0
      %2409 = vmatprep.subr.bf16.mxu0 0
      %2410 = vmatpush1.bf16.msra.mxu0 0
      %2411 = vmatprep.mubr.bf16.mxu0 0
      %2412 = vmatmul.mubr.bf16.gmra.mrb[0].mxu0 %v2295
      %v2413 = vpop.f32.mrb[0].mxu0
      %v2414 = vadd.f32 %v2030, %v2413
      %v2415 = vpop.f32.mrb[0].mxu0
      %v2416 = vpop.f32.mrb[0].mxu0
      %v2417 = vadd.f32 %v2030, %v2416
      %v2418 = vpop.f32.mrb[0].mxu0
      %2419 = vmatprep.mubr.bf16.mxu0 0
      %2420 = vmatmul.mubr.bf16.gmra.mrb[0].mxu0 %v2298
      %v2421 = vpop.f32.mrb[0].mxu0
      %v2422 = vadd.f32 %v2030, %v2421
      %v2423 = vpop.f32.mrb[0].mxu0
      %v2424 = vpop.f32.mrb[0].mxu0
      %v2425 = vadd.f32 %v2030, %v2424
      %v2426 = vpop.f32.mrb[0].mxu0
      %2427 = vmatprep.mubr.bf16.mxu0 0
      %2428 = vmatmul.mubr.bf16.gmra.mrb[0].mxu0 %v2301
      %v2429 = vpop.f32.mrb[0].mxu0
      %v2430 = vadd.f32 %v2030, %v2429
      %v2431 = vpop.f32.mrb[0].mxu0
      %v2432 = vpop.f32.mrb[0].mxu0
      %v2433 = vadd.f32 %v2030, %v2432
      %v2434 = vpop.f32.mrb[0].mxu0
      %2435 = vmatprep.mubr.bf16.mxu0 0
      %2436 = vmatmul.mubr.bf16.gmra.mrb[0].mxu0 %v2304
      %v2437 = vpop.f32.mrb[0].mxu0
      %v2438 = vadd.f32 %v2030, %v2437
      %v2439 = vpop.f32.mrb[0].mxu0
      %v2440 = vpop.f32.mrb[0].mxu0
      %v2441 = vadd.f32 %v2030, %v2440
      %v2442 = vpop.f32.mrb[0].mxu0
      %2443 = vmatprep.mubr.bf16.mxu0 0
      %2444 = vmatmul.mubr.bf16.gmra.mrb[0].mxu0 %v2307
      %v2445 = vpop.f32.mrb[0].mxu0
      %v2446 = vadd.f32 %v2030, %v2445
      %v2447 = vpop.f32.mrb[0].mxu0
      %v2448 = vpop.f32.mrb[0].mxu0
      %v2449 = vadd.f32 %v2030, %v2448
      %v2450 = vpop.f32.mrb[0].mxu0
      %2451 = vmatprep.mubr.bf16.mxu0 0
      %2452 = vmatmul.mubr.bf16.gmra.mrb[0].mxu0 %v2310
      %v2453 = vpop.f32.mrb[0].mxu0
      %v2454 = vadd.f32 %v2030, %v2453
      %v2455 = vpop.f32.mrb[0].mxu0
      %v2456 = vpop.f32.mrb[0].mxu0
      %v2457 = vadd.f32 %v2030, %v2456
      %v2458 = vpop.f32.mrb[0].mxu0
      %2459 = vmatprep.mubr.bf16.mxu0 0
      %2460 = vmatmul.mubr.bf16.gmra.mrb[0].mxu0 %v2313
      %v2461 = vpop.f32.mrb[0].mxu0
      %v2462 = vadd.f32 %v2030, %v2461
      %v2463 = vpop.f32.mrb[0].mxu0
      %v2464 = vpop.f32.mrb[0].mxu0
      %v2465 = vadd.f32 %v2030, %v2464
      %v2466 = vpop.f32.mrb[0].mxu0
      %2467 = vmatprep.mubr.bf16.mxu0 0
      %2468 = vmatmul.mubr.bf16.gmra.mrb[0].mxu0 %v2316
      %v2469 = vpop.f32.mrb[0].mxu0
      %v2470 = vadd.f32 %v2030, %v2469
      %v2471 = vpop.f32.mrb[0].mxu0
      %v2472 = vpop.f32.mrb[0].mxu0
      %v2473 = vadd.f32 %v2030, %v2472
      %v2474 = vpop.f32.mrb[0].mxu0
      %2475 = vmatprep.mubr.bf16.mxu0 0
      %2476 = vmatmul.mubr.bf16.gmra.mrb[0].mxu0 %v2319
      %v2477 = vpop.f32.mrb[0].mxu0
      %v2478 = vadd.f32 %v2030, %v2477
      %v2479 = vpop.f32.mrb[0].mxu0
      %v2480 = vpop.f32.mrb[0].mxu0
      %v2481 = vadd.f32 %v2030, %v2480
      %v2482 = vpop.f32.mrb[0].mxu0
      %2483 = vmatprep.mubr.bf16.mxu0 0
      %2484 = vmatmul.mubr.bf16.gmra.mrb[0].mxu0 %v2322
      %v2485 = vpop.f32.mrb[0].mxu0
      %v2486 = vadd.f32 %v2030, %v2485
      %v2487 = vpop.f32.mrb[0].mxu0
      %v2488 = vpop.f32.mrb[0].mxu0
      %v2489 = vadd.f32 %v2030, %v2488
      %v2490 = vpop.f32.mrb[0].mxu0
      %2491 = vmatprep.mubr.bf16.mxu0 0
      %2492 = vmatmul.mubr.bf16.gmra.mrb[0].mxu0 %v2325
      %v2493 = vpop.f32.mrb[0].mxu0
      %v2494 = vadd.f32 %v2030, %v2493
      %v2495 = vpop.f32.mrb[0].mxu0
      %v2496 = vpop.f32.mrb[0].mxu0
      %v2497 = vadd.f32 %v2030, %v2496
      %v2498 = vpop.f32.mrb[0].mxu0
      %2499 = vmatprep.mubr.bf16.mxu0 0
      %2500 = vmatmul.mubr.bf16.gmra.mrb[0].mxu0 %v2328
      %v2501 = vpop.f32.mrb[0].mxu0
      %v2502 = vadd.f32 %v2030, %v2501
      %v2503 = vpop.f32.mrb[0].mxu0
      %v2504 = vpop.f32.mrb[0].mxu0
      %v2505 = vadd.f32 %v2030, %v2504
      %v2506 = vpop.f32.mrb[0].mxu0
      %2507 = vmatprep.mubr.bf16.mxu0 0
      %2508 = vmatmul.mubr.bf16.gmra.mrb[0].mxu0 %v2331
      %v2509 = vpop.f32.mrb[0].mxu0
      %v2510 = vadd.f32 %v2030, %v2509
      %v2511 = vpop.f32.mrb[0].mxu0
      %v2512 = vpop.f32.mrb[0].mxu0
      %v2513 = vadd.f32 %v2030, %v2512
      %v2514 = vpop.f32.mrb[0].mxu0
      %2515 = vmatprep.mubr.bf16.mxu0 0
      %2516 = vmatmul.mubr.bf16.gmra.mrb[0].mxu0 %v2334
      %v2517 = vpop.f32.mrb[0].mxu0
      %v2518 = vadd.f32 %v2030, %v2517
      %v2519 = vpop.f32.mrb[0].mxu0
      %v2520 = vpop.f32.mrb[0].mxu0
      %v2521 = vadd.f32 %v2030, %v2520
      %v2522 = vpop.f32.mrb[0].mxu0
      %2523 = vmatprep.mubr.bf16.mxu0 0
      %2524 = vmatmul.mubr.bf16.gmra.mrb[0].mxu0 %v2337
      %v2525 = vpop.f32.mrb[0].mxu0
      %v2526 = vadd.f32 %v2030, %v2525
      %v2527 = vpop.f32.mrb[0].mxu0
      %v2528 = vpop.f32.mrb[0].mxu0
      %v2529 = vadd.f32 %v2030, %v2528
      %v2530 = vpop.f32.mrb[0].mxu0
      %2531 = vmatprep.mubr.bf16.mxu0 0
      %2532 = vmatmul.mubr.bf16.gmra.mrb[0].mxu0 %v2340
      %v2533 = vpop.f32.mrb[0].mxu0
      %v2534 = vadd.f32 %v2030, %v2533
      %v2535 = vpop.f32.mrb[0].mxu0
      %v2536 = vpop.f32.mrb[0].mxu0
      %v2537 = vadd.f32 %v2030, %v2536
      %v2538 = vpop.f32.mrb[0].mxu0
      %2539 = vmatprep.mubr.bf16.mxu0 0
      %2540 = vmatmul.mubr.bf16.gmra.mrb[0].mxu0 %v2343
      %v2541 = vpop.f32.mrb[0].mxu0
      %v2542 = vadd.f32 %v2030, %v2541
      %v2543 = vpop.f32.mrb[0].mxu0
      %v2544 = vpop.f32.mrb[0].mxu0
      %v2545 = vadd.f32 %v2030, %v2544
      %v2546 = vpop.f32.mrb[0].mxu0
      %2547 = vmatprep.mubr.bf16.mxu0 0
      %2548 = vmatmul.mubr.bf16.gmra.mrb[0].mxu0 %v2346
      %v2549 = vpop.f32.mrb[0].mxu0
      %v2550 = vadd.f32 %v2030, %v2549
      %v2551 = vpop.f32.mrb[0].mxu0
      %v2552 = vpop.f32.mrb[0].mxu0
      %v2553 = vadd.f32 %v2030, %v2552
      %v2554 = vpop.f32.mrb[0].mxu0
      %2555 = vmatprep.mubr.bf16.mxu0 0
      %2556 = vmatmul.mubr.bf16.gmra.mrb[0].mxu0 %v2349
      %v2557 = vpop.f32.mrb[0].mxu0
      %v2558 = vadd.f32 %v2030, %v2557
      %v2559 = vpop.f32.mrb[0].mxu0
      %v2560 = vpop.f32.mrb[0].mxu0
      %v2561 = vadd.f32 %v2030, %v2560
      %v2562 = vpop.f32.mrb[0].mxu0
      %2563 = vmatprep.mubr.bf16.mxu0 0
      %2564 = vmatmul.mubr.bf16.gmra.mrb[0].mxu0 %v2352
      %v2565 = vpop.f32.mrb[0].mxu0
      %v2566 = vadd.f32 %v2030, %v2565
      %v2567 = vpop.f32.mrb[0].mxu0
      %v2568 = vpop.f32.mrb[0].mxu0
      %v2569 = vadd.f32 %v2030, %v2568
      %v2570 = vpop.f32.mrb[0].mxu0
      %2571 = vmatprep.mubr.bf16.mxu0 0
      %2572 = vmatmul.mubr.bf16.gmra.mrb[0].mxu0 %v2355
      %v2573 = vpop.f32.mrb[0].mxu0
      %v2574 = vadd.f32 %v2030, %v2573
      %v2575 = vpop.f32.mrb[0].mxu0
      %v2576 = vpop.f32.mrb[0].mxu0
      %v2577 = vadd.f32 %v2030, %v2576
      %v2578 = vpop.f32.mrb[0].mxu0
      %2579 = vmatprep.mubr.bf16.mxu0 0
      %2580 = vmatmul.mubr.bf16.gmra.mrb[0].mxu0 %v2358
      %v2581 = vpop.f32.mrb[0].mxu0
      %v2582 = vadd.f32 %v2030, %v2581
      %v2583 = vpop.f32.mrb[0].mxu0
      %v2584 = vpop.f32.mrb[0].mxu0
      %v2585 = vadd.f32 %v2030, %v2584
      %v2586 = vpop.f32.mrb[0].mxu0
      %2587 = vmatprep.mubr.bf16.mxu0 0
      %2588 = vmatmul.mubr.bf16.gmra.mrb[0].mxu0 %v2361
      %v2589 = vpop.f32.mrb[0].mxu0
      %v2590 = vadd.f32 %v2030, %v2589
      %v2591 = vpop.f32.mrb[0].mxu0
      %v2592 = vpop.f32.mrb[0].mxu0
      %v2593 = vadd.f32 %v2030, %v2592
      %v2594 = vpop.f32.mrb[0].mxu0
      %2595 = vmatprep.mubr.bf16.mxu0 0
      %2596 = vmatmul.mubr.bf16.gmra.mrb[0].mxu0 %v2364
      %v2597 = vpop.f32.mrb[0].mxu0
      %v2598 = vadd.f32 %v2030, %v2597
      %v2599 = vpop.f32.mrb[0].mxu0
      %v2600 = vpop.f32.mrb[0].mxu0
      %v2601 = vadd.f32 %v2030, %v2600
      %v2602 = vpop.f32.mrb[0].mxu0
      %2603 = vmatprep.mubr.bf16.mxu0 0
      %2604 = vmatmul.mubr.bf16.gmra.mrb[0].mxu0 %v2367
      %v2605 = vpop.f32.mrb[0].mxu0
      %v2606 = vadd.f32 %v2030, %v2605
      %v2607 = vpop.f32.mrb[0].mxu0
      %v2608 = vpop.f32.mrb[0].mxu0
      %v2609 = vadd.f32 %v2030, %v2608
      %v2610 = vpop.f32.mrb[0].mxu0
      %2611 = vmatprep.mubr.bf16.mxu0 0
      %2612 = vmatmul.mubr.bf16.gmra.mrb[0].mxu0 %v2370
      %v2613 = vpop.f32.mrb[0].mxu0
      %v2614 = vadd.f32 %v2030, %v2613
      %v2615 = vpop.f32.mrb[0].mxu0
      %v2616 = vpop.f32.mrb[0].mxu0
      %v2617 = vadd.f32 %v2030, %v2616
      %v2618 = vpop.f32.mrb[0].mxu0
      %2619 = vmatprep.mubr.bf16.mxu0 0
      %2620 = vmatmul.mubr.bf16.gmra.mrb[0].mxu0 %v2373
      %v2621 = vpop.f32.mrb[0].mxu0
      %v2622 = vadd.f32 %v2030, %v2621
      %v2623 = vpop.f32.mrb[0].mxu0
      %v2624 = vpop.f32.mrb[0].mxu0
      %v2625 = vadd.f32 %v2030, %v2624
      %v2626 = vpop.f32.mrb[0].mxu0
      %2627 = vdwg.mxu0
      %vm2628 = vcmp.ge.f32.partialorder %v2414, 0.0
      %vm2629 = vcmp.ge.f32.partialorder %v2417, 0.0
      %vm2630 = vcmp.ge.f32.partialorder %v2422, 0.0
      %vm2631 = vcmp.ge.f32.partialorder %v2425, 0.0
      %vm2632 = vcmp.ge.f32.partialorder %v2430, 0.0
      %vm2633 = vcmp.ge.f32.partialorder %v2433, 0.0
      %vm2634 = vcmp.ge.f32.partialorder %v2438, 0.0
      %vm2635 = vcmp.ge.f32.partialorder %v2441, 0.0
      %vm2636 = vcmp.ge.f32.partialorder %v2446, 0.0
      %vm2637 = vcmp.ge.f32.partialorder %v2449, 0.0
      %vm2638 = vcmp.ge.f32.partialorder %v2454, 0.0
      %vm2639 = vcmp.ge.f32.partialorder %v2457, 0.0
      %vm2640 = vcmp.ge.f32.partialorder %v2462, 0.0
      %vm2641 = vcmp.ge.f32.partialorder %v2465, 0.0
      %vm2642 = vcmp.ge.f32.partialorder %v2470, 0.0
      %vm2643 = vcmp.ge.f32.partialorder %v2473, 0.0
      %vm2644 = vcmp.ge.f32.partialorder %v2478, 0.0
      %vm2645 = vcmp.ge.f32.partialorder %v2481, 0.0
      %vm2646 = vcmp.ge.f32.partialorder %v2486, 0.0
      %vm2647 = vcmp.ge.f32.partialorder %v2489, 0.0
      %vm2648 = vcmp.ge.f32.partialorder %v2494, 0.0
      %vm2649 = vcmp.ge.f32.partialorder %v2497, 0.0
      %vm2650 = vcmp.ge.f32.partialorder %v2502, 0.0
      %vm2651 = vcmp.ge.f32.partialorder %v2505, 0.0
      %vm2652 = vcmp.ge.f32.partialorder %v2510, 0.0
      %vm2653 = vcmp.ge.f32.partialorder %v2513, 0.0
      %vm2654 = vcmp.ge.f32.partialorder %v2518, 0.0
      %vm2655 = vcmp.ge.f32.partialorder %v2521, 0.0
      %vm2656 = vcmp.ge.f32.partialorder %v2526, 0.0
      %vm2657 = vcmp.ge.f32.partialorder %v2529, 0.0
      %vm2658 = vcmp.ge.f32.partialorder %v2534, 0.0
      %vm2659 = vcmp.ge.f32.partialorder %v2537, 0.0
      %vm2660 = vcmp.ge.f32.partialorder %v2542, 0.0
      %vm2661 = vcmp.ge.f32.partialorder %v2545, 0.0
      %vm2662 = vcmp.ge.f32.partialorder %v2550, 0.0
      %vm2663 = vcmp.ge.f32.partialorder %v2553, 0.0
      %vm2664 = vcmp.ge.f32.partialorder %v2558, 0.0
      %vm2665 = vcmp.ge.f32.partialorder %v2561, 0.0
      %vm2666 = vcmp.ge.f32.partialorder %v2566, 0.0
      %vm2667 = vcmp.ge.f32.partialorder %v2569, 0.0
      %vm2668 = vcmp.ge.f32.partialorder %v2574, 0.0
      %vm2669 = vcmp.ge.f32.partialorder %v2577, 0.0
      %vm2670 = vcmp.ge.f32.partialorder %v2582, 0.0
      %vm2671 = vcmp.ge.f32.partialorder %v2585, 0.0
      %vm2672 = vcmp.ge.f32.partialorder %v2590, 0.0
      %vm2673 = vcmp.ge.f32.partialorder %v2593, 0.0
      %vm2674 = vcmp.ge.f32.partialorder %v2598, 0.0
      %vm2675 = vcmp.ge.f32.partialorder %v2601, 0.0
      %vm2676 = vcmp.ge.f32.partialorder %v2606, 0.0
      %vm2677 = vcmp.ge.f32.partialorder %v2609, 0.0
      %vm2678 = vcmp.ge.f32.partialorder %v2614, 0.0
      %vm2679 = vcmp.ge.f32.partialorder %v2617, 0.0
      %vm2680 = vcmp.ge.f32.partialorder %v2622, 0.0
      %vm2681 = vcmp.ge.f32.partialorder %v2625, 0.0
      %v2682 = vmul.f32 %v2414, 0.2
      %v2683 = vmul.f32 %v2417, 0.2
      %v2684 = vmul.f32 %v2422, 0.2
      %v2685 = vmul.f32 %v2425, 0.2
      %v2686 = vmul.f32 %v2430, 0.2
      %v2687 = vmul.f32 %v2433, 0.2
      %v2688 = vmul.f32 %v2438, 0.2
      %v2689 = vmul.f32 %v2441, 0.2
      %v2690 = vmul.f32 %v2446, 0.2
      %v2691 = vmul.f32 %v2449, 0.2
      %v2692 = vmul.f32 %v2454, 0.2
      %v2693 = vmul.f32 %v2457, 0.2
      %v2694 = vmul.f32 %v2462, 0.2
      %v2695 = vmul.f32 %v2465, 0.2
      %v2696 = vmul.f32 %v2470, 0.2
      %v2697 = vmul.f32 %v2473, 0.2
      %v2698 = vmul.f32 %v2478, 0.2
      %v2699 = vmul.f32 %v2481, 0.2
      %v2700 = vmul.f32 %v2486, 0.2
      %v2701 = vmul.f32 %v2489, 0.2
      %v2702 = vmul.f32 %v2494, 0.2
      %v2703 = vmul.f32 %v2497, 0.2
      %v2704 = vmul.f32 %v2502, 0.2
      %v2705 = vmul.f32 %v2505, 0.2
      %v2706 = vmul.f32 %v2510, 0.2
      %v2707 = vmul.f32 %v2513, 0.2
      %v2708 = vmul.f32 %v2518, 0.2
      %v2709 = vmul.f32 %v2521, 0.2
      %v2710 = vmul.f32 %v2526, 0.2
      %v2711 = vmul.f32 %v2529, 0.2
      %v2712 = vmul.f32 %v2534, 0.2
      %v2713 = vmul.f32 %v2537, 0.2
      %v2714 = vmul.f32 %v2542, 0.2
      %v2715 = vmul.f32 %v2545, 0.2
      %v2716 = vmul.f32 %v2550, 0.2
      %v2717 = vmul.f32 %v2553, 0.2
      %v2718 = vmul.f32 %v2558, 0.2
      %v2719 = vmul.f32 %v2561, 0.2
      %v2720 = vmul.f32 %v2566, 0.2
      %v2721 = vmul.f32 %v2569, 0.2
      %v2722 = vmul.f32 %v2574, 0.2
      %v2723 = vmul.f32 %v2577, 0.2
      %v2724 = vmul.f32 %v2582, 0.2
      %v2725 = vmul.f32 %v2585, 0.2
      %v2726 = vmul.f32 %v2590, 0.2
      %v2727 = vmul.f32 %v2593, 0.2
      %v2728 = vmul.f32 %v2598, 0.2
      %v2729 = vmul.f32 %v2601, 0.2
      %v2730 = vmul.f32 %v2606, 0.2
      %v2731 = vmul.f32 %v2609, 0.2
      %v2732 = vmul.f32 %v2614, 0.2
      %v2733 = vmul.f32 %v2617, 0.2
      %v2734 = vmul.f32 %v2622, 0.2
      %v2735 = vmul.f32 %v2625, 0.2
      %v2736 = vsel %vm2628, %v2414, %v2682
      %v2737 = vsel %vm2629, %v2417, %v2683
      %v2738 = vsel %vm2630, %v2422, %v2684
      %v2739 = vsel %vm2631, %v2425, %v2685
      %v2740 = vsel %vm2632, %v2430, %v2686
      %v2741 = vsel %vm2633, %v2433, %v2687
      %v2742 = vsel %vm2634, %v2438, %v2688
      %v2743 = vsel %vm2635, %v2441, %v2689
      %v2744 = vsel %vm2636, %v2446, %v2690
      %v2745 = vsel %vm2637, %v2449, %v2691
      %v2746 = vsel %vm2638, %v2454, %v2692
      %v2747 = vsel %vm2639, %v2457, %v2693
      %v2748 = vsel %vm2640, %v2462, %v2694
      %v2749 = vsel %vm2641, %v2465, %v2695
      %v2750 = vsel %vm2642, %v2470, %v2696
      %v2751 = vsel %vm2643, %v2473, %v2697
      %v2752 = vsel %vm2644, %v2478, %v2698
      %v2753 = vsel %vm2645, %v2481, %v2699
      %v2754 = vsel %vm2646, %v2486, %v2700
      %v2755 = vsel %vm2647, %v2489, %v2701
      %v2756 = vsel %vm2648, %v2494, %v2702
      %v2757 = vsel %vm2649, %v2497, %v2703
      %v2758 = vsel %vm2650, %v2502, %v2704
      %v2759 = vsel %vm2651, %v2505, %v2705
      %v2760 = vsel %vm2652, %v2510, %v2706
      %v2761 = vsel %vm2653, %v2513, %v2707
      %v2762 = vsel %vm2654, %v2518, %v2708
      %v2763 = vsel %vm2655, %v2521, %v2709
      %v2764 = vsel %vm2656, %v2526, %v2710
      %v2765 = vsel %vm2657, %v2529, %v2711
      %v2766 = vsel %vm2658, %v2534, %v2712
      %v2767 = vsel %vm2659, %v2537, %v2713
      %v2768 = vsel %vm2660, %v2542, %v2714
      %v2769 = vsel %vm2661, %v2545, %v2715
      %v2770 = vsel %vm2662, %v2550, %v2716
      %v2771 = vsel %vm2663, %v2553, %v2717
      %v2772 = vsel %vm2664, %v2558, %v2718
      %v2773 = vsel %vm2665, %v2561, %v2719
      %v2774 = vsel %vm2666, %v2566, %v2720
      %v2775 = vsel %vm2667, %v2569, %v2721
      %v2776 = vsel %vm2668, %v2574, %v2722
      %v2777 = vsel %vm2669, %v2577, %v2723
      %v2778 = vsel %vm2670, %v2582, %v2724
      %v2779 = vsel %vm2671, %v2585, %v2725
      %v2780 = vsel %vm2672, %v2590, %v2726
      %v2781 = vsel %vm2673, %v2593, %v2727
      %v2782 = vsel %vm2674, %v2598, %v2728
      %v2783 = vsel %vm2675, %v2601, %v2729
      %v2784 = vsel %vm2676, %v2606, %v2730
      %v2785 = vsel %vm2677, %v2609, %v2731
      %v2786 = vsel %vm2678, %v2614, %v2732
      %v2787 = vsel %vm2679, %v2617, %v2733
      %v2788 = vsel %vm2680, %v2622, %v2734
      %v2789 = vsel %vm2681, %v2625, %v2735
      %v2790 = vpack.c.bf16 %v2737, %v2736
      %v2791 = vpack.c.bf16 %v2739, %v2738
      %v2792 = vpack.c.bf16 %v2741, %v2740
      %v2793 = vpack.c.bf16 %v2743, %v2742
      %v2794 = vpack.c.bf16 %v2745, %v2744
      %v2795 = vpack.c.bf16 %v2747, %v2746
      %v2796 = vpack.c.bf16 %v2749, %v2748
      %v2797 = vpack.c.bf16 %v2751, %v2750
      %v2798 = vpack.c.bf16 %v2753, %v2752
      %v2799 = vpack.c.bf16 %v2755, %v2754
      %v2800 = vpack.c.bf16 %v2757, %v2756
      %v2801 = vpack.c.bf16 %v2759, %v2758
      %v2802 = vpack.c.bf16 %v2761, %v2760
      %v2803 = vpack.c.bf16 %v2763, %v2762
      %v2804 = vpack.c.bf16 %v2765, %v2764
      %v2805 = vpack.c.bf16 %v2767, %v2766
      %v2806 = vpack.c.bf16 %v2769, %v2768
      %v2807 = vpack.c.bf16 %v2771, %v2770
      %v2808 = vpack.c.bf16 %v2773, %v2772
      %v2809 = vpack.c.bf16 %v2775, %v2774
      %v2810 = vpack.c.bf16 %v2777, %v2776
      %v2811 = vpack.c.bf16 %v2779, %v2778
      %v2812 = vpack.c.bf16 %v2781, %v2780
      %v2813 = vpack.c.bf16 %v2783, %v2782
      %v2814 = vpack.c.bf16 %v2785, %v2784
      %v2815 = vpack.c.bf16 %v2787, %v2786
      %v2816 = vpack.c.bf16 %v2789, %v2788
      %v2817 = vld [vmem:[%s4] sm:$0x3]
      %v2818 = vld [vmem:[%s5] sm:$0x1]
      %v2820 = vlaneseq
      %v2821 = vshrl.u32 %v2820, 7
      %v2822 = vsub.s32 0, %v2821
      %v2823 = vrot.slane %v2818, %v2822
      %v2826 = vsel %vm1432, %v2790, 0
      %v2829 = vsel %vm1432, %v2791, 0
      %v2832 = vsel %vm1432, %v2792, 0
      %v2835 = vsel %vm1432, %v2793, 0
      %v2838 = vsel %vm1432, %v2794, 0
      %v2841 = vsel %vm1432, %v2795, 0
      %v2844 = vsel %vm1432, %v2796, 0
      %v2847 = vsel %vm1432, %v2797, 0
      %v2850 = vsel %vm1432, %v2798, 0
      %v2853 = vsel %vm1432, %v2799, 0
      %v2856 = vsel %vm1432, %v2800, 0
      %v2859 = vsel %vm1432, %v2801, 0
      %v2862 = vsel %vm1432, %v2802, 0
      %v2865 = vsel %vm1432, %v2803, 0
      %v2868 = vsel %vm1432, %v2804, 0
      %v2871 = vsel %vm1432, %v2805, 0
      %v2874 = vsel %vm1432, %v2806, 0
      %v2877 = vsel %vm1432, %v2807, 0
      %v2880 = vsel %vm1432, %v2808, 0
      %v2883 = vsel %vm1432, %v2809, 0
      %v2886 = vsel %vm1432, %v2810, 0
      %v2889 = vsel %vm1432, %v2811, 0
      %v2892 = vsel %vm1432, %v2812, 0
      %v2895 = vsel %vm1432, %v2813, 0
      %v2898 = vsel %vm1432, %v2814, 0
      %v2901 = vsel %vm1432, %v2815, 0
      %v2904 = vsel %vm1432, %v2816, 0
      %vm2906 = vcmask 1041408
      %v2908 = vsel %vm2906, %v2817, 0
      %2910 = vmatprep.subr.bf16.mxu0 0
      %2911 = vmatpush1.bf16.msra.mxu0 %v2908
      %2912 = vmatprep.subr.bf16.mxu0 0
      %2913 = vmatpush1.bf16.msra.mxu0 0
      %2914 = vmatprep.subr.bf16.mxu0 0
      %2915 = vmatpush1.bf16.msra.mxu0 0
      %2916 = vmatprep.subr.bf16.mxu0 0
      %2917 = vmatpush1.bf16.msra.mxu0 0
      %2918 = vmatprep.subr.bf16.mxu0 0
      %2919 = vmatpush1.bf16.msra.mxu0 0
      %2920 = vmatprep.subr.bf16.mxu0 0
      %2921 = vmatpush1.bf16.msra.mxu0 0
      %2922 = vmatprep.subr.bf16.mxu0 0
      %2923 = vmatpush1.bf16.msra.mxu0 0
      %2924 = vmatprep.subr.bf16.mxu0 0
      %2925 = vmatpush1.bf16.msra.mxu0 0
      %2926 = vmatprep.subr.bf16.mxu0 0
      %2927 = vmatpush1.bf16.msra.mxu0 0
      %2928 = vmatprep.subr.bf16.mxu0 0
      %2929 = vmatpush1.bf16.msra.mxu0 0
      %2930 = vmatprep.subr.bf16.mxu0 0
      %2931 = vmatpush1.bf16.msra.mxu0 0
      %2932 = vmatprep.subr.bf16.mxu0 0
      %2933 = vmatpush1.bf16.msra.mxu0 0
      %2934 = vmatprep.subr.bf16.mxu0 0
      %2935 = vmatpush1.bf16.msra.mxu0 0
      %2936 = vmatprep.subr.bf16.mxu0 0
      %2937 = vmatpush1.bf16.msra.mxu0 0
      %2938 = vmatprep.subr.bf16.mxu0 0
      %2939 = vmatpush1.bf16.msra.mxu0 0
      %2940 = vmatprep.subr.bf16.mxu0 0
      %2941 = vmatpush1.bf16.msra.mxu0 0
      %2942 = vmatprep.mubr.bf16.mxu0 0
      %2943 = vmatmul.mubr.bf16.gmra.mrb[0].mxu0 %v2826
      %v2944 = vpop.f32.mrb[0].mxu0
      %v2945 = vadd.f32 %v2823, %v2944
      %v2946 = vpop.f32.mrb[0].mxu0
      %v2947 = vpop.f32.mrb[0].mxu0
      %v2948 = vadd.f32 %v2823, %v2947
      %v2949 = vpop.f32.mrb[0].mxu0
      %2950 = vmatprep.mubr.bf16.mxu0 0
      %2951 = vmatmul.mubr.bf16.gmra.mrb[0].mxu0 %v2829
      %v2952 = vpop.f32.mrb[0].mxu0
      %v2953 = vadd.f32 %v2823, %v2952
      %v2954 = vpop.f32.mrb[0].mxu0
      %v2955 = vpop.f32.mrb[0].mxu0
      %v2956 = vadd.f32 %v2823, %v2955
      %v2957 = vpop.f32.mrb[0].mxu0
      %2958 = vmatprep.mubr.bf16.mxu0 0
      %2959 = vmatmul.mubr.bf16.gmra.mrb[0].mxu0 %v2832
      %v2960 = vpop.f32.mrb[0].mxu0
      %v2961 = vadd.f32 %v2823, %v2960
      %v2962 = vpop.f32.mrb[0].mxu0
      %v2963 = vpop.f32.mrb[0].mxu0
      %v2964 = vadd.f32 %v2823, %v2963
      %v2965 = vpop.f32.mrb[0].mxu0
      %2966 = vmatprep.mubr.bf16.mxu0 0
      %2967 = vmatmul.mubr.bf16.gmra.mrb[0].mxu0 %v2835
      %v2968 = vpop.f32.mrb[0].mxu0
      %v2969 = vadd.f32 %v2823, %v2968
      %v2970 = vpop.f32.mrb[0].mxu0
      %v2971 = vpop.f32.mrb[0].mxu0
      %v2972 = vadd.f32 %v2823, %v2971
      %v2973 = vpop.f32.mrb[0].mxu0
      %2974 = vmatprep.mubr.bf16.mxu0 0
      %2975 = vmatmul.mubr.bf16.gmra.mrb[0].mxu0 %v2838
      %v2976 = vpop.f32.mrb[0].mxu0
      %v2977 = vadd.f32 %v2823, %v2976
      %v2978 = vpop.f32.mrb[0].mxu0
      %v2979 = vpop.f32.mrb[0].mxu0
      %v2980 = vadd.f32 %v2823, %v2979
      %v2981 = vpop.f32.mrb[0].mxu0
      %2982 = vmatprep.mubr.bf16.mxu0 0
      %2983 = vmatmul.mubr.bf16.gmra.mrb[0].mxu0 %v2841
      %v2984 = vpop.f32.mrb[0].mxu0
      %v2985 = vadd.f32 %v2823, %v2984
      %v2986 = vpop.f32.mrb[0].mxu0
      %v2987 = vpop.f32.mrb[0].mxu0
      %v2988 = vadd.f32 %v2823, %v2987
      %v2989 = vpop.f32.mrb[0].mxu0
      %2990 = vmatprep.mubr.bf16.mxu0 0
      %2991 = vmatmul.mubr.bf16.gmra.mrb[0].mxu0 %v2844
      %v2992 = vpop.f32.mrb[0].mxu0
      %v2993 = vadd.f32 %v2823, %v2992
      %v2994 = vpop.f32.mrb[0].mxu0
      %v2995 = vpop.f32.mrb[0].mxu0
      %v2996 = vadd.f32 %v2823, %v2995
      %v2997 = vpop.f32.mrb[0].mxu0
      %2998 = vmatprep.mubr.bf16.mxu0 0
      %2999 = vmatmul.mubr.bf16.gmra.mrb[0].mxu0 %v2847
      %v3000 = vpop.f32.mrb[0].mxu0
      %v3001 = vadd.f32 %v2823, %v3000
      %v3002 = vpop.f32.mrb[0].mxu0
      %v3003 = vpop.f32.mrb[0].mxu0
      %v3004 = vadd.f32 %v2823, %v3003
      %v3005 = vpop.f32.mrb[0].mxu0
      %3006 = vmatprep.mubr.bf16.mxu0 0
      %3007 = vmatmul.mubr.bf16.gmra.mrb[0].mxu0 %v2850
      %v3008 = vpop.f32.mrb[0].mxu0
      %v3009 = vadd.f32 %v2823, %v3008
      %v3010 = vpop.f32.mrb[0].mxu0
      %v3011 = vpop.f32.mrb[0].mxu0
      %v3012 = vadd.f32 %v2823, %v3011
      %v3013 = vpop.f32.mrb[0].mxu0
      %3014 = vmatprep.mubr.bf16.mxu0 0
      %3015 = vmatmul.mubr.bf16.gmra.mrb[0].mxu0 %v2853
      %v3016 = vpop.f32.mrb[0].mxu0
      %v3017 = vadd.f32 %v2823, %v3016
      %v3018 = vpop.f32.mrb[0].mxu0
      %v3019 = vpop.f32.mrb[0].mxu0
      %v3020 = vadd.f32 %v2823, %v3019
      %v3021 = vpop.f32.mrb[0].mxu0
      %3022 = vmatprep.mubr.bf16.mxu0 0
      %3023 = vmatmul.mubr.bf16.gmra.mrb[0].mxu0 %v2856
      %v3024 = vpop.f32.mrb[0].mxu0
      %v3025 = vadd.f32 %v2823, %v3024
      %v3026 = vpop.f32.mrb[0].mxu0
      %v3027 = vpop.f32.mrb[0].mxu0
      %v3028 = vadd.f32 %v2823, %v3027
      %v3029 = vpop.f32.mrb[0].mxu0
      %3030 = vmatprep.mubr.bf16.mxu0 0
      %3031 = vmatmul.mubr.bf16.gmra.mrb[0].mxu0 %v2859
      %v3032 = vpop.f32.mrb[0].mxu0
      %v3033 = vadd.f32 %v2823, %v3032
      %v3034 = vpop.f32.mrb[0].mxu0
      %v3035 = vpop.f32.mrb[0].mxu0
      %v3036 = vadd.f32 %v2823, %v3035
      %v3037 = vpop.f32.mrb[0].mxu0
      %3038 = vmatprep.mubr.bf16.mxu0 0
      %3039 = vmatmul.mubr.bf16.gmra.mrb[0].mxu0 %v2862
      %v3040 = vpop.f32.mrb[0].mxu0
      %v3041 = vadd.f32 %v2823, %v3040
      %v3042 = vpop.f32.mrb[0].mxu0
      %v3043 = vpop.f32.mrb[0].mxu0
      %v3044 = vadd.f32 %v2823, %v3043
      %v3045 = vpop.f32.mrb[0].mxu0
      %3046 = vmatprep.mubr.bf16.mxu0 0
      %3047 = vmatmul.mubr.bf16.gmra.mrb[0].mxu0 %v2865
      %v3048 = vpop.f32.mrb[0].mxu0
      %v3049 = vadd.f32 %v2823, %v3048
      %v3050 = vpop.f32.mrb[0].mxu0
      %v3051 = vpop.f32.mrb[0].mxu0
      %v3052 = vadd.f32 %v2823, %v3051
      %v3053 = vpop.f32.mrb[0].mxu0
      %3054 = vmatprep.mubr.bf16.mxu0 0
      %3055 = vmatmul.mubr.bf16.gmra.mrb[0].mxu0 %v2868
      %v3056 = vpop.f32.mrb[0].mxu0
      %v3057 = vadd.f32 %v2823, %v3056
      %v3058 = vpop.f32.mrb[0].mxu0
      %v3059 = vpop.f32.mrb[0].mxu0
      %v3060 = vadd.f32 %v2823, %v3059
      %v3061 = vpop.f32.mrb[0].mxu0
      %3062 = vmatprep.mubr.bf16.mxu0 0
      %3063 = vmatmul.mubr.bf16.gmra.mrb[0].mxu0 %v2871
      %v3064 = vpop.f32.mrb[0].mxu0
      %v3065 = vadd.f32 %v2823, %v3064
      %v3066 = vpop.f32.mrb[0].mxu0
      %v3067 = vpop.f32.mrb[0].mxu0
      %v3068 = vadd.f32 %v2823, %v3067
      %v3069 = vpop.f32.mrb[0].mxu0
      %3070 = vmatprep.mubr.bf16.mxu0 0
      %3071 = vmatmul.mubr.bf16.gmra.mrb[0].mxu0 %v2874
      %v3072 = vpop.f32.mrb[0].mxu0
      %v3073 = vadd.f32 %v2823, %v3072
      %v3074 = vpop.f32.mrb[0].mxu0
      %v3075 = vpop.f32.mrb[0].mxu0
      %v3076 = vadd.f32 %v2823, %v3075
      %v3077 = vpop.f32.mrb[0].mxu0
      %3078 = vmatprep.mubr.bf16.mxu0 0
      %3079 = vmatmul.mubr.bf16.gmra.mrb[0].mxu0 %v2877
      %v3080 = vpop.f32.mrb[0].mxu0
      %v3081 = vadd.f32 %v2823, %v3080
      %v3082 = vpop.f32.mrb[0].mxu0
      %v3083 = vpop.f32.mrb[0].mxu0
      %v3084 = vadd.f32 %v2823, %v3083
      %v3085 = vpop.f32.mrb[0].mxu0
      %3086 = vmatprep.mubr.bf16.mxu0 0
      %3087 = vmatmul.mubr.bf16.gmra.mrb[0].mxu0 %v2880
      %v3088 = vpop.f32.mrb[0].mxu0
      %v3089 = vadd.f32 %v2823, %v3088
      %v3090 = vpop.f32.mrb[0].mxu0
      %v3091 = vpop.f32.mrb[0].mxu0
      %v3092 = vadd.f32 %v2823, %v3091
      %v3093 = vpop.f32.mrb[0].mxu0
      %3094 = vmatprep.mubr.bf16.mxu0 0
      %3095 = vmatmul.mubr.bf16.gmra.mrb[0].mxu0 %v2883
      %v3096 = vpop.f32.mrb[0].mxu0
      %v3097 = vadd.f32 %v2823, %v3096
      %v3098 = vpop.f32.mrb[0].mxu0
      %v3099 = vpop.f32.mrb[0].mxu0
      %v3100 = vadd.f32 %v2823, %v3099
      %v3101 = vpop.f32.mrb[0].mxu0
      %3102 = vmatprep.mubr.bf16.mxu0 0
      %3103 = vmatmul.mubr.bf16.gmra.mrb[0].mxu0 %v2886
      %v3104 = vpop.f32.mrb[0].mxu0
      %v3105 = vadd.f32 %v2823, %v3104
      %v3106 = vpop.f32.mrb[0].mxu0
      %v3107 = vpop.f32.mrb[0].mxu0
      %v3108 = vadd.f32 %v2823, %v3107
      %v3109 = vpop.f32.mrb[0].mxu0
      %3110 = vmatprep.mubr.bf16.mxu0 0
      %3111 = vmatmul.mubr.bf16.gmra.mrb[0].mxu0 %v2889
      %v3112 = vpop.f32.mrb[0].mxu0
      %v3113 = vadd.f32 %v2823, %v3112
      %v3114 = vpop.f32.mrb[0].mxu0
      %v3115 = vpop.f32.mrb[0].mxu0
      %v3116 = vadd.f32 %v2823, %v3115
      %v3117 = vpop.f32.mrb[0].mxu0
      %3118 = vmatprep.mubr.bf16.mxu0 0
      %3119 = vmatmul.mubr.bf16.gmra.mrb[0].mxu0 %v2892
      %v3120 = vpop.f32.mrb[0].mxu0
      %v3121 = vadd.f32 %v2823, %v3120
      %v3122 = vpop.f32.mrb[0].mxu0
      %v3123 = vpop.f32.mrb[0].mxu0
      %v3124 = vadd.f32 %v2823, %v3123
      %v3125 = vpop.f32.mrb[0].mxu0
      %3126 = vmatprep.mubr.bf16.mxu0 0
      %3127 = vmatmul.mubr.bf16.gmra.mrb[0].mxu0 %v2895
      %v3128 = vpop.f32.mrb[0].mxu0
      %v3129 = vadd.f32 %v2823, %v3128
      %v3130 = vpop.f32.mrb[0].mxu0
      %v3131 = vpop.f32.mrb[0].mxu0
      %v3132 = vadd.f32 %v2823, %v3131
      %v3133 = vpop.f32.mrb[0].mxu0
      %3134 = vmatprep.mubr.bf16.mxu0 0
      %3135 = vmatmul.mubr.bf16.gmra.mrb[0].mxu0 %v2898
      %v3136 = vpop.f32.mrb[0].mxu0
      %v3137 = vadd.f32 %v2823, %v3136
      %v3138 = vpop.f32.mrb[0].mxu0
      %v3139 = vpop.f32.mrb[0].mxu0
      %v3140 = vadd.f32 %v2823, %v3139
      %v3141 = vpop.f32.mrb[0].mxu0
      %3142 = vmatprep.mubr.bf16.mxu0 0
      %3143 = vmatmul.mubr.bf16.gmra.mrb[0].mxu0 %v2901
      %v3144 = vpop.f32.mrb[0].mxu0
      %v3145 = vadd.f32 %v2823, %v3144
      %v3146 = vpop.f32.mrb[0].mxu0
      %v3147 = vpop.f32.mrb[0].mxu0
      %v3148 = vadd.f32 %v2823, %v3147
      %v3149 = vpop.f32.mrb[0].mxu0
      %3150 = vmatprep.mubr.bf16.mxu0 0
      %3151 = vmatmul.mubr.bf16.gmra.mrb[0].mxu0 %v2904
      %v3152 = vpop.f32.mrb[0].mxu0
      %v3153 = vadd.f32 %v2823, %v3152
      %v3154 = vpop.f32.mrb[0].mxu0
      %v3155 = vpop.f32.mrb[0].mxu0
      %v3156 = vadd.f32 %v2823, %v3155
      %v3157 = vpop.f32.mrb[0].mxu0
      %3158 = vdwg.mxu0
      %vm3159 = vcmp.ge.f32.partialorder %v2945, 0.0
      %vm3160 = vcmp.ge.f32.partialorder %v2948, 0.0
      %vm3161 = vcmp.ge.f32.partialorder %v2953, 0.0
      %vm3162 = vcmp.ge.f32.partialorder %v2956, 0.0
      %vm3163 = vcmp.ge.f32.partialorder %v2961, 0.0
      %vm3164 = vcmp.ge.f32.partialorder %v2964, 0.0
      %vm3165 = vcmp.ge.f32.partialorder %v2969, 0.0
      %vm3166 = vcmp.ge.f32.partialorder %v2972, 0.0
      %vm3167 = vcmp.ge.f32.partialorder %v2977, 0.0
      %vm3168 = vcmp.ge.f32.partialorder %v2980, 0.0
      %vm3169 = vcmp.ge.f32.partialorder %v2985, 0.0
      %vm3170 = vcmp.ge.f32.partialorder %v2988, 0.0
      %vm3171 = vcmp.ge.f32.partialorder %v2993, 0.0
      %vm3172 = vcmp.ge.f32.partialorder %v2996, 0.0
      %vm3173 = vcmp.ge.f32.partialorder %v3001, 0.0
      %vm3174 = vcmp.ge.f32.partialorder %v3004, 0.0
      %vm3175 = vcmp.ge.f32.partialorder %v3009, 0.0
      %vm3176 = vcmp.ge.f32.partialorder %v3012, 0.0
      %vm3177 = vcmp.ge.f32.partialorder %v3017, 0.0
      %vm3178 = vcmp.ge.f32.partialorder %v3020, 0.0
      %vm3179 = vcmp.ge.f32.partialorder %v3025, 0.0
      %vm3180 = vcmp.ge.f32.partialorder %v3028, 0.0
      %vm3181 = vcmp.ge.f32.partialorder %v3033, 0.0
      %vm3182 = vcmp.ge.f32.partialorder %v3036, 0.0
      %vm3183 = vcmp.ge.f32.partialorder %v3041, 0.0
      %vm3184 = vcmp.ge.f32.partialorder %v3044, 0.0
      %vm3185 = vcmp.ge.f32.partialorder %v3049, 0.0
      %vm3186 = vcmp.ge.f32.partialorder %v3052, 0.0
      %vm3187 = vcmp.ge.f32.partialorder %v3057, 0.0
      %vm3188 = vcmp.ge.f32.partialorder %v3060, 0.0
      %vm3189 = vcmp.ge.f32.partialorder %v3065, 0.0
      %vm3190 = vcmp.ge.f32.partialorder %v3068, 0.0
      %vm3191 = vcmp.ge.f32.partialorder %v3073, 0.0
      %vm3192 = vcmp.ge.f32.partialorder %v3076, 0.0
      %vm3193 = vcmp.ge.f32.partialorder %v3081, 0.0
      %vm3194 = vcmp.ge.f32.partialorder %v3084, 0.0
      %vm3195 = vcmp.ge.f32.partialorder %v3089, 0.0
      %vm3196 = vcmp.ge.f32.partialorder %v3092, 0.0
      %vm3197 = vcmp.ge.f32.partialorder %v3097, 0.0
      %vm3198 = vcmp.ge.f32.partialorder %v3100, 0.0
      %vm3199 = vcmp.ge.f32.partialorder %v3105, 0.0
      %vm3200 = vcmp.ge.f32.partialorder %v3108, 0.0
      %vm3201 = vcmp.ge.f32.partialorder %v3113, 0.0
      %vm3202 = vcmp.ge.f32.partialorder %v3116, 0.0
      %vm3203 = vcmp.ge.f32.partialorder %v3121, 0.0
      %vm3204 = vcmp.ge.f32.partialorder %v3124, 0.0
      %vm3205 = vcmp.ge.f32.partialorder %v3129, 0.0
      %vm3206 = vcmp.ge.f32.partialorder %v3132, 0.0
      %vm3207 = vcmp.ge.f32.partialorder %v3137, 0.0
      %vm3208 = vcmp.ge.f32.partialorder %v3140, 0.0
      %vm3209 = vcmp.ge.f32.partialorder %v3145, 0.0
      %vm3210 = vcmp.ge.f32.partialorder %v3148, 0.0
      %vm3211 = vcmp.ge.f32.partialorder %v3153, 0.0
      %vm3212 = vcmp.ge.f32.partialorder %v3156, 0.0
      %v3213 = vmul.f32 %v2945, 0.2
      %v3214 = vmul.f32 %v2948, 0.2
      %v3215 = vmul.f32 %v2953, 0.2
      %v3216 = vmul.f32 %v2956, 0.2
      %v3217 = vmul.f32 %v2961, 0.2
      %v3218 = vmul.f32 %v2964, 0.2
      %v3219 = vmul.f32 %v2969, 0.2
      %v3220 = vmul.f32 %v2972, 0.2
      %v3221 = vmul.f32 %v2977, 0.2
      %v3222 = vmul.f32 %v2980, 0.2
      %v3223 = vmul.f32 %v2985, 0.2
      %v3224 = vmul.f32 %v2988, 0.2
      %v3225 = vmul.f32 %v2993, 0.2
      %v3226 = vmul.f32 %v2996, 0.2
      %v3227 = vmul.f32 %v3001, 0.2
      %v3228 = vmul.f32 %v3004, 0.2
      %v3229 = vmul.f32 %v3009, 0.2
      %v3230 = vmul.f32 %v3012, 0.2
      %v3231 = vmul.f32 %v3017, 0.2
      %v3232 = vmul.f32 %v3020, 0.2
      %v3233 = vmul.f32 %v3025, 0.2
      %v3234 = vmul.f32 %v3028, 0.2
      %v3235 = vmul.f32 %v3033, 0.2
      %v3236 = vmul.f32 %v3036, 0.2
      %v3237 = vmul.f32 %v3041, 0.2
      %v3238 = vmul.f32 %v3044, 0.2
      %v3239 = vmul.f32 %v3049, 0.2
      %v3240 = vmul.f32 %v3052, 0.2
      %v3241 = vmul.f32 %v3057, 0.2
      %v3242 = vmul.f32 %v3060, 0.2
      %v3243 = vmul.f32 %v3065, 0.2
      %v3244 = vmul.f32 %v3068, 0.2
      %v3245 = vmul.f32 %v3073, 0.2
      %v3246 = vmul.f32 %v3076, 0.2
      %v3247 = vmul.f32 %v3081, 0.2
      %v3248 = vmul.f32 %v3084, 0.2
      %v3249 = vmul.f32 %v3089, 0.2
      %v3250 = vmul.f32 %v3092, 0.2
      %v3251 = vmul.f32 %v3097, 0.2
      %v3252 = vmul.f32 %v3100, 0.2
      %v3253 = vmul.f32 %v3105, 0.2
      %v3254 = vmul.f32 %v3108, 0.2
      %v3255 = vmul.f32 %v3113, 0.2
      %v3256 = vmul.f32 %v3116, 0.2
      %v3257 = vmul.f32 %v3121, 0.2
      %v3258 = vmul.f32 %v3124, 0.2
      %v3259 = vmul.f32 %v3129, 0.2
      %v3260 = vmul.f32 %v3132, 0.2
      %v3261 = vmul.f32 %v3137, 0.2
      %v3262 = vmul.f32 %v3140, 0.2
      %v3263 = vmul.f32 %v3145, 0.2
      %v3264 = vmul.f32 %v3148, 0.2
      %v3265 = vmul.f32 %v3153, 0.2
      %v3266 = vmul.f32 %v3156, 0.2
      %v3267 = vsel %vm3159, %v2945, %v3213
      %v3268 = vsel %vm3160, %v2948, %v3214
      %v3269 = vsel %vm3161, %v2953, %v3215
      %v3270 = vsel %vm3162, %v2956, %v3216
      %v3271 = vsel %vm3163, %v2961, %v3217
      %v3272 = vsel %vm3164, %v2964, %v3218
      %v3273 = vsel %vm3165, %v2969, %v3219
      %v3274 = vsel %vm3166, %v2972, %v3220
      %v3275 = vsel %vm3167, %v2977, %v3221
      %v3276 = vsel %vm3168, %v2980, %v3222
      %v3277 = vsel %vm3169, %v2985, %v3223
      %v3278 = vsel %vm3170, %v2988, %v3224
      %v3279 = vsel %vm3171, %v2993, %v3225
      %v3280 = vsel %vm3172, %v2996, %v3226
      %v3281 = vsel %vm3173, %v3001, %v3227
      %v3282 = vsel %vm3174, %v3004, %v3228
      %v3283 = vsel %vm3175, %v3009, %v3229
      %v3284 = vsel %vm3176, %v3012, %v3230
      %v3285 = vsel %vm3177, %v3017, %v3231
      %v3286 = vsel %vm3178, %v3020, %v3232
      %v3287 = vsel %vm3179, %v3025, %v3233
      %v3288 = vsel %vm3180, %v3028, %v3234
      %v3289 = vsel %vm3181, %v3033, %v3235
      %v3290 = vsel %vm3182, %v3036, %v3236
      %v3291 = vsel %vm3183, %v3041, %v3237
      %v3292 = vsel %vm3184, %v3044, %v3238
      %v3293 = vsel %vm3185, %v3049, %v3239
      %v3294 = vsel %vm3186, %v3052, %v3240
      %v3295 = vsel %vm3187, %v3057, %v3241
      %v3296 = vsel %vm3188, %v3060, %v3242
      %v3297 = vsel %vm3189, %v3065, %v3243
      %v3298 = vsel %vm3190, %v3068, %v3244
      %v3299 = vsel %vm3191, %v3073, %v3245
      %v3300 = vsel %vm3192, %v3076, %v3246
      %v3301 = vsel %vm3193, %v3081, %v3247
      %v3302 = vsel %vm3194, %v3084, %v3248
      %v3303 = vsel %vm3195, %v3089, %v3249
      %v3304 = vsel %vm3196, %v3092, %v3250
      %v3305 = vsel %vm3197, %v3097, %v3251
      %v3306 = vsel %vm3198, %v3100, %v3252
      %v3307 = vsel %vm3199, %v3105, %v3253
      %v3308 = vsel %vm3200, %v3108, %v3254
      %v3309 = vsel %vm3201, %v3113, %v3255
      %v3310 = vsel %vm3202, %v3116, %v3256
      %v3311 = vsel %vm3203, %v3121, %v3257
      %v3312 = vsel %vm3204, %v3124, %v3258
      %v3313 = vsel %vm3205, %v3129, %v3259
      %v3314 = vsel %vm3206, %v3132, %v3260
      %v3315 = vsel %vm3207, %v3137, %v3261
      %v3316 = vsel %vm3208, %v3140, %v3262
      %v3317 = vsel %vm3209, %v3145, %v3263
      %v3318 = vsel %vm3210, %v3148, %v3264
      %v3319 = vsel %vm3211, %v3153, %v3265
      %v3320 = vsel %vm3212, %v3156, %v3266
      %v3321 = vsel %vm523, 1, 0
      %v3322 = vsel %vm524, 1, 0
      %v3323 = vsel %vm525, 1, 0
      %v3324 = vsel %vm526, 1, 0
      %v3325 = vsel %vm527, 1, 0
      %v3326 = vsel %vm528, 1, 0
      %v3327 = vsel %vm529, 1, 0
      %v3328 = vsel %vm530, 1, 0
      %v3329 = vsel %vm531, 1, 0
      %v3330 = vsel %vm532, 1, 0
      %v3331 = vsel %vm533, 1, 0
      %v3332 = vsel %vm534, 1, 0
      %v3333 = vsel %vm535, 1, 0
      %v3334 = vsel %vm536, 1, 0
      %v3335 = vsel %vm537, 1, 0
      %v3336 = vsel %vm538, 1, 0
      %v3337 = vsel %vm539, 1, 0
      %v3338 = vsel %vm540, 1, 0
      %v3339 = vsel %vm541, 1, 0
      %v3340 = vsel %vm542, 1, 0
      %v3341 = vsel %vm543, 1, 0
      %v3342 = vsel %vm544, 1, 0
      %v3343 = vsel %vm545, 1, 0
      %v3344 = vsel %vm546, 1, 0
      %v3345 = vsel %vm547, 1, 0
      %v3346 = vsel %vm548, 1, 0
      %v3347 = vsel %vm549, 1, 0
      %v3348 = vsel %vm550, 1, 0
      %v3349 = vsel %vm551, 1, 0
      %v3350 = vsel %vm552, 1, 0
      %v3351 = vsel %vm553, 1, 0
      %v3352 = vsel %vm554, 1, 0
      %v3353 = vsel %vm555, 1, 0
      %v3354 = vsel %vm556, 1, 0
      %v3355 = vsel %vm557, 1, 0
      %v3356 = vsel %vm558, 1, 0
      %v3357 = vsel %vm559, 1, 0
      %v3358 = vsel %vm560, 1, 0
      %v3359 = vsel %vm561, 1, 0
      %v3360 = vsel %vm562, 1, 0
      %v3361 = vsel %vm563, 1, 0
      %v3362 = vsel %vm564, 1, 0
      %v3363 = vsel %vm565, 1, 0
      %v3364 = vsel %vm566, 1, 0
      %v3365 = vsel %vm567, 1, 0
      %v3366 = vsel %vm568, 1, 0
      %v3367 = vsel %vm569, 1, 0
      %v3368 = vsel %vm570, 1, 0
      %v3369 = vsel %vm571, 1, 0
      %v3370 = vsel %vm572, 1, 0
      %v3371 = vsel %vm573, 1, 0
      %v3372 = vsel %vm574, 1, 0
      %v3373 = vsel %vm575, 1, 0
      %v3374 = vsel %vm576, 1, 0
      %3375 = vset.pattern.permute.xlu0 0
      %3376 = vperm.xlu0 %3375, %v3321
      %v3377 = vpop.permute.xlu0 %3376
      %3378 = vset.pattern.permute.xlu0 0
      %3379 = vperm.xlu0 %3378, %v3322
      %v3380 = vpop.permute.xlu0 %3379
      %3381 = vset.pattern.permute.xlu0 0
      %3382 = vperm.xlu0 %3381, %v3323
      %v3383 = vpop.permute.xlu0 %3382
      %3384 = vset.pattern.permute.xlu0 0
      %3385 = vperm.xlu0 %3384, %v3324
      %v3386 = vpop.permute.xlu0 %3385
      %3387 = vset.pattern.permute.xlu0 0
      %3388 = vperm.xlu0 %3387, %v3325
      %v3389 = vpop.permute.xlu0 %3388
      %3390 = vset.pattern.permute.xlu0 0
      %3391 = vperm.xlu0 %3390, %v3326
      %v3392 = vpop.permute.xlu0 %3391
      %3393 = vset.pattern.permute.xlu0 0
      %3394 = vperm.xlu0 %3393, %v3327
      %v3395 = vpop.permute.xlu0 %3394
      %3396 = vset.pattern.permute.xlu0 0
      %3397 = vperm.xlu0 %3396, %v3328
      %v3398 = vpop.permute.xlu0 %3397
      %3399 = vset.pattern.permute.xlu0 0
      %3400 = vperm.xlu0 %3399, %v3329
      %v3401 = vpop.permute.xlu0 %3400
      %3402 = vset.pattern.permute.xlu0 0
      %3403 = vperm.xlu0 %3402, %v3330
      %v3404 = vpop.permute.xlu0 %3403
      %3405 = vset.pattern.permute.xlu0 0
      %3406 = vperm.xlu0 %3405, %v3331
      %v3407 = vpop.permute.xlu0 %3406
      %3408 = vset.pattern.permute.xlu0 0
      %3409 = vperm.xlu0 %3408, %v3332
      %v3410 = vpop.permute.xlu0 %3409
      %3411 = vset.pattern.permute.xlu0 0
      %3412 = vperm.xlu0 %3411, %v3333
      %v3413 = vpop.permute.xlu0 %3412
      %3414 = vset.pattern.permute.xlu0 0
      %3415 = vperm.xlu0 %3414, %v3334
      %v3416 = vpop.permute.xlu0 %3415
      %3417 = vset.pattern.permute.xlu0 0
      %3418 = vperm.xlu0 %3417, %v3335
      %v3419 = vpop.permute.xlu0 %3418
      %3420 = vset.pattern.permute.xlu0 0
      %3421 = vperm.xlu0 %3420, %v3336
      %v3422 = vpop.permute.xlu0 %3421
      %3423 = vset.pattern.permute.xlu0 0
      %3424 = vperm.xlu0 %3423, %v3337
      %v3425 = vpop.permute.xlu0 %3424
      %3426 = vset.pattern.permute.xlu0 0
      %3427 = vperm.xlu0 %3426, %v3338
      %v3428 = vpop.permute.xlu0 %3427
      %3429 = vset.pattern.permute.xlu0 0
      %3430 = vperm.xlu0 %3429, %v3339
      %v3431 = vpop.permute.xlu0 %3430
      %3432 = vset.pattern.permute.xlu0 0
      %3433 = vperm.xlu0 %3432, %v3340
      %v3434 = vpop.permute.xlu0 %3433
      %3435 = vset.pattern.permute.xlu0 0
      %3436 = vperm.xlu0 %3435, %v3341
      %v3437 = vpop.permute.xlu0 %3436
      %3438 = vset.pattern.permute.xlu0 0
      %3439 = vperm.xlu0 %3438, %v3342
      %v3440 = vpop.permute.xlu0 %3439
      %3441 = vset.pattern.permute.xlu0 0
      %3442 = vperm.xlu0 %3441, %v3343
      %v3443 = vpop.permute.xlu0 %3442
      %3444 = vset.pattern.permute.xlu0 0
      %3445 = vperm.xlu0 %3444, %v3344
      %v3446 = vpop.permute.xlu0 %3445
      %3447 = vset.pattern.permute.xlu0 0
      %3448 = vperm.xlu0 %3447, %v3345
      %v3449 = vpop.permute.xlu0 %3448
      %3450 = vset.pattern.permute.xlu0 0
      %3451 = vperm.xlu0 %3450, %v3346
      %v3452 = vpop.permute.xlu0 %3451
      %3453 = vset.pattern.permute.xlu0 0
      %3454 = vperm.xlu0 %3453, %v3347
      %v3455 = vpop.permute.xlu0 %3454
      %3456 = vset.pattern.permute.xlu0 0
      %3457 = vperm.xlu0 %3456, %v3348
      %v3458 = vpop.permute.xlu0 %3457
      %3459 = vset.pattern.permute.xlu0 0
      %3460 = vperm.xlu0 %3459, %v3349
      %v3461 = vpop.permute.xlu0 %3460
      %3462 = vset.pattern.permute.xlu0 0
      %3463 = vperm.xlu0 %3462, %v3350
      %v3464 = vpop.permute.xlu0 %3463
      %3465 = vset.pattern.permute.xlu0 0
      %3466 = vperm.xlu0 %3465, %v3351
      %v3467 = vpop.permute.xlu0 %3466
      %3468 = vset.pattern.permute.xlu0 0
      %3469 = vperm.xlu0 %3468, %v3352
      %v3470 = vpop.permute.xlu0 %3469
      %3471 = vset.pattern.permute.xlu0 0
      %3472 = vperm.xlu0 %3471, %v3353
      %v3473 = vpop.permute.xlu0 %3472
      %3474 = vset.pattern.permute.xlu0 0
      %3475 = vperm.xlu0 %3474, %v3354
      %v3476 = vpop.permute.xlu0 %3475
      %3477 = vset.pattern.permute.xlu0 0
      %3478 = vperm.xlu0 %3477, %v3355
      %v3479 = vpop.permute.xlu0 %3478
      %3480 = vset.pattern.permute.xlu0 0
      %3481 = vperm.xlu0 %3480, %v3356
      %v3482 = vpop.permute.xlu0 %3481
      %3483 = vset.pattern.permute.xlu0 0
      %3484 = vperm.xlu0 %3483, %v3357
      %v3485 = vpop.permute.xlu0 %3484
      %3486 = vset.pattern.permute.xlu0 0
      %3487 = vperm.xlu0 %3486, %v3358
      %v3488 = vpop.permute.xlu0 %3487
      %3489 = vset.pattern.permute.xlu0 0
      %3490 = vperm.xlu0 %3489, %v3359
      %v3491 = vpop.permute.xlu0 %3490
      %3492 = vset.pattern.permute.xlu0 0
      %3493 = vperm.xlu0 %3492, %v3360
      %v3494 = vpop.permute.xlu0 %3493
      %3495 = vset.pattern.permute.xlu0 0
      %3496 = vperm.xlu0 %3495, %v3361
      %v3497 = vpop.permute.xlu0 %3496
      %3498 = vset.pattern.permute.xlu0 0
      %3499 = vperm.xlu0 %3498, %v3362
      %v3500 = vpop.permute.xlu0 %3499
      %3501 = vset.pattern.permute.xlu0 0
      %3502 = vperm.xlu0 %3501, %v3363
      %v3503 = vpop.permute.xlu0 %3502
      %3504 = vset.pattern.permute.xlu0 0
      %3505 = vperm.xlu0 %3504, %v3364
      %v3506 = vpop.permute.xlu0 %3505
      %3507 = vset.pattern.permute.xlu0 0
      %3508 = vperm.xlu0 %3507, %v3365
      %v3509 = vpop.permute.xlu0 %3508
      %3510 = vset.pattern.permute.xlu0 0
      %3511 = vperm.xlu0 %3510, %v3366
      %v3512 = vpop.permute.xlu0 %3511
      %3513 = vset.pattern.permute.xlu0 0
      %3514 = vperm.xlu0 %3513, %v3367
      %v3515 = vpop.permute.xlu0 %3514
      %3516 = vset.pattern.permute.xlu0 0
      %3517 = vperm.xlu0 %3516, %v3368
      %v3518 = vpop.permute.xlu0 %3517
      %3519 = vset.pattern.permute.xlu0 0
      %3520 = vperm.xlu0 %3519, %v3369
      %v3521 = vpop.permute.xlu0 %3520
      %3522 = vset.pattern.permute.xlu0 0
      %3523 = vperm.xlu0 %3522, %v3370
      %v3524 = vpop.permute.xlu0 %3523
      %3525 = vset.pattern.permute.xlu0 0
      %3526 = vperm.xlu0 %3525, %v3371
      %v3527 = vpop.permute.xlu0 %3526
      %3528 = vset.pattern.permute.xlu0 0
      %3529 = vperm.xlu0 %3528, %v3372
      %v3530 = vpop.permute.xlu0 %3529
      %3531 = vset.pattern.permute.xlu0 0
      %3532 = vperm.xlu0 %3531, %v3373
      %v3533 = vpop.permute.xlu0 %3532
      %3534 = vset.pattern.permute.xlu0 0
      %3535 = vperm.xlu0 %3534, %v3374
      %v3536 = vpop.permute.xlu0 %3535
      %vm3537 = vcmp.eq.s32.totalorder %v3377, 1
      %vm3538 = vcmp.eq.s32.totalorder %v3380, 1
      %vm3539 = vcmp.eq.s32.totalorder %v3383, 1
      %vm3540 = vcmp.eq.s32.totalorder %v3386, 1
      %vm3541 = vcmp.eq.s32.totalorder %v3389, 1
      %vm3542 = vcmp.eq.s32.totalorder %v3392, 1
      %vm3543 = vcmp.eq.s32.totalorder %v3395, 1
      %vm3544 = vcmp.eq.s32.totalorder %v3398, 1
      %vm3545 = vcmp.eq.s32.totalorder %v3401, 1
      %vm3546 = vcmp.eq.s32.totalorder %v3404, 1
      %vm3547 = vcmp.eq.s32.totalorder %v3407, 1
      %vm3548 = vcmp.eq.s32.totalorder %v3410, 1
      %vm3549 = vcmp.eq.s32.totalorder %v3413, 1
      %vm3550 = vcmp.eq.s32.totalorder %v3416, 1
      %vm3551 = vcmp.eq.s32.totalorder %v3419, 1
      %vm3552 = vcmp.eq.s32.totalorder %v3422, 1
      %vm3553 = vcmp.eq.s32.totalorder %v3425, 1
      %vm3554 = vcmp.eq.s32.totalorder %v3428, 1
      %vm3555 = vcmp.eq.s32.totalorder %v3431, 1
      %vm3556 = vcmp.eq.s32.totalorder %v3434, 1
      %vm3557 = vcmp.eq.s32.totalorder %v3437, 1
      %vm3558 = vcmp.eq.s32.totalorder %v3440, 1
      %vm3559 = vcmp.eq.s32.totalorder %v3443, 1
      %vm3560 = vcmp.eq.s32.totalorder %v3446, 1
      %vm3561 = vcmp.eq.s32.totalorder %v3449, 1
      %vm3562 = vcmp.eq.s32.totalorder %v3452, 1
      %vm3563 = vcmp.eq.s32.totalorder %v3455, 1
      %vm3564 = vcmp.eq.s32.totalorder %v3458, 1
      %vm3565 = vcmp.eq.s32.totalorder %v3461, 1
      %vm3566 = vcmp.eq.s32.totalorder %v3464, 1
      %vm3567 = vcmp.eq.s32.totalorder %v3467, 1
      %vm3568 = vcmp.eq.s32.totalorder %v3470, 1
      %vm3569 = vcmp.eq.s32.totalorder %v3473, 1
      %vm3570 = vcmp.eq.s32.totalorder %v3476, 1
      %vm3571 = vcmp.eq.s32.totalorder %v3479, 1
      %vm3572 = vcmp.eq.s32.totalorder %v3482, 1
      %vm3573 = vcmp.eq.s32.totalorder %v3485, 1
      %vm3574 = vcmp.eq.s32.totalorder %v3488, 1
      %vm3575 = vcmp.eq.s32.totalorder %v3491, 1
      %vm3576 = vcmp.eq.s32.totalorder %v3494, 1
      %vm3577 = vcmp.eq.s32.totalorder %v3497, 1
      %vm3578 = vcmp.eq.s32.totalorder %v3500, 1
      %vm3579 = vcmp.eq.s32.totalorder %v3503, 1
      %vm3580 = vcmp.eq.s32.totalorder %v3506, 1
      %vm3581 = vcmp.eq.s32.totalorder %v3509, 1
      %vm3582 = vcmp.eq.s32.totalorder %v3512, 1
      %vm3583 = vcmp.eq.s32.totalorder %v3515, 1
      %vm3584 = vcmp.eq.s32.totalorder %v3518, 1
      %vm3585 = vcmp.eq.s32.totalorder %v3521, 1
      %vm3586 = vcmp.eq.s32.totalorder %v3524, 1
      %vm3587 = vcmp.eq.s32.totalorder %v3527, 1
      %vm3588 = vcmp.eq.s32.totalorder %v3530, 1
      %vm3589 = vcmp.eq.s32.totalorder %v3533, 1
      %vm3590 = vcmp.eq.s32.totalorder %v3536, 1
      %v3591 = vsel %vm3537, %v3267, 0.0
      %v3592 = vsel %vm3538, %v3268, 0.0
      %v3593 = vsel %vm3539, %v3269, 0.0
      %v3594 = vsel %vm3540, %v3270, 0.0
      %v3595 = vsel %vm3541, %v3271, 0.0
      %v3596 = vsel %vm3542, %v3272, 0.0
      %v3597 = vsel %vm3543, %v3273, 0.0
      %v3598 = vsel %vm3544, %v3274, 0.0
      %v3599 = vsel %vm3545, %v3275, 0.0
      %v3600 = vsel %vm3546, %v3276, 0.0
      %v3601 = vsel %vm3547, %v3277, 0.0
      %v3602 = vsel %vm3548, %v3278, 0.0
      %v3603 = vsel %vm3549, %v3279, 0.0
      %v3604 = vsel %vm3550, %v3280, 0.0
      %v3605 = vsel %vm3551, %v3281, 0.0
      %v3606 = vsel %vm3552, %v3282, 0.0
      %v3607 = vsel %vm3553, %v3283, 0.0
      %v3608 = vsel %vm3554, %v3284, 0.0
      %v3609 = vsel %vm3555, %v3285, 0.0
      %v3610 = vsel %vm3556, %v3286, 0.0
      %v3611 = vsel %vm3557, %v3287, 0.0
      %v3612 = vsel %vm3558, %v3288, 0.0
      %v3613 = vsel %vm3559, %v3289, 0.0
      %v3614 = vsel %vm3560, %v3290, 0.0
      %v3615 = vsel %vm3561, %v3291, 0.0
      %v3616 = vsel %vm3562, %v3292, 0.0
      %v3617 = vsel %vm3563, %v3293, 0.0
      %v3618 = vsel %vm3564, %v3294, 0.0
      %v3619 = vsel %vm3565, %v3295, 0.0
      %v3620 = vsel %vm3566, %v3296, 0.0
      %v3621 = vsel %vm3567, %v3297, 0.0
      %v3622 = vsel %vm3568, %v3298, 0.0
      %v3623 = vsel %vm3569, %v3299, 0.0
      %v3624 = vsel %vm3570, %v3300, 0.0
      %v3625 = vsel %vm3571, %v3301, 0.0
      %v3626 = vsel %vm3572, %v3302, 0.0
      %v3627 = vsel %vm3573, %v3303, 0.0
      %v3628 = vsel %vm3574, %v3304, 0.0
      %v3629 = vsel %vm3575, %v3305, 0.0
      %v3630 = vsel %vm3576, %v3306, 0.0
      %v3631 = vsel %vm3577, %v3307, 0.0
      %v3632 = vsel %vm3578, %v3308, 0.0
      %v3633 = vsel %vm3579, %v3309, 0.0
      %v3634 = vsel %vm3580, %v3310, 0.0
      %v3635 = vsel %vm3581, %v3311, 0.0
      %v3636 = vsel %vm3582, %v3312, 0.0
      %v3637 = vsel %vm3583, %v3313, 0.0
      %v3638 = vsel %vm3584, %v3314, 0.0
      %v3639 = vsel %vm3585, %v3315, 0.0
      %v3640 = vsel %vm3586, %v3316, 0.0
      %v3641 = vsel %vm3587, %v3317, 0.0
      %v3642 = vsel %vm3588, %v3318, 0.0
      %v3643 = vsel %vm3589, %v3319, 0.0
      %v3644 = vsel %vm3590, %v3320, 0.0
      %v3700 = vrot.slane 0.0, 1
      %v3701 = vsel %vm883, %v3700, %v3700
      %v3702 = vrot.slane %v3591, 1
      %v3703 = vsel %vm883, %v3700, %v3702
      %v3704 = vrot.slane %v3592, 1
      %v3705 = vsel %vm883, %v3702, %v3704
      %v3706 = vrot.slane %v3593, 1
      %v3707 = vsel %vm883, %v3704, %v3706
      %v3708 = vrot.slane %v3594, 1
      %v3709 = vsel %vm883, %v3706, %v3708
      %v3710 = vrot.slane %v3595, 1
      %v3711 = vsel %vm883, %v3708, %v3710
      %v3712 = vrot.slane %v3596, 1
      %v3713 = vsel %vm883, %v3710, %v3712
      %v3714 = vrot.slane %v3597, 1
      %v3715 = vsel %vm883, %v3712, %v3714
      %v3716 = vrot.slane %v3598, 1
      %v3717 = vsel %vm883, %v3714, %v3716
      %v3718 = vrot.slane %v3599, 1
      %v3719 = vsel %vm883, %v3716, %v3718
      %v3720 = vrot.slane %v3600, 1
      %v3721 = vsel %vm883, %v3718, %v3720
      %v3722 = vrot.slane %v3601, 1
      %v3723 = vsel %vm883, %v3720, %v3722
      %v3724 = vrot.slane %v3602, 1
      %v3725 = vsel %vm883, %v3722, %v3724
      %v3726 = vrot.slane %v3603, 1
      %v3727 = vsel %vm883, %v3724, %v3726
      %v3728 = vrot.slane %v3604, 1
      %v3729 = vsel %vm883, %v3726, %v3728
      %v3730 = vrot.slane %v3605, 1
      %v3731 = vsel %vm883, %v3728, %v3730
      %v3732 = vrot.slane %v3606, 1
      %v3733 = vsel %vm883, %v3730, %v3732
      %v3734 = vrot.slane %v3607, 1
      %v3735 = vsel %vm883, %v3732, %v3734
      %v3736 = vrot.slane %v3608, 1
      %v3737 = vsel %vm883, %v3734, %v3736
      %v3738 = vrot.slane %v3609, 1
      %v3739 = vsel %vm883, %v3736, %v3738
      %v3740 = vrot.slane %v3610, 1
      %v3741 = vsel %vm883, %v3738, %v3740
      %v3742 = vrot.slane %v3611, 1
      %v3743 = vsel %vm883, %v3740, %v3742
      %v3744 = vrot.slane %v3612, 1
      %v3745 = vsel %vm883, %v3742, %v3744
      %v3746 = vrot.slane %v3613, 1
      %v3747 = vsel %vm883, %v3744, %v3746
      %v3748 = vrot.slane %v3614, 1
      %v3749 = vsel %vm883, %v3746, %v3748
      %v3750 = vrot.slane %v3615, 1
      %v3751 = vsel %vm883, %v3748, %v3750
      %v3752 = vrot.slane %v3616, 1
      %v3753 = vsel %vm883, %v3750, %v3752
      %v3754 = vrot.slane %v3617, 1
      %v3755 = vsel %vm883, %v3752, %v3754
      %v3756 = vrot.slane %v3618, 1
      %v3757 = vsel %vm883, %v3754, %v3756
      %v3758 = vrot.slane %v3619, 1
      %v3759 = vsel %vm883, %v3756, %v3758
      %v3760 = vrot.slane %v3620, 1
      %v3761 = vsel %vm883, %v3758, %v3760
      %v3762 = vrot.slane %v3621, 1
      %v3763 = vsel %vm883, %v3760, %v3762
      %v3764 = vrot.slane %v3622, 1
      %v3765 = vsel %vm883, %v3762, %v3764
      %v3766 = vrot.slane %v3623, 1
      %v3767 = vsel %vm883, %v3764, %v3766
      %v3768 = vrot.slane %v3624, 1
      %v3769 = vsel %vm883, %v3766, %v3768
      %v3770 = vrot.slane %v3625, 1
      %v3771 = vsel %vm883, %v3768, %v3770
      %v3772 = vrot.slane %v3626, 1
      %v3773 = vsel %vm883, %v3770, %v3772
      %v3774 = vrot.slane %v3627, 1
      %v3775 = vsel %vm883, %v3772, %v3774
      %v3776 = vrot.slane %v3628, 1
      %v3777 = vsel %vm883, %v3774, %v3776
      %v3778 = vrot.slane %v3629, 1
      %v3779 = vsel %vm883, %v3776, %v3778
      %v3780 = vrot.slane %v3630, 1
      %v3781 = vsel %vm883, %v3778, %v3780
      %v3782 = vrot.slane %v3631, 1
      %v3783 = vsel %vm883, %v3780, %v3782
      %v3784 = vrot.slane %v3632, 1
      %v3785 = vsel %vm883, %v3782, %v3784
      %v3786 = vrot.slane %v3633, 1
      %v3787 = vsel %vm883, %v3784, %v3786
      %v3788 = vrot.slane %v3634, 1
      %v3789 = vsel %vm883, %v3786, %v3788
      %v3790 = vrot.slane %v3635, 1
      %v3791 = vsel %vm883, %v3788, %v3790
      %v3792 = vrot.slane %v3636, 1
      %v3793 = vsel %vm883, %v3790, %v3792
      %v3794 = vrot.slane %v3637, 1
      %v3795 = vsel %vm883, %v3792, %v3794
      %v3796 = vrot.slane %v3638, 1
      %v3797 = vsel %vm883, %v3794, %v3796
      %v3798 = vrot.slane %v3639, 1
      %v3799 = vsel %vm883, %v3796, %v3798
      %v3800 = vrot.slane %v3640, 1
      %v3801 = vsel %vm883, %v3798, %v3800
      %v3802 = vrot.slane %v3641, 1
      %v3803 = vsel %vm883, %v3800, %v3802
      %v3804 = vrot.slane %v3642, 1
      %v3805 = vsel %vm883, %v3802, %v3804
      %v3806 = vrot.slane %v3643, 1
      %v3807 = vsel %vm883, %v3804, %v3806
      %v3808 = vrot.slane %v3644, 1
      %v3809 = vsel %vm883, %v3806, %v3808
      %v3810 = vsel %vm883, %v3808, %v3700
      %3811 = vrot.lane.b32.xlu0 %v3700, 4
      %v3812 = vpop.permute.xlu0 %3811
      %3813 = vrot.lane.b32.xlu0 %v3701, 4
      %v3814 = vpop.permute.xlu0 %3813
      %3815 = vrot.lane.b32.xlu0 %v3703, 4
      %v3816 = vpop.permute.xlu0 %3815
      %3817 = vrot.lane.b32.xlu0 %v3705, 4
      %v3818 = vpop.permute.xlu0 %3817
      %3819 = vrot.lane.b32.xlu0 %v3707, 4
      %v3820 = vpop.permute.xlu0 %3819
      %3821 = vrot.lane.b32.xlu0 %v3709, 4
      %v3822 = vpop.permute.xlu0 %3821
      %3823 = vrot.lane.b32.xlu0 %v3711, 4
      %v3824 = vpop.permute.xlu0 %3823
      %3825 = vrot.lane.b32.xlu0 %v3713, 4
      %v3826 = vpop.permute.xlu0 %3825
      %3827 = vrot.lane.b32.xlu0 %v3715, 4
      %v3828 = vpop.permute.xlu0 %3827
      %3829 = vrot.lane.b32.xlu0 %v3717, 4
      %v3830 = vpop.permute.xlu0 %3829
      %3831 = vrot.lane.b32.xlu0 %v3719, 4
      %v3832 = vpop.permute.xlu0 %3831
      %3833 = vrot.lane.b32.xlu0 %v3721, 4
      %v3834 = vpop.permute.xlu0 %3833
      %3835 = vrot.lane.b32.xlu0 %v3723, 4
      %v3836 = vpop.permute.xlu0 %3835
      %3837 = vrot.lane.b32.xlu0 %v3725, 4
      %v3838 = vpop.permute.xlu0 %3837
      %3839 = vrot.lane.b32.xlu0 %v3727, 4
      %v3840 = vpop.permute.xlu0 %3839
      %3841 = vrot.lane.b32.xlu0 %v3729, 4
      %v3842 = vpop.permute.xlu0 %3841
      %3843 = vrot.lane.b32.xlu0 %v3731, 4
      %v3844 = vpop.permute.xlu0 %3843
      %3845 = vrot.lane.b32.xlu0 %v3733, 4
      %v3846 = vpop.permute.xlu0 %3845
      %3847 = vrot.lane.b32.xlu0 %v3735, 4
      %v3848 = vpop.permute.xlu0 %3847
      %3849 = vrot.lane.b32.xlu0 %v3737, 4
      %v3850 = vpop.permute.xlu0 %3849
      %3851 = vrot.lane.b32.xlu0 %v3739, 4
      %v3852 = vpop.permute.xlu0 %3851
      %3853 = vrot.lane.b32.xlu0 %v3741, 4
      %v3854 = vpop.permute.xlu0 %3853
      %3855 = vrot.lane.b32.xlu0 %v3743, 4
      %v3856 = vpop.permute.xlu0 %3855
      %3857 = vrot.lane.b32.xlu0 %v3745, 4
      %v3858 = vpop.permute.xlu0 %3857
      %3859 = vrot.lane.b32.xlu0 %v3747, 4
      %v3860 = vpop.permute.xlu0 %3859
      %3861 = vrot.lane.b32.xlu0 %v3749, 4
      %v3862 = vpop.permute.xlu0 %3861
      %3863 = vrot.lane.b32.xlu0 %v3751, 4
      %v3864 = vpop.permute.xlu0 %3863
      %3865 = vrot.lane.b32.xlu0 %v3753, 4
      %v3866 = vpop.permute.xlu0 %3865
      %3867 = vrot.lane.b32.xlu0 %v3755, 4
      %v3868 = vpop.permute.xlu0 %3867
      %3869 = vrot.lane.b32.xlu0 %v3757, 4
      %v3870 = vpop.permute.xlu0 %3869
      %3871 = vrot.lane.b32.xlu0 %v3759, 4
      %v3872 = vpop.permute.xlu0 %3871
      %3873 = vrot.lane.b32.xlu0 %v3761, 4
      %v3874 = vpop.permute.xlu0 %3873
      %3875 = vrot.lane.b32.xlu0 %v3763, 4
      %v3876 = vpop.permute.xlu0 %3875
      %3877 = vrot.lane.b32.xlu0 %v3765, 4
      %v3878 = vpop.permute.xlu0 %3877
      %3879 = vrot.lane.b32.xlu0 %v3767, 4
      %v3880 = vpop.permute.xlu0 %3879
      %3881 = vrot.lane.b32.xlu0 %v3769, 4
      %v3882 = vpop.permute.xlu0 %3881
      %3883 = vrot.lane.b32.xlu0 %v3771, 4
      %v3884 = vpop.permute.xlu0 %3883
      %3885 = vrot.lane.b32.xlu0 %v3773, 4
      %v3886 = vpop.permute.xlu0 %3885
      %3887 = vrot.lane.b32.xlu0 %v3775, 4
      %v3888 = vpop.permute.xlu0 %3887
      %3889 = vrot.lane.b32.xlu0 %v3777, 4
      %v3890 = vpop.permute.xlu0 %3889
      %3891 = vrot.lane.b32.xlu0 %v3779, 4
      %v3892 = vpop.permute.xlu0 %3891
      %3893 = vrot.lane.b32.xlu0 %v3781, 4
      %v3894 = vpop.permute.xlu0 %3893
      %3895 = vrot.lane.b32.xlu0 %v3783, 4
      %v3896 = vpop.permute.xlu0 %3895
      %3897 = vrot.lane.b32.xlu0 %v3785, 4
      %v3898 = vpop.permute.xlu0 %3897
      %3899 = vrot.lane.b32.xlu0 %v3787, 4
      %v3900 = vpop.permute.xlu0 %3899
      %3901 = vrot.lane.b32.xlu0 %v3789, 4
      %v3902 = vpop.permute.xlu0 %3901
      %3903 = vrot.lane.b32.xlu0 %v3791, 4
      %v3904 = vpop.permute.xlu0 %3903
      %3905 = vrot.lane.b32.xlu0 %v3793, 4
      %v3906 = vpop.permute.xlu0 %3905
      %3907 = vrot.lane.b32.xlu0 %v3795, 4
      %v3908 = vpop.permute.xlu0 %3907
      %3909 = vrot.lane.b32.xlu0 %v3797, 4
      %v3910 = vpop.permute.xlu0 %3909
      %3911 = vrot.lane.b32.xlu0 %v3799, 4
      %v3912 = vpop.permute.xlu0 %3911
      %3913 = vrot.lane.b32.xlu0 %v3801, 4
      %v3914 = vpop.permute.xlu0 %3913
      %3915 = vrot.lane.b32.xlu0 %v3803, 4
      %v3916 = vpop.permute.xlu0 %3915
      %3917 = vrot.lane.b32.xlu0 %v3805, 4
      %v3918 = vpop.permute.xlu0 %3917
      %3919 = vrot.lane.b32.xlu0 %v3807, 4
      %v3920 = vpop.permute.xlu0 %3919
      %3921 = vrot.lane.b32.xlu0 %v3809, 4
      %v3922 = vpop.permute.xlu0 %3921
      %3923 = vrot.lane.b32.xlu0 %v3810, 4
      %v3924 = vpop.permute.xlu0 %3923
      %v3982 = vrot.slane 0.0, 2
      %v3983 = vsel %vm1065, %v3982, %v3982
      %v3984 = vrot.slane %v3591, 2
      %v3985 = vsel %vm1065, %v3982, %v3984
      %v3986 = vrot.slane %v3592, 2
      %v3987 = vsel %vm1065, %v3984, %v3986
      %v3988 = vrot.slane %v3593, 2
      %v3989 = vsel %vm1065, %v3986, %v3988
      %v3990 = vrot.slane %v3594, 2
      %v3991 = vsel %vm1065, %v3988, %v3990
      %v3992 = vrot.slane %v3595, 2
      %v3993 = vsel %vm1065, %v3990, %v3992
      %v3994 = vrot.slane %v3596, 2
      %v3995 = vsel %vm1065, %v3992, %v3994
      %v3996 = vrot.slane %v3597, 2
      %v3997 = vsel %vm1065, %v3994, %v3996
      %v3998 = vrot.slane %v3598, 2
      %v3999 = vsel %vm1065, %v3996, %v3998
      %v4000 = vrot.slane %v3599, 2
      %v4001 = vsel %vm1065, %v3998, %v4000
      %v4002 = vrot.slane %v3600, 2
      %v4003 = vsel %vm1065, %v4000, %v4002
      %v4004 = vrot.slane %v3601, 2
      %v4005 = vsel %vm1065, %v4002, %v4004
      %v4006 = vrot.slane %v3602, 2
      %v4007 = vsel %vm1065, %v4004, %v4006
      %v4008 = vrot.slane %v3603, 2
      %v4009 = vsel %vm1065, %v4006, %v4008
      %v4010 = vrot.slane %v3604, 2
      %v4011 = vsel %vm1065, %v4008, %v4010
      %v4012 = vrot.slane %v3605, 2
      %v4013 = vsel %vm1065, %v4010, %v4012
      %v4014 = vrot.slane %v3606, 2
      %v4015 = vsel %vm1065, %v4012, %v4014
      %v4016 = vrot.slane %v3607, 2
      %v4017 = vsel %vm1065, %v4014, %v4016
      %v4018 = vrot.slane %v3608, 2
      %v4019 = vsel %vm1065, %v4016, %v4018
      %v4020 = vrot.slane %v3609, 2
      %v4021 = vsel %vm1065, %v4018, %v4020
      %v4022 = vrot.slane %v3610, 2
      %v4023 = vsel %vm1065, %v4020, %v4022
      %v4024 = vrot.slane %v3611, 2
      %v4025 = vsel %vm1065, %v4022, %v4024
      %v4026 = vrot.slane %v3612, 2
      %v4027 = vsel %vm1065, %v4024, %v4026
      %v4028 = vrot.slane %v3613, 2
      %v4029 = vsel %vm1065, %v4026, %v4028
      %v4030 = vrot.slane %v3614, 2
      %v4031 = vsel %vm1065, %v4028, %v4030
      %v4032 = vrot.slane %v3615, 2
      %v4033 = vsel %vm1065, %v4030, %v4032
      %v4034 = vrot.slane %v3616, 2
      %v4035 = vsel %vm1065, %v4032, %v4034
      %v4036 = vrot.slane %v3617, 2
      %v4037 = vsel %vm1065, %v4034, %v4036
      %v4038 = vrot.slane %v3618, 2
      %v4039 = vsel %vm1065, %v4036, %v4038
      %v4040 = vrot.slane %v3619, 2
      %v4041 = vsel %vm1065, %v4038, %v4040
      %v4042 = vrot.slane %v3620, 2
      %v4043 = vsel %vm1065, %v4040, %v4042
      %v4044 = vrot.slane %v3621, 2
      %v4045 = vsel %vm1065, %v4042, %v4044
      %v4046 = vrot.slane %v3622, 2
      %v4047 = vsel %vm1065, %v4044, %v4046
      %v4048 = vrot.slane %v3623, 2
      %v4049 = vsel %vm1065, %v4046, %v4048
      %v4050 = vrot.slane %v3624, 2
      %v4051 = vsel %vm1065, %v4048, %v4050
      %v4052 = vrot.slane %v3625, 2
      %v4053 = vsel %vm1065, %v4050, %v4052
      %v4054 = vrot.slane %v3626, 2
      %v4055 = vsel %vm1065, %v4052, %v4054
      %v4056 = vrot.slane %v3627, 2
      %v4057 = vsel %vm1065, %v4054, %v4056
      %v4058 = vrot.slane %v3628, 2
      %v4059 = vsel %vm1065, %v4056, %v4058
      %v4060 = vrot.slane %v3629, 2
      %v4061 = vsel %vm1065, %v4058, %v4060
      %v4062 = vrot.slane %v3630, 2
      %v4063 = vsel %vm1065, %v4060, %v4062
      %v4064 = vrot.slane %v3631, 2
      %v4065 = vsel %vm1065, %v4062, %v4064
      %v4066 = vrot.slane %v3632, 2
      %v4067 = vsel %vm1065, %v4064, %v4066
      %v4068 = vrot.slane %v3633, 2
      %v4069 = vsel %vm1065, %v4066, %v4068
      %v4070 = vrot.slane %v3634, 2
      %v4071 = vsel %vm1065, %v4068, %v4070
      %v4072 = vrot.slane %v3635, 2
      %v4073 = vsel %vm1065, %v4070, %v4072
      %v4074 = vrot.slane %v3636, 2
      %v4075 = vsel %vm1065, %v4072, %v4074
      %v4076 = vrot.slane %v3637, 2
      %v4077 = vsel %vm1065, %v4074, %v4076
      %v4078 = vrot.slane %v3638, 2
      %v4079 = vsel %vm1065, %v4076, %v4078
      %v4080 = vrot.slane %v3639, 2
      %v4081 = vsel %vm1065, %v4078, %v4080
      %v4082 = vrot.slane %v3640, 2
      %v4083 = vsel %vm1065, %v4080, %v4082
      %v4084 = vrot.slane %v3641, 2
      %v4085 = vsel %vm1065, %v4082, %v4084
      %v4086 = vrot.slane %v3642, 2
      %v4087 = vsel %vm1065, %v4084, %v4086
      %v4088 = vrot.slane %v3643, 2
      %v4089 = vsel %vm1065, %v4086, %v4088
      %v4090 = vrot.slane %v3644, 2
      %v4091 = vsel %vm1065, %v4088, %v4090
      %v4092 = vsel %vm1065, %v4090, %v3982
      %4093 = vrot.lane.b32.xlu0 %v3982, 8
      %v4094 = vpop.permute.xlu0 %4093
      %4095 = vrot.lane.b32.xlu0 %v3983, 8
      %v4096 = vpop.permute.xlu0 %4095
      %4097 = vrot.lane.b32.xlu0 %v3985, 8
      %v4098 = vpop.permute.xlu0 %4097
      %4099 = vrot.lane.b32.xlu0 %v3987, 8
      %v4100 = vpop.permute.xlu0 %4099
      %4101 = vrot.lane.b32.xlu0 %v3989, 8
      %v4102 = vpop.permute.xlu0 %4101
      %4103 = vrot.lane.b32.xlu0 %v3991, 8
      %v4104 = vpop.permute.xlu0 %4103
      %4105 = vrot.lane.b32.xlu0 %v3993, 8
      %v4106 = vpop.permute.xlu0 %4105
      %4107 = vrot.lane.b32.xlu0 %v3995, 8
      %v4108 = vpop.permute.xlu0 %4107
      %4109 = vrot.lane.b32.xlu0 %v3997, 8
      %v4110 = vpop.permute.xlu0 %4109
      %4111 = vrot.lane.b32.xlu0 %v3999, 8
      %v4112 = vpop.permute.xlu0 %4111
      %4113 = vrot.lane.b32.xlu0 %v4001, 8
      %v4114 = vpop.permute.xlu0 %4113
      %4115 = vrot.lane.b32.xlu0 %v4003, 8
      %v4116 = vpop.permute.xlu0 %4115
      %4117 = vrot.lane.b32.xlu0 %v4005, 8
      %v4118 = vpop.permute.xlu0 %4117
      %4119 = vrot.lane.b32.xlu0 %v4007, 8
      %v4120 = vpop.permute.xlu0 %4119
      %4121 = vrot.lane.b32.xlu0 %v4009, 8
      %v4122 = vpop.permute.xlu0 %4121
      %4123 = vrot.lane.b32.xlu0 %v4011, 8
      %v4124 = vpop.permute.xlu0 %4123
      %4125 = vrot.lane.b32.xlu0 %v4013, 8
      %v4126 = vpop.permute.xlu0 %4125
      %4127 = vrot.lane.b32.xlu0 %v4015, 8
      %v4128 = vpop.permute.xlu0 %4127
      %4129 = vrot.lane.b32.xlu0 %v4017, 8
      %v4130 = vpop.permute.xlu0 %4129
      %4131 = vrot.lane.b32.xlu0 %v4019, 8
      %v4132 = vpop.permute.xlu0 %4131
      %4133 = vrot.lane.b32.xlu0 %v4021, 8
      %v4134 = vpop.permute.xlu0 %4133
      %4135 = vrot.lane.b32.xlu0 %v4023, 8
      %v4136 = vpop.permute.xlu0 %4135
      %4137 = vrot.lane.b32.xlu0 %v4025, 8
      %v4138 = vpop.permute.xlu0 %4137
      %4139 = vrot.lane.b32.xlu0 %v4027, 8
      %v4140 = vpop.permute.xlu0 %4139
      %4141 = vrot.lane.b32.xlu0 %v4029, 8
      %v4142 = vpop.permute.xlu0 %4141
      %4143 = vrot.lane.b32.xlu0 %v4031, 8
      %v4144 = vpop.permute.xlu0 %4143
      %4145 = vrot.lane.b32.xlu0 %v4033, 8
      %v4146 = vpop.permute.xlu0 %4145
      %4147 = vrot.lane.b32.xlu0 %v4035, 8
      %v4148 = vpop.permute.xlu0 %4147
      %4149 = vrot.lane.b32.xlu0 %v4037, 8
      %v4150 = vpop.permute.xlu0 %4149
      %4151 = vrot.lane.b32.xlu0 %v4039, 8
      %v4152 = vpop.permute.xlu0 %4151
      %4153 = vrot.lane.b32.xlu0 %v4041, 8
      %v4154 = vpop.permute.xlu0 %4153
      %4155 = vrot.lane.b32.xlu0 %v4043, 8
      %v4156 = vpop.permute.xlu0 %4155
      %4157 = vrot.lane.b32.xlu0 %v4045, 8
      %v4158 = vpop.permute.xlu0 %4157
      %4159 = vrot.lane.b32.xlu0 %v4047, 8
      %v4160 = vpop.permute.xlu0 %4159
      %4161 = vrot.lane.b32.xlu0 %v4049, 8
      %v4162 = vpop.permute.xlu0 %4161
      %4163 = vrot.lane.b32.xlu0 %v4051, 8
      %v4164 = vpop.permute.xlu0 %4163
      %4165 = vrot.lane.b32.xlu0 %v4053, 8
      %v4166 = vpop.permute.xlu0 %4165
      %4167 = vrot.lane.b32.xlu0 %v4055, 8
      %v4168 = vpop.permute.xlu0 %4167
      %4169 = vrot.lane.b32.xlu0 %v4057, 8
      %v4170 = vpop.permute.xlu0 %4169
      %4171 = vrot.lane.b32.xlu0 %v4059, 8
      %v4172 = vpop.permute.xlu0 %4171
      %4173 = vrot.lane.b32.xlu0 %v4061, 8
      %v4174 = vpop.permute.xlu0 %4173
      %4175 = vrot.lane.b32.xlu0 %v4063, 8
      %v4176 = vpop.permute.xlu0 %4175
      %4177 = vrot.lane.b32.xlu0 %v4065, 8
      %v4178 = vpop.permute.xlu0 %4177
      %4179 = vrot.lane.b32.xlu0 %v4067, 8
      %v4180 = vpop.permute.xlu0 %4179
      %4181 = vrot.lane.b32.xlu0 %v4069, 8
      %v4182 = vpop.permute.xlu0 %4181
      %4183 = vrot.lane.b32.xlu0 %v4071, 8
      %v4184 = vpop.permute.xlu0 %4183
      %4185 = vrot.lane.b32.xlu0 %v4073, 8
      %v4186 = vpop.permute.xlu0 %4185
      %4187 = vrot.lane.b32.xlu0 %v4075, 8
      %v4188 = vpop.permute.xlu0 %4187
      %4189 = vrot.lane.b32.xlu0 %v4077, 8
      %v4190 = vpop.permute.xlu0 %4189
      %4191 = vrot.lane.b32.xlu0 %v4079, 8
      %v4192 = vpop.permute.xlu0 %4191
      %4193 = vrot.lane.b32.xlu0 %v4081, 8
      %v4194 = vpop.permute.xlu0 %4193
      %4195 = vrot.lane.b32.xlu0 %v4083, 8
      %v4196 = vpop.permute.xlu0 %4195
      %4197 = vrot.lane.b32.xlu0 %v4085, 8
      %v4198 = vpop.permute.xlu0 %4197
      %4199 = vrot.lane.b32.xlu0 %v4087, 8
      %v4200 = vpop.permute.xlu0 %4199
      %4201 = vrot.lane.b32.xlu0 %v4089, 8
      %v4202 = vpop.permute.xlu0 %4201
      %4203 = vrot.lane.b32.xlu0 %v4091, 8
      %v4204 = vpop.permute.xlu0 %4203
      %4205 = vrot.lane.b32.xlu0 %v4092, 8
      %v4206 = vpop.permute.xlu0 %4205
      %v4264 = vsel %vm1432, 0.0, %v3812
      %v4265 = vsel %vm1432, 0.0, %v3814
      %v4266 = vsel %vm1432, 0.0, %v3816
      %v4267 = vsel %vm1432, %v3591, %v3818
      %v4268 = vsel %vm1432, %v3592, %v3820
      %v4269 = vsel %vm1432, %v3593, %v3822
      %v4270 = vsel %vm1432, %v3594, %v3824
      %v4271 = vsel %vm1432, %v3595, %v3826
      %v4272 = vsel %vm1432, %v3596, %v3828
      %v4273 = vsel %vm1432, %v3597, %v3830
      %v4274 = vsel %vm1432, %v3598, %v3832
      %v4275 = vsel %vm1432, %v3599, %v3834
      %v4276 = vsel %vm1432, %v3600, %v3836
      %v4277 = vsel %vm1432, %v3601, %v3838
      %v4278 = vsel %vm1432, %v3602, %v3840
      %v4279 = vsel %vm1432, %v3603, %v3842
      %v4280 = vsel %vm1432, %v3604, %v3844
      %v4281 = vsel %vm1432, %v3605, %v3846
      %v4282 = vsel %vm1432, %v3606, %v3848
      %v4283 = vsel %vm1432, %v3607, %v3850
      %v4284 = vsel %vm1432, %v3608, %v3852
      %v4285 = vsel %vm1432, %v3609, %v3854
      %v4286 = vsel %vm1432, %v3610, %v3856
      %v4287 = vsel %vm1432, %v3611, %v3858
      %v4288 = vsel %vm1432, %v3612, %v3860
      %v4289 = vsel %vm1432, %v3613, %v3862
      %v4290 = vsel %vm1432, %v3614, %v3864
      %v4291 = vsel %vm1432, %v3615, %v3866
      %v4292 = vsel %vm1432, %v3616, %v3868
      %v4293 = vsel %vm1432, %v3617, %v3870
      %v4294 = vsel %vm1432, %v3618, %v3872
      %v4295 = vsel %vm1432, %v3619, %v3874
      %v4296 = vsel %vm1432, %v3620, %v3876
      %v4297 = vsel %vm1432, %v3621, %v3878
      %v4298 = vsel %vm1432, %v3622, %v3880
      %v4299 = vsel %vm1432, %v3623, %v3882
      %v4300 = vsel %vm1432, %v3624, %v3884
      %v4301 = vsel %vm1432, %v3625, %v3886
      %v4302 = vsel %vm1432, %v3626, %v3888
      %v4303 = vsel %vm1432, %v3627, %v3890
      %v4304 = vsel %vm1432, %v3628, %v3892
      %v4305 = vsel %vm1432, %v3629, %v3894
      %v4306 = vsel %vm1432, %v3630, %v3896
      %v4307 = vsel %vm1432, %v3631, %v3898
      %v4308 = vsel %vm1432, %v3632, %v3900
      %v4309 = vsel %vm1432, %v3633, %v3902
      %v4310 = vsel %vm1432, %v3634, %v3904
      %v4311 = vsel %vm1432, %v3635, %v3906
      %v4312 = vsel %vm1432, %v3636, %v3908
      %v4313 = vsel %vm1432, %v3637, %v3910
      %v4314 = vsel %vm1432, %v3638, %v3912
      %v4315 = vsel %vm1432, %v3639, %v3914
      %v4316 = vsel %vm1432, %v3640, %v3916
      %v4317 = vsel %vm1432, %v3641, %v3918
      %v4318 = vsel %vm1432, %v3642, %v3920
      %v4319 = vsel %vm1432, %v3643, %v3922
      %v4320 = vsel %vm1432, %v3644, %v3924
      %vm4321 = vcmask 64512
      %v4322 = vsel %vm4321, %v4264, %v4094
      %v4323 = vsel %vm4321, %v4265, %v4096
      %v4324 = vsel %vm4321, %v4266, %v4098
      %v4325 = vsel %vm4321, %v4267, %v4100
      %v4326 = vsel %vm4321, %v4268, %v4102
      %v4327 = vsel %vm4321, %v4269, %v4104
      %v4328 = vsel %vm4321, %v4270, %v4106
      %v4329 = vsel %vm4321, %v4271, %v4108
      %v4330 = vsel %vm4321, %v4272, %v4110
      %v4331 = vsel %vm4321, %v4273, %v4112
      %v4332 = vsel %vm4321, %v4274, %v4114
      %v4333 = vsel %vm4321, %v4275, %v4116
      %v4334 = vsel %vm4321, %v4276, %v4118
      %v4335 = vsel %vm4321, %v4277, %v4120
      %v4336 = vsel %vm4321, %v4278, %v4122
      %v4337 = vsel %vm4321, %v4279, %v4124
      %v4338 = vsel %vm4321, %v4280, %v4126
      %v4339 = vsel %vm4321, %v4281, %v4128
      %v4340 = vsel %vm4321, %v4282, %v4130
      %v4341 = vsel %vm4321, %v4283, %v4132
      %v4342 = vsel %vm4321, %v4284, %v4134
      %v4343 = vsel %vm4321, %v4285, %v4136
      %v4344 = vsel %vm4321, %v4286, %v4138
      %v4345 = vsel %vm4321, %v4287, %v4140
      %v4346 = vsel %vm4321, %v4288, %v4142
      %v4347 = vsel %vm4321, %v4289, %v4144
      %v4348 = vsel %vm4321, %v4290, %v4146
      %v4349 = vsel %vm4321, %v4291, %v4148
      %v4350 = vsel %vm4321, %v4292, %v4150
      %v4351 = vsel %vm4321, %v4293, %v4152
      %v4352 = vsel %vm4321, %v4294, %v4154
      %v4353 = vsel %vm4321, %v4295, %v4156
      %v4354 = vsel %vm4321, %v4296, %v4158
      %v4355 = vsel %vm4321, %v4297, %v4160
      %v4356 = vsel %vm4321, %v4298, %v4162
      %v4357 = vsel %vm4321, %v4299, %v4164
      %v4358 = vsel %vm4321, %v4300, %v4166
      %v4359 = vsel %vm4321, %v4301, %v4168
      %v4360 = vsel %vm4321, %v4302, %v4170
      %v4361 = vsel %vm4321, %v4303, %v4172
      %v4362 = vsel %vm4321, %v4304, %v4174
      %v4363 = vsel %vm4321, %v4305, %v4176
      %v4364 = vsel %vm4321, %v4306, %v4178
      %v4365 = vsel %vm4321, %v4307, %v4180
      %v4366 = vsel %vm4321, %v4308, %v4182
      %v4367 = vsel %vm4321, %v4309, %v4184
      %v4368 = vsel %vm4321, %v4310, %v4186
      %v4369 = vsel %vm4321, %v4311, %v4188
      %v4370 = vsel %vm4321, %v4312, %v4190
      %v4371 = vsel %vm4321, %v4313, %v4192
      %v4372 = vsel %vm4321, %v4314, %v4194
      %v4373 = vsel %vm4321, %v4315, %v4196
      %v4374 = vsel %vm4321, %v4316, %v4198
      %v4375 = vsel %vm4321, %v4317, %v4200
      %v4376 = vsel %vm4321, %v4318, %v4202
      %v4377 = vsel %vm4321, %v4319, %v4204
      %v4378 = vsel %vm4321, %v4320, %v4206
      %v4379 = vsel %vm4321, %v4264, %v4096
      %4435 = vrot.lane.b32.xlu0 %v4324, 12
      %v4436 = vpop.permute.xlu0 %4435
      %4437 = vrot.lane.b32.xlu0 %v4325, 12
      %v4438 = vpop.permute.xlu0 %4437
      %4439 = vrot.lane.b32.xlu0 %v4326, 12
      %v4440 = vpop.permute.xlu0 %4439
      %4441 = vrot.lane.b32.xlu0 %v4327, 12
      %v4442 = vpop.permute.xlu0 %4441
      %4443 = vrot.lane.b32.xlu0 %v4328, 12
      %v4444 = vpop.permute.xlu0 %4443
      %4445 = vrot.lane.b32.xlu0 %v4329, 12
      %v4446 = vpop.permute.xlu0 %4445
      %4447 = vrot.lane.b32.xlu0 %v4330, 12
      %v4448 = vpop.permute.xlu0 %4447
      %4449 = vrot.lane.b32.xlu0 %v4331, 12
      %v4450 = vpop.permute.xlu0 %4449
      %4451 = vrot.lane.b32.xlu0 %v4332, 12
      %v4452 = vpop.permute.xlu0 %4451
      %4453 = vrot.lane.b32.xlu0 %v4333, 12
      %v4454 = vpop.permute.xlu0 %4453
      %4455 = vrot.lane.b32.xlu0 %v4334, 12
      %v4456 = vpop.permute.xlu0 %4455
      %4457 = vrot.lane.b32.xlu0 %v4335, 12
      %v4458 = vpop.permute.xlu0 %4457
      %4459 = vrot.lane.b32.xlu0 %v4336, 12
      %v4460 = vpop.permute.xlu0 %4459
      %4461 = vrot.lane.b32.xlu0 %v4337, 12
      %v4462 = vpop.permute.xlu0 %4461
      %4463 = vrot.lane.b32.xlu0 %v4338, 12
      %v4464 = vpop.permute.xlu0 %4463
      %4465 = vrot.lane.b32.xlu0 %v4339, 12
      %v4466 = vpop.permute.xlu0 %4465
      %4467 = vrot.lane.b32.xlu0 %v4340, 12
      %v4468 = vpop.permute.xlu0 %4467
      %4469 = vrot.lane.b32.xlu0 %v4341, 12
      %v4470 = vpop.permute.xlu0 %4469
      %4471 = vrot.lane.b32.xlu0 %v4342, 12
      %v4472 = vpop.permute.xlu0 %4471
      %4473 = vrot.lane.b32.xlu0 %v4343, 12
      %v4474 = vpop.permute.xlu0 %4473
      %4475 = vrot.lane.b32.xlu0 %v4344, 12
      %v4476 = vpop.permute.xlu0 %4475
      %4477 = vrot.lane.b32.xlu0 %v4345, 12
      %v4478 = vpop.permute.xlu0 %4477
      %4479 = vrot.lane.b32.xlu0 %v4346, 12
      %v4480 = vpop.permute.xlu0 %4479
      %4481 = vrot.lane.b32.xlu0 %v4347, 12
      %v4482 = vpop.permute.xlu0 %4481
      %4483 = vrot.lane.b32.xlu0 %v4348, 12
      %v4484 = vpop.permute.xlu0 %4483
      %4485 = vrot.lane.b32.xlu0 %v4349, 12
      %v4486 = vpop.permute.xlu0 %4485
      %4487 = vrot.lane.b32.xlu0 %v4350, 12
      %v4488 = vpop.permute.xlu0 %4487
      %4489 = vrot.lane.b32.xlu0 %v4351, 12
      %v4490 = vpop.permute.xlu0 %4489
      %4491 = vrot.lane.b32.xlu0 %v4352, 12
      %v4492 = vpop.permute.xlu0 %4491
      %4493 = vrot.lane.b32.xlu0 %v4353, 12
      %v4494 = vpop.permute.xlu0 %4493
      %4495 = vrot.lane.b32.xlu0 %v4354, 12
      %v4496 = vpop.permute.xlu0 %4495
      %4497 = vrot.lane.b32.xlu0 %v4355, 12
      %v4498 = vpop.permute.xlu0 %4497
      %4499 = vrot.lane.b32.xlu0 %v4356, 12
      %v4500 = vpop.permute.xlu0 %4499
      %4501 = vrot.lane.b32.xlu0 %v4357, 12
      %v4502 = vpop.permute.xlu0 %4501
      %4503 = vrot.lane.b32.xlu0 %v4358, 12
      %v4504 = vpop.permute.xlu0 %4503
      %4505 = vrot.lane.b32.xlu0 %v4359, 12
      %v4506 = vpop.permute.xlu0 %4505
      %4507 = vrot.lane.b32.xlu0 %v4360, 12
      %v4508 = vpop.permute.xlu0 %4507
      %4509 = vrot.lane.b32.xlu0 %v4361, 12
      %v4510 = vpop.permute.xlu0 %4509
      %4511 = vrot.lane.b32.xlu0 %v4362, 12
      %v4512 = vpop.permute.xlu0 %4511
      %4513 = vrot.lane.b32.xlu0 %v4363, 12
      %v4514 = vpop.permute.xlu0 %4513
      %4515 = vrot.lane.b32.xlu0 %v4364, 12
      %v4516 = vpop.permute.xlu0 %4515
      %4517 = vrot.lane.b32.xlu0 %v4365, 12
      %v4518 = vpop.permute.xlu0 %4517
      %4519 = vrot.lane.b32.xlu0 %v4366, 12
      %v4520 = vpop.permute.xlu0 %4519
      %4521 = vrot.lane.b32.xlu0 %v4367, 12
      %v4522 = vpop.permute.xlu0 %4521
      %4523 = vrot.lane.b32.xlu0 %v4368, 12
      %v4524 = vpop.permute.xlu0 %4523
      %4525 = vrot.lane.b32.xlu0 %v4369, 12
      %v4526 = vpop.permute.xlu0 %4525
      %4527 = vrot.lane.b32.xlu0 %v4370, 12
      %v4528 = vpop.permute.xlu0 %4527
      %4529 = vrot.lane.b32.xlu0 %v4371, 12
      %v4530 = vpop.permute.xlu0 %4529
      %4531 = vrot.lane.b32.xlu0 %v4372, 12
      %v4532 = vpop.permute.xlu0 %4531
      %4533 = vrot.lane.b32.xlu0 %v4373, 12
      %v4534 = vpop.permute.xlu0 %4533
      %4535 = vrot.lane.b32.xlu0 %v4374, 12
      %v4536 = vpop.permute.xlu0 %4535
      %4537 = vrot.lane.b32.xlu0 %v4375, 12
      %v4538 = vpop.permute.xlu0 %4537
      %4539 = vrot.lane.b32.xlu0 %v4376, 12
      %v4540 = vpop.permute.xlu0 %4539
      %4541 = vrot.lane.b32.xlu0 %v4377, 12
      %v4542 = vpop.permute.xlu0 %4541
      %4543 = vrot.lane.b32.xlu0 %v4378, 12
      %v4544 = vpop.permute.xlu0 %4543
      %4602 = vrot.lane.b32.xlu0 %v4327, 24
      %v4603 = vpop.permute.xlu0 %4602
      %4604 = vrot.lane.b32.xlu0 %v4328, 24
      %v4605 = vpop.permute.xlu0 %4604
      %4606 = vrot.lane.b32.xlu0 %v4329, 24
      %v4607 = vpop.permute.xlu0 %4606
      %4608 = vrot.lane.b32.xlu0 %v4330, 24
      %v4609 = vpop.permute.xlu0 %4608
      %4610 = vrot.lane.b32.xlu0 %v4331, 24
      %v4611 = vpop.permute.xlu0 %4610
      %4612 = vrot.lane.b32.xlu0 %v4332, 24
      %v4613 = vpop.permute.xlu0 %4612
      %4614 = vrot.lane.b32.xlu0 %v4333, 24
      %v4615 = vpop.permute.xlu0 %4614
      %4616 = vrot.lane.b32.xlu0 %v4334, 24
      %v4617 = vpop.permute.xlu0 %4616
      %4618 = vrot.lane.b32.xlu0 %v4335, 24
      %v4619 = vpop.permute.xlu0 %4618
      %4620 = vrot.lane.b32.xlu0 %v4336, 24
      %v4621 = vpop.permute.xlu0 %4620
      %4622 = vrot.lane.b32.xlu0 %v4337, 24
      %v4623 = vpop.permute.xlu0 %4622
      %4624 = vrot.lane.b32.xlu0 %v4338, 24
      %v4625 = vpop.permute.xlu0 %4624
      %4626 = vrot.lane.b32.xlu0 %v4339, 24
      %v4627 = vpop.permute.xlu0 %4626
      %4628 = vrot.lane.b32.xlu0 %v4340, 24
      %v4629 = vpop.permute.xlu0 %4628
      %4630 = vrot.lane.b32.xlu0 %v4341, 24
      %v4631 = vpop.permute.xlu0 %4630
      %4632 = vrot.lane.b32.xlu0 %v4342, 24
      %v4633 = vpop.permute.xlu0 %4632
      %4634 = vrot.lane.b32.xlu0 %v4343, 24
      %v4635 = vpop.permute.xlu0 %4634
      %4636 = vrot.lane.b32.xlu0 %v4344, 24
      %v4637 = vpop.permute.xlu0 %4636
      %4638 = vrot.lane.b32.xlu0 %v4345, 24
      %v4639 = vpop.permute.xlu0 %4638
      %4640 = vrot.lane.b32.xlu0 %v4346, 24
      %v4641 = vpop.permute.xlu0 %4640
      %4642 = vrot.lane.b32.xlu0 %v4347, 24
      %v4643 = vpop.permute.xlu0 %4642
      %4644 = vrot.lane.b32.xlu0 %v4348, 24
      %v4645 = vpop.permute.xlu0 %4644
      %4646 = vrot.lane.b32.xlu0 %v4349, 24
      %v4647 = vpop.permute.xlu0 %4646
      %4648 = vrot.lane.b32.xlu0 %v4350, 24
      %v4649 = vpop.permute.xlu0 %4648
      %4650 = vrot.lane.b32.xlu0 %v4351, 24
      %v4651 = vpop.permute.xlu0 %4650
      %4652 = vrot.lane.b32.xlu0 %v4352, 24
      %v4653 = vpop.permute.xlu0 %4652
      %4654 = vrot.lane.b32.xlu0 %v4353, 24
      %v4655 = vpop.permute.xlu0 %4654
      %4656 = vrot.lane.b32.xlu0 %v4354, 24
      %v4657 = vpop.permute.xlu0 %4656
      %4658 = vrot.lane.b32.xlu0 %v4355, 24
      %v4659 = vpop.permute.xlu0 %4658
      %4660 = vrot.lane.b32.xlu0 %v4356, 24
      %v4661 = vpop.permute.xlu0 %4660
      %4662 = vrot.lane.b32.xlu0 %v4357, 24
      %v4663 = vpop.permute.xlu0 %4662
      %4664 = vrot.lane.b32.xlu0 %v4358, 24
      %v4665 = vpop.permute.xlu0 %4664
      %4666 = vrot.lane.b32.xlu0 %v4359, 24
      %v4667 = vpop.permute.xlu0 %4666
      %4668 = vrot.lane.b32.xlu0 %v4360, 24
      %v4669 = vpop.permute.xlu0 %4668
      %4670 = vrot.lane.b32.xlu0 %v4361, 24
      %v4671 = vpop.permute.xlu0 %4670
      %4672 = vrot.lane.b32.xlu0 %v4362, 24
      %v4673 = vpop.permute.xlu0 %4672
      %4674 = vrot.lane.b32.xlu0 %v4363, 24
      %v4675 = vpop.permute.xlu0 %4674
      %4676 = vrot.lane.b32.xlu0 %v4364, 24
      %v4677 = vpop.permute.xlu0 %4676
      %4678 = vrot.lane.b32.xlu0 %v4365, 24
      %v4679 = vpop.permute.xlu0 %4678
      %4680 = vrot.lane.b32.xlu0 %v4366, 24
      %v4681 = vpop.permute.xlu0 %4680
      %4682 = vrot.lane.b32.xlu0 %v4367, 24
      %v4683 = vpop.permute.xlu0 %4682
      %4684 = vrot.lane.b32.xlu0 %v4368, 24
      %v4685 = vpop.permute.xlu0 %4684
      %4686 = vrot.lane.b32.xlu0 %v4369, 24
      %v4687 = vpop.permute.xlu0 %4686
      %4688 = vrot.lane.b32.xlu0 %v4370, 24
      %v4689 = vpop.permute.xlu0 %4688
      %4690 = vrot.lane.b32.xlu0 %v4371, 24
      %v4691 = vpop.permute.xlu0 %4690
      %4692 = vrot.lane.b32.xlu0 %v4372, 24
      %v4693 = vpop.permute.xlu0 %4692
      %4694 = vrot.lane.b32.xlu0 %v4373, 24
      %v4695 = vpop.permute.xlu0 %4694
      %4696 = vrot.lane.b32.xlu0 %v4374, 24
      %v4697 = vpop.permute.xlu0 %4696
      %4698 = vrot.lane.b32.xlu0 %v4375, 24
      %v4699 = vpop.permute.xlu0 %4698
      %4700 = vrot.lane.b32.xlu0 %v4376, 24
      %v4701 = vpop.permute.xlu0 %4700
      %4702 = vrot.lane.b32.xlu0 %v4377, 24
      %v4703 = vpop.permute.xlu0 %4702
      %4704 = vrot.lane.b32.xlu0 %v4378, 24
      %v4705 = vpop.permute.xlu0 %4704
      %4706 = vrot.lane.b32.xlu0 %v4323, 24
      %v4707 = vpop.permute.xlu0 %4706
      %4708 = vrot.lane.b32.xlu0 %v4379, 24
      %v4709 = vpop.permute.xlu0 %4708
      %v4764 = vsel %vm1938, %v4322, %v4436
      %v4765 = vsel %vm1938, %v4323, %v4438
      %v4766 = vsel %vm1938, %v4323, %v4440
      %v4767 = vsel %vm1938, %v4324, %v4442
      %v4768 = vsel %vm1938, %v4325, %v4444
      %v4769 = vsel %vm1938, %v4326, %v4446
      %v4770 = vsel %vm1938, %v4327, %v4448
      %v4771 = vsel %vm1938, %v4328, %v4450
      %v4772 = vsel %vm1938, %v4329, %v4452
      %v4773 = vsel %vm1938, %v4330, %v4454
      %v4774 = vsel %vm1938, %v4331, %v4456
      %v4775 = vsel %vm1938, %v4332, %v4458
      %v4776 = vsel %vm1938, %v4333, %v4460
      %v4777 = vsel %vm1938, %v4334, %v4462
      %v4778 = vsel %vm1938, %v4335, %v4464
      %v4779 = vsel %vm1938, %v4336, %v4466
      %v4780 = vsel %vm1938, %v4337, %v4468
      %v4781 = vsel %vm1938, %v4338, %v4470
      %v4782 = vsel %vm1938, %v4339, %v4472
      %v4783 = vsel %vm1938, %v4340, %v4474
      %v4784 = vsel %vm1938, %v4341, %v4476
      %v4785 = vsel %vm1938, %v4342, %v4478
      %v4786 = vsel %vm1938, %v4343, %v4480
      %v4787 = vsel %vm1938, %v4344, %v4482
      %v4788 = vsel %vm1938, %v4345, %v4484
      %v4789 = vsel %vm1938, %v4346, %v4486
      %v4790 = vsel %vm1938, %v4347, %v4488
      %v4791 = vsel %vm1938, %v4348, %v4490
      %v4792 = vsel %vm1938, %v4349, %v4492
      %v4793 = vsel %vm1938, %v4350, %v4494
      %v4794 = vsel %vm1938, %v4351, %v4496
      %v4795 = vsel %vm1938, %v4352, %v4498
      %v4796 = vsel %vm1938, %v4353, %v4500
      %v4797 = vsel %vm1938, %v4354, %v4502
      %v4798 = vsel %vm1938, %v4355, %v4504
      %v4799 = vsel %vm1938, %v4356, %v4506
      %v4800 = vsel %vm1938, %v4357, %v4508
      %v4801 = vsel %vm1938, %v4358, %v4510
      %v4802 = vsel %vm1938, %v4359, %v4512
      %v4803 = vsel %vm1938, %v4360, %v4514
      %v4804 = vsel %vm1938, %v4361, %v4516
      %v4805 = vsel %vm1938, %v4362, %v4518
      %v4806 = vsel %vm1938, %v4363, %v4520
      %v4807 = vsel %vm1938, %v4364, %v4522
      %v4808 = vsel %vm1938, %v4365, %v4524
      %v4809 = vsel %vm1938, %v4366, %v4526
      %v4810 = vsel %vm1938, %v4367, %v4528
      %v4811 = vsel %vm1938, %v4368, %v4530
      %v4812 = vsel %vm1938, %v4369, %v4532
      %v4813 = vsel %vm1938, %v4370, %v4534
      %v4814 = vsel %vm1938, %v4371, %v4536
      %v4815 = vsel %vm1938, %v4372, %v4538
      %v4816 = vsel %vm1938, %v4373, %v4540
      %v4817 = vsel %vm1938, %v4374, %v4542
      %v4818 = vsel %vm1938, %v4375, %v4544
      %vm4819 = vcmask 195584
      %v4820 = vsel %vm4819, %v4764, %v4603
      %v4821 = vsel %vm4819, %v4765, %v4605
      %v4822 = vsel %vm4819, %v4766, %v4607
      %v4823 = vsel %vm4819, %v4767, %v4609
      %v4824 = vsel %vm4819, %v4768, %v4611
      %v4825 = vsel %vm4819, %v4769, %v4613
      %v4826 = vsel %vm4819, %v4770, %v4615
      %v4827 = vsel %vm4819, %v4771, %v4617
      %v4828 = vsel %vm4819, %v4772, %v4619
      %v4829 = vsel %vm4819, %v4773, %v4621
      %v4830 = vsel %vm4819, %v4774, %v4623
      %v4831 = vsel %vm4819, %v4775, %v4625
      %v4832 = vsel %vm4819, %v4776, %v4627
      %v4833 = vsel %vm4819, %v4777, %v4629
      %v4834 = vsel %vm4819, %v4778, %v4631
      %v4835 = vsel %vm4819, %v4779, %v4633
      %v4836 = vsel %vm4819, %v4780, %v4635
      %v4837 = vsel %vm4819, %v4781, %v4637
      %v4838 = vsel %vm4819, %v4782, %v4639
      %v4839 = vsel %vm4819, %v4783, %v4641
      %v4840 = vsel %vm4819, %v4784, %v4643
      %v4841 = vsel %vm4819, %v4785, %v4645
      %v4842 = vsel %vm4819, %v4786, %v4647
      %v4843 = vsel %vm4819, %v4787, %v4649
      %v4844 = vsel %vm4819, %v4788, %v4651
      %v4845 = vsel %vm4819, %v4789, %v4653
      %v4846 = vsel %vm4819, %v4790, %v4655
      %v4847 = vsel %vm4819, %v4791, %v4657
      %v4848 = vsel %vm4819, %v4792, %v4659
      %v4849 = vsel %vm4819, %v4793, %v4661
      %v4850 = vsel %vm4819, %v4794, %v4663
      %v4851 = vsel %vm4819, %v4795, %v4665
      %v4852 = vsel %vm4819, %v4796, %v4667
      %v4853 = vsel %vm4819, %v4797, %v4669
      %v4854 = vsel %vm4819, %v4798, %v4671
      %v4855 = vsel %vm4819, %v4799, %v4673
      %v4856 = vsel %vm4819, %v4800, %v4675
      %v4857 = vsel %vm4819, %v4801, %v4677
      %v4858 = vsel %vm4819, %v4802, %v4679
      %v4859 = vsel %vm4819, %v4803, %v4681
      %v4860 = vsel %vm4819, %v4804, %v4683
      %v4861 = vsel %vm4819, %v4805, %v4685
      %v4862 = vsel %vm4819, %v4806, %v4687
      %v4863 = vsel %vm4819, %v4807, %v4689
      %v4864 = vsel %vm4819, %v4808, %v4691
      %v4865 = vsel %vm4819, %v4809, %v4693
      %v4866 = vsel %vm4819, %v4810, %v4695
      %v4867 = vsel %vm4819, %v4811, %v4697
      %v4868 = vsel %vm4819, %v4812, %v4699
      %v4869 = vsel %vm4819, %v4813, %v4701
      %v4870 = vsel %vm4819, %v4814, %v4703
      %v4871 = vsel %vm4819, %v4815, %v4705
      %v4872 = vsel %vm4819, %v4816, %v4707
      %v4873 = vsel %vm4819, %v4817, %v4707
      %v4874 = vsel %vm4819, %v4818, %v4709
      %v4875 = vpack.c.bf16 %v4821, %v4820
      %v4876 = vpack.c.bf16 %v4823, %v4822
      %v4877 = vpack.c.bf16 %v4825, %v4824
      %v4878 = vpack.c.bf16 %v4827, %v4826
      %v4879 = vpack.c.bf16 %v4829, %v4828
      %v4880 = vpack.c.bf16 %v4831, %v4830
      %v4881 = vpack.c.bf16 %v4833, %v4832
      %v4882 = vpack.c.bf16 %v4835, %v4834
      %v4883 = vpack.c.bf16 %v4837, %v4836
      %v4884 = vpack.c.bf16 %v4839, %v4838
      %v4885 = vpack.c.bf16 %v4841, %v4840
      %v4886 = vpack.c.bf16 %v4843, %v4842
      %v4887 = vpack.c.bf16 %v4845, %v4844
      %v4888 = vpack.c.bf16 %v4847, %v4846
      %v4889 = vpack.c.bf16 %v4849, %v4848
      %v4890 = vpack.c.bf16 %v4851, %v4850
      %v4891 = vpack.c.bf16 %v4853, %v4852
      %v4892 = vpack.c.bf16 %v4855, %v4854
      %v4893 = vpack.c.bf16 %v4857, %v4856
      %v4894 = vpack.c.bf16 %v4859, %v4858
      %v4895 = vpack.c.bf16 %v4861, %v4860
      %v4896 = vpack.c.bf16 %v4863, %v4862
      %v4897 = vpack.c.bf16 %v4865, %v4864
      %v4898 = vpack.c.bf16 %v4867, %v4866
      %v4899 = vpack.c.bf16 %v4869, %v4868
      %v4900 = vpack.c.bf16 %v4871, %v4870
      %v4901 = vpack.c.bf16 %v4873, %v4872
      %v4902 = vpack.c.bf16 %v4874, %v4874
      %v4903 = vld [vmem:[%s6] sm:$0xf]
      %v4904 = vld [vmem:[%s6 + $0x4] sm:$0xf]
      %v4905 = vld [vmem:[%s6 + $0x8] sm:$0xf]
      %v4906 = vld [vmem:[%s6 + $0xc] sm:$0xf]
      %v4907 = vld [vmem:[%s6 + $0x10] sm:$0x3]
      %v4908 = vld [vmem:[%s7] sm:$0x1]
      %v4910 = vlaneseq
      %v4911 = vshrl.u32 %v4910, 7
      %v4912 = vsub.s32 0, %v4911
      %v4913 = vrot.slane %v4908, %v4912
      %v4916 = vshrl.u32 %v4875, 16
      %v4918 = vrot.slane %v4916, 3
      %v4919 = vshll.u32 %v4875, 16
      %v4921 = vrot.slane %v4919, 4
      %v4922 = vor.u32 %v4918, %v4921
      %v4924 = vshrl.u32 %v4876, 16
      %v4926 = vrot.slane %v4924, 3
      %v4927 = vshll.u32 %v4876, 16
      %v4929 = vrot.slane %v4927, 4
      %v4930 = vor.u32 %v4926, %v4929
      %v4931 = vsel %vm2032, %v4922, %v4930
      %v4933 = vshrl.u32 %v4877, 16
      %v4935 = vrot.slane %v4933, 3
      %v4936 = vshll.u32 %v4877, 16
      %v4938 = vrot.slane %v4936, 4
      %v4939 = vor.u32 %v4935, %v4938
      %v4940 = vsel %vm2032, %v4930, %v4939
      %v4942 = vshrl.u32 %v4878, 16
      %v4944 = vrot.slane %v4942, 3
      %v4945 = vshll.u32 %v4878, 16
      %v4947 = vrot.slane %v4945, 4
      %v4948 = vor.u32 %v4944, %v4947
      %v4949 = vsel %vm2032, %v4939, %v4948
      %v4951 = vshrl.u32 %v4879, 16
      %v4953 = vrot.slane %v4951, 3
      %v4954 = vshll.u32 %v4879, 16
      %v4956 = vrot.slane %v4954, 4
      %v4957 = vor.u32 %v4953, %v4956
      %v4958 = vsel %vm2032, %v4948, %v4957
      %v4960 = vshrl.u32 %v4880, 16
      %v4962 = vrot.slane %v4960, 3
      %v4963 = vshll.u32 %v4880, 16
      %v4965 = vrot.slane %v4963, 4
      %v4966 = vor.u32 %v4962, %v4965
      %v4967 = vsel %vm2032, %v4957, %v4966
      %v4969 = vshrl.u32 %v4881, 16
      %v4971 = vrot.slane %v4969, 3
      %v4972 = vshll.u32 %v4881, 16
      %v4974 = vrot.slane %v4972, 4
      %v4975 = vor.u32 %v4971, %v4974
      %v4976 = vsel %vm2032, %v4966, %v4975
      %v4978 = vshrl.u32 %v4882, 16
      %v4980 = vrot.slane %v4978, 3
      %v4981 = vshll.u32 %v4882, 16
      %v4983 = vrot.slane %v4981, 4
      %v4984 = vor.u32 %v4980, %v4983
      %v4985 = vsel %vm2032, %v4975, %v4984
      %v4987 = vshrl.u32 %v4883, 16
      %v4989 = vrot.slane %v4987, 3
      %v4990 = vshll.u32 %v4883, 16
      %v4992 = vrot.slane %v4990, 4
      %v4993 = vor.u32 %v4989, %v4992
      %v4994 = vsel %vm2032, %v4984, %v4993
      %v4996 = vshrl.u32 %v4884, 16
      %v4998 = vrot.slane %v4996, 3
      %v4999 = vshll.u32 %v4884, 16
      %v5001 = vrot.slane %v4999, 4
      %v5002 = vor.u32 %v4998, %v5001
      %v5003 = vsel %vm2032, %v4993, %v5002
      %v5005 = vshrl.u32 %v4885, 16
      %v5007 = vrot.slane %v5005, 3
      %v5008 = vshll.u32 %v4885, 16
      %v5010 = vrot.slane %v5008, 4
      %v5011 = vor.u32 %v5007, %v5010
      %v5012 = vsel %vm2032, %v5002, %v5011
      %v5014 = vshrl.u32 %v4886, 16
      %v5016 = vrot.slane %v5014, 3
      %v5017 = vshll.u32 %v4886, 16
      %v5019 = vrot.slane %v5017, 4
      %v5020 = vor.u32 %v5016, %v5019
      %v5021 = vsel %vm2032, %v5011, %v5020
      %v5023 = vshrl.u32 %v4887, 16
      %v5025 = vrot.slane %v5023, 3
      %v5026 = vshll.u32 %v4887, 16
      %v5028 = vrot.slane %v5026, 4
      %v5029 = vor.u32 %v5025, %v5028
      %v5030 = vsel %vm2032, %v5020, %v5029
      %v5032 = vshrl.u32 %v4888, 16
      %v5034 = vrot.slane %v5032, 3
      %v5035 = vshll.u32 %v4888, 16
      %v5037 = vrot.slane %v5035, 4
      %v5038 = vor.u32 %v5034, %v5037
      %v5039 = vsel %vm2032, %v5029, %v5038
      %v5041 = vshrl.u32 %v4889, 16
      %v5043 = vrot.slane %v5041, 3
      %v5044 = vshll.u32 %v4889, 16
      %v5046 = vrot.slane %v5044, 4
      %v5047 = vor.u32 %v5043, %v5046
      %v5048 = vsel %vm2032, %v5038, %v5047
      %v5050 = vshrl.u32 %v4890, 16
      %v5052 = vrot.slane %v5050, 3
      %v5053 = vshll.u32 %v4890, 16
      %v5055 = vrot.slane %v5053, 4
      %v5056 = vor.u32 %v5052, %v5055
      %v5057 = vsel %vm2032, %v5047, %v5056
      %v5059 = vshrl.u32 %v4891, 16
      %v5061 = vrot.slane %v5059, 3
      %v5062 = vshll.u32 %v4891, 16
      %v5064 = vrot.slane %v5062, 4
      %v5065 = vor.u32 %v5061, %v5064
      %v5066 = vsel %vm2032, %v5056, %v5065
      %v5068 = vshrl.u32 %v4892, 16
      %v5070 = vrot.slane %v5068, 3
      %v5071 = vshll.u32 %v4892, 16
      %v5073 = vrot.slane %v5071, 4
      %v5074 = vor.u32 %v5070, %v5073
      %v5075 = vsel %vm2032, %v5065, %v5074
      %v5077 = vshrl.u32 %v4893, 16
      %v5079 = vrot.slane %v5077, 3
      %v5080 = vshll.u32 %v4893, 16
      %v5082 = vrot.slane %v5080, 4
      %v5083 = vor.u32 %v5079, %v5082
      %v5084 = vsel %vm2032, %v5074, %v5083
      %v5086 = vshrl.u32 %v4894, 16
      %v5088 = vrot.slane %v5086, 3
      %v5089 = vshll.u32 %v4894, 16
      %v5091 = vrot.slane %v5089, 4
      %v5092 = vor.u32 %v5088, %v5091
      %v5093 = vsel %vm2032, %v5083, %v5092
      %v5095 = vshrl.u32 %v4895, 16
      %v5097 = vrot.slane %v5095, 3
      %v5098 = vshll.u32 %v4895, 16
      %v5100 = vrot.slane %v5098, 4
      %v5101 = vor.u32 %v5097, %v5100
      %v5102 = vsel %vm2032, %v5092, %v5101
      %v5104 = vshrl.u32 %v4896, 16
      %v5106 = vrot.slane %v5104, 3
      %v5107 = vshll.u32 %v4896, 16
      %v5109 = vrot.slane %v5107, 4
      %v5110 = vor.u32 %v5106, %v5109
      %v5111 = vsel %vm2032, %v5101, %v5110
      %v5113 = vshrl.u32 %v4897, 16
      %v5115 = vrot.slane %v5113, 3
      %v5116 = vshll.u32 %v4897, 16
      %v5118 = vrot.slane %v5116, 4
      %v5119 = vor.u32 %v5115, %v5118
      %v5120 = vsel %vm2032, %v5110, %v5119
      %v5122 = vshrl.u32 %v4898, 16
      %v5124 = vrot.slane %v5122, 3
      %v5125 = vshll.u32 %v4898, 16
      %v5127 = vrot.slane %v5125, 4
      %v5128 = vor.u32 %v5124, %v5127
      %v5129 = vsel %vm2032, %v5119, %v5128
      %v5131 = vshrl.u32 %v4899, 16
      %v5133 = vrot.slane %v5131, 3
      %v5134 = vshll.u32 %v4899, 16
      %v5136 = vrot.slane %v5134, 4
      %v5137 = vor.u32 %v5133, %v5136
      %v5138 = vsel %vm2032, %v5128, %v5137
      %v5140 = vshrl.u32 %v4900, 16
      %v5142 = vrot.slane %v5140, 3
      %v5143 = vshll.u32 %v4900, 16
      %v5145 = vrot.slane %v5143, 4
      %v5146 = vor.u32 %v5142, %v5145
      %v5147 = vsel %vm2032, %v5137, %v5146
      %v5149 = vshrl.u32 %v4901, 16
      %v5151 = vrot.slane %v5149, 3
      %v5152 = vshll.u32 %v4901, 16
      %v5154 = vrot.slane %v5152, 4
      %v5155 = vor.u32 %v5151, %v5154
      %v5156 = vsel %vm2032, %v5146, %v5155
      %v5158 = vshrl.u32 %v4902, 16
      %v5160 = vrot.slane %v5158, 3
      %v5161 = vshll.u32 %v4902, 16
      %v5163 = vrot.slane %v5161, 4
      %v5164 = vor.u32 %v5160, %v5163
      %v5165 = vsel %vm2032, %v5155, %v5164
      %v5171 = vunpack.c.l.b16 %v4903
      %v5172 = vunpack.c.l.b16 %v4904
      %v5173 = vunpack.c.l.b16 %v4905
      %v5174 = vunpack.c.l.b16 %v4906
      %v5175 = vunpack.c.l.b16 %v4907
      %v5176 = vpack.c.b16 %v5172, %v5171
      %v5177 = vpack.c.b16 %v5174, %v5173
      %v5178 = vpack.c.b16 %v5175, %v5175
      %vm5181 = vcmask 293888
      %v5183 = vsel %vm5181, %v4931, 0
      %v5186 = vsel %vm5181, %v4940, 0
      %v5189 = vsel %vm5181, %v4949, 0
      %v5192 = vsel %vm5181, %v4958, 0
      %v5195 = vsel %vm5181, %v4967, 0
      %v5198 = vsel %vm5181, %v4976, 0
      %v5201 = vsel %vm5181, %v4985, 0
      %v5204 = vsel %vm5181, %v4994, 0
      %v5207 = vsel %vm5181, %v5003, 0
      %v5210 = vsel %vm5181, %v5012, 0
      %v5213 = vsel %vm5181, %v5021, 0
      %v5216 = vsel %vm5181, %v5030, 0
      %v5219 = vsel %vm5181, %v5039, 0
      %v5222 = vsel %vm5181, %v5048, 0
      %v5225 = vsel %vm5181, %v5057, 0
      %v5228 = vsel %vm5181, %v5066, 0
      %v5231 = vsel %vm5181, %v5075, 0
      %v5234 = vsel %vm5181, %v5084, 0
      %v5237 = vsel %vm5181, %v5093, 0
      %v5240 = vsel %vm5181, %v5102, 0
      %v5243 = vsel %vm5181, %v5111, 0
      %v5246 = vsel %vm5181, %v5120, 0
      %v5249 = vsel %vm5181, %v5129, 0
      %v5252 = vsel %vm5181, %v5138, 0
      %v5255 = vsel %vm5181, %v5147, 0
      %v5258 = vsel %vm5181, %v5156, 0
      %v5261 = vsel %vm5181, %v5165, 0
      %v5264 = vsel %vm2906, %v5178, 0
      %5266 = vmatprep.subr.bf16.mxu0 0
      %5267 = vmatpush1.bf16.msra.mxu0 %v5176
      %5268 = vmatprep.subr.bf16.mxu0 0
      %5269 = vmatpush1.bf16.msra.mxu0 %v5177
      %5270 = vmatprep.subr.bf16.mxu0 0
      %5271 = vmatpush1.bf16.msra.mxu0 %v5264
      %5272 = vmatprep.subr.bf16.mxu0 0
      %5273 = vmatpush1.bf16.msra.mxu0 0
      %5274 = vmatprep.subr.bf16.mxu0 0
      %5275 = vmatpush1.bf16.msra.mxu0 0
      %5276 = vmatprep.subr.bf16.mxu0 0
      %5277 = vmatpush1.bf16.msra.mxu0 0
      %5278 = vmatprep.subr.bf16.mxu0 0
      %5279 = vmatpush1.bf16.msra.mxu0 0
      %5280 = vmatprep.subr.bf16.mxu0 0
      %5281 = vmatpush1.bf16.msra.mxu0 0
      %5282 = vmatprep.subr.bf16.mxu0 0
      %5283 = vmatpush1.bf16.msra.mxu0 0
      %5284 = vmatprep.subr.bf16.mxu0 0
      %5285 = vmatpush1.bf16.msra.mxu0 0
      %5286 = vmatprep.subr.bf16.mxu0 0
      %5287 = vmatpush1.bf16.msra.mxu0 0
      %5288 = vmatprep.subr.bf16.mxu0 0
      %5289 = vmatpush1.bf16.msra.mxu0 0
      %5290 = vmatprep.subr.bf16.mxu0 0
      %5291 = vmatpush1.bf16.msra.mxu0 0
      %5292 = vmatprep.subr.bf16.mxu0 0
      %5293 = vmatpush1.bf16.msra.mxu0 0
      %5294 = vmatprep.subr.bf16.mxu0 0
      %5295 = vmatpush1.bf16.msra.mxu0 0
      %5296 = vmatprep.subr.bf16.mxu0 0
      %5297 = vmatpush1.bf16.msra.mxu0 0
      %5298 = vmatprep.mubr.bf16.mxu0 0
      %5299 = vmatmul.mubr.bf16.gmra.mrb[0].mxu0 %v5183
      %v5300 = vpop.f32.mrb[0].mxu0
      %v5301 = vadd.f32 %v4913, %v5300
      %v5302 = vpop.f32.mrb[0].mxu0
      %v5303 = vpop.f32.mrb[0].mxu0
      %v5304 = vadd.f32 %v4913, %v5303
      %v5305 = vpop.f32.mrb[0].mxu0
      %5306 = vmatprep.mubr.bf16.mxu0 0
      %5307 = vmatmul.mubr.bf16.gmra.mrb[0].mxu0 %v5186
      %v5308 = vpop.f32.mrb[0].mxu0
      %v5309 = vadd.f32 %v4913, %v5308
      %v5310 = vpop.f32.mrb[0].mxu0
      %v5311 = vpop.f32.mrb[0].mxu0
      %v5312 = vadd.f32 %v4913, %v5311
      %v5313 = vpop.f32.mrb[0].mxu0
      %5314 = vmatprep.mubr.bf16.mxu0 0
      %5315 = vmatmul.mubr.bf16.gmra.mrb[0].mxu0 %v5189
      %v5316 = vpop.f32.mrb[0].mxu0
      %v5317 = vadd.f32 %v4913, %v5316
      %v5318 = vpop.f32.mrb[0].mxu0
      %v5319 = vpop.f32.mrb[0].mxu0
      %v5320 = vadd.f32 %v4913, %v5319
      %v5321 = vpop.f32.mrb[0].mxu0
      %5322 = vmatprep.mubr.bf16.mxu0 0
      %5323 = vmatmul.mubr.bf16.gmra.mrb[0].mxu0 %v5192
      %v5324 = vpop.f32.mrb[0].mxu0
      %v5325 = vadd.f32 %v4913, %v5324
      %v5326 = vpop.f32.mrb[0].mxu0
      %v5327 = vpop.f32.mrb[0].mxu0
      %v5328 = vadd.f32 %v4913, %v5327
      %v5329 = vpop.f32.mrb[0].mxu0
      %5330 = vmatprep.mubr.bf16.mxu0 0
      %5331 = vmatmul.mubr.bf16.gmra.mrb[0].mxu0 %v5195
      %v5332 = vpop.f32.mrb[0].mxu0
      %v5333 = vadd.f32 %v4913, %v5332
      %v5334 = vpop.f32.mrb[0].mxu0
      %v5335 = vpop.f32.mrb[0].mxu0
      %v5336 = vadd.f32 %v4913, %v5335
      %v5337 = vpop.f32.mrb[0].mxu0
      %5338 = vmatprep.mubr.bf16.mxu0 0
      %5339 = vmatmul.mubr.bf16.gmra.mrb[0].mxu0 %v5198
      %v5340 = vpop.f32.mrb[0].mxu0
      %v5341 = vadd.f32 %v4913, %v5340
      %v5342 = vpop.f32.mrb[0].mxu0
      %v5343 = vpop.f32.mrb[0].mxu0
      %v5344 = vadd.f32 %v4913, %v5343
      %v5345 = vpop.f32.mrb[0].mxu0
      %5346 = vmatprep.mubr.bf16.mxu0 0
      %5347 = vmatmul.mubr.bf16.gmra.mrb[0].mxu0 %v5201
      %v5348 = vpop.f32.mrb[0].mxu0
      %v5349 = vadd.f32 %v4913, %v5348
      %v5350 = vpop.f32.mrb[0].mxu0
      %v5351 = vpop.f32.mrb[0].mxu0
      %v5352 = vadd.f32 %v4913, %v5351
      %v5353 = vpop.f32.mrb[0].mxu0
      %5354 = vmatprep.mubr.bf16.mxu0 0
      %5355 = vmatmul.mubr.bf16.gmra.mrb[0].mxu0 %v5204
      %v5356 = vpop.f32.mrb[0].mxu0
      %v5357 = vadd.f32 %v4913, %v5356
      %v5358 = vpop.f32.mrb[0].mxu0
      %v5359 = vpop.f32.mrb[0].mxu0
      %v5360 = vadd.f32 %v4913, %v5359
      %v5361 = vpop.f32.mrb[0].mxu0
      %5362 = vmatprep.mubr.bf16.mxu0 0
      %5363 = vmatmul.mubr.bf16.gmra.mrb[0].mxu0 %v5207
      %v5364 = vpop.f32.mrb[0].mxu0
      %v5365 = vadd.f32 %v4913, %v5364
      %v5366 = vpop.f32.mrb[0].mxu0
      %v5367 = vpop.f32.mrb[0].mxu0
      %v5368 = vadd.f32 %v4913, %v5367
      %v5369 = vpop.f32.mrb[0].mxu0
      %5370 = vmatprep.mubr.bf16.mxu0 0
      %5371 = vmatmul.mubr.bf16.gmra.mrb[0].mxu0 %v5210
      %v5372 = vpop.f32.mrb[0].mxu0
      %v5373 = vadd.f32 %v4913, %v5372
      %v5374 = vpop.f32.mrb[0].mxu0
      %v5375 = vpop.f32.mrb[0].mxu0
      %v5376 = vadd.f32 %v4913, %v5375
      %v5377 = vpop.f32.mrb[0].mxu0
      %5378 = vmatprep.mubr.bf16.mxu0 0
      %5379 = vmatmul.mubr.bf16.gmra.mrb[0].mxu0 %v5213
      %v5380 = vpop.f32.mrb[0].mxu0
      %v5381 = vadd.f32 %v4913, %v5380
      %v5382 = vpop.f32.mrb[0].mxu0
      %v5383 = vpop.f32.mrb[0].mxu0
      %v5384 = vadd.f32 %v4913, %v5383
      %v5385 = vpop.f32.mrb[0].mxu0
      %5386 = vmatprep.mubr.bf16.mxu0 0
      %5387 = vmatmul.mubr.bf16.gmra.mrb[0].mxu0 %v5216
      %v5388 = vpop.f32.mrb[0].mxu0
      %v5389 = vadd.f32 %v4913, %v5388
      %v5390 = vpop.f32.mrb[0].mxu0
      %v5391 = vpop.f32.mrb[0].mxu0
      %v5392 = vadd.f32 %v4913, %v5391
      %v5393 = vpop.f32.mrb[0].mxu0
      %5394 = vmatprep.mubr.bf16.mxu0 0
      %5395 = vmatmul.mubr.bf16.gmra.mrb[0].mxu0 %v5219
      %v5396 = vpop.f32.mrb[0].mxu0
      %v5397 = vadd.f32 %v4913, %v5396
      %v5398 = vpop.f32.mrb[0].mxu0
      %v5399 = vpop.f32.mrb[0].mxu0
      %v5400 = vadd.f32 %v4913, %v5399
      %v5401 = vpop.f32.mrb[0].mxu0
      %5402 = vmatprep.mubr.bf16.mxu0 0
      %5403 = vmatmul.mubr.bf16.gmra.mrb[0].mxu0 %v5222
      %v5404 = vpop.f32.mrb[0].mxu0
      %v5405 = vadd.f32 %v4913, %v5404
      %v5406 = vpop.f32.mrb[0].mxu0
      %v5407 = vpop.f32.mrb[0].mxu0
      %v5408 = vadd.f32 %v4913, %v5407
      %v5409 = vpop.f32.mrb[0].mxu0
      %5410 = vmatprep.mubr.bf16.mxu0 0
      %5411 = vmatmul.mubr.bf16.gmra.mrb[0].mxu0 %v5225
      %v5412 = vpop.f32.mrb[0].mxu0
      %v5413 = vadd.f32 %v4913, %v5412
      %v5414 = vpop.f32.mrb[0].mxu0
      %v5415 = vpop.f32.mrb[0].mxu0
      %v5416 = vadd.f32 %v4913, %v5415
      %v5417 = vpop.f32.mrb[0].mxu0
      %5418 = vmatprep.mubr.bf16.mxu0 0
      %5419 = vmatmul.mubr.bf16.gmra.mrb[0].mxu0 %v5228
      %v5420 = vpop.f32.mrb[0].mxu0
      %v5421 = vadd.f32 %v4913, %v5420
      %v5422 = vpop.f32.mrb[0].mxu0
      %v5423 = vpop.f32.mrb[0].mxu0
      %v5424 = vadd.f32 %v4913, %v5423
      %v5425 = vpop.f32.mrb[0].mxu0
      %5426 = vmatprep.mubr.bf16.mxu0 0
      %5427 = vmatmul.mubr.bf16.gmra.mrb[0].mxu0 %v5231
      %v5428 = vpop.f32.mrb[0].mxu0
      %v5429 = vadd.f32 %v4913, %v5428
      %v5430 = vpop.f32.mrb[0].mxu0
      %v5431 = vpop.f32.mrb[0].mxu0
      %v5432 = vadd.f32 %v4913, %v5431
      %v5433 = vpop.f32.mrb[0].mxu0
      %5434 = vmatprep.mubr.bf16.mxu0 0
      %5435 = vmatmul.mubr.bf16.gmra.mrb[0].mxu0 %v5234
      %v5436 = vpop.f32.mrb[0].mxu0
      %v5437 = vadd.f32 %v4913, %v5436
      %v5438 = vpop.f32.mrb[0].mxu0
      %v5439 = vpop.f32.mrb[0].mxu0
      %v5440 = vadd.f32 %v4913, %v5439
      %v5441 = vpop.f32.mrb[0].mxu0
      %5442 = vmatprep.mubr.bf16.mxu0 0
      %5443 = vmatmul.mubr.bf16.gmra.mrb[0].mxu0 %v5237
      %v5444 = vpop.f32.mrb[0].mxu0
      %v5445 = vadd.f32 %v4913, %v5444
      %v5446 = vpop.f32.mrb[0].mxu0
      %v5447 = vpop.f32.mrb[0].mxu0
      %v5448 = vadd.f32 %v4913, %v5447
      %v5449 = vpop.f32.mrb[0].mxu0
      %5450 = vmatprep.mubr.bf16.mxu0 0
      %5451 = vmatmul.mubr.bf16.gmra.mrb[0].mxu0 %v5240
      %v5452 = vpop.f32.mrb[0].mxu0
      %v5453 = vadd.f32 %v4913, %v5452
      %v5454 = vpop.f32.mrb[0].mxu0
      %v5455 = vpop.f32.mrb[0].mxu0
      %v5456 = vadd.f32 %v4913, %v5455
      %v5457 = vpop.f32.mrb[0].mxu0
      %5458 = vmatprep.mubr.bf16.mxu0 0
      %5459 = vmatmul.mubr.bf16.gmra.mrb[0].mxu0 %v5243
      %v5460 = vpop.f32.mrb[0].mxu0
      %v5461 = vadd.f32 %v4913, %v5460
      %v5462 = vpop.f32.mrb[0].mxu0
      %v5463 = vpop.f32.mrb[0].mxu0
      %v5464 = vadd.f32 %v4913, %v5463
      %v5465 = vpop.f32.mrb[0].mxu0
      %5466 = vmatprep.mubr.bf16.mxu0 0
      %5467 = vmatmul.mubr.bf16.gmra.mrb[0].mxu0 %v5246
      %v5468 = vpop.f32.mrb[0].mxu0
      %v5469 = vadd.f32 %v4913, %v5468
      %v5470 = vpop.f32.mrb[0].mxu0
      %v5471 = vpop.f32.mrb[0].mxu0
      %v5472 = vadd.f32 %v4913, %v5471
      %v5473 = vpop.f32.mrb[0].mxu0
      %5474 = vmatprep.mubr.bf16.mxu0 0
      %5475 = vmatmul.mubr.bf16.gmra.mrb[0].mxu0 %v5249
      %v5476 = vpop.f32.mrb[0].mxu0
      %v5477 = vadd.f32 %v4913, %v5476
      %v5478 = vpop.f32.mrb[0].mxu0
      %v5479 = vpop.f32.mrb[0].mxu0
      %v5480 = vadd.f32 %v4913, %v5479
      %v5481 = vpop.f32.mrb[0].mxu0
      %5482 = vmatprep.mubr.bf16.mxu0 0
      %5483 = vmatmul.mubr.bf16.gmra.mrb[0].mxu0 %v5252
      %v5484 = vpop.f32.mrb[0].mxu0
      %v5485 = vadd.f32 %v4913, %v5484
      %v5486 = vpop.f32.mrb[0].mxu0
      %v5487 = vpop.f32.mrb[0].mxu0
      %v5488 = vadd.f32 %v4913, %v5487
      %v5489 = vpop.f32.mrb[0].mxu0
      %5490 = vmatprep.mubr.bf16.mxu0 0
      %5491 = vmatmul.mubr.bf16.gmra.mrb[0].mxu0 %v5255
      %v5492 = vpop.f32.mrb[0].mxu0
      %v5493 = vadd.f32 %v4913, %v5492
      %v5494 = vpop.f32.mrb[0].mxu0
      %v5495 = vpop.f32.mrb[0].mxu0
      %v5496 = vadd.f32 %v4913, %v5495
      %v5497 = vpop.f32.mrb[0].mxu0
      %5498 = vmatprep.mubr.bf16.mxu0 0
      %5499 = vmatmul.mubr.bf16.gmra.mrb[0].mxu0 %v5258
      %v5500 = vpop.f32.mrb[0].mxu0
      %v5501 = vadd.f32 %v4913, %v5500
      %v5502 = vpop.f32.mrb[0].mxu0
      %v5503 = vpop.f32.mrb[0].mxu0
      %v5504 = vadd.f32 %v4913, %v5503
      %v5505 = vpop.f32.mrb[0].mxu0
      %5506 = vmatprep.mubr.bf16.mxu0 0
      %5507 = vmatmul.mubr.bf16.gmra.mrb[0].mxu0 %v5261
      %v5508 = vpop.f32.mrb[0].mxu0
      %v5509 = vadd.f32 %v4913, %v5508
      %v5510 = vpop.f32.mrb[0].mxu0
      %v5511 = vpop.f32.mrb[0].mxu0
      %v5512 = vadd.f32 %v4913, %v5511
      %v5513 = vpop.f32.mrb[0].mxu0
      %5514 = vdwg.mxu0
      %v5515 = vmul.f32 %v5301, 0.5
      %v5516 = vmul.f32 %v5304, 0.5
      %v5517 = vmul.f32 %v5309, 0.5
      %v5518 = vmul.f32 %v5312, 0.5
      %v5519 = vmul.f32 %v5317, 0.5
      %v5520 = vmul.f32 %v5320, 0.5
      %v5521 = vmul.f32 %v5325, 0.5
      %v5522 = vmul.f32 %v5328, 0.5
      %v5523 = vmul.f32 %v5333, 0.5
      %v5524 = vmul.f32 %v5336, 0.5
      %v5525 = vmul.f32 %v5341, 0.5
      %v5526 = vmul.f32 %v5344, 0.5
      %v5527 = vmul.f32 %v5349, 0.5
      %v5528 = vmul.f32 %v5352, 0.5
      %v5529 = vmul.f32 %v5357, 0.5
      %v5530 = vmul.f32 %v5360, 0.5
      %v5531 = vmul.f32 %v5365, 0.5
      %v5532 = vmul.f32 %v5368, 0.5
      %v5533 = vmul.f32 %v5373, 0.5
      %v5534 = vmul.f32 %v5376, 0.5
      %v5535 = vmul.f32 %v5381, 0.5
      %v5536 = vmul.f32 %v5384, 0.5
      %v5537 = vmul.f32 %v5389, 0.5
      %v5538 = vmul.f32 %v5392, 0.5
      %v5539 = vmul.f32 %v5397, 0.5
      %v5540 = vmul.f32 %v5400, 0.5
      %v5541 = vmul.f32 %v5405, 0.5
      %v5542 = vmul.f32 %v5408, 0.5
      %v5543 = vmul.f32 %v5413, 0.5
      %v5544 = vmul.f32 %v5416, 0.5
      %v5545 = vmul.f32 %v5421, 0.5
      %v5546 = vmul.f32 %v5424, 0.5
      %v5547 = vmul.f32 %v5429, 0.5
      %v5548 = vmul.f32 %v5432, 0.5
      %v5549 = vmul.f32 %v5437, 0.5
      %v5550 = vmul.f32 %v5440, 0.5
      %v5551 = vmul.f32 %v5445, 0.5
      %v5552 = vmul.f32 %v5448, 0.5
      %v5553 = vmul.f32 %v5453, 0.5
      %v5554 = vmul.f32 %v5456, 0.5
      %v5555 = vmul.f32 %v5461, 0.5
      %v5556 = vmul.f32 %v5464, 0.5
      %v5557 = vmul.f32 %v5469, 0.5
      %v5558 = vmul.f32 %v5472, 0.5
      %v5559 = vmul.f32 %v5477, 0.5
      %v5560 = vmul.f32 %v5480, 0.5
      %v5561 = vmul.f32 %v5485, 0.5
      %v5562 = vmul.f32 %v5488, 0.5
      %v5563 = vmul.f32 %v5493, 0.5
      %v5564 = vmul.f32 %v5496, 0.5
      %v5565 = vmul.f32 %v5501, 0.5
      %v5566 = vmul.f32 %v5504, 0.5
      %v5567 = vmul.f32 %v5509, 0.5
      %v5568 = vmul.f32 %v5512, 0.5
      %v5569 = vtanh.pop %v5515
      %v5570 = vtanh.pop %v5516
      %v5571 = vtanh.pop %v5517
      %v5572 = vtanh.pop %v5518
      %v5573 = vtanh.pop %v5519
      %v5574 = vtanh.pop %v5520
      %v5575 = vtanh.pop %v5521
      %v5576 = vtanh.pop %v5522
      %v5577 = vtanh.pop %v5523
      %v5578 = vtanh.pop %v5524
      %v5579 = vtanh.pop %v5525
      %v5580 = vtanh.pop %v5526
      %v5581 = vtanh.pop %v5527
      %v5582 = vtanh.pop %v5528
      %v5583 = vtanh.pop %v5529
      %v5584 = vtanh.pop %v5530
      %v5585 = vtanh.pop %v5531
      %v5586 = vtanh.pop %v5532
      %v5587 = vtanh.pop %v5533
      %v5588 = vtanh.pop %v5534
      %v5589 = vtanh.pop %v5535
      %v5590 = vtanh.pop %v5536
      %v5591 = vtanh.pop %v5537
      %v5592 = vtanh.pop %v5538
      %v5593 = vtanh.pop %v5539
      %v5594 = vtanh.pop %v5540
      %v5595 = vtanh.pop %v5541
      %v5596 = vtanh.pop %v5542
      %v5597 = vtanh.pop %v5543
      %v5598 = vtanh.pop %v5544
      %v5599 = vtanh.pop %v5545
      %v5600 = vtanh.pop %v5546
      %v5601 = vtanh.pop %v5547
      %v5602 = vtanh.pop %v5548
      %v5603 = vtanh.pop %v5549
      %v5604 = vtanh.pop %v5550
      %v5605 = vtanh.pop %v5551
      %v5606 = vtanh.pop %v5552
      %v5607 = vtanh.pop %v5553
      %v5608 = vtanh.pop %v5554
      %v5609 = vtanh.pop %v5555
      %v5610 = vtanh.pop %v5556
      %v5611 = vtanh.pop %v5557
      %v5612 = vtanh.pop %v5558
      %v5613 = vtanh.pop %v5559
      %v5614 = vtanh.pop %v5560
      %v5615 = vtanh.pop %v5561
      %v5616 = vtanh.pop %v5562
      %v5617 = vtanh.pop %v5563
      %v5618 = vtanh.pop %v5564
      %v5619 = vtanh.pop %v5565
      %v5620 = vtanh.pop %v5566
      %v5621 = vtanh.pop %v5567
      %v5622 = vtanh.pop %v5568
      %v5623 = vmul.f32 %v5569, 1.442695
      %v5624 = vpow.pop %v5623
      %v5625 = vmul.f32 %v5570, 1.442695
      %v5626 = vpow.pop %v5625
      %v5627 = vmul.f32 %v5571, 1.442695
      %v5628 = vpow.pop %v5627
      %v5629 = vmul.f32 %v5572, 1.442695
      %v5630 = vpow.pop %v5629
      %v5631 = vmul.f32 %v5573, 1.442695
      %v5632 = vpow.pop %v5631
      %v5633 = vmul.f32 %v5574, 1.442695
      %v5634 = vpow.pop %v5633
      %v5635 = vmul.f32 %v5575, 1.442695
      %v5636 = vpow.pop %v5635
      %v5637 = vmul.f32 %v5576, 1.442695
      %v5638 = vpow.pop %v5637
      %v5639 = vmul.f32 %v5577, 1.442695
      %v5640 = vpow.pop %v5639
      %v5641 = vmul.f32 %v5578, 1.442695
      %v5642 = vpow.pop %v5641
      %v5643 = vmul.f32 %v5579, 1.442695
      %v5644 = vpow.pop %v5643
      %v5645 = vmul.f32 %v5580, 1.442695
      %v5646 = vpow.pop %v5645
      %v5647 = vmul.f32 %v5581, 1.442695
      %v5648 = vpow.pop %v5647
      %v5649 = vmul.f32 %v5582, 1.442695
      %v5650 = vpow.pop %v5649
      %v5651 = vmul.f32 %v5583, 1.442695
      %v5652 = vpow.pop %v5651
      %v5653 = vmul.f32 %v5584, 1.442695
      %v5654 = vpow.pop %v5653
      %v5655 = vmul.f32 %v5585, 1.442695
      %v5656 = vpow.pop %v5655
      %v5657 = vmul.f32 %v5586, 1.442695
      %v5658 = vpow.pop %v5657
      %v5659 = vmul.f32 %v5587, 1.442695
      %v5660 = vpow.pop %v5659
      %v5661 = vmul.f32 %v5588, 1.442695
      %v5662 = vpow.pop %v5661
      %v5663 = vmul.f32 %v5589, 1.442695
      %v5664 = vpow.pop %v5663
      %v5665 = vmul.f32 %v5590, 1.442695
      %v5666 = vpow.pop %v5665
      %v5667 = vmul.f32 %v5591, 1.442695
      %v5668 = vpow.pop %v5667
      %v5669 = vmul.f32 %v5592, 1.442695
      %v5670 = vpow.pop %v5669
      %v5671 = vmul.f32 %v5593, 1.442695
      %v5672 = vpow.pop %v5671
      %v5673 = vmul.f32 %v5594, 1.442695
      %v5674 = vpow.pop %v5673
      %v5675 = vmul.f32 %v5595, 1.442695
      %v5676 = vpow.pop %v5675
      %v5677 = vmul.f32 %v5596, 1.442695
      %v5678 = vpow.pop %v5677
      %v5679 = vmul.f32 %v5597, 1.442695
      %v5680 = vpow.pop %v5679
      %v5681 = vmul.f32 %v5598, 1.442695
      %v5682 = vpow.pop %v5681
      %v5683 = vmul.f32 %v5599, 1.442695
      %v5684 = vpow.pop %v5683
      %v5685 = vmul.f32 %v5600, 1.442695
      %v5686 = vpow.pop %v5685
      %v5687 = vmul.f32 %v5601, 1.442695
      %v5688 = vpow.pop %v5687
      %v5689 = vmul.f32 %v5602, 1.442695
      %v5690 = vpow.pop %v5689
      %v5691 = vmul.f32 %v5603, 1.442695
      %v5692 = vpow.pop %v5691
      %v5693 = vmul.f32 %v5604, 1.442695
      %v5694 = vpow.pop %v5693
      %v5695 = vmul.f32 %v5605, 1.442695
      %v5696 = vpow.pop %v5695
      %v5697 = vmul.f32 %v5606, 1.442695
      %v5698 = vpow.pop %v5697
      %v5699 = vmul.f32 %v5607, 1.442695
      %v5700 = vpow.pop %v5699
      %v5701 = vmul.f32 %v5608, 1.442695
      %v5702 = vpow.pop %v5701
      %v5703 = vmul.f32 %v5609, 1.442695
      %v5704 = vpow.pop %v5703
      %v5705 = vmul.f32 %v5610, 1.442695
      %v5706 = vpow.pop %v5705
      %v5707 = vmul.f32 %v5611, 1.442695
      %v5708 = vpow.pop %v5707
      %v5709 = vmul.f32 %v5612, 1.442695
      %v5710 = vpow.pop %v5709
      %v5711 = vmul.f32 %v5613, 1.442695
      %v5712 = vpow.pop %v5711
      %v5713 = vmul.f32 %v5614, 1.442695
      %v5714 = vpow.pop %v5713
      %v5715 = vmul.f32 %v5615, 1.442695
      %v5716 = vpow.pop %v5715
      %v5717 = vmul.f32 %v5616, 1.442695
      %v5718 = vpow.pop %v5717
      %v5719 = vmul.f32 %v5617, 1.442695
      %v5720 = vpow.pop %v5719
      %v5721 = vmul.f32 %v5618, 1.442695
      %v5722 = vpow.pop %v5721
      %v5723 = vmul.f32 %v5619, 1.442695
      %v5724 = vpow.pop %v5723
      %v5725 = vmul.f32 %v5620, 1.442695
      %v5726 = vpow.pop %v5725
      %v5727 = vmul.f32 %v5621, 1.442695
      %v5728 = vpow.pop %v5727
      %v5729 = vmul.f32 %v5622, 1.442695
      %v5730 = vpow.pop %v5729
      %v5731 = vmul.f32 %v581, %v5624
      %v5732 = vmul.f32 %v582, %v5626
      %v5733 = vmul.f32 %v583, %v5628
      %v5734 = vmul.f32 %v584, %v5630
      %v5735 = vmul.f32 %v585, %v5632
      %v5736 = vmul.f32 %v586, %v5634
      %v5737 = vmul.f32 %v587, %v5636
      %v5738 = vmul.f32 %v588, %v5638
      %v5739 = vmul.f32 %v589, %v5640
      %v5740 = vmul.f32 %v590, %v5642
      %v5741 = vmul.f32 %v591, %v5644
      %v5742 = vmul.f32 %v592, %v5646
      %v5743 = vmul.f32 %v593, %v5648
      %v5744 = vmul.f32 %v594, %v5650
      %v5745 = vmul.f32 %v595, %v5652
      %v5746 = vmul.f32 %v596, %v5654
      %v5747 = vmul.f32 %v597, %v5656
      %v5748 = vmul.f32 %v598, %v5658
      %v5749 = vmul.f32 %v599, %v5660
      %v5750 = vmul.f32 %v600, %v5662
      %v5751 = vmul.f32 %v601, %v5664
      %v5752 = vmul.f32 %v602, %v5666
      %v5753 = vmul.f32 %v603, %v5668
      %v5754 = vmul.f32 %v604, %v5670
      %v5755 = vmul.f32 %v605, %v5672
      %v5756 = vmul.f32 %v606, %v5674
      %v5757 = vmul.f32 %v607, %v5676
      %v5758 = vmul.f32 %v608, %v5678
      %v5759 = vmul.f32 %v609, %v5680
      %v5760 = vmul.f32 %v610, %v5682
      %v5761 = vmul.f32 %v611, %v5684
      %v5762 = vmul.f32 %v612, %v5686
      %v5763 = vmul.f32 %v613, %v5688
      %v5764 = vmul.f32 %v614, %v5690
      %v5765 = vmul.f32 %v615, %v5692
      %v5766 = vmul.f32 %v616, %v5694
      %v5767 = vmul.f32 %v617, %v5696
      %v5768 = vmul.f32 %v618, %v5698
      %v5769 = vmul.f32 %v619, %v5700
      %v5770 = vmul.f32 %v620, %v5702
      %v5771 = vmul.f32 %v621, %v5704
      %v5772 = vmul.f32 %v622, %v5706
      %v5773 = vmul.f32 %v623, %v5708
      %v5774 = vmul.f32 %v624, %v5710
      %v5775 = vmul.f32 %v625, %v5712
      %v5776 = vmul.f32 %v626, %v5714
      %v5777 = vmul.f32 %v627, %v5716
      %v5778 = vmul.f32 %v628, %v5718
      %v5779 = vmul.f32 %v629, %v5720
      %v5780 = vmul.f32 %v630, %v5722
      %v5781 = vmul.f32 %v631, %v5724
      %v5782 = vmul.f32 %v632, %v5726
      %v5783 = vmul.f32 %v633, %v5728
      %v5784 = vmul.f32 %v634, %v5730
      %5839 = vrot.lane.b32.xlu0 %v5301, 126
      %v5840 = vpop.permute.xlu0 %5839
      %5841 = vrot.lane.b32.xlu0 %v5304, 126
      %v5842 = vpop.permute.xlu0 %5841
      %5843 = vrot.lane.b32.xlu0 %v5309, 126
      %v5844 = vpop.permute.xlu0 %5843
      %5845 = vrot.lane.b32.xlu0 %v5312, 126
      %v5846 = vpop.permute.xlu0 %5845
      %5847 = vrot.lane.b32.xlu0 %v5317, 126
      %v5848 = vpop.permute.xlu0 %5847
      %5849 = vrot.lane.b32.xlu0 %v5320, 126
      %v5850 = vpop.permute.xlu0 %5849
      %5851 = vrot.lane.b32.xlu0 %v5325, 126
      %v5852 = vpop.permute.xlu0 %5851
      %5853 = vrot.lane.b32.xlu0 %v5328, 126
      %v5854 = vpop.permute.xlu0 %5853
      %5855 = vrot.lane.b32.xlu0 %v5333, 126
      %v5856 = vpop.permute.xlu0 %5855
      %5857 = vrot.lane.b32.xlu0 %v5336, 126
      %v5858 = vpop.permute.xlu0 %5857
      %5859 = vrot.lane.b32.xlu0 %v5341, 126
      %v5860 = vpop.permute.xlu0 %5859
      %5861 = vrot.lane.b32.xlu0 %v5344, 126
      %v5862 = vpop.permute.xlu0 %5861
      %5863 = vrot.lane.b32.xlu0 %v5349, 126
      %v5864 = vpop.permute.xlu0 %5863
      %5865 = vrot.lane.b32.xlu0 %v5352, 126
      %v5866 = vpop.permute.xlu0 %5865
      %5867 = vrot.lane.b32.xlu0 %v5357, 126
      %v5868 = vpop.permute.xlu0 %5867
      %5869 = vrot.lane.b32.xlu0 %v5360, 126
      %v5870 = vpop.permute.xlu0 %5869
      %5871 = vrot.lane.b32.xlu0 %v5365, 126
      %v5872 = vpop.permute.xlu0 %5871
      %5873 = vrot.lane.b32.xlu0 %v5368, 126
      %v5874 = vpop.permute.xlu0 %5873
      %5875 = vrot.lane.b32.xlu0 %v5373, 126
      %v5876 = vpop.permute.xlu0 %5875
      %5877 = vrot.lane.b32.xlu0 %v5376, 126
      %v5878 = vpop.permute.xlu0 %5877
      %5879 = vrot.lane.b32.xlu0 %v5381, 126
      %v5880 = vpop.permute.xlu0 %5879
      %5881 = vrot.lane.b32.xlu0 %v5384, 126
      %v5882 = vpop.permute.xlu0 %5881
      %5883 = vrot.lane.b32.xlu0 %v5389, 126
      %v5884 = vpop.permute.xlu0 %5883
      %5885 = vrot.lane.b32.xlu0 %v5392, 126
      %v5886 = vpop.permute.xlu0 %5885
      %5887 = vrot.lane.b32.xlu0 %v5397, 126
      %v5888 = vpop.permute.xlu0 %5887
      %5889 = vrot.lane.b32.xlu0 %v5400, 126
      %v5890 = vpop.permute.xlu0 %5889
      %5891 = vrot.lane.b32.xlu0 %v5405, 126
      %v5892 = vpop.permute.xlu0 %5891
      %5893 = vrot.lane.b32.xlu0 %v5408, 126
      %v5894 = vpop.permute.xlu0 %5893
      %5895 = vrot.lane.b32.xlu0 %v5413, 126
      %v5896 = vpop.permute.xlu0 %5895
      %5897 = vrot.lane.b32.xlu0 %v5416, 126
      %v5898 = vpop.permute.xlu0 %5897
      %5899 = vrot.lane.b32.xlu0 %v5421, 126
      %v5900 = vpop.permute.xlu0 %5899
      %5901 = vrot.lane.b32.xlu0 %v5424, 126
      %v5902 = vpop.permute.xlu0 %5901
      %5903 = vrot.lane.b32.xlu0 %v5429, 126
      %v5904 = vpop.permute.xlu0 %5903
      %5905 = vrot.lane.b32.xlu0 %v5432, 126
      %v5906 = vpop.permute.xlu0 %5905
      %5907 = vrot.lane.b32.xlu0 %v5437, 126
      %v5908 = vpop.permute.xlu0 %5907
      %5909 = vrot.lane.b32.xlu0 %v5440, 126
      %v5910 = vpop.permute.xlu0 %5909
      %5911 = vrot.lane.b32.xlu0 %v5445, 126
      %v5912 = vpop.permute.xlu0 %5911
      %5913 = vrot.lane.b32.xlu0 %v5448, 126
      %v5914 = vpop.permute.xlu0 %5913
      %5915 = vrot.lane.b32.xlu0 %v5453, 126
      %v5916 = vpop.permute.xlu0 %5915
      %5917 = vrot.lane.b32.xlu0 %v5456, 126
      %v5918 = vpop.permute.xlu0 %5917
      %5919 = vrot.lane.b32.xlu0 %v5461, 126
      %v5920 = vpop.permute.xlu0 %5919
      %5921 = vrot.lane.b32.xlu0 %v5464, 126
      %v5922 = vpop.permute.xlu0 %5921
      %5923 = vrot.lane.b32.xlu0 %v5469, 126
      %v5924 = vpop.permute.xlu0 %5923
      %5925 = vrot.lane.b32.xlu0 %v5472, 126
      %v5926 = vpop.permute.xlu0 %5925
      %5927 = vrot.lane.b32.xlu0 %v5477, 126
      %v5928 = vpop.permute.xlu0 %5927
      %5929 = vrot.lane.b32.xlu0 %v5480, 126
      %v5930 = vpop.permute.xlu0 %5929
      %5931 = vrot.lane.b32.xlu0 %v5485, 126
      %v5932 = vpop.permute.xlu0 %5931
      %5933 = vrot.lane.b32.xlu0 %v5488, 126
      %v5934 = vpop.permute.xlu0 %5933
      %5935 = vrot.lane.b32.xlu0 %v5493, 126
      %v5936 = vpop.permute.xlu0 %5935
      %5937 = vrot.lane.b32.xlu0 %v5496, 126
      %v5938 = vpop.permute.xlu0 %5937
      %5939 = vrot.lane.b32.xlu0 %v5501, 126
      %v5940 = vpop.permute.xlu0 %5939
      %5941 = vrot.lane.b32.xlu0 %v5504, 126
      %v5942 = vpop.permute.xlu0 %5941
      %5943 = vrot.lane.b32.xlu0 %v5509, 126
      %v5944 = vpop.permute.xlu0 %5943
      %5945 = vrot.lane.b32.xlu0 %v5512, 126
      %v5946 = vpop.permute.xlu0 %5945
      %v6001 = vadd.f32 %v5731, %v5840
      %v6002 = vadd.f32 %v5732, %v5842
      %v6003 = vadd.f32 %v5733, %v5844
      %v6004 = vadd.f32 %v5734, %v5846
      %v6005 = vadd.f32 %v5735, %v5848
      %v6006 = vadd.f32 %v5736, %v5850
      %v6007 = vadd.f32 %v5737, %v5852
      %v6008 = vadd.f32 %v5738, %v5854
      %v6009 = vadd.f32 %v5739, %v5856
      %v6010 = vadd.f32 %v5740, %v5858
      %v6011 = vadd.f32 %v5741, %v5860
      %v6012 = vadd.f32 %v5742, %v5862
      %v6013 = vadd.f32 %v5743, %v5864
      %v6014 = vadd.f32 %v5744, %v5866
      %v6015 = vadd.f32 %v5745, %v5868
      %v6016 = vadd.f32 %v5746, %v5870
      %v6017 = vadd.f32 %v5747, %v5872
      %v6018 = vadd.f32 %v5748, %v5874
      %v6019 = vadd.f32 %v5749, %v5876
      %v6020 = vadd.f32 %v5750, %v5878
      %v6021 = vadd.f32 %v5751, %v5880
      %v6022 = vadd.f32 %v5752, %v5882
      %v6023 = vadd.f32 %v5753, %v5884
      %v6024 = vadd.f32 %v5754, %v5886
      %v6025 = vadd.f32 %v5755, %v5888
      %v6026 = vadd.f32 %v5756, %v5890
      %v6027 = vadd.f32 %v5757, %v5892
      %v6028 = vadd.f32 %v5758, %v5894
      %v6029 = vadd.f32 %v5759, %v5896
      %v6030 = vadd.f32 %v5760, %v5898
      %v6031 = vadd.f32 %v5761, %v5900
      %v6032 = vadd.f32 %v5762, %v5902
      %v6033 = vadd.f32 %v5763, %v5904
      %v6034 = vadd.f32 %v5764, %v5906
      %v6035 = vadd.f32 %v5765, %v5908
      %v6036 = vadd.f32 %v5766, %v5910
      %v6037 = vadd.f32 %v5767, %v5912
      %v6038 = vadd.f32 %v5768, %v5914
      %v6039 = vadd.f32 %v5769, %v5916
      %v6040 = vadd.f32 %v5770, %v5918
      %v6041 = vadd.f32 %v5771, %v5920
      %v6042 = vadd.f32 %v5772, %v5922
      %v6043 = vadd.f32 %v5773, %v5924
      %v6044 = vadd.f32 %v5774, %v5926
      %v6045 = vadd.f32 %v5775, %v5928
      %v6046 = vadd.f32 %v5776, %v5930
      %v6047 = vadd.f32 %v5777, %v5932
      %v6048 = vadd.f32 %v5778, %v5934
      %v6049 = vadd.f32 %v5779, %v5936
      %v6050 = vadd.f32 %v5780, %v5938
      %v6051 = vadd.f32 %v5781, %v5940
      %v6052 = vadd.f32 %v5782, %v5942
      %v6053 = vadd.f32 %v5783, %v5944
      %v6054 = vadd.f32 %v5784, %v5946
      %v6055 = vsel %vm3537, %v6001, 0.0
      %v6056 = vsel %vm3538, %v6002, 0.0
      %v6057 = vsel %vm3539, %v6003, 0.0
      %v6058 = vsel %vm3540, %v6004, 0.0
      %v6059 = vsel %vm3541, %v6005, 0.0
      %v6060 = vsel %vm3542, %v6006, 0.0
      %v6061 = vsel %vm3543, %v6007, 0.0
      %v6062 = vsel %vm3544, %v6008, 0.0
      %v6063 = vsel %vm3545, %v6009, 0.0
      %v6064 = vsel %vm3546, %v6010, 0.0
      %v6065 = vsel %vm3547, %v6011, 0.0
      %v6066 = vsel %vm3548, %v6012, 0.0
      %v6067 = vsel %vm3549, %v6013, 0.0
      %v6068 = vsel %vm3550, %v6014, 0.0
      %v6069 = vsel %vm3551, %v6015, 0.0
      %v6070 = vsel %vm3552, %v6016, 0.0
      %v6071 = vsel %vm3553, %v6017, 0.0
      %v6072 = vsel %vm3554, %v6018, 0.0
      %v6073 = vsel %vm3555, %v6019, 0.0
      %v6074 = vsel %vm3556, %v6020, 0.0
      %v6075 = vsel %vm3557, %v6021, 0.0
      %v6076 = vsel %vm3558, %v6022, 0.0
      %v6077 = vsel %vm3559, %v6023, 0.0
      %v6078 = vsel %vm3560, %v6024, 0.0
      %v6079 = vsel %vm3561, %v6025, 0.0
      %v6080 = vsel %vm3562, %v6026, 0.0
      %v6081 = vsel %vm3563, %v6027, 0.0
      %v6082 = vsel %vm3564, %v6028, 0.0
      %v6083 = vsel %vm3565, %v6029, 0.0
      %v6084 = vsel %vm3566, %v6030, 0.0
      %v6085 = vsel %vm3567, %v6031, 0.0
      %v6086 = vsel %vm3568, %v6032, 0.0
      %v6087 = vsel %vm3569, %v6033, 0.0
      %v6088 = vsel %vm3570, %v6034, 0.0
      %v6089 = vsel %vm3571, %v6035, 0.0
      %v6090 = vsel %vm3572, %v6036, 0.0
      %v6091 = vsel %vm3573, %v6037, 0.0
      %v6092 = vsel %vm3574, %v6038, 0.0
      %v6093 = vsel %vm3575, %v6039, 0.0
      %v6094 = vsel %vm3576, %v6040, 0.0
      %v6095 = vsel %vm3577, %v6041, 0.0
      %v6096 = vsel %vm3578, %v6042, 0.0
      %v6097 = vsel %vm3579, %v6043, 0.0
      %v6098 = vsel %vm3580, %v6044, 0.0
      %v6099 = vsel %vm3581, %v6045, 0.0
      %v6100 = vsel %vm3582, %v6046, 0.0
      %v6101 = vsel %vm3583, %v6047, 0.0
      %v6102 = vsel %vm3584, %v6048, 0.0
      %v6103 = vsel %vm3585, %v6049, 0.0
      %v6104 = vsel %vm3586, %v6050, 0.0
      %v6105 = vsel %vm3587, %v6051, 0.0
      %v6106 = vsel %vm3588, %v6052, 0.0
      %v6107 = vsel %vm3589, %v6053, 0.0
      %v6108 = vsel %vm3590, %v6054, 0.0
      %v6163 = vrot.slane %v6055, 1
      %v6164 = vsel %vm883, %v3700, %v6163
      %v6165 = vrot.slane %v6056, 1
      %v6166 = vsel %vm883, %v6163, %v6165
      %v6167 = vrot.slane %v6057, 1
      %v6168 = vsel %vm883, %v6165, %v6167
      %v6169 = vrot.slane %v6058, 1
      %v6170 = vsel %vm883, %v6167, %v6169
      %v6171 = vrot.slane %v6059, 1
      %v6172 = vsel %vm883, %v6169, %v6171
      %v6173 = vrot.slane %v6060, 1
      %v6174 = vsel %vm883, %v6171, %v6173
      %v6175 = vrot.slane %v6061, 1
      %v6176 = vsel %vm883, %v6173, %v6175
      %v6177 = vrot.slane %v6062, 1
      %v6178 = vsel %vm883, %v6175, %v6177
      %v6179 = vrot.slane %v6063, 1
      %v6180 = vsel %vm883, %v6177, %v6179
      %v6181 = vrot.slane %v6064, 1
      %v6182 = vsel %vm883, %v6179, %v6181
      %v6183 = vrot.slane %v6065, 1
      %v6184 = vsel %vm883, %v6181, %v6183
      %v6185 = vrot.slane %v6066, 1
      %v6186 = vsel %vm883, %v6183, %v6185
      %v6187 = vrot.slane %v6067, 1
      %v6188 = vsel %vm883, %v6185, %v6187
      %v6189 = vrot.slane %v6068, 1
      %v6190 = vsel %vm883, %v6187, %v6189
      %v6191 = vrot.slane %v6069, 1
      %v6192 = vsel %vm883, %v6189, %v6191
      %v6193 = vrot.slane %v6070, 1
      %v6194 = vsel %vm883, %v6191, %v6193
      %v6195 = vrot.slane %v6071, 1
      %v6196 = vsel %vm883, %v6193, %v6195
      %v6197 = vrot.slane %v6072, 1
      %v6198 = vsel %vm883, %v6195, %v6197
      %v6199 = vrot.slane %v6073, 1
      %v6200 = vsel %vm883, %v6197, %v6199
      %v6201 = vrot.slane %v6074, 1
      %v6202 = vsel %vm883, %v6199, %v6201
      %v6203 = vrot.slane %v6075, 1
      %v6204 = vsel %vm883, %v6201, %v6203
      %v6205 = vrot.slane %v6076, 1
      %v6206 = vsel %vm883, %v6203, %v6205
      %v6207 = vrot.slane %v6077, 1
      %v6208 = vsel %vm883, %v6205, %v6207
      %v6209 = vrot.slane %v6078, 1
      %v6210 = vsel %vm883, %v6207, %v6209
      %v6211 = vrot.slane %v6079, 1
      %v6212 = vsel %vm883, %v6209, %v6211
      %v6213 = vrot.slane %v6080, 1
      %v6214 = vsel %vm883, %v6211, %v6213
      %v6215 = vrot.slane %v6081, 1
      %v6216 = vsel %vm883, %v6213, %v6215
      %v6217 = vrot.slane %v6082, 1
      %v6218 = vsel %vm883, %v6215, %v6217
      %v6219 = vrot.slane %v6083, 1
      %v6220 = vsel %vm883, %v6217, %v6219
      %v6221 = vrot.slane %v6084, 1
      %v6222 = vsel %vm883, %v6219, %v6221
      %v6223 = vrot.slane %v6085, 1
      %v6224 = vsel %vm883, %v6221, %v6223
      %v6225 = vrot.slane %v6086, 1
      %v6226 = vsel %vm883, %v6223, %v6225
      %v6227 = vrot.slane %v6087, 1
      %v6228 = vsel %vm883, %v6225, %v6227
      %v6229 = vrot.slane %v6088, 1
      %v6230 = vsel %vm883, %v6227, %v6229
      %v6231 = vrot.slane %v6089, 1
      %v6232 = vsel %vm883, %v6229, %v6231
      %v6233 = vrot.slane %v6090, 1
      %v6234 = vsel %vm883, %v6231, %v6233
      %v6235 = vrot.slane %v6091, 1
      %v6236 = vsel %vm883, %v6233, %v6235
      %v6237 = vrot.slane %v6092, 1
      %v6238 = vsel %vm883, %v6235, %v6237
      %v6239 = vrot.slane %v6093, 1
      %v6240 = vsel %vm883, %v6237, %v6239
      %v6241 = vrot.slane %v6094, 1
      %v6242 = vsel %vm883, %v6239, %v6241
      %v6243 = vrot.slane %v6095, 1
      %v6244 = vsel %vm883, %v6241, %v6243
      %v6245 = vrot.slane %v6096, 1
      %v6246 = vsel %vm883, %v6243, %v6245
      %v6247 = vrot.slane %v6097, 1
      %v6248 = vsel %vm883, %v6245, %v6247
      %v6249 = vrot.slane %v6098, 1
      %v6250 = vsel %vm883, %v6247, %v6249
      %v6251 = vrot.slane %v6099, 1
      %v6252 = vsel %vm883, %v6249, %v6251
      %v6253 = vrot.slane %v6100, 1
      %v6254 = vsel %vm883, %v6251, %v6253
      %v6255 = vrot.slane %v6101, 1
      %v6256 = vsel %vm883, %v6253, %v6255
      %v6257 = vrot.slane %v6102, 1
      %v6258 = vsel %vm883, %v6255, %v6257
      %v6259 = vrot.slane %v6103, 1
      %v6260 = vsel %vm883, %v6257, %v6259
      %v6261 = vrot.slane %v6104, 1
      %v6262 = vsel %vm883, %v6259, %v6261
      %v6263 = vrot.slane %v6105, 1
      %v6264 = vsel %vm883, %v6261, %v6263
      %v6265 = vrot.slane %v6106, 1
      %v6266 = vsel %vm883, %v6263, %v6265
      %v6267 = vrot.slane %v6107, 1
      %v6268 = vsel %vm883, %v6265, %v6267
      %v6269 = vrot.slane %v6108, 1
      %v6270 = vsel %vm883, %v6267, %v6269
      %v6271 = vsel %vm883, %v6269, %v3700
      %6272 = vrot.lane.b32.xlu0 %v3700, 2
      %v6273 = vpop.permute.xlu0 %6272
      %6274 = vrot.lane.b32.xlu0 %v3701, 2
      %v6275 = vpop.permute.xlu0 %6274
      %6276 = vrot.lane.b32.xlu0 %v6164, 2
      %v6277 = vpop.permute.xlu0 %6276
      %6278 = vrot.lane.b32.xlu0 %v6166, 2
      %v6279 = vpop.permute.xlu0 %6278
      %6280 = vrot.lane.b32.xlu0 %v6168, 2
      %v6281 = vpop.permute.xlu0 %6280
      %6282 = vrot.lane.b32.xlu0 %v6170, 2
      %v6283 = vpop.permute.xlu0 %6282
      %6284 = vrot.lane.b32.xlu0 %v6172, 2
      %v6285 = vpop.permute.xlu0 %6284
      %6286 = vrot.lane.b32.xlu0 %v6174, 2
      %v6287 = vpop.permute.xlu0 %6286
      %6288 = vrot.lane.b32.xlu0 %v6176, 2
      %v6289 = vpop.permute.xlu0 %6288
      %6290 = vrot.lane.b32.xlu0 %v6178, 2
      %v6291 = vpop.permute.xlu0 %6290
      %6292 = vrot.lane.b32.xlu0 %v6180, 2
      %v6293 = vpop.permute.xlu0 %6292
      %6294 = vrot.lane.b32.xlu0 %v6182, 2
      %v6295 = vpop.permute.xlu0 %6294
      %6296 = vrot.lane.b32.xlu0 %v6184, 2
      %v6297 = vpop.permute.xlu0 %6296
      %6298 = vrot.lane.b32.xlu0 %v6186, 2
      %v6299 = vpop.permute.xlu0 %6298
      %6300 = vrot.lane.b32.xlu0 %v6188, 2
      %v6301 = vpop.permute.xlu0 %6300
      %6302 = vrot.lane.b32.xlu0 %v6190, 2
      %v6303 = vpop.permute.xlu0 %6302
      %6304 = vrot.lane.b32.xlu0 %v6192, 2
      %v6305 = vpop.permute.xlu0 %6304
      %6306 = vrot.lane.b32.xlu0 %v6194, 2
      %v6307 = vpop.permute.xlu0 %6306
      %6308 = vrot.lane.b32.xlu0 %v6196, 2
      %v6309 = vpop.permute.xlu0 %6308
      %6310 = vrot.lane.b32.xlu0 %v6198, 2
      %v6311 = vpop.permute.xlu0 %6310
      %6312 = vrot.lane.b32.xlu0 %v6200, 2
      %v6313 = vpop.permute.xlu0 %6312
      %6314 = vrot.lane.b32.xlu0 %v6202, 2
      %v6315 = vpop.permute.xlu0 %6314
      %6316 = vrot.lane.b32.xlu0 %v6204, 2
      %v6317 = vpop.permute.xlu0 %6316
      %6318 = vrot.lane.b32.xlu0 %v6206, 2
      %v6319 = vpop.permute.xlu0 %6318
      %6320 = vrot.lane.b32.xlu0 %v6208, 2
      %v6321 = vpop.permute.xlu0 %6320
      %6322 = vrot.lane.b32.xlu0 %v6210, 2
      %v6323 = vpop.permute.xlu0 %6322
      %6324 = vrot.lane.b32.xlu0 %v6212, 2
      %v6325 = vpop.permute.xlu0 %6324
      %6326 = vrot.lane.b32.xlu0 %v6214, 2
      %v6327 = vpop.permute.xlu0 %6326
      %6328 = vrot.lane.b32.xlu0 %v6216, 2
      %v6329 = vpop.permute.xlu0 %6328
      %6330 = vrot.lane.b32.xlu0 %v6218, 2
      %v6331 = vpop.permute.xlu0 %6330
      %6332 = vrot.lane.b32.xlu0 %v6220, 2
      %v6333 = vpop.permute.xlu0 %6332
      %6334 = vrot.lane.b32.xlu0 %v6222, 2
      %v6335 = vpop.permute.xlu0 %6334
      %6336 = vrot.lane.b32.xlu0 %v6224, 2
      %v6337 = vpop.permute.xlu0 %6336
      %6338 = vrot.lane.b32.xlu0 %v6226, 2
      %v6339 = vpop.permute.xlu0 %6338
      %6340 = vrot.lane.b32.xlu0 %v6228, 2
      %v6341 = vpop.permute.xlu0 %6340
      %6342 = vrot.lane.b32.xlu0 %v6230, 2
      %v6343 = vpop.permute.xlu0 %6342
      %6344 = vrot.lane.b32.xlu0 %v6232, 2
      %v6345 = vpop.permute.xlu0 %6344
      %6346 = vrot.lane.b32.xlu0 %v6234, 2
      %v6347 = vpop.permute.xlu0 %6346
      %6348 = vrot.lane.b32.xlu0 %v6236, 2
      %v6349 = vpop.permute.xlu0 %6348
      %6350 = vrot.lane.b32.xlu0 %v6238, 2
      %v6351 = vpop.permute.xlu0 %6350
      %6352 = vrot.lane.b32.xlu0 %v6240, 2
      %v6353 = vpop.permute.xlu0 %6352
      %6354 = vrot.lane.b32.xlu0 %v6242, 2
      %v6355 = vpop.permute.xlu0 %6354
      %6356 = vrot.lane.b32.xlu0 %v6244, 2
      %v6357 = vpop.permute.xlu0 %6356
      %6358 = vrot.lane.b32.xlu0 %v6246, 2
      %v6359 = vpop.permute.xlu0 %6358
      %6360 = vrot.lane.b32.xlu0 %v6248, 2
      %v6361 = vpop.permute.xlu0 %6360
      %6362 = vrot.lane.b32.xlu0 %v6250, 2
      %v6363 = vpop.permute.xlu0 %6362
      %6364 = vrot.lane.b32.xlu0 %v6252, 2
      %v6365 = vpop.permute.xlu0 %6364
      %6366 = vrot.lane.b32.xlu0 %v6254, 2
      %v6367 = vpop.permute.xlu0 %6366
      %6368 = vrot.lane.b32.xlu0 %v6256, 2
      %v6369 = vpop.permute.xlu0 %6368
      %6370 = vrot.lane.b32.xlu0 %v6258, 2
      %v6371 = vpop.permute.xlu0 %6370
      %6372 = vrot.lane.b32.xlu0 %v6260, 2
      %v6373 = vpop.permute.xlu0 %6372
      %6374 = vrot.lane.b32.xlu0 %v6262, 2
      %v6375 = vpop.permute.xlu0 %6374
      %6376 = vrot.lane.b32.xlu0 %v6264, 2
      %v6377 = vpop.permute.xlu0 %6376
      %6378 = vrot.lane.b32.xlu0 %v6266, 2
      %v6379 = vpop.permute.xlu0 %6378
      %6380 = vrot.lane.b32.xlu0 %v6268, 2
      %v6381 = vpop.permute.xlu0 %6380
      %6382 = vrot.lane.b32.xlu0 %v6270, 2
      %v6383 = vpop.permute.xlu0 %6382
      %6384 = vrot.lane.b32.xlu0 %v6271, 2
      %v6385 = vpop.permute.xlu0 %6384
      %v6443 = vrot.slane %v6055, 2
      %v6444 = vsel %vm1065, %v3982, %v6443
      %v6445 = vrot.slane %v6056, 2
      %v6446 = vsel %vm1065, %v6443, %v6445
      %v6447 = vrot.slane %v6057, 2
      %v6448 = vsel %vm1065, %v6445, %v6447
      %v6449 = vrot.slane %v6058, 2
      %v6450 = vsel %vm1065, %v6447, %v6449
      %v6451 = vrot.slane %v6059, 2
      %v6452 = vsel %vm1065, %v6449, %v6451
      %v6453 = vrot.slane %v6060, 2
      %v6454 = vsel %vm1065, %v6451, %v6453
      %v6455 = vrot.slane %v6061, 2
      %v6456 = vsel %vm1065, %v6453, %v6455
      %v6457 = vrot.slane %v6062, 2
      %v6458 = vsel %vm1065, %v6455, %v6457
      %v6459 = vrot.slane %v6063, 2
      %v6460 = vsel %vm1065, %v6457, %v6459
      %v6461 = vrot.slane %v6064, 2
      %v6462 = vsel %vm1065, %v6459, %v6461
      %v6463 = vrot.slane %v6065, 2
      %v6464 = vsel %vm1065, %v6461, %v6463
      %v6465 = vrot.slane %v6066, 2
      %v6466 = vsel %vm1065, %v6463, %v6465
      %v6467 = vrot.slane %v6067, 2
      %v6468 = vsel %vm1065, %v6465, %v6467
      %v6469 = vrot.slane %v6068, 2
      %v6470 = vsel %vm1065, %v6467, %v6469
      %v6471 = vrot.slane %v6069, 2
      %v6472 = vsel %vm1065, %v6469, %v6471
      %v6473 = vrot.slane %v6070, 2
      %v6474 = vsel %vm1065, %v6471, %v6473
      %v6475 = vrot.slane %v6071, 2
      %v6476 = vsel %vm1065, %v6473, %v6475
      %v6477 = vrot.slane %v6072, 2
      %v6478 = vsel %vm1065, %v6475, %v6477
      %v6479 = vrot.slane %v6073, 2
      %v6480 = vsel %vm1065, %v6477, %v6479
      %v6481 = vrot.slane %v6074, 2
      %v6482 = vsel %vm1065, %v6479, %v6481
      %v6483 = vrot.slane %v6075, 2
      %v6484 = vsel %vm1065, %v6481, %v6483
      %v6485 = vrot.slane %v6076, 2
      %v6486 = vsel %vm1065, %v6483, %v6485
      %v6487 = vrot.slane %v6077, 2
      %v6488 = vsel %vm1065, %v6485, %v6487
      %v6489 = vrot.slane %v6078, 2
      %v6490 = vsel %vm1065, %v6487, %v6489
      %v6491 = vrot.slane %v6079, 2
      %v6492 = vsel %vm1065, %v6489, %v6491
      %v6493 = vrot.slane %v6080, 2
      %v6494 = vsel %vm1065, %v6491, %v6493
      %v6495 = vrot.slane %v6081, 2
      %v6496 = vsel %vm1065, %v6493, %v6495
      %v6497 = vrot.slane %v6082, 2
      %v6498 = vsel %vm1065, %v6495, %v6497
      %v6499 = vrot.slane %v6083, 2
      %v6500 = vsel %vm1065, %v6497, %v6499
      %v6501 = vrot.slane %v6084, 2
      %v6502 = vsel %vm1065, %v6499, %v6501
      %v6503 = vrot.slane %v6085, 2
      %v6504 = vsel %vm1065, %v6501, %v6503
      %v6505 = vrot.slane %v6086, 2
      %v6506 = vsel %vm1065, %v6503, %v6505
      %v6507 = vrot.slane %v6087, 2
      %v6508 = vsel %vm1065, %v6505, %v6507
      %v6509 = vrot.slane %v6088, 2
      %v6510 = vsel %vm1065, %v6507, %v6509
      %v6511 = vrot.slane %v6089, 2
      %v6512 = vsel %vm1065, %v6509, %v6511
      %v6513 = vrot.slane %v6090, 2
      %v6514 = vsel %vm1065, %v6511, %v6513
      %v6515 = vrot.slane %v6091, 2
      %v6516 = vsel %vm1065, %v6513, %v6515
      %v6517 = vrot.slane %v6092, 2
      %v6518 = vsel %vm1065, %v6515, %v6517
      %v6519 = vrot.slane %v6093, 2
      %v6520 = vsel %vm1065, %v6517, %v6519
      %v6521 = vrot.slane %v6094, 2
      %v6522 = vsel %vm1065, %v6519, %v6521
      %v6523 = vrot.slane %v6095, 2
      %v6524 = vsel %vm1065, %v6521, %v6523
      %v6525 = vrot.slane %v6096, 2
      %v6526 = vsel %vm1065, %v6523, %v6525
      %v6527 = vrot.slane %v6097, 2
      %v6528 = vsel %vm1065, %v6525, %v6527
      %v6529 = vrot.slane %v6098, 2
      %v6530 = vsel %vm1065, %v6527, %v6529
      %v6531 = vrot.slane %v6099, 2
      %v6532 = vsel %vm1065, %v6529, %v6531
      %v6533 = vrot.slane %v6100, 2
      %v6534 = vsel %vm1065, %v6531, %v6533
      %v6535 = vrot.slane %v6101, 2
      %v6536 = vsel %vm1065, %v6533, %v6535
      %v6537 = vrot.slane %v6102, 2
      %v6538 = vsel %vm1065, %v6535, %v6537
      %v6539 = vrot.slane %v6103, 2
      %v6540 = vsel %vm1065, %v6537, %v6539
      %v6541 = vrot.slane %v6104, 2
      %v6542 = vsel %vm1065, %v6539, %v6541
      %v6543 = vrot.slane %v6105, 2
      %v6544 = vsel %vm1065, %v6541, %v6543
      %v6545 = vrot.slane %v6106, 2
      %v6546 = vsel %vm1065, %v6543, %v6545
      %v6547 = vrot.slane %v6107, 2
      %v6548 = vsel %vm1065, %v6545, %v6547
      %v6549 = vrot.slane %v6108, 2
      %v6550 = vsel %vm1065, %v6547, %v6549
      %v6551 = vsel %vm1065, %v6549, %v3982
      %6552 = vrot.lane.b32.xlu0 %v3982, 4
      %v6553 = vpop.permute.xlu0 %6552
      %6554 = vrot.lane.b32.xlu0 %v3983, 4
      %v6555 = vpop.permute.xlu0 %6554
      %6556 = vrot.lane.b32.xlu0 %v6444, 4
      %v6557 = vpop.permute.xlu0 %6556
      %6558 = vrot.lane.b32.xlu0 %v6446, 4
      %v6559 = vpop.permute.xlu0 %6558
      %6560 = vrot.lane.b32.xlu0 %v6448, 4
      %v6561 = vpop.permute.xlu0 %6560
      %6562 = vrot.lane.b32.xlu0 %v6450, 4
      %v6563 = vpop.permute.xlu0 %6562
      %6564 = vrot.lane.b32.xlu0 %v6452, 4
      %v6565 = vpop.permute.xlu0 %6564
      %6566 = vrot.lane.b32.xlu0 %v6454, 4
      %v6567 = vpop.permute.xlu0 %6566
      %6568 = vrot.lane.b32.xlu0 %v6456, 4
      %v6569 = vpop.permute.xlu0 %6568
      %6570 = vrot.lane.b32.xlu0 %v6458, 4
      %v6571 = vpop.permute.xlu0 %6570
      %6572 = vrot.lane.b32.xlu0 %v6460, 4
      %v6573 = vpop.permute.xlu0 %6572
      %6574 = vrot.lane.b32.xlu0 %v6462, 4
      %v6575 = vpop.permute.xlu0 %6574
      %6576 = vrot.lane.b32.xlu0 %v6464, 4
      %v6577 = vpop.permute.xlu0 %6576
      %6578 = vrot.lane.b32.xlu0 %v6466, 4
      %v6579 = vpop.permute.xlu0 %6578
      %6580 = vrot.lane.b32.xlu0 %v6468, 4
      %v6581 = vpop.permute.xlu0 %6580
      %6582 = vrot.lane.b32.xlu0 %v6470, 4
      %v6583 = vpop.permute.xlu0 %6582
      %6584 = vrot.lane.b32.xlu0 %v6472, 4
      %v6585 = vpop.permute.xlu0 %6584
      %6586 = vrot.lane.b32.xlu0 %v6474, 4
      %v6587 = vpop.permute.xlu0 %6586
      %6588 = vrot.lane.b32.xlu0 %v6476, 4
      %v6589 = vpop.permute.xlu0 %6588
      %6590 = vrot.lane.b32.xlu0 %v6478, 4
      %v6591 = vpop.permute.xlu0 %6590
      %6592 = vrot.lane.b32.xlu0 %v6480, 4
      %v6593 = vpop.permute.xlu0 %6592
      %6594 = vrot.lane.b32.xlu0 %v6482, 4
      %v6595 = vpop.permute.xlu0 %6594
      %6596 = vrot.lane.b32.xlu0 %v6484, 4
      %v6597 = vpop.permute.xlu0 %6596
      %6598 = vrot.lane.b32.xlu0 %v6486, 4
      %v6599 = vpop.permute.xlu0 %6598
      %6600 = vrot.lane.b32.xlu0 %v6488, 4
      %v6601 = vpop.permute.xlu0 %6600
      %6602 = vrot.lane.b32.xlu0 %v6490, 4
      %v6603 = vpop.permute.xlu0 %6602
      %6604 = vrot.lane.b32.xlu0 %v6492, 4
      %v6605 = vpop.permute.xlu0 %6604
      %6606 = vrot.lane.b32.xlu0 %v6494, 4
      %v6607 = vpop.permute.xlu0 %6606
      %6608 = vrot.lane.b32.xlu0 %v6496, 4
      %v6609 = vpop.permute.xlu0 %6608
      %6610 = vrot.lane.b32.xlu0 %v6498, 4
      %v6611 = vpop.permute.xlu0 %6610
      %6612 = vrot.lane.b32.xlu0 %v6500, 4
      %v6613 = vpop.permute.xlu0 %6612
      %6614 = vrot.lane.b32.xlu0 %v6502, 4
      %v6615 = vpop.permute.xlu0 %6614
      %6616 = vrot.lane.b32.xlu0 %v6504, 4
      %v6617 = vpop.permute.xlu0 %6616
      %6618 = vrot.lane.b32.xlu0 %v6506, 4
      %v6619 = vpop.permute.xlu0 %6618
      %6620 = vrot.lane.b32.xlu0 %v6508, 4
      %v6621 = vpop.permute.xlu0 %6620
      %6622 = vrot.lane.b32.xlu0 %v6510, 4
      %v6623 = vpop.permute.xlu0 %6622
      %6624 = vrot.lane.b32.xlu0 %v6512, 4
      %v6625 = vpop.permute.xlu0 %6624
      %6626 = vrot.lane.b32.xlu0 %v6514, 4
      %v6627 = vpop.permute.xlu0 %6626
      %6628 = vrot.lane.b32.xlu0 %v6516, 4
      %v6629 = vpop.permute.xlu0 %6628
      %6630 = vrot.lane.b32.xlu0 %v6518, 4
      %v6631 = vpop.permute.xlu0 %6630
      %6632 = vrot.lane.b32.xlu0 %v6520, 4
      %v6633 = vpop.permute.xlu0 %6632
      %6634 = vrot.lane.b32.xlu0 %v6522, 4
      %v6635 = vpop.permute.xlu0 %6634
      %6636 = vrot.lane.b32.xlu0 %v6524, 4
      %v6637 = vpop.permute.xlu0 %6636
      %6638 = vrot.lane.b32.xlu0 %v6526, 4
      %v6639 = vpop.permute.xlu0 %6638
      %6640 = vrot.lane.b32.xlu0 %v6528, 4
      %v6641 = vpop.permute.xlu0 %6640
      %6642 = vrot.lane.b32.xlu0 %v6530, 4
      %v6643 = vpop.permute.xlu0 %6642
      %6644 = vrot.lane.b32.xlu0 %v6532, 4
      %v6645 = vpop.permute.xlu0 %6644
      %6646 = vrot.lane.b32.xlu0 %v6534, 4
      %v6647 = vpop.permute.xlu0 %6646
      %6648 = vrot.lane.b32.xlu0 %v6536, 4
      %v6649 = vpop.permute.xlu0 %6648
      %6650 = vrot.lane.b32.xlu0 %v6538, 4
      %v6651 = vpop.permute.xlu0 %6650
      %6652 = vrot.lane.b32.xlu0 %v6540, 4
      %v6653 = vpop.permute.xlu0 %6652
      %6654 = vrot.lane.b32.xlu0 %v6542, 4
      %v6655 = vpop.permute.xlu0 %6654
      %6656 = vrot.lane.b32.xlu0 %v6544, 4
      %v6657 = vpop.permute.xlu0 %6656
      %6658 = vrot.lane.b32.xlu0 %v6546, 4
      %v6659 = vpop.permute.xlu0 %6658
      %6660 = vrot.lane.b32.xlu0 %v6548, 4
      %v6661 = vpop.permute.xlu0 %6660
      %6662 = vrot.lane.b32.xlu0 %v6550, 4
      %v6663 = vpop.permute.xlu0 %6662
      %6664 = vrot.lane.b32.xlu0 %v6551, 4
      %v6665 = vpop.permute.xlu0 %6664
      %v6723 = vsel %vm1370, 0.0, %v6273
      %v6724 = vsel %vm1370, 0.0, %v6275
      %v6725 = vsel %vm1370, 0.0, %v6277
      %v6726 = vsel %vm1370, %v6055, %v6279
      %v6727 = vsel %vm1370, %v6056, %v6281
      %v6728 = vsel %vm1370, %v6057, %v6283
      %v6729 = vsel %vm1370, %v6058, %v6285
      %v6730 = vsel %vm1370, %v6059, %v6287
      %v6731 = vsel %vm1370, %v6060, %v6289
      %v6732 = vsel %vm1370, %v6061, %v6291
      %v6733 = vsel %vm1370, %v6062, %v6293
      %v6734 = vsel %vm1370, %v6063, %v6295
      %v6735 = vsel %vm1370, %v6064, %v6297
      %v6736 = vsel %vm1370, %v6065, %v6299
      %v6737 = vsel %vm1370, %v6066, %v6301
      %v6738 = vsel %vm1370, %v6067, %v6303
      %v6739 = vsel %vm1370, %v6068, %v6305
      %v6740 = vsel %vm1370, %v6069, %v6307
      %v6741 = vsel %vm1370, %v6070, %v6309
      %v6742 = vsel %vm1370, %v6071, %v6311
      %v6743 = vsel %vm1370, %v6072, %v6313
      %v6744 = vsel %vm1370, %v6073, %v6315
      %v6745 = vsel %vm1370, %v6074, %v6317
      %v6746 = vsel %vm1370, %v6075, %v6319
      %v6747 = vsel %vm1370, %v6076, %v6321
      %v6748 = vsel %vm1370, %v6077, %v6323
      %v6749 = vsel %vm1370, %v6078, %v6325
      %v6750 = vsel %vm1370, %v6079, %v6327
      %v6751 = vsel %vm1370, %v6080, %v6329
      %v6752 = vsel %vm1370, %v6081, %v6331
      %v6753 = vsel %vm1370, %v6082, %v6333
      %v6754 = vsel %vm1370, %v6083, %v6335
      %v6755 = vsel %vm1370, %v6084, %v6337
      %v6756 = vsel %vm1370, %v6085, %v6339
      %v6757 = vsel %vm1370, %v6086, %v6341
      %v6758 = vsel %vm1370, %v6087, %v6343
      %v6759 = vsel %vm1370, %v6088, %v6345
      %v6760 = vsel %vm1370, %v6089, %v6347
      %v6761 = vsel %vm1370, %v6090, %v6349
      %v6762 = vsel %vm1370, %v6091, %v6351
      %v6763 = vsel %vm1370, %v6092, %v6353
      %v6764 = vsel %vm1370, %v6093, %v6355
      %v6765 = vsel %vm1370, %v6094, %v6357
      %v6766 = vsel %vm1370, %v6095, %v6359
      %v6767 = vsel %vm1370, %v6096, %v6361
      %v6768 = vsel %vm1370, %v6097, %v6363
      %v6769 = vsel %vm1370, %v6098, %v6365
      %v6770 = vsel %vm1370, %v6099, %v6367
      %v6771 = vsel %vm1370, %v6100, %v6369
      %v6772 = vsel %vm1370, %v6101, %v6371
      %v6773 = vsel %vm1370, %v6102, %v6373
      %v6774 = vsel %vm1370, %v6103, %v6375
      %v6775 = vsel %vm1370, %v6104, %v6377
      %v6776 = vsel %vm1370, %v6105, %v6379
      %v6777 = vsel %vm1370, %v6106, %v6381
      %v6778 = vsel %vm1370, %v6107, %v6383
      %v6779 = vsel %vm1370, %v6108, %v6385
      %v6780 = vsel %vm1432, %v6723, %v6553
      %v6781 = vsel %vm1432, %v6724, %v6555
      %v6782 = vsel %vm1432, %v6725, %v6557
      %v6783 = vsel %vm1432, %v6726, %v6559
      %v6784 = vsel %vm1432, %v6727, %v6561
      %v6785 = vsel %vm1432, %v6728, %v6563
      %v6786 = vsel %vm1432, %v6729, %v6565
      %v6787 = vsel %vm1432, %v6730, %v6567
      %v6788 = vsel %vm1432, %v6731, %v6569
      %v6789 = vsel %vm1432, %v6732, %v6571
      %v6790 = vsel %vm1432, %v6733, %v6573
      %v6791 = vsel %vm1432, %v6734, %v6575
      %v6792 = vsel %vm1432, %v6735, %v6577
      %v6793 = vsel %vm1432, %v6736, %v6579
      %v6794 = vsel %vm1432, %v6737, %v6581
      %v6795 = vsel %vm1432, %v6738, %v6583
      %v6796 = vsel %vm1432, %v6739, %v6585
      %v6797 = vsel %vm1432, %v6740, %v6587
      %v6798 = vsel %vm1432, %v6741, %v6589
      %v6799 = vsel %vm1432, %v6742, %v6591
      %v6800 = vsel %vm1432, %v6743, %v6593
      %v6801 = vsel %vm1432, %v6744, %v6595
      %v6802 = vsel %vm1432, %v6745, %v6597
      %v6803 = vsel %vm1432, %v6746, %v6599
      %v6804 = vsel %vm1432, %v6747, %v6601
      %v6805 = vsel %vm1432, %v6748, %v6603
      %v6806 = vsel %vm1432, %v6749, %v6605
      %v6807 = vsel %vm1432, %v6750, %v6607
      %v6808 = vsel %vm1432, %v6751, %v6609
      %v6809 = vsel %vm1432, %v6752, %v6611
      %v6810 = vsel %vm1432, %v6753, %v6613
      %v6811 = vsel %vm1432, %v6754, %v6615
      %v6812 = vsel %vm1432, %v6755, %v6617
      %v6813 = vsel %vm1432, %v6756, %v6619
      %v6814 = vsel %vm1432, %v6757, %v6621
      %v6815 = vsel %vm1432, %v6758, %v6623
      %v6816 = vsel %vm1432, %v6759, %v6625
      %v6817 = vsel %vm1432, %v6760, %v6627
      %v6818 = vsel %vm1432, %v6761, %v6629
      %v6819 = vsel %vm1432, %v6762, %v6631
      %v6820 = vsel %vm1432, %v6763, %v6633
      %v6821 = vsel %vm1432, %v6764, %v6635
      %v6822 = vsel %vm1432, %v6765, %v6637
      %v6823 = vsel %vm1432, %v6766, %v6639
      %v6824 = vsel %vm1432, %v6767, %v6641
      %v6825 = vsel %vm1432, %v6768, %v6643
      %v6826 = vsel %vm1432, %v6769, %v6645
      %v6827 = vsel %vm1432, %v6770, %v6647
      %v6828 = vsel %vm1432, %v6771, %v6649
      %v6829 = vsel %vm1432, %v6772, %v6651
      %v6830 = vsel %vm1432, %v6773, %v6653
      %v6831 = vsel %vm1432, %v6774, %v6655
      %v6832 = vsel %vm1432, %v6775, %v6657
      %v6833 = vsel %vm1432, %v6776, %v6659
      %v6834 = vsel %vm1432, %v6777, %v6661
      %v6835 = vsel %vm1432, %v6778, %v6663
      %v6836 = vsel %vm1432, %v6779, %v6665
      %v6837 = vsel %vm1432, %v6723, %v6555
      %6893 = vrot.lane.b32.xlu0 %v6782, 6
      %v6894 = vpop.permute.xlu0 %6893
      %6895 = vrot.lane.b32.xlu0 %v6783, 6
      %v6896 = vpop.permute.xlu0 %6895
      %6897 = vrot.lane.b32.xlu0 %v6784, 6
      %v6898 = vpop.permute.xlu0 %6897
      %6899 = vrot.lane.b32.xlu0 %v6785, 6
      %v6900 = vpop.permute.xlu0 %6899
      %6901 = vrot.lane.b32.xlu0 %v6786, 6
      %v6902 = vpop.permute.xlu0 %6901
      %6903 = vrot.lane.b32.xlu0 %v6787, 6
      %v6904 = vpop.permute.xlu0 %6903
      %6905 = vrot.lane.b32.xlu0 %v6788, 6
      %v6906 = vpop.permute.xlu0 %6905
      %6907 = vrot.lane.b32.xlu0 %v6789, 6
      %v6908 = vpop.permute.xlu0 %6907
      %6909 = vrot.lane.b32.xlu0 %v6790, 6
      %v6910 = vpop.permute.xlu0 %6909
      %6911 = vrot.lane.b32.xlu0 %v6791, 6
      %v6912 = vpop.permute.xlu0 %6911
      %6913 = vrot.lane.b32.xlu0 %v6792, 6
      %v6914 = vpop.permute.xlu0 %6913
      %6915 = vrot.lane.b32.xlu0 %v6793, 6
      %v6916 = vpop.permute.xlu0 %6915
      %6917 = vrot.lane.b32.xlu0 %v6794, 6
      %v6918 = vpop.permute.xlu0 %6917
      %6919 = vrot.lane.b32.xlu0 %v6795, 6
      %v6920 = vpop.permute.xlu0 %6919
      %6921 = vrot.lane.b32.xlu0 %v6796, 6
      %v6922 = vpop.permute.xlu0 %6921
      %6923 = vrot.lane.b32.xlu0 %v6797, 6
      %v6924 = vpop.permute.xlu0 %6923
      %6925 = vrot.lane.b32.xlu0 %v6798, 6
      %v6926 = vpop.permute.xlu0 %6925
      %6927 = vrot.lane.b32.xlu0 %v6799, 6
      %v6928 = vpop.permute.xlu0 %6927
      %6929 = vrot.lane.b32.xlu0 %v6800, 6
      %v6930 = vpop.permute.xlu0 %6929
      %6931 = vrot.lane.b32.xlu0 %v6801, 6
      %v6932 = vpop.permute.xlu0 %6931
      %6933 = vrot.lane.b32.xlu0 %v6802, 6
      %v6934 = vpop.permute.xlu0 %6933
      %6935 = vrot.lane.b32.xlu0 %v6803, 6
      %v6936 = vpop.permute.xlu0 %6935
      %6937 = vrot.lane.b32.xlu0 %v6804, 6
      %v6938 = vpop.permute.xlu0 %6937
      %6939 = vrot.lane.b32.xlu0 %v6805, 6
      %v6940 = vpop.permute.xlu0 %6939
      %6941 = vrot.lane.b32.xlu0 %v6806, 6
      %v6942 = vpop.permute.xlu0 %6941
      %6943 = vrot.lane.b32.xlu0 %v6807, 6
      %v6944 = vpop.permute.xlu0 %6943
      %6945 = vrot.lane.b32.xlu0 %v6808, 6
      %v6946 = vpop.permute.xlu0 %6945
      %6947 = vrot.lane.b32.xlu0 %v6809, 6
      %v6948 = vpop.permute.xlu0 %6947
      %6949 = vrot.lane.b32.xlu0 %v6810, 6
      %v6950 = vpop.permute.xlu0 %6949
      %6951 = vrot.lane.b32.xlu0 %v6811, 6
      %v6952 = vpop.permute.xlu0 %6951
      %6953 = vrot.lane.b32.xlu0 %v6812, 6
      %v6954 = vpop.permute.xlu0 %6953
      %6955 = vrot.lane.b32.xlu0 %v6813, 6
      %v6956 = vpop.permute.xlu0 %6955
      %6957 = vrot.lane.b32.xlu0 %v6814, 6
      %v6958 = vpop.permute.xlu0 %6957
      %6959 = vrot.lane.b32.xlu0 %v6815, 6
      %v6960 = vpop.permute.xlu0 %6959
      %6961 = vrot.lane.b32.xlu0 %v6816, 6
      %v6962 = vpop.permute.xlu0 %6961
      %6963 = vrot.lane.b32.xlu0 %v6817, 6
      %v6964 = vpop.permute.xlu0 %6963
      %6965 = vrot.lane.b32.xlu0 %v6818, 6
      %v6966 = vpop.permute.xlu0 %6965
      %6967 = vrot.lane.b32.xlu0 %v6819, 6
      %v6968 = vpop.permute.xlu0 %6967
      %6969 = vrot.lane.b32.xlu0 %v6820, 6
      %v6970 = vpop.permute.xlu0 %6969
      %6971 = vrot.lane.b32.xlu0 %v6821, 6
      %v6972 = vpop.permute.xlu0 %6971
      %6973 = vrot.lane.b32.xlu0 %v6822, 6
      %v6974 = vpop.permute.xlu0 %6973
      %6975 = vrot.lane.b32.xlu0 %v6823, 6
      %v6976 = vpop.permute.xlu0 %6975
      %6977 = vrot.lane.b32.xlu0 %v6824, 6
      %v6978 = vpop.permute.xlu0 %6977
      %6979 = vrot.lane.b32.xlu0 %v6825, 6
      %v6980 = vpop.permute.xlu0 %6979
      %6981 = vrot.lane.b32.xlu0 %v6826, 6
      %v6982 = vpop.permute.xlu0 %6981
      %6983 = vrot.lane.b32.xlu0 %v6827, 6
      %v6984 = vpop.permute.xlu0 %6983
      %6985 = vrot.lane.b32.xlu0 %v6828, 6
      %v6986 = vpop.permute.xlu0 %6985
      %6987 = vrot.lane.b32.xlu0 %v6829, 6
      %v6988 = vpop.permute.xlu0 %6987
      %6989 = vrot.lane.b32.xlu0 %v6830, 6
      %v6990 = vpop.permute.xlu0 %6989
      %6991 = vrot.lane.b32.xlu0 %v6831, 6
      %v6992 = vpop.permute.xlu0 %6991
      %6993 = vrot.lane.b32.xlu0 %v6832, 6
      %v6994 = vpop.permute.xlu0 %6993
      %6995 = vrot.lane.b32.xlu0 %v6833, 6
      %v6996 = vpop.permute.xlu0 %6995
      %6997 = vrot.lane.b32.xlu0 %v6834, 6
      %v6998 = vpop.permute.xlu0 %6997
      %6999 = vrot.lane.b32.xlu0 %v6835, 6
      %v7000 = vpop.permute.xlu0 %6999
      %7001 = vrot.lane.b32.xlu0 %v6836, 6
      %v7002 = vpop.permute.xlu0 %7001
      %7060 = vrot.lane.b32.xlu0 %v6785, 12
      %v7061 = vpop.permute.xlu0 %7060
      %7062 = vrot.lane.b32.xlu0 %v6786, 12
      %v7063 = vpop.permute.xlu0 %7062
      %7064 = vrot.lane.b32.xlu0 %v6787, 12
      %v7065 = vpop.permute.xlu0 %7064
      %7066 = vrot.lane.b32.xlu0 %v6788, 12
      %v7067 = vpop.permute.xlu0 %7066
      %7068 = vrot.lane.b32.xlu0 %v6789, 12
      %v7069 = vpop.permute.xlu0 %7068
      %7070 = vrot.lane.b32.xlu0 %v6790, 12
      %v7071 = vpop.permute.xlu0 %7070
      %7072 = vrot.lane.b32.xlu0 %v6791, 12
      %v7073 = vpop.permute.xlu0 %7072
      %7074 = vrot.lane.b32.xlu0 %v6792, 12
      %v7075 = vpop.permute.xlu0 %7074
      %7076 = vrot.lane.b32.xlu0 %v6793, 12
      %v7077 = vpop.permute.xlu0 %7076
      %7078 = vrot.lane.b32.xlu0 %v6794, 12
      %v7079 = vpop.permute.xlu0 %7078
      %7080 = vrot.lane.b32.xlu0 %v6795, 12
      %v7081 = vpop.permute.xlu0 %7080
      %7082 = vrot.lane.b32.xlu0 %v6796, 12
      %v7083 = vpop.permute.xlu0 %7082
      %7084 = vrot.lane.b32.xlu0 %v6797, 12
      %v7085 = vpop.permute.xlu0 %7084
      %7086 = vrot.lane.b32.xlu0 %v6798, 12
      %v7087 = vpop.permute.xlu0 %7086
      %7088 = vrot.lane.b32.xlu0 %v6799, 12
      %v7089 = vpop.permute.xlu0 %7088
      %7090 = vrot.lane.b32.xlu0 %v6800, 12
      %v7091 = vpop.permute.xlu0 %7090
      %7092 = vrot.lane.b32.xlu0 %v6801, 12
      %v7093 = vpop.permute.xlu0 %7092
      %7094 = vrot.lane.b32.xlu0 %v6802, 12
      %v7095 = vpop.permute.xlu0 %7094
      %7096 = vrot.lane.b32.xlu0 %v6803, 12
      %v7097 = vpop.permute.xlu0 %7096
      %7098 = vrot.lane.b32.xlu0 %v6804, 12
      %v7099 = vpop.permute.xlu0 %7098
      %7100 = vrot.lane.b32.xlu0 %v6805, 12
      %v7101 = vpop.permute.xlu0 %7100
      %7102 = vrot.lane.b32.xlu0 %v6806, 12
      %v7103 = vpop.permute.xlu0 %7102
      %7104 = vrot.lane.b32.xlu0 %v6807, 12
      %v7105 = vpop.permute.xlu0 %7104
      %7106 = vrot.lane.b32.xlu0 %v6808, 12
      %v7107 = vpop.permute.xlu0 %7106
      %7108 = vrot.lane.b32.xlu0 %v6809, 12
      %v7109 = vpop.permute.xlu0 %7108
      %7110 = vrot.lane.b32.xlu0 %v6810, 12
      %v7111 = vpop.permute.xlu0 %7110
      %7112 = vrot.lane.b32.xlu0 %v6811, 12
      %v7113 = vpop.permute.xlu0 %7112
      %7114 = vrot.lane.b32.xlu0 %v6812, 12
      %v7115 = vpop.permute.xlu0 %7114
      %7116 = vrot.lane.b32.xlu0 %v6813, 12
      %v7117 = vpop.permute.xlu0 %7116
      %7118 = vrot.lane.b32.xlu0 %v6814, 12
      %v7119 = vpop.permute.xlu0 %7118
      %7120 = vrot.lane.b32.xlu0 %v6815, 12
      %v7121 = vpop.permute.xlu0 %7120
      %7122 = vrot.lane.b32.xlu0 %v6816, 12
      %v7123 = vpop.permute.xlu0 %7122
      %7124 = vrot.lane.b32.xlu0 %v6817, 12
      %v7125 = vpop.permute.xlu0 %7124
      %7126 = vrot.lane.b32.xlu0 %v6818, 12
      %v7127 = vpop.permute.xlu0 %7126
      %7128 = vrot.lane.b32.xlu0 %v6819, 12
      %v7129 = vpop.permute.xlu0 %7128
      %7130 = vrot.lane.b32.xlu0 %v6820, 12
      %v7131 = vpop.permute.xlu0 %7130
      %7132 = vrot.lane.b32.xlu0 %v6821, 12
      %v7133 = vpop.permute.xlu0 %7132
      %7134 = vrot.lane.b32.xlu0 %v6822, 12
      %v7135 = vpop.permute.xlu0 %7134
      %7136 = vrot.lane.b32.xlu0 %v6823, 12
      %v7137 = vpop.permute.xlu0 %7136
      %7138 = vrot.lane.b32.xlu0 %v6824, 12
      %v7139 = vpop.permute.xlu0 %7138
      %7140 = vrot.lane.b32.xlu0 %v6825, 12
      %v7141 = vpop.permute.xlu0 %7140
      %7142 = vrot.lane.b32.xlu0 %v6826, 12
      %v7143 = vpop.permute.xlu0 %7142
      %7144 = vrot.lane.b32.xlu0 %v6827, 12
      %v7145 = vpop.permute.xlu0 %7144
      %7146 = vrot.lane.b32.xlu0 %v6828, 12
      %v7147 = vpop.permute.xlu0 %7146
      %7148 = vrot.lane.b32.xlu0 %v6829, 12
      %v7149 = vpop.permute.xlu0 %7148
      %7150 = vrot.lane.b32.xlu0 %v6830, 12
      %v7151 = vpop.permute.xlu0 %7150
      %7152 = vrot.lane.b32.xlu0 %v6831, 12
      %v7153 = vpop.permute.xlu0 %7152
      %7154 = vrot.lane.b32.xlu0 %v6832, 12
      %v7155 = vpop.permute.xlu0 %7154
      %7156 = vrot.lane.b32.xlu0 %v6833, 12
      %v7157 = vpop.permute.xlu0 %7156
      %7158 = vrot.lane.b32.xlu0 %v6834, 12
      %v7159 = vpop.permute.xlu0 %7158
      %7160 = vrot.lane.b32.xlu0 %v6835, 12
      %v7161 = vpop.permute.xlu0 %7160
      %7162 = vrot.lane.b32.xlu0 %v6836, 12
      %v7163 = vpop.permute.xlu0 %7162
      %7164 = vrot.lane.b32.xlu0 %v6781, 12
      %v7165 = vpop.permute.xlu0 %7164
      %7166 = vrot.lane.b32.xlu0 %v6837, 12
      %v7167 = vpop.permute.xlu0 %7166
      %v7222 = vsel %vm1882, %v6780, %v6894
      %v7223 = vsel %vm1882, %v6781, %v6896
      %v7224 = vsel %vm1882, %v6781, %v6898
      %v7225 = vsel %vm1882, %v6782, %v6900
      %v7226 = vsel %vm1882, %v6783, %v6902
      %v7227 = vsel %vm1882, %v6784, %v6904
      %v7228 = vsel %vm1882, %v6785, %v6906
      %v7229 = vsel %vm1882, %v6786, %v6908
      %v7230 = vsel %vm1882, %v6787, %v6910
      %v7231 = vsel %vm1882, %v6788, %v6912
      %v7232 = vsel %vm1882, %v6789, %v6914
      %v7233 = vsel %vm1882, %v6790, %v6916
      %v7234 = vsel %vm1882, %v6791, %v6918
      %v7235 = vsel %vm1882, %v6792, %v6920
      %v7236 = vsel %vm1882, %v6793, %v6922
      %v7237 = vsel %vm1882, %v6794, %v6924
      %v7238 = vsel %vm1882, %v6795, %v6926
      %v7239 = vsel %vm1882, %v6796, %v6928
      %v7240 = vsel %vm1882, %v6797, %v6930
      %v7241 = vsel %vm1882, %v6798, %v6932
      %v7242 = vsel %vm1882, %v6799, %v6934
      %v7243 = vsel %vm1882, %v6800, %v6936
      %v7244 = vsel %vm1882, %v6801, %v6938
      %v7245 = vsel %vm1882, %v6802, %v6940
      %v7246 = vsel %vm1882, %v6803, %v6942
      %v7247 = vsel %vm1882, %v6804, %v6944
      %v7248 = vsel %vm1882, %v6805, %v6946
      %v7249 = vsel %vm1882, %v6806, %v6948
      %v7250 = vsel %vm1882, %v6807, %v6950
      %v7251 = vsel %vm1882, %v6808, %v6952
      %v7252 = vsel %vm1882, %v6809, %v6954
      %v7253 = vsel %vm1882, %v6810, %v6956
      %v7254 = vsel %vm1882, %v6811, %v6958
      %v7255 = vsel %vm1882, %v6812, %v6960
      %v7256 = vsel %vm1882, %v6813, %v6962
      %v7257 = vsel %vm1882, %v6814, %v6964
      %v7258 = vsel %vm1882, %v6815, %v6966
      %v7259 = vsel %vm1882, %v6816, %v6968
      %v7260 = vsel %vm1882, %v6817, %v6970
      %v7261 = vsel %vm1882, %v6818, %v6972
      %v7262 = vsel %vm1882, %v6819, %v6974
      %v7263 = vsel %vm1882, %v6820, %v6976
      %v7264 = vsel %vm1882, %v6821, %v6978
      %v7265 = vsel %vm1882, %v6822, %v6980
      %v7266 = vsel %vm1882, %v6823, %v6982
      %v7267 = vsel %vm1882, %v6824, %v6984
      %v7268 = vsel %vm1882, %v6825, %v6986
      %v7269 = vsel %vm1882, %v6826, %v6988
      %v7270 = vsel %vm1882, %v6827, %v6990
      %v7271 = vsel %vm1882, %v6828, %v6992
      %v7272 = vsel %vm1882, %v6829, %v6994
      %v7273 = vsel %vm1882, %v6830, %v6996
      %v7274 = vsel %vm1882, %v6831, %v6998
      %v7275 = vsel %vm1882, %v6832, %v7000
      %v7276 = vsel %vm1882, %v6833, %v7002
      %v7277 = vsel %vm1938, %v7222, %v7061
      %v7278 = vsel %vm1938, %v7223, %v7063
      %v7279 = vsel %vm1938, %v7224, %v7065
      %v7280 = vsel %vm1938, %v7225, %v7067
      %v7281 = vsel %vm1938, %v7226, %v7069
      %v7282 = vsel %vm1938, %v7227, %v7071
      %v7283 = vsel %vm1938, %v7228, %v7073
      %v7284 = vsel %vm1938, %v7229, %v7075
      %v7285 = vsel %vm1938, %v7230, %v7077
      %v7286 = vsel %vm1938, %v7231, %v7079
      %v7287 = vsel %vm1938, %v7232, %v7081
      %v7288 = vsel %vm1938, %v7233, %v7083
      %v7289 = vsel %vm1938, %v7234, %v7085
      %v7290 = vsel %vm1938, %v7235, %v7087
      %v7291 = vsel %vm1938, %v7236, %v7089
      %v7292 = vsel %vm1938, %v7237, %v7091
      %v7293 = vsel %vm1938, %v7238, %v7093
      %v7294 = vsel %vm1938, %v7239, %v7095
      %v7295 = vsel %vm1938, %v7240, %v7097
      %v7296 = vsel %vm1938, %v7241, %v7099
      %v7297 = vsel %vm1938, %v7242, %v7101
      %v7298 = vsel %vm1938, %v7243, %v7103
      %v7299 = vsel %vm1938, %v7244, %v7105
      %v7300 = vsel %vm1938, %v7245, %v7107
      %v7301 = vsel %vm1938, %v7246, %v7109
      %v7302 = vsel %vm1938, %v7247, %v7111
      %v7303 = vsel %vm1938, %v7248, %v7113
      %v7304 = vsel %vm1938, %v7249, %v7115
      %v7305 = vsel %vm1938, %v7250, %v7117
      %v7306 = vsel %vm1938, %v7251, %v7119
      %v7307 = vsel %vm1938, %v7252, %v7121
      %v7308 = vsel %vm1938, %v7253, %v7123
      %v7309 = vsel %vm1938, %v7254, %v7125
      %v7310 = vsel %vm1938, %v7255, %v7127
      %v7311 = vsel %vm1938, %v7256, %v7129
      %v7312 = vsel %vm1938, %v7257, %v7131
      %v7313 = vsel %vm1938, %v7258, %v7133
      %v7314 = vsel %vm1938, %v7259, %v7135
      %v7315 = vsel %vm1938, %v7260, %v7137
      %v7316 = vsel %vm1938, %v7261, %v7139
      %v7317 = vsel %vm1938, %v7262, %v7141
      %v7318 = vsel %vm1938, %v7263, %v7143
      %v7319 = vsel %vm1938, %v7264, %v7145
      %v7320 = vsel %vm1938, %v7265, %v7147
      %v7321 = vsel %vm1938, %v7266, %v7149
      %v7322 = vsel %vm1938, %v7267, %v7151
      %v7323 = vsel %vm1938, %v7268, %v7153
      %v7324 = vsel %vm1938, %v7269, %v7155
      %v7325 = vsel %vm1938, %v7270, %v7157
      %v7326 = vsel %vm1938, %v7271, %v7159
      %v7327 = vsel %vm1938, %v7272, %v7161
      %v7328 = vsel %vm1938, %v7273, %v7163
      %v7329 = vsel %vm1938, %v7274, %v7165
      %v7330 = vsel %vm1938, %v7275, %v7165
      %v7331 = vsel %vm1938, %v7276, %v7167
      %v7332 = vpack.c.bf16 %v7278, %v7277
      %v7333 = vpack.c.bf16 %v7280, %v7279
      %v7334 = vpack.c.bf16 %v7282, %v7281
      %v7335 = vpack.c.bf16 %v7284, %v7283
      %v7336 = vpack.c.bf16 %v7286, %v7285
      %v7337 = vpack.c.bf16 %v7288, %v7287
      %v7338 = vpack.c.bf16 %v7290, %v7289
      %v7339 = vpack.c.bf16 %v7292, %v7291
      %v7340 = vpack.c.bf16 %v7294, %v7293
      %v7341 = vpack.c.bf16 %v7296, %v7295
      %v7342 = vpack.c.bf16 %v7298, %v7297
      %v7343 = vpack.c.bf16 %v7300, %v7299
      %v7344 = vpack.c.bf16 %v7302, %v7301
      %v7345 = vpack.c.bf16 %v7304, %v7303
      %v7346 = vpack.c.bf16 %v7306, %v7305
      %v7347 = vpack.c.bf16 %v7308, %v7307
      %v7348 = vpack.c.bf16 %v7310, %v7309
      %v7349 = vpack.c.bf16 %v7312, %v7311
      %v7350 = vpack.c.bf16 %v7314, %v7313
      %v7351 = vpack.c.bf16 %v7316, %v7315
      %v7352 = vpack.c.bf16 %v7318, %v7317
      %v7353 = vpack.c.bf16 %v7320, %v7319
      %v7354 = vpack.c.bf16 %v7322, %v7321
      %v7355 = vpack.c.bf16 %v7324, %v7323
      %v7356 = vpack.c.bf16 %v7326, %v7325
      %v7357 = vpack.c.bf16 %v7328, %v7327
      %v7358 = vpack.c.bf16 %v7330, %v7329
      %v7359 = vpack.c.bf16 %v7331, %v7331
      %v7360 = vld [vmem:[%s8] sm:$0xf]
      %v7361 = vld [vmem:[%s8 + $0x4] sm:$0xf]
      %v7362 = vld [vmem:[%s8 + $0x8] sm:$0x1]
      %v7363 = vld [vmem:[%s9] sm:$0x1]
      %v7365 = vlaneseq
      %v7366 = vshrl.u32 %v7365, 7
      %v7367 = vsub.s32 0, %v7366
      %v7368 = vrot.slane %v7363, %v7367
      %v7371 = vshrl.u32 %v7332, 16
      %v7373 = vrot.slane %v7371, 3
      %v7374 = vshll.u32 %v7332, 16
      %v7376 = vrot.slane %v7374, 4
      %v7377 = vor.u32 %v7373, %v7376
      %v7379 = vshrl.u32 %v7333, 16
      %v7381 = vrot.slane %v7379, 3
      %v7382 = vshll.u32 %v7333, 16
      %v7384 = vrot.slane %v7382, 4
      %v7385 = vor.u32 %v7381, %v7384
      %v7386 = vsel %vm2032, %v7377, %v7385
      %v7388 = vshrl.u32 %v7334, 16
      %v7390 = vrot.slane %v7388, 3
      %v7391 = vshll.u32 %v7334, 16
      %v7393 = vrot.slane %v7391, 4
      %v7394 = vor.u32 %v7390, %v7393
      %v7395 = vsel %vm2032, %v7385, %v7394
      %v7397 = vshrl.u32 %v7335, 16
      %v7399 = vrot.slane %v7397, 3
      %v7400 = vshll.u32 %v7335, 16
      %v7402 = vrot.slane %v7400, 4
      %v7403 = vor.u32 %v7399, %v7402
      %v7404 = vsel %vm2032, %v7394, %v7403
      %v7406 = vshrl.u32 %v7336, 16
      %v7408 = vrot.slane %v7406, 3
      %v7409 = vshll.u32 %v7336, 16
      %v7411 = vrot.slane %v7409, 4
      %v7412 = vor.u32 %v7408, %v7411
      %v7413 = vsel %vm2032, %v7403, %v7412
      %v7415 = vshrl.u32 %v7337, 16
      %v7417 = vrot.slane %v7415, 3
      %v7418 = vshll.u32 %v7337, 16
      %v7420 = vrot.slane %v7418, 4
      %v7421 = vor.u32 %v7417, %v7420
      %v7422 = vsel %vm2032, %v7412, %v7421
      %v7424 = vshrl.u32 %v7338, 16
      %v7426 = vrot.slane %v7424, 3
      %v7427 = vshll.u32 %v7338, 16
      %v7429 = vrot.slane %v7427, 4
      %v7430 = vor.u32 %v7426, %v7429
      %v7431 = vsel %vm2032, %v7421, %v7430
      %v7433 = vshrl.u32 %v7339, 16
      %v7435 = vrot.slane %v7433, 3
      %v7436 = vshll.u32 %v7339, 16
      %v7438 = vrot.slane %v7436, 4
      %v7439 = vor.u32 %v7435, %v7438
      %v7440 = vsel %vm2032, %v7430, %v7439
      %v7442 = vshrl.u32 %v7340, 16
      %v7444 = vrot.slane %v7442, 3
      %v7445 = vshll.u32 %v7340, 16
      %v7447 = vrot.slane %v7445, 4
      %v7448 = vor.u32 %v7444, %v7447
      %v7449 = vsel %vm2032, %v7439, %v7448
      %v7451 = vshrl.u32 %v7341, 16
      %v7453 = vrot.slane %v7451, 3
      %v7454 = vshll.u32 %v7341, 16
      %v7456 = vrot.slane %v7454, 4
      %v7457 = vor.u32 %v7453, %v7456
      %v7458 = vsel %vm2032, %v7448, %v7457
      %v7460 = vshrl.u32 %v7342, 16
      %v7462 = vrot.slane %v7460, 3
      %v7463 = vshll.u32 %v7342, 16
      %v7465 = vrot.slane %v7463, 4
      %v7466 = vor.u32 %v7462, %v7465
      %v7467 = vsel %vm2032, %v7457, %v7466
      %v7469 = vshrl.u32 %v7343, 16
      %v7471 = vrot.slane %v7469, 3
      %v7472 = vshll.u32 %v7343, 16
      %v7474 = vrot.slane %v7472, 4
      %v7475 = vor.u32 %v7471, %v7474
      %v7476 = vsel %vm2032, %v7466, %v7475
      %v7478 = vshrl.u32 %v7344, 16
      %v7480 = vrot.slane %v7478, 3
      %v7481 = vshll.u32 %v7344, 16
      %v7483 = vrot.slane %v7481, 4
      %v7484 = vor.u32 %v7480, %v7483
      %v7485 = vsel %vm2032, %v7475, %v7484
      %v7487 = vshrl.u32 %v7345, 16
      %v7489 = vrot.slane %v7487, 3
      %v7490 = vshll.u32 %v7345, 16
      %v7492 = vrot.slane %v7490, 4
      %v7493 = vor.u32 %v7489, %v7492
      %v7494 = vsel %vm2032, %v7484, %v7493
      %v7496 = vshrl.u32 %v7346, 16
      %v7498 = vrot.slane %v7496, 3
      %v7499 = vshll.u32 %v7346, 16
      %v7501 = vrot.slane %v7499, 4
      %v7502 = vor.u32 %v7498, %v7501
      %v7503 = vsel %vm2032, %v7493, %v7502
      %v7505 = vshrl.u32 %v7347, 16
      %v7507 = vrot.slane %v7505, 3
      %v7508 = vshll.u32 %v7347, 16
      %v7510 = vrot.slane %v7508, 4
      %v7511 = vor.u32 %v7507, %v7510
      %v7512 = vsel %vm2032, %v7502, %v7511
      %v7514 = vshrl.u32 %v7348, 16
      %v7516 = vrot.slane %v7514, 3
      %v7517 = vshll.u32 %v7348, 16
      %v7519 = vrot.slane %v7517, 4
      %v7520 = vor.u32 %v7516, %v7519
      %v7521 = vsel %vm2032, %v7511, %v7520
      %v7523 = vshrl.u32 %v7349, 16
      %v7525 = vrot.slane %v7523, 3
      %v7526 = vshll.u32 %v7349, 16
      %v7528 = vrot.slane %v7526, 4
      %v7529 = vor.u32 %v7525, %v7528
      %v7530 = vsel %vm2032, %v7520, %v7529
      %v7532 = vshrl.u32 %v7350, 16
      %v7534 = vrot.slane %v7532, 3
      %v7535 = vshll.u32 %v7350, 16
      %v7537 = vrot.slane %v7535, 4
      %v7538 = vor.u32 %v7534, %v7537
      %v7539 = vsel %vm2032, %v7529, %v7538
      %v7541 = vshrl.u32 %v7351, 16
      %v7543 = vrot.slane %v7541, 3
      %v7544 = vshll.u32 %v7351, 16
      %v7546 = vrot.slane %v7544, 4
      %v7547 = vor.u32 %v7543, %v7546
      %v7548 = vsel %vm2032, %v7538, %v7547
      %v7550 = vshrl.u32 %v7352, 16
      %v7552 = vrot.slane %v7550, 3
      %v7553 = vshll.u32 %v7352, 16
      %v7555 = vrot.slane %v7553, 4
      %v7556 = vor.u32 %v7552, %v7555
      %v7557 = vsel %vm2032, %v7547, %v7556
      %v7559 = vshrl.u32 %v7353, 16
      %v7561 = vrot.slane %v7559, 3
      %v7562 = vshll.u32 %v7353, 16
      %v7564 = vrot.slane %v7562, 4
      %v7565 = vor.u32 %v7561, %v7564
      %v7566 = vsel %vm2032, %v7556, %v7565
      %v7568 = vshrl.u32 %v7354, 16
      %v7570 = vrot.slane %v7568, 3
      %v7571 = vshll.u32 %v7354, 16
      %v7573 = vrot.slane %v7571, 4
      %v7574 = vor.u32 %v7570, %v7573
      %v7575 = vsel %vm2032, %v7565, %v7574
      %v7577 = vshrl.u32 %v7355, 16
      %v7579 = vrot.slane %v7577, 3
      %v7580 = vshll.u32 %v7355, 16
      %v7582 = vrot.slane %v7580, 4
      %v7583 = vor.u32 %v7579, %v7582
      %v7584 = vsel %vm2032, %v7574, %v7583
      %v7586 = vshrl.u32 %v7356, 16
      %v7588 = vrot.slane %v7586, 3
      %v7589 = vshll.u32 %v7356, 16
      %v7591 = vrot.slane %v7589, 4
      %v7592 = vor.u32 %v7588, %v7591
      %v7593 = vsel %vm2032, %v7583, %v7592
      %v7595 = vshrl.u32 %v7357, 16
      %v7597 = vrot.slane %v7595, 3
      %v7598 = vshll.u32 %v7357, 16
      %v7600 = vrot.slane %v7598, 4
      %v7601 = vor.u32 %v7597, %v7600
      %v7602 = vsel %vm2032, %v7592, %v7601
      %v7604 = vshrl.u32 %v7358, 16
      %v7606 = vrot.slane %v7604, 3
      %v7607 = vshll.u32 %v7358, 16
      %v7609 = vrot.slane %v7607, 4
      %v7610 = vor.u32 %v7606, %v7609
      %v7611 = vsel %vm2032, %v7601, %v7610
      %v7613 = vshrl.u32 %v7359, 16
      %v7615 = vrot.slane %v7613, 3
      %v7616 = vshll.u32 %v7359, 16
      %v7618 = vrot.slane %v7616, 4
      %v7619 = vor.u32 %v7615, %v7618
      %v7620 = vsel %vm2032, %v7610, %v7619
      %v7624 = vunpack.c.l.b16 %v7360
      %v7625 = vunpack.c.l.b16 %v7361
      %v7626 = vunpack.c.l.b16 %v7362
      %v7627 = vpack.c.b16 %v7625, %v7624
      %v7628 = vpack.c.b16 %v7626, %v7626
      %v7631 = vsel %vm2293, %v7386, 0
      %v7634 = vsel %vm2293, %v7395, 0
      %v7637 = vsel %vm2293, %v7404, 0
      %v7640 = vsel %vm2293, %v7413, 0
      %v7643 = vsel %vm2293, %v7422, 0
      %v7646 = vsel %vm2293, %v7431, 0
      %v7649 = vsel %vm2293, %v7440, 0
      %v7652 = vsel %vm2293, %v7449, 0
      %v7655 = vsel %vm2293, %v7458, 0
      %v7658 = vsel %vm2293, %v7467, 0
      %v7661 = vsel %vm2293, %v7476, 0
      %v7664 = vsel %vm2293, %v7485, 0
      %v7667 = vsel %vm2293, %v7494, 0
      %v7670 = vsel %vm2293, %v7503, 0
      %v7673 = vsel %vm2293, %v7512, 0
      %v7676 = vsel %vm2293, %v7521, 0
      %v7679 = vsel %vm2293, %v7530, 0
      %v7682 = vsel %vm2293, %v7539, 0
      %v7685 = vsel %vm2293, %v7548, 0
      %v7688 = vsel %vm2293, %v7557, 0
      %v7691 = vsel %vm2293, %v7566, 0
      %v7694 = vsel %vm2293, %v7575, 0
      %v7697 = vsel %vm2293, %v7584, 0
      %v7700 = vsel %vm2293, %v7593, 0
      %v7703 = vsel %vm2293, %v7602, 0
      %v7706 = vsel %vm2293, %v7611, 0
      %v7709 = vsel %vm2293, %v7620, 0
      %v7712 = vsel %vm2375, %v7628, 0
      %7714 = vmatprep.subr.bf16.mxu0 0
      %7715 = vmatpush1.bf16.msra.mxu0 %v7627
      %7716 = vmatprep.subr.bf16.mxu0 0
      %7717 = vmatpush1.bf16.msra.mxu0 %v7712
      %7718 = vmatprep.subr.bf16.mxu0 0
      %7719 = vmatpush1.bf16.msra.mxu0 0
      %7720 = vmatprep.subr.bf16.mxu0 0
      %7721 = vmatpush1.bf16.msra.mxu0 0
      %7722 = vmatprep.subr.bf16.mxu0 0
      %7723 = vmatpush1.bf16.msra.mxu0 0
      %7724 = vmatprep.subr.bf16.mxu0 0
      %7725 = vmatpush1.bf16.msra.mxu0 0
      %7726 = vmatprep.subr.bf16.mxu0 0
      %7727 = vmatpush1.bf16.msra.mxu0 0
      %7728 = vmatprep.subr.bf16.mxu0 0
      %7729 = vmatpush1.bf16.msra.mxu0 0
      %7730 = vmatprep.subr.bf16.mxu0 0
      %7731 = vmatpush1.bf16.msra.mxu0 0
      %7732 = vmatprep.subr.bf16.mxu0 0
      %7733 = vmatpush1.bf16.msra.mxu0 0
      %7734 = vmatprep.subr.bf16.mxu0 0
      %7735 = vmatpush1.bf16.msra.mxu0 0
      %7736 = vmatprep.subr.bf16.mxu0 0
      %7737 = vmatpush1.bf16.msra.mxu0 0
      %7738 = vmatprep.subr.bf16.mxu0 0
      %7739 = vmatpush1.bf16.msra.mxu0 0
      %7740 = vmatprep.subr.bf16.mxu0 0
      %7741 = vmatpush1.bf16.msra.mxu0 0
      %7742 = vmatprep.subr.bf16.mxu0 0
      %7743 = vmatpush1.bf16.msra.mxu0 0
      %7744 = vmatprep.subr.bf16.mxu0 0
      %7745 = vmatpush1.bf16.msra.mxu0 0
      %7746 = vmatprep.mubr.bf16.mxu0 0
      %7747 = vmatmul.mubr.bf16.gmra.mrb[0].mxu0 %v7631
      %v7748 = vpop.f32.mrb[0].mxu0
      %v7749 = vadd.f32 %v7368, %v7748
      %v7750 = vpop.f32.mrb[0].mxu0
      %v7751 = vpop.f32.mrb[0].mxu0
      %v7752 = vadd.f32 %v7368, %v7751
      %v7753 = vpop.f32.mrb[0].mxu0
      %7754 = vmatprep.mubr.bf16.mxu0 0
      %7755 = vmatmul.mubr.bf16.gmra.mrb[0].mxu0 %v7634
      %v7756 = vpop.f32.mrb[0].mxu0
      %v7757 = vadd.f32 %v7368, %v7756
      %v7758 = vpop.f32.mrb[0].mxu0
      %v7759 = vpop.f32.mrb[0].mxu0
      %v7760 = vadd.f32 %v7368, %v7759
      %v7761 = vpop.f32.mrb[0].mxu0
      %7762 = vmatprep.mubr.bf16.mxu0 0
      %7763 = vmatmul.mubr.bf16.gmra.mrb[0].mxu0 %v7637
      %v7764 = vpop.f32.mrb[0].mxu0
      %v7765 = vadd.f32 %v7368, %v7764
      %v7766 = vpop.f32.mrb[0].mxu0
      %v7767 = vpop.f32.mrb[0].mxu0
      %v7768 = vadd.f32 %v7368, %v7767
      %v7769 = vpop.f32.mrb[0].mxu0
      %7770 = vmatprep.mubr.bf16.mxu0 0
      %7771 = vmatmul.mubr.bf16.gmra.mrb[0].mxu0 %v7640
      %v7772 = vpop.f32.mrb[0].mxu0
      %v7773 = vadd.f32 %v7368, %v7772
      %v7774 = vpop.f32.mrb[0].mxu0
      %v7775 = vpop.f32.mrb[0].mxu0
      %v7776 = vadd.f32 %v7368, %v7775
      %v7777 = vpop.f32.mrb[0].mxu0
      %7778 = vmatprep.mubr.bf16.mxu0 0
      %7779 = vmatmul.mubr.bf16.gmra.mrb[0].mxu0 %v7643
      %v7780 = vpop.f32.mrb[0].mxu0
      %v7781 = vadd.f32 %v7368, %v7780
      %v7782 = vpop.f32.mrb[0].mxu0
      %v7783 = vpop.f32.mrb[0].mxu0
      %v7784 = vadd.f32 %v7368, %v7783
      %v7785 = vpop.f32.mrb[0].mxu0
      %7786 = vmatprep.mubr.bf16.mxu0 0
      %7787 = vmatmul.mubr.bf16.gmra.mrb[0].mxu0 %v7646
      %v7788 = vpop.f32.mrb[0].mxu0
      %v7789 = vadd.f32 %v7368, %v7788
      %v7790 = vpop.f32.mrb[0].mxu0
      %v7791 = vpop.f32.mrb[0].mxu0
      %v7792 = vadd.f32 %v7368, %v7791
      %v7793 = vpop.f32.mrb[0].mxu0
      %7794 = vmatprep.mubr.bf16.mxu0 0
      %7795 = vmatmul.mubr.bf16.gmra.mrb[0].mxu0 %v7649
      %v7796 = vpop.f32.mrb[0].mxu0
      %v7797 = vadd.f32 %v7368, %v7796
      %v7798 = vpop.f32.mrb[0].mxu0
      %v7799 = vpop.f32.mrb[0].mxu0
      %v7800 = vadd.f32 %v7368, %v7799
      %v7801 = vpop.f32.mrb[0].mxu0
      %7802 = vmatprep.mubr.bf16.mxu0 0
      %7803 = vmatmul.mubr.bf16.gmra.mrb[0].mxu0 %v7652
      %v7804 = vpop.f32.mrb[0].mxu0
      %v7805 = vadd.f32 %v7368, %v7804
      %v7806 = vpop.f32.mrb[0].mxu0
      %v7807 = vpop.f32.mrb[0].mxu0
      %v7808 = vadd.f32 %v7368, %v7807
      %v7809 = vpop.f32.mrb[0].mxu0
      %7810 = vmatprep.mubr.bf16.mxu0 0
      %7811 = vmatmul.mubr.bf16.gmra.mrb[0].mxu0 %v7655
      %v7812 = vpop.f32.mrb[0].mxu0
      %v7813 = vadd.f32 %v7368, %v7812
      %v7814 = vpop.f32.mrb[0].mxu0
      %v7815 = vpop.f32.mrb[0].mxu0
      %v7816 = vadd.f32 %v7368, %v7815
      %v7817 = vpop.f32.mrb[0].mxu0
      %7818 = vmatprep.mubr.bf16.mxu0 0
      %7819 = vmatmul.mubr.bf16.gmra.mrb[0].mxu0 %v7658
      %v7820 = vpop.f32.mrb[0].mxu0
      %v7821 = vadd.f32 %v7368, %v7820
      %v7822 = vpop.f32.mrb[0].mxu0
      %v7823 = vpop.f32.mrb[0].mxu0
      %v7824 = vadd.f32 %v7368, %v7823
      %v7825 = vpop.f32.mrb[0].mxu0
      %7826 = vmatprep.mubr.bf16.mxu0 0
      %7827 = vmatmul.mubr.bf16.gmra.mrb[0].mxu0 %v7661
      %v7828 = vpop.f32.mrb[0].mxu0
      %v7829 = vadd.f32 %v7368, %v7828
      %v7830 = vpop.f32.mrb[0].mxu0
      %v7831 = vpop.f32.mrb[0].mxu0
      %v7832 = vadd.f32 %v7368, %v7831
      %v7833 = vpop.f32.mrb[0].mxu0
      %7834 = vmatprep.mubr.bf16.mxu0 0
      %7835 = vmatmul.mubr.bf16.gmra.mrb[0].mxu0 %v7664
      %v7836 = vpop.f32.mrb[0].mxu0
      %v7837 = vadd.f32 %v7368, %v7836
      %v7838 = vpop.f32.mrb[0].mxu0
      %v7839 = vpop.f32.mrb[0].mxu0
      %v7840 = vadd.f32 %v7368, %v7839
      %v7841 = vpop.f32.mrb[0].mxu0
      %7842 = vmatprep.mubr.bf16.mxu0 0
      %7843 = vmatmul.mubr.bf16.gmra.mrb[0].mxu0 %v7667
      %v7844 = vpop.f32.mrb[0].mxu0
      %v7845 = vadd.f32 %v7368, %v7844
      %v7846 = vpop.f32.mrb[0].mxu0
      %v7847 = vpop.f32.mrb[0].mxu0
      %v7848 = vadd.f32 %v7368, %v7847
      %v7849 = vpop.f32.mrb[0].mxu0
      %7850 = vmatprep.mubr.bf16.mxu0 0
      %7851 = vmatmul.mubr.bf16.gmra.mrb[0].mxu0 %v7670
      %v7852 = vpop.f32.mrb[0].mxu0
      %v7853 = vadd.f32 %v7368, %v7852
      %v7854 = vpop.f32.mrb[0].mxu0
      %v7855 = vpop.f32.mrb[0].mxu0
      %v7856 = vadd.f32 %v7368, %v7855
      %v7857 = vpop.f32.mrb[0].mxu0
      %7858 = vmatprep.mubr.bf16.mxu0 0
      %7859 = vmatmul.mubr.bf16.gmra.mrb[0].mxu0 %v7673
      %v7860 = vpop.f32.mrb[0].mxu0
      %v7861 = vadd.f32 %v7368, %v7860
      %v7862 = vpop.f32.mrb[0].mxu0
      %v7863 = vpop.f32.mrb[0].mxu0
      %v7864 = vadd.f32 %v7368, %v7863
      %v7865 = vpop.f32.mrb[0].mxu0
      %7866 = vmatprep.mubr.bf16.mxu0 0
      %7867 = vmatmul.mubr.bf16.gmra.mrb[0].mxu0 %v7676
      %v7868 = vpop.f32.mrb[0].mxu0
      %v7869 = vadd.f32 %v7368, %v7868
      %v7870 = vpop.f32.mrb[0].mxu0
      %v7871 = vpop.f32.mrb[0].mxu0
      %v7872 = vadd.f32 %v7368, %v7871
      %v7873 = vpop.f32.mrb[0].mxu0
      %7874 = vmatprep.mubr.bf16.mxu0 0
      %7875 = vmatmul.mubr.bf16.gmra.mrb[0].mxu0 %v7679
      %v7876 = vpop.f32.mrb[0].mxu0
      %v7877 = vadd.f32 %v7368, %v7876
      %v7878 = vpop.f32.mrb[0].mxu0
      %v7879 = vpop.f32.mrb[0].mxu0
      %v7880 = vadd.f32 %v7368, %v7879
      %v7881 = vpop.f32.mrb[0].mxu0
      %7882 = vmatprep.mubr.bf16.mxu0 0
      %7883 = vmatmul.mubr.bf16.gmra.mrb[0].mxu0 %v7682
      %v7884 = vpop.f32.mrb[0].mxu0
      %v7885 = vadd.f32 %v7368, %v7884
      %v7886 = vpop.f32.mrb[0].mxu0
      %v7887 = vpop.f32.mrb[0].mxu0
      %v7888 = vadd.f32 %v7368, %v7887
      %v7889 = vpop.f32.mrb[0].mxu0
      %7890 = vmatprep.mubr.bf16.mxu0 0
      %7891 = vmatmul.mubr.bf16.gmra.mrb[0].mxu0 %v7685
      %v7892 = vpop.f32.mrb[0].mxu0
      %v7893 = vadd.f32 %v7368, %v7892
      %v7894 = vpop.f32.mrb[0].mxu0
      %v7895 = vpop.f32.mrb[0].mxu0
      %v7896 = vadd.f32 %v7368, %v7895
      %v7897 = vpop.f32.mrb[0].mxu0
      %7898 = vmatprep.mubr.bf16.mxu0 0
      %7899 = vmatmul.mubr.bf16.gmra.mrb[0].mxu0 %v7688
      %v7900 = vpop.f32.mrb[0].mxu0
      %v7901 = vadd.f32 %v7368, %v7900
      %v7902 = vpop.f32.mrb[0].mxu0
      %v7903 = vpop.f32.mrb[0].mxu0
      %v7904 = vadd.f32 %v7368, %v7903
      %v7905 = vpop.f32.mrb[0].mxu0
      %7906 = vmatprep.mubr.bf16.mxu0 0
      %7907 = vmatmul.mubr.bf16.gmra.mrb[0].mxu0 %v7691
      %v7908 = vpop.f32.mrb[0].mxu0
      %v7909 = vadd.f32 %v7368, %v7908
      %v7910 = vpop.f32.mrb[0].mxu0
      %v7911 = vpop.f32.mrb[0].mxu0
      %v7912 = vadd.f32 %v7368, %v7911
      %v7913 = vpop.f32.mrb[0].mxu0
      %7914 = vmatprep.mubr.bf16.mxu0 0
      %7915 = vmatmul.mubr.bf16.gmra.mrb[0].mxu0 %v7694
      %v7916 = vpop.f32.mrb[0].mxu0
      %v7917 = vadd.f32 %v7368, %v7916
      %v7918 = vpop.f32.mrb[0].mxu0
      %v7919 = vpop.f32.mrb[0].mxu0
      %v7920 = vadd.f32 %v7368, %v7919
      %v7921 = vpop.f32.mrb[0].mxu0
      %7922 = vmatprep.mubr.bf16.mxu0 0
      %7923 = vmatmul.mubr.bf16.gmra.mrb[0].mxu0 %v7697
      %v7924 = vpop.f32.mrb[0].mxu0
      %v7925 = vadd.f32 %v7368, %v7924
      %v7926 = vpop.f32.mrb[0].mxu0
      %v7927 = vpop.f32.mrb[0].mxu0
      %v7928 = vadd.f32 %v7368, %v7927
      %v7929 = vpop.f32.mrb[0].mxu0
      %7930 = vmatprep.mubr.bf16.mxu0 0
      %7931 = vmatmul.mubr.bf16.gmra.mrb[0].mxu0 %v7700
      %v7932 = vpop.f32.mrb[0].mxu0
      %v7933 = vadd.f32 %v7368, %v7932
      %v7934 = vpop.f32.mrb[0].mxu0
      %v7935 = vpop.f32.mrb[0].mxu0
      %v7936 = vadd.f32 %v7368, %v7935
      %v7937 = vpop.f32.mrb[0].mxu0
      %7938 = vmatprep.mubr.bf16.mxu0 0
      %7939 = vmatmul.mubr.bf16.gmra.mrb[0].mxu0 %v7703
      %v7940 = vpop.f32.mrb[0].mxu0
      %v7941 = vadd.f32 %v7368, %v7940
      %v7942 = vpop.f32.mrb[0].mxu0
      %v7943 = vpop.f32.mrb[0].mxu0
      %v7944 = vadd.f32 %v7368, %v7943
      %v7945 = vpop.f32.mrb[0].mxu0
      %7946 = vmatprep.mubr.bf16.mxu0 0
      %7947 = vmatmul.mubr.bf16.gmra.mrb[0].mxu0 %v7706
      %v7948 = vpop.f32.mrb[0].mxu0
      %v7949 = vadd.f32 %v7368, %v7948
      %v7950 = vpop.f32.mrb[0].mxu0
      %v7951 = vpop.f32.mrb[0].mxu0
      %v7952 = vadd.f32 %v7368, %v7951
      %v7953 = vpop.f32.mrb[0].mxu0
      %7954 = vmatprep.mubr.bf16.mxu0 0
      %7955 = vmatmul.mubr.bf16.gmra.mrb[0].mxu0 %v7709
      %v7956 = vpop.f32.mrb[0].mxu0
      %v7957 = vadd.f32 %v7368, %v7956
      %v7958 = vpop.f32.mrb[0].mxu0
      %v7959 = vpop.f32.mrb[0].mxu0
      %v7960 = vadd.f32 %v7368, %v7959
      %v7961 = vpop.f32.mrb[0].mxu0
      %7962 = vdwg.mxu0
      %vm7963 = vcmp.ge.f32.partialorder %v7749, 0.0
      %vm7964 = vcmp.ge.f32.partialorder %v7752, 0.0
      %vm7965 = vcmp.ge.f32.partialorder %v7757, 0.0
      %vm7966 = vcmp.ge.f32.partialorder %v7760, 0.0
      %vm7967 = vcmp.ge.f32.partialorder %v7765, 0.0
      %vm7968 = vcmp.ge.f32.partialorder %v7768, 0.0
      %vm7969 = vcmp.ge.f32.partialorder %v7773, 0.0
      %vm7970 = vcmp.ge.f32.partialorder %v7776, 0.0
      %vm7971 = vcmp.ge.f32.partialorder %v7781, 0.0
      %vm7972 = vcmp.ge.f32.partialorder %v7784, 0.0
      %vm7973 = vcmp.ge.f32.partialorder %v7789, 0.0
      %vm7974 = vcmp.ge.f32.partialorder %v7792, 0.0
      %vm7975 = vcmp.ge.f32.partialorder %v7797, 0.0
      %vm7976 = vcmp.ge.f32.partialorder %v7800, 0.0
      %vm7977 = vcmp.ge.f32.partialorder %v7805, 0.0
      %vm7978 = vcmp.ge.f32.partialorder %v7808, 0.0
      %vm7979 = vcmp.ge.f32.partialorder %v7813, 0.0
      %vm7980 = vcmp.ge.f32.partialorder %v7816, 0.0
      %vm7981 = vcmp.ge.f32.partialorder %v7821, 0.0
      %vm7982 = vcmp.ge.f32.partialorder %v7824, 0.0
      %vm7983 = vcmp.ge.f32.partialorder %v7829, 0.0
      %vm7984 = vcmp.ge.f32.partialorder %v7832, 0.0
      %vm7985 = vcmp.ge.f32.partialorder %v7837, 0.0
      %vm7986 = vcmp.ge.f32.partialorder %v7840, 0.0
      %vm7987 = vcmp.ge.f32.partialorder %v7845, 0.0
      %vm7988 = vcmp.ge.f32.partialorder %v7848, 0.0
      %vm7989 = vcmp.ge.f32.partialorder %v7853, 0.0
      %vm7990 = vcmp.ge.f32.partialorder %v7856, 0.0
      %vm7991 = vcmp.ge.f32.partialorder %v7861, 0.0
      %vm7992 = vcmp.ge.f32.partialorder %v7864, 0.0
      %vm7993 = vcmp.ge.f32.partialorder %v7869, 0.0
      %vm7994 = vcmp.ge.f32.partialorder %v7872, 0.0
      %vm7995 = vcmp.ge.f32.partialorder %v7877, 0.0
      %vm7996 = vcmp.ge.f32.partialorder %v7880, 0.0
      %vm7997 = vcmp.ge.f32.partialorder %v7885, 0.0
      %vm7998 = vcmp.ge.f32.partialorder %v7888, 0.0
      %vm7999 = vcmp.ge.f32.partialorder %v7893, 0.0
      %vm8000 = vcmp.ge.f32.partialorder %v7896, 0.0
      %vm8001 = vcmp.ge.f32.partialorder %v7901, 0.0
      %vm8002 = vcmp.ge.f32.partialorder %v7904, 0.0
      %vm8003 = vcmp.ge.f32.partialorder %v7909, 0.0
      %vm8004 = vcmp.ge.f32.partialorder %v7912, 0.0
      %vm8005 = vcmp.ge.f32.partialorder %v7917, 0.0
      %vm8006 = vcmp.ge.f32.partialorder %v7920, 0.0
      %vm8007 = vcmp.ge.f32.partialorder %v7925, 0.0
      %vm8008 = vcmp.ge.f32.partialorder %v7928, 0.0
      %vm8009 = vcmp.ge.f32.partialorder %v7933, 0.0
      %vm8010 = vcmp.ge.f32.partialorder %v7936, 0.0
      %vm8011 = vcmp.ge.f32.partialorder %v7941, 0.0
      %vm8012 = vcmp.ge.f32.partialorder %v7944, 0.0
      %vm8013 = vcmp.ge.f32.partialorder %v7949, 0.0
      %vm8014 = vcmp.ge.f32.partialorder %v7952, 0.0
      %vm8015 = vcmp.ge.f32.partialorder %v7957, 0.0
      %vm8016 = vcmp.ge.f32.partialorder %v7960, 0.0
      %v8017 = vmul.f32 %v7749, 0.2
      %v8018 = vmul.f32 %v7752, 0.2
      %v8019 = vmul.f32 %v7757, 0.2
      %v8020 = vmul.f32 %v7760, 0.2
      %v8021 = vmul.f32 %v7765, 0.2
      %v8022 = vmul.f32 %v7768, 0.2
      %v8023 = vmul.f32 %v7773, 0.2
      %v8024 = vmul.f32 %v7776, 0.2
      %v8025 = vmul.f32 %v7781, 0.2
      %v8026 = vmul.f32 %v7784, 0.2
      %v8027 = vmul.f32 %v7789, 0.2
      %v8028 = vmul.f32 %v7792, 0.2
      %v8029 = vmul.f32 %v7797, 0.2
      %v8030 = vmul.f32 %v7800, 0.2
      %v8031 = vmul.f32 %v7805, 0.2
      %v8032 = vmul.f32 %v7808, 0.2
      %v8033 = vmul.f32 %v7813, 0.2
      %v8034 = vmul.f32 %v7816, 0.2
      %v8035 = vmul.f32 %v7821, 0.2
      %v8036 = vmul.f32 %v7824, 0.2
      %v8037 = vmul.f32 %v7829, 0.2
      %v8038 = vmul.f32 %v7832, 0.2
      %v8039 = vmul.f32 %v7837, 0.2
      %v8040 = vmul.f32 %v7840, 0.2
      %v8041 = vmul.f32 %v7845, 0.2
      %v8042 = vmul.f32 %v7848, 0.2
      %v8043 = vmul.f32 %v7853, 0.2
      %v8044 = vmul.f32 %v7856, 0.2
      %v8045 = vmul.f32 %v7861, 0.2
      %v8046 = vmul.f32 %v7864, 0.2
      %v8047 = vmul.f32 %v7869, 0.2
      %v8048 = vmul.f32 %v7872, 0.2
      %v8049 = vmul.f32 %v7877, 0.2
      %v8050 = vmul.f32 %v7880, 0.2
      %v8051 = vmul.f32 %v7885, 0.2
      %v8052 = vmul.f32 %v7888, 0.2
      %v8053 = vmul.f32 %v7893, 0.2
      %v8054 = vmul.f32 %v7896, 0.2
      %v8055 = vmul.f32 %v7901, 0.2
      %v8056 = vmul.f32 %v7904, 0.2
      %v8057 = vmul.f32 %v7909, 0.2
      %v8058 = vmul.f32 %v7912, 0.2
      %v8059 = vmul.f32 %v7917, 0.2
      %v8060 = vmul.f32 %v7920, 0.2
      %v8061 = vmul.f32 %v7925, 0.2
      %v8062 = vmul.f32 %v7928, 0.2
      %v8063 = vmul.f32 %v7933, 0.2
      %v8064 = vmul.f32 %v7936, 0.2
      %v8065 = vmul.f32 %v7941, 0.2
      %v8066 = vmul.f32 %v7944, 0.2
      %v8067 = vmul.f32 %v7949, 0.2
      %v8068 = vmul.f32 %v7952, 0.2
      %v8069 = vmul.f32 %v7957, 0.2
      %v8070 = vmul.f32 %v7960, 0.2
      %v8071 = vsel %vm7963, %v7749, %v8017
      %v8072 = vsel %vm7964, %v7752, %v8018
      %v8073 = vsel %vm7965, %v7757, %v8019
      %v8074 = vsel %vm7966, %v7760, %v8020
      %v8075 = vsel %vm7967, %v7765, %v8021
      %v8076 = vsel %vm7968, %v7768, %v8022
      %v8077 = vsel %vm7969, %v7773, %v8023
      %v8078 = vsel %vm7970, %v7776, %v8024
      %v8079 = vsel %vm7971, %v7781, %v8025
      %v8080 = vsel %vm7972, %v7784, %v8026
      %v8081 = vsel %vm7973, %v7789, %v8027
      %v8082 = vsel %vm7974, %v7792, %v8028
      %v8083 = vsel %vm7975, %v7797, %v8029
      %v8084 = vsel %vm7976, %v7800, %v8030
      %v8085 = vsel %vm7977, %v7805, %v8031
      %v8086 = vsel %vm7978, %v7808, %v8032
      %v8087 = vsel %vm7979, %v7813, %v8033
      %v8088 = vsel %vm7980, %v7816, %v8034
      %v8089 = vsel %vm7981, %v7821, %v8035
      %v8090 = vsel %vm7982, %v7824, %v8036
      %v8091 = vsel %vm7983, %v7829, %v8037
      %v8092 = vsel %vm7984, %v7832, %v8038
      %v8093 = vsel %vm7985, %v7837, %v8039
      %v8094 = vsel %vm7986, %v7840, %v8040
      %v8095 = vsel %vm7987, %v7845, %v8041
      %v8096 = vsel %vm7988, %v7848, %v8042
      %v8097 = vsel %vm7989, %v7853, %v8043
      %v8098 = vsel %vm7990, %v7856, %v8044
      %v8099 = vsel %vm7991, %v7861, %v8045
      %v8100 = vsel %vm7992, %v7864, %v8046
      %v8101 = vsel %vm7993, %v7869, %v8047
      %v8102 = vsel %vm7994, %v7872, %v8048
      %v8103 = vsel %vm7995, %v7877, %v8049
      %v8104 = vsel %vm7996, %v7880, %v8050
      %v8105 = vsel %vm7997, %v7885, %v8051
      %v8106 = vsel %vm7998, %v7888, %v8052
      %v8107 = vsel %vm7999, %v7893, %v8053
      %v8108 = vsel %vm8000, %v7896, %v8054
      %v8109 = vsel %vm8001, %v7901, %v8055
      %v8110 = vsel %vm8002, %v7904, %v8056
      %v8111 = vsel %vm8003, %v7909, %v8057
      %v8112 = vsel %vm8004, %v7912, %v8058
      %v8113 = vsel %vm8005, %v7917, %v8059
      %v8114 = vsel %vm8006, %v7920, %v8060
      %v8115 = vsel %vm8007, %v7925, %v8061
      %v8116 = vsel %vm8008, %v7928, %v8062
      %v8117 = vsel %vm8009, %v7933, %v8063
      %v8118 = vsel %vm8010, %v7936, %v8064
      %v8119 = vsel %vm8011, %v7941, %v8065
      %v8120 = vsel %vm8012, %v7944, %v8066
      %v8121 = vsel %vm8013, %v7949, %v8067
      %v8122 = vsel %vm8014, %v7952, %v8068
      %v8123 = vsel %vm8015, %v7957, %v8069
      %v8124 = vsel %vm8016, %v7960, %v8070
      %v8125 = vpack.c.bf16 %v8072, %v8071
      %v8126 = vpack.c.bf16 %v8074, %v8073
      %v8127 = vpack.c.bf16 %v8076, %v8075
      %v8128 = vpack.c.bf16 %v8078, %v8077
      %v8129 = vpack.c.bf16 %v8080, %v8079
      %v8130 = vpack.c.bf16 %v8082, %v8081
      %v8131 = vpack.c.bf16 %v8084, %v8083
      %v8132 = vpack.c.bf16 %v8086, %v8085
      %v8133 = vpack.c.bf16 %v8088, %v8087
      %v8134 = vpack.c.bf16 %v8090, %v8089
      %v8135 = vpack.c.bf16 %v8092, %v8091
      %v8136 = vpack.c.bf16 %v8094, %v8093
      %v8137 = vpack.c.bf16 %v8096, %v8095
      %v8138 = vpack.c.bf16 %v8098, %v8097
      %v8139 = vpack.c.bf16 %v8100, %v8099
      %v8140 = vpack.c.bf16 %v8102, %v8101
      %v8141 = vpack.c.bf16 %v8104, %v8103
      %v8142 = vpack.c.bf16 %v8106, %v8105
      %v8143 = vpack.c.bf16 %v8108, %v8107
      %v8144 = vpack.c.bf16 %v8110, %v8109
      %v8145 = vpack.c.bf16 %v8112, %v8111
      %v8146 = vpack.c.bf16 %v8114, %v8113
      %v8147 = vpack.c.bf16 %v8116, %v8115
      %v8148 = vpack.c.bf16 %v8118, %v8117
      %v8149 = vpack.c.bf16 %v8120, %v8119
      %v8150 = vpack.c.bf16 %v8122, %v8121
      %v8151 = vpack.c.bf16 %v8124, %v8123
      %v8152 = vld [vmem:[%s10] sm:$0x3]
      %v8153 = vld [vmem:[%s11] sm:$0x1]
      %v8155 = vlaneseq
      %v8156 = vshrl.u32 %v8155, 7
      %v8157 = vsub.s32 0, %v8156
      %v8158 = vrot.slane %v8153, %v8157
      %v8161 = vsel %vm1432, %v8125, 0
      %v8164 = vsel %vm1432, %v8126, 0
      %v8167 = vsel %vm1432, %v8127, 0
      %v8170 = vsel %vm1432, %v8128, 0
      %v8173 = vsel %vm1432, %v8129, 0
      %v8176 = vsel %vm1432, %v8130, 0
      %v8179 = vsel %vm1432, %v8131, 0
      %v8182 = vsel %vm1432, %v8132, 0
      %v8185 = vsel %vm1432, %v8133, 0
      %v8188 = vsel %vm1432, %v8134, 0
      %v8191 = vsel %vm1432, %v8135, 0
      %v8194 = vsel %vm1432, %v8136, 0
      %v8197 = vsel %vm1432, %v8137, 0
      %v8200 = vsel %vm1432, %v8138, 0
      %v8203 = vsel %vm1432, %v8139, 0
      %v8206 = vsel %vm1432, %v8140, 0
      %v8209 = vsel %vm1432, %v8141, 0
      %v8212 = vsel %vm1432, %v8142, 0
      %v8215 = vsel %vm1432, %v8143, 0
      %v8218 = vsel %vm1432, %v8144, 0
      %v8221 = vsel %vm1432, %v8145, 0
      %v8224 = vsel %vm1432, %v8146, 0
      %v8227 = vsel %vm1432, %v8147, 0
      %v8230 = vsel %vm1432, %v8148, 0
      %v8233 = vsel %vm1432, %v8149, 0
      %v8236 = vsel %vm1432, %v8150, 0
      %v8239 = vsel %vm1432, %v8151, 0
      %v8242 = vsel %vm2906, %v8152, 0
      %8244 = vmatprep.subr.bf16.mxu0 0
      %8245 = vmatpush1.bf16.msra.mxu0 %v8242
      %8246 = vmatprep.subr.bf16.mxu0 0
      %8247 = vmatpush1.bf16.msra.mxu0 0
      %8248 = vmatprep.subr.bf16.mxu0 0
      %8249 = vmatpush1.bf16.msra.mxu0 0
      %8250 = vmatprep.subr.bf16.mxu0 0
      %8251 = vmatpush1.bf16.msra.mxu0 0
      %8252 = vmatprep.subr.bf16.mxu0 0
      %8253 = vmatpush1.bf16.msra.mxu0 0
      %8254 = vmatprep.subr.bf16.mxu0 0
      %8255 = vmatpush1.bf16.msra.mxu0 0
      %8256 = vmatprep.subr.bf16.mxu0 0
      %8257 = vmatpush1.bf16.msra.mxu0 0
      %8258 = vmatprep.subr.bf16.mxu0 0
      %8259 = vmatpush1.bf16.msra.mxu0 0
      %8260 = vmatprep.subr.bf16.mxu0 0
      %8261 = vmatpush1.bf16.msra.mxu0 0
      %8262 = vmatprep.subr.bf16.mxu0 0
      %8263 = vmatpush1.bf16.msra.mxu0 0
      %8264 = vmatprep.subr.bf16.mxu0 0
      %8265 = vmatpush1.bf16.msra.mxu0 0
      %8266 = vmatprep.subr.bf16.mxu0 0
      %8267 = vmatpush1.bf16.msra.mxu0 0
      %8268 = vmatprep.subr.bf16.mxu0 0
      %8269 = vmatpush1.bf16.msra.mxu0 0
      %8270 = vmatprep.subr.bf16.mxu0 0
      %8271 = vmatpush1.bf16.msra.mxu0 0
      %8272 = vmatprep.subr.bf16.mxu0 0
      %8273 = vmatpush1.bf16.msra.mxu0 0
      %8274 = vmatprep.subr.bf16.mxu0 0
      %8275 = vmatpush1.bf16.msra.mxu0 0
      %8276 = vmatprep.mubr.bf16.mxu0 0
      %8277 = vmatmul.mubr.bf16.gmra.mrb[0].mxu0 %v8161
      %v8278 = vpop.f32.mrb[0].mxu0
      %v8279 = vadd.f32 %v8158, %v8278
      %v8280 = vpop.f32.mrb[0].mxu0
      %v8281 = vpop.f32.mrb[0].mxu0
      %v8282 = vadd.f32 %v8158, %v8281
      %v8283 = vpop.f32.mrb[0].mxu0
      %8284 = vmatprep.mubr.bf16.mxu0 0
      %8285 = vmatmul.mubr.bf16.gmra.mrb[0].mxu0 %v8164
      %v8286 = vpop.f32.mrb[0].mxu0
      %v8287 = vadd.f32 %v8158, %v8286
      %v8288 = vpop.f32.mrb[0].mxu0
      %v8289 = vpop.f32.mrb[0].mxu0
      %v8290 = vadd.f32 %v8158, %v8289
      %v8291 = vpop.f32.mrb[0].mxu0
      %8292 = vmatprep.mubr.bf16.mxu0 0
      %8293 = vmatmul.mubr.bf16.gmra.mrb[0].mxu0 %v8167
      %v8294 = vpop.f32.mrb[0].mxu0
      %v8295 = vadd.f32 %v8158, %v8294
      %v8296 = vpop.f32.mrb[0].mxu0
      %v8297 = vpop.f32.mrb[0].mxu0
      %v8298 = vadd.f32 %v8158, %v8297
      %v8299 = vpop.f32.mrb[0].mxu0
      %8300 = vmatprep.mubr.bf16.mxu0 0
      %8301 = vmatmul.mubr.bf16.gmra.mrb[0].mxu0 %v8170
      %v8302 = vpop.f32.mrb[0].mxu0
      %v8303 = vadd.f32 %v8158, %v8302
      %v8304 = vpop.f32.mrb[0].mxu0
      %v8305 = vpop.f32.mrb[0].mxu0
      %v8306 = vadd.f32 %v8158, %v8305
      %v8307 = vpop.f32.mrb[0].mxu0
      %8308 = vmatprep.mubr.bf16.mxu0 0
      %8309 = vmatmul.mubr.bf16.gmra.mrb[0].mxu0 %v8173
      %v8310 = vpop.f32.mrb[0].mxu0
      %v8311 = vadd.f32 %v8158, %v8310
      %v8312 = vpop.f32.mrb[0].mxu0
      %v8313 = vpop.f32.mrb[0].mxu0
      %v8314 = vadd.f32 %v8158, %v8313
      %v8315 = vpop.f32.mrb[0].mxu0
      %8316 = vmatprep.mubr.bf16.mxu0 0
      %8317 = vmatmul.mubr.bf16.gmra.mrb[0].mxu0 %v8176
      %v8318 = vpop.f32.mrb[0].mxu0
      %v8319 = vadd.f32 %v8158, %v8318
      %v8320 = vpop.f32.mrb[0].mxu0
      %v8321 = vpop.f32.mrb[0].mxu0
      %v8322 = vadd.f32 %v8158, %v8321
      %v8323 = vpop.f32.mrb[0].mxu0
      %8324 = vmatprep.mubr.bf16.mxu0 0
      %8325 = vmatmul.mubr.bf16.gmra.mrb[0].mxu0 %v8179
      %v8326 = vpop.f32.mrb[0].mxu0
      %v8327 = vadd.f32 %v8158, %v8326
      %v8328 = vpop.f32.mrb[0].mxu0
      %v8329 = vpop.f32.mrb[0].mxu0
      %v8330 = vadd.f32 %v8158, %v8329
      %v8331 = vpop.f32.mrb[0].mxu0
      %8332 = vmatprep.mubr.bf16.mxu0 0
      %8333 = vmatmul.mubr.bf16.gmra.mrb[0].mxu0 %v8182
      %v8334 = vpop.f32.mrb[0].mxu0
      %v8335 = vadd.f32 %v8158, %v8334
      %v8336 = vpop.f32.mrb[0].mxu0
      %v8337 = vpop.f32.mrb[0].mxu0
      %v8338 = vadd.f32 %v8158, %v8337
      %v8339 = vpop.f32.mrb[0].mxu0
      %8340 = vmatprep.mubr.bf16.mxu0 0
      %8341 = vmatmul.mubr.bf16.gmra.mrb[0].mxu0 %v8185
      %v8342 = vpop.f32.mrb[0].mxu0
      %v8343 = vadd.f32 %v8158, %v8342
      %v8344 = vpop.f32.mrb[0].mxu0
      %v8345 = vpop.f32.mrb[0].mxu0
      %v8346 = vadd.f32 %v8158, %v8345
      %v8347 = vpop.f32.mrb[0].mxu0
      %8348 = vmatprep.mubr.bf16.mxu0 0
      %8349 = vmatmul.mubr.bf16.gmra.mrb[0].mxu0 %v8188
      %v8350 = vpop.f32.mrb[0].mxu0
      %v8351 = vadd.f32 %v8158, %v8350
      %v8352 = vpop.f32.mrb[0].mxu0
      %v8353 = vpop.f32.mrb[0].mxu0
      %v8354 = vadd.f32 %v8158, %v8353
      %v8355 = vpop.f32.mrb[0].mxu0
      %8356 = vmatprep.mubr.bf16.mxu0 0
      %8357 = vmatmul.mubr.bf16.gmra.mrb[0].mxu0 %v8191
      %v8358 = vpop.f32.mrb[0].mxu0
      %v8359 = vadd.f32 %v8158, %v8358
      %v8360 = vpop.f32.mrb[0].mxu0
      %v8361 = vpop.f32.mrb[0].mxu0
      %v8362 = vadd.f32 %v8158, %v8361
      %v8363 = vpop.f32.mrb[0].mxu0
      %8364 = vmatprep.mubr.bf16.mxu0 0
      %8365 = vmatmul.mubr.bf16.gmra.mrb[0].mxu0 %v8194
      %v8366 = vpop.f32.mrb[0].mxu0
      %v8367 = vadd.f32 %v8158, %v8366
      %v8368 = vpop.f32.mrb[0].mxu0
      %v8369 = vpop.f32.mrb[0].mxu0
      %v8370 = vadd.f32 %v8158, %v8369
      %v8371 = vpop.f32.mrb[0].mxu0
      %8372 = vmatprep.mubr.bf16.mxu0 0
      %8373 = vmatmul.mubr.bf16.gmra.mrb[0].mxu0 %v8197
      %v8374 = vpop.f32.mrb[0].mxu0
      %v8375 = vadd.f32 %v8158, %v8374
      %v8376 = vpop.f32.mrb[0].mxu0
      %v8377 = vpop.f32.mrb[0].mxu0
      %v8378 = vadd.f32 %v8158, %v8377
      %v8379 = vpop.f32.mrb[0].mxu0
      %8380 = vmatprep.mubr.bf16.mxu0 0
      %8381 = vmatmul.mubr.bf16.gmra.mrb[0].mxu0 %v8200
      %v8382 = vpop.f32.mrb[0].mxu0
      %v8383 = vadd.f32 %v8158, %v8382
      %v8384 = vpop.f32.mrb[0].mxu0
      %v8385 = vpop.f32.mrb[0].mxu0
      %v8386 = vadd.f32 %v8158, %v8385
      %v8387 = vpop.f32.mrb[0].mxu0
      %8388 = vmatprep.mubr.bf16.mxu0 0
      %8389 = vmatmul.mubr.bf16.gmra.mrb[0].mxu0 %v8203
      %v8390 = vpop.f32.mrb[0].mxu0
      %v8391 = vadd.f32 %v8158, %v8390
      %v8392 = vpop.f32.mrb[0].mxu0
      %v8393 = vpop.f32.mrb[0].mxu0
      %v8394 = vadd.f32 %v8158, %v8393
      %v8395 = vpop.f32.mrb[0].mxu0
      %8396 = vmatprep.mubr.bf16.mxu0 0
      %8397 = vmatmul.mubr.bf16.gmra.mrb[0].mxu0 %v8206
      %v8398 = vpop.f32.mrb[0].mxu0
      %v8399 = vadd.f32 %v8158, %v8398
      %v8400 = vpop.f32.mrb[0].mxu0
      %v8401 = vpop.f32.mrb[0].mxu0
      %v8402 = vadd.f32 %v8158, %v8401
      %v8403 = vpop.f32.mrb[0].mxu0
      %8404 = vmatprep.mubr.bf16.mxu0 0
      %8405 = vmatmul.mubr.bf16.gmra.mrb[0].mxu0 %v8209
      %v8406 = vpop.f32.mrb[0].mxu0
      %v8407 = vadd.f32 %v8158, %v8406
      %v8408 = vpop.f32.mrb[0].mxu0
      %v8409 = vpop.f32.mrb[0].mxu0
      %v8410 = vadd.f32 %v8158, %v8409
      %v8411 = vpop.f32.mrb[0].mxu0
      %8412 = vmatprep.mubr.bf16.mxu0 0
      %8413 = vmatmul.mubr.bf16.gmra.mrb[0].mxu0 %v8212
      %v8414 = vpop.f32.mrb[0].mxu0
      %v8415 = vadd.f32 %v8158, %v8414
      %v8416 = vpop.f32.mrb[0].mxu0
      %v8417 = vpop.f32.mrb[0].mxu0
      %v8418 = vadd.f32 %v8158, %v8417
      %v8419 = vpop.f32.mrb[0].mxu0
      %8420 = vmatprep.mubr.bf16.mxu0 0
      %8421 = vmatmul.mubr.bf16.gmra.mrb[0].mxu0 %v8215
      %v8422 = vpop.f32.mrb[0].mxu0
      %v8423 = vadd.f32 %v8158, %v8422
      %v8424 = vpop.f32.mrb[0].mxu0
      %v8425 = vpop.f32.mrb[0].mxu0
      %v8426 = vadd.f32 %v8158, %v8425
      %v8427 = vpop.f32.mrb[0].mxu0
      %8428 = vmatprep.mubr.bf16.mxu0 0
      %8429 = vmatmul.mubr.bf16.gmra.mrb[0].mxu0 %v8218
      %v8430 = vpop.f32.mrb[0].mxu0
      %v8431 = vadd.f32 %v8158, %v8430
      %v8432 = vpop.f32.mrb[0].mxu0
      %v8433 = vpop.f32.mrb[0].mxu0
      %v8434 = vadd.f32 %v8158, %v8433
      %v8435 = vpop.f32.mrb[0].mxu0
      %8436 = vmatprep.mubr.bf16.mxu0 0
      %8437 = vmatmul.mubr.bf16.gmra.mrb[0].mxu0 %v8221
      %v8438 = vpop.f32.mrb[0].mxu0
      %v8439 = vadd.f32 %v8158, %v8438
      %v8440 = vpop.f32.mrb[0].mxu0
      %v8441 = vpop.f32.mrb[0].mxu0
      %v8442 = vadd.f32 %v8158, %v8441
      %v8443 = vpop.f32.mrb[0].mxu0
      %8444 = vmatprep.mubr.bf16.mxu0 0
      %8445 = vmatmul.mubr.bf16.gmra.mrb[0].mxu0 %v8224
      %v8446 = vpop.f32.mrb[0].mxu0
      %v8447 = vadd.f32 %v8158, %v8446
      %v8448 = vpop.f32.mrb[0].mxu0
      %v8449 = vpop.f32.mrb[0].mxu0
      %v8450 = vadd.f32 %v8158, %v8449
      %v8451 = vpop.f32.mrb[0].mxu0
      %8452 = vmatprep.mubr.bf16.mxu0 0
      %8453 = vmatmul.mubr.bf16.gmra.mrb[0].mxu0 %v8227
      %v8454 = vpop.f32.mrb[0].mxu0
      %v8455 = vadd.f32 %v8158, %v8454
      %v8456 = vpop.f32.mrb[0].mxu0
      %v8457 = vpop.f32.mrb[0].mxu0
      %v8458 = vadd.f32 %v8158, %v8457
      %v8459 = vpop.f32.mrb[0].mxu0
      %8460 = vmatprep.mubr.bf16.mxu0 0
      %8461 = vmatmul.mubr.bf16.gmra.mrb[0].mxu0 %v8230
      %v8462 = vpop.f32.mrb[0].mxu0
      %v8463 = vadd.f32 %v8158, %v8462
      %v8464 = vpop.f32.mrb[0].mxu0
      %v8465 = vpop.f32.mrb[0].mxu0
      %v8466 = vadd.f32 %v8158, %v8465
      %v8467 = vpop.f32.mrb[0].mxu0
      %8468 = vmatprep.mubr.bf16.mxu0 0
      %8469 = vmatmul.mubr.bf16.gmra.mrb[0].mxu0 %v8233
      %v8470 = vpop.f32.mrb[0].mxu0
      %v8471 = vadd.f32 %v8158, %v8470
      %v8472 = vpop.f32.mrb[0].mxu0
      %v8473 = vpop.f32.mrb[0].mxu0
      %v8474 = vadd.f32 %v8158, %v8473
      %v8475 = vpop.f32.mrb[0].mxu0
      %8476 = vmatprep.mubr.bf16.mxu0 0
      %8477 = vmatmul.mubr.bf16.gmra.mrb[0].mxu0 %v8236
      %v8478 = vpop.f32.mrb[0].mxu0
      %v8479 = vadd.f32 %v8158, %v8478
      %v8480 = vpop.f32.mrb[0].mxu0
      %v8481 = vpop.f32.mrb[0].mxu0
      %v8482 = vadd.f32 %v8158, %v8481
      %v8483 = vpop.f32.mrb[0].mxu0
      %8484 = vmatprep.mubr.bf16.mxu0 0
      %8485 = vmatmul.mubr.bf16.gmra.mrb[0].mxu0 %v8239
      %v8486 = vpop.f32.mrb[0].mxu0
      %v8487 = vadd.f32 %v8158, %v8486
      %v8488 = vpop.f32.mrb[0].mxu0
      %v8489 = vpop.f32.mrb[0].mxu0
      %v8490 = vadd.f32 %v8158, %v8489
      %v8491 = vpop.f32.mrb[0].mxu0
      %8492 = vdwg.mxu0
      %vm8493 = vcmp.ge.f32.partialorder %v8279, 0.0
      %vm8494 = vcmp.ge.f32.partialorder %v8282, 0.0
      %vm8495 = vcmp.ge.f32.partialorder %v8287, 0.0
      %vm8496 = vcmp.ge.f32.partialorder %v8290, 0.0
      %vm8497 = vcmp.ge.f32.partialorder %v8295, 0.0
      %vm8498 = vcmp.ge.f32.partialorder %v8298, 0.0
      %vm8499 = vcmp.ge.f32.partialorder %v8303, 0.0
      %vm8500 = vcmp.ge.f32.partialorder %v8306, 0.0
      %vm8501 = vcmp.ge.f32.partialorder %v8311, 0.0
      %vm8502 = vcmp.ge.f32.partialorder %v8314, 0.0
      %vm8503 = vcmp.ge.f32.partialorder %v8319, 0.0
      %vm8504 = vcmp.ge.f32.partialorder %v8322, 0.0
      %vm8505 = vcmp.ge.f32.partialorder %v8327, 0.0
      %vm8506 = vcmp.ge.f32.partialorder %v8330, 0.0
      %vm8507 = vcmp.ge.f32.partialorder %v8335, 0.0
      %vm8508 = vcmp.ge.f32.partialorder %v8338, 0.0
      %vm8509 = vcmp.ge.f32.partialorder %v8343, 0.0
      %vm8510 = vcmp.ge.f32.partialorder %v8346, 0.0
      %vm8511 = vcmp.ge.f32.partialorder %v8351, 0.0
      %vm8512 = vcmp.ge.f32.partialorder %v8354, 0.0
      %vm8513 = vcmp.ge.f32.partialorder %v8359, 0.0
      %vm8514 = vcmp.ge.f32.partialorder %v8362, 0.0
      %vm8515 = vcmp.ge.f32.partialorder %v8367, 0.0
      %vm8516 = vcmp.ge.f32.partialorder %v8370, 0.0
      %vm8517 = vcmp.ge.f32.partialorder %v8375, 0.0
      %vm8518 = vcmp.ge.f32.partialorder %v8378, 0.0
      %vm8519 = vcmp.ge.f32.partialorder %v8383, 0.0
      %vm8520 = vcmp.ge.f32.partialorder %v8386, 0.0
      %vm8521 = vcmp.ge.f32.partialorder %v8391, 0.0
      %vm8522 = vcmp.ge.f32.partialorder %v8394, 0.0
      %vm8523 = vcmp.ge.f32.partialorder %v8399, 0.0
      %vm8524 = vcmp.ge.f32.partialorder %v8402, 0.0
      %vm8525 = vcmp.ge.f32.partialorder %v8407, 0.0
      %vm8526 = vcmp.ge.f32.partialorder %v8410, 0.0
      %vm8527 = vcmp.ge.f32.partialorder %v8415, 0.0
      %vm8528 = vcmp.ge.f32.partialorder %v8418, 0.0
      %vm8529 = vcmp.ge.f32.partialorder %v8423, 0.0
      %vm8530 = vcmp.ge.f32.partialorder %v8426, 0.0
      %vm8531 = vcmp.ge.f32.partialorder %v8431, 0.0
      %vm8532 = vcmp.ge.f32.partialorder %v8434, 0.0
      %vm8533 = vcmp.ge.f32.partialorder %v8439, 0.0
      %vm8534 = vcmp.ge.f32.partialorder %v8442, 0.0
      %vm8535 = vcmp.ge.f32.partialorder %v8447, 0.0
      %vm8536 = vcmp.ge.f32.partialorder %v8450, 0.0
      %vm8537 = vcmp.ge.f32.partialorder %v8455, 0.0
      %vm8538 = vcmp.ge.f32.partialorder %v8458, 0.0
      %vm8539 = vcmp.ge.f32.partialorder %v8463, 0.0
      %vm8540 = vcmp.ge.f32.partialorder %v8466, 0.0
      %vm8541 = vcmp.ge.f32.partialorder %v8471, 0.0
      %vm8542 = vcmp.ge.f32.partialorder %v8474, 0.0
      %vm8543 = vcmp.ge.f32.partialorder %v8479, 0.0
      %vm8544 = vcmp.ge.f32.partialorder %v8482, 0.0
      %vm8545 = vcmp.ge.f32.partialorder %v8487, 0.0
      %vm8546 = vcmp.ge.f32.partialorder %v8490, 0.0
      %v8547 = vmul.f32 %v8279, 0.2
      %v8548 = vmul.f32 %v8282, 0.2
      %v8549 = vmul.f32 %v8287, 0.2
      %v8550 = vmul.f32 %v8290, 0.2
      %v8551 = vmul.f32 %v8295, 0.2
      %v8552 = vmul.f32 %v8298, 0.2
      %v8553 = vmul.f32 %v8303, 0.2
      %v8554 = vmul.f32 %v8306, 0.2
      %v8555 = vmul.f32 %v8311, 0.2
      %v8556 = vmul.f32 %v8314, 0.2
      %v8557 = vmul.f32 %v8319, 0.2
      %v8558 = vmul.f32 %v8322, 0.2
      %v8559 = vmul.f32 %v8327, 0.2
      %v8560 = vmul.f32 %v8330, 0.2
      %v8561 = vmul.f32 %v8335, 0.2
      %v8562 = vmul.f32 %v8338, 0.2
      %v8563 = vmul.f32 %v8343, 0.2
      %v8564 = vmul.f32 %v8346, 0.2
      %v8565 = vmul.f32 %v8351, 0.2
      %v8566 = vmul.f32 %v8354, 0.2
      %v8567 = vmul.f32 %v8359, 0.2
      %v8568 = vmul.f32 %v8362, 0.2
      %v8569 = vmul.f32 %v8367, 0.2
      %v8570 = vmul.f32 %v8370, 0.2
      %v8571 = vmul.f32 %v8375, 0.2
      %v8572 = vmul.f32 %v8378, 0.2
      %v8573 = vmul.f32 %v8383, 0.2
      %v8574 = vmul.f32 %v8386, 0.2
      %v8575 = vmul.f32 %v8391, 0.2
      %v8576 = vmul.f32 %v8394, 0.2
      %v8577 = vmul.f32 %v8399, 0.2
      %v8578 = vmul.f32 %v8402, 0.2
      %v8579 = vmul.f32 %v8407, 0.2
      %v8580 = vmul.f32 %v8410, 0.2
      %v8581 = vmul.f32 %v8415, 0.2
      %v8582 = vmul.f32 %v8418, 0.2
      %v8583 = vmul.f32 %v8423, 0.2
      %v8584 = vmul.f32 %v8426, 0.2
      %v8585 = vmul.f32 %v8431, 0.2
      %v8586 = vmul.f32 %v8434, 0.2
      %v8587 = vmul.f32 %v8439, 0.2
      %v8588 = vmul.f32 %v8442, 0.2
      %v8589 = vmul.f32 %v8447, 0.2
      %v8590 = vmul.f32 %v8450, 0.2
      %v8591 = vmul.f32 %v8455, 0.2
      %v8592 = vmul.f32 %v8458, 0.2
      %v8593 = vmul.f32 %v8463, 0.2
      %v8594 = vmul.f32 %v8466, 0.2
      %v8595 = vmul.f32 %v8471, 0.2
      %v8596 = vmul.f32 %v8474, 0.2
      %v8597 = vmul.f32 %v8479, 0.2
      %v8598 = vmul.f32 %v8482, 0.2
      %v8599 = vmul.f32 %v8487, 0.2
      %v8600 = vmul.f32 %v8490, 0.2
      %v8601 = vsel %vm8493, %v8279, %v8547
      %v8602 = vsel %vm8494, %v8282, %v8548
      %v8603 = vsel %vm8495, %v8287, %v8549
      %v8604 = vsel %vm8496, %v8290, %v8550
      %v8605 = vsel %vm8497, %v8295, %v8551
      %v8606 = vsel %vm8498, %v8298, %v8552
      %v8607 = vsel %vm8499, %v8303, %v8553
      %v8608 = vsel %vm8500, %v8306, %v8554
      %v8609 = vsel %vm8501, %v8311, %v8555
      %v8610 = vsel %vm8502, %v8314, %v8556
      %v8611 = vsel %vm8503, %v8319, %v8557
      %v8612 = vsel %vm8504, %v8322, %v8558
      %v8613 = vsel %vm8505, %v8327, %v8559
      %v8614 = vsel %vm8506, %v8330, %v8560
      %v8615 = vsel %vm8507, %v8335, %v8561
      %v8616 = vsel %vm8508, %v8338, %v8562
      %v8617 = vsel %vm8509, %v8343, %v8563
      %v8618 = vsel %vm8510, %v8346, %v8564
      %v8619 = vsel %vm8511, %v8351, %v8565
      %v8620 = vsel %vm8512, %v8354, %v8566
      %v8621 = vsel %vm8513, %v8359, %v8567
      %v8622 = vsel %vm8514, %v8362, %v8568
      %v8623 = vsel %vm8515, %v8367, %v8569
      %v8624 = vsel %vm8516, %v8370, %v8570
      %v8625 = vsel %vm8517, %v8375, %v8571
      %v8626 = vsel %vm8518, %v8378, %v8572
      %v8627 = vsel %vm8519, %v8383, %v8573
      %v8628 = vsel %vm8520, %v8386, %v8574
      %v8629 = vsel %vm8521, %v8391, %v8575
      %v8630 = vsel %vm8522, %v8394, %v8576
      %v8631 = vsel %vm8523, %v8399, %v8577
      %v8632 = vsel %vm8524, %v8402, %v8578
      %v8633 = vsel %vm8525, %v8407, %v8579
      %v8634 = vsel %vm8526, %v8410, %v8580
      %v8635 = vsel %vm8527, %v8415, %v8581
      %v8636 = vsel %vm8528, %v8418, %v8582
      %v8637 = vsel %vm8529, %v8423, %v8583
      %v8638 = vsel %vm8530, %v8426, %v8584
      %v8639 = vsel %vm8531, %v8431, %v8585
      %v8640 = vsel %vm8532, %v8434, %v8586
      %v8641 = vsel %vm8533, %v8439, %v8587
      %v8642 = vsel %vm8534, %v8442, %v8588
      %v8643 = vsel %vm8535, %v8447, %v8589
      %v8644 = vsel %vm8536, %v8450, %v8590
      %v8645 = vsel %vm8537, %v8455, %v8591
      %v8646 = vsel %vm8538, %v8458, %v8592
      %v8647 = vsel %vm8539, %v8463, %v8593
      %v8648 = vsel %vm8540, %v8466, %v8594
      %v8649 = vsel %vm8541, %v8471, %v8595
      %v8650 = vsel %vm8542, %v8474, %v8596
      %v8651 = vsel %vm8543, %v8479, %v8597
      %v8652 = vsel %vm8544, %v8482, %v8598
      %v8653 = vsel %vm8545, %v8487, %v8599
      %v8654 = vsel %vm8546, %v8490, %v8600
      %v8655 = vsel %vm3537, %v8601, 0.0
      %v8656 = vsel %vm3538, %v8602, 0.0
      %v8657 = vsel %vm3539, %v8603, 0.0
      %v8658 = vsel %vm3540, %v8604, 0.0
      %v8659 = vsel %vm3541, %v8605, 0.0
      %v8660 = vsel %vm3542, %v8606, 0.0
      %v8661 = vsel %vm3543, %v8607, 0.0
      %v8662 = vsel %vm3544, %v8608, 0.0
      %v8663 = vsel %vm3545, %v8609, 0.0
      %v8664 = vsel %vm3546, %v8610, 0.0
      %v8665 = vsel %vm3547, %v8611, 0.0
      %v8666 = vsel %vm3548, %v8612, 0.0
      %v8667 = vsel %vm3549, %v8613, 0.0
      %v8668 = vsel %vm3550, %v8614, 0.0
      %v8669 = vsel %vm3551, %v8615, 0.0
      %v8670 = vsel %vm3552, %v8616, 0.0
      %v8671 = vsel %vm3553, %v8617, 0.0
      %v8672 = vsel %vm3554, %v8618, 0.0
      %v8673 = vsel %vm3555, %v8619, 0.0
      %v8674 = vsel %vm3556, %v8620, 0.0
      %v8675 = vsel %vm3557, %v8621, 0.0
      %v8676 = vsel %vm3558, %v8622, 0.0
      %v8677 = vsel %vm3559, %v8623, 0.0
      %v8678 = vsel %vm3560, %v8624, 0.0
      %v8679 = vsel %vm3561, %v8625, 0.0
      %v8680 = vsel %vm3562, %v8626, 0.0
      %v8681 = vsel %vm3563, %v8627, 0.0
      %v8682 = vsel %vm3564, %v8628, 0.0
      %v8683 = vsel %vm3565, %v8629, 0.0
      %v8684 = vsel %vm3566, %v8630, 0.0
      %v8685 = vsel %vm3567, %v8631, 0.0
      %v8686 = vsel %vm3568, %v8632, 0.0
      %v8687 = vsel %vm3569, %v8633, 0.0
      %v8688 = vsel %vm3570, %v8634, 0.0
      %v8689 = vsel %vm3571, %v8635, 0.0
      %v8690 = vsel %vm3572, %v8636, 0.0
      %v8691 = vsel %vm3573, %v8637, 0.0
      %v8692 = vsel %vm3574, %v8638, 0.0
      %v8693 = vsel %vm3575, %v8639, 0.0
      %v8694 = vsel %vm3576, %v8640, 0.0
      %v8695 = vsel %vm3577, %v8641, 0.0
      %v8696 = vsel %vm3578, %v8642, 0.0
      %v8697 = vsel %vm3579, %v8643, 0.0
      %v8698 = vsel %vm3580, %v8644, 0.0
      %v8699 = vsel %vm3581, %v8645, 0.0
      %v8700 = vsel %vm3582, %v8646, 0.0
      %v8701 = vsel %vm3583, %v8647, 0.0
      %v8702 = vsel %vm3584, %v8648, 0.0
      %v8703 = vsel %vm3585, %v8649, 0.0
      %v8704 = vsel %vm3586, %v8650, 0.0
      %v8705 = vsel %vm3587, %v8651, 0.0
      %v8706 = vsel %vm3588, %v8652, 0.0
      %v8707 = vsel %vm3589, %v8653, 0.0
      %v8708 = vsel %vm3590, %v8654, 0.0
      %v8763 = vrot.slane %v8655, 1
      %v8764 = vsel %vm883, %v3700, %v8763
      %v8765 = vrot.slane %v8656, 1
      %v8766 = vsel %vm883, %v8763, %v8765
      %v8767 = vrot.slane %v8657, 1
      %v8768 = vsel %vm883, %v8765, %v8767
      %v8769 = vrot.slane %v8658, 1
      %v8770 = vsel %vm883, %v8767, %v8769
      %v8771 = vrot.slane %v8659, 1
      %v8772 = vsel %vm883, %v8769, %v8771
      %v8773 = vrot.slane %v8660, 1
      %v8774 = vsel %vm883, %v8771, %v8773
      %v8775 = vrot.slane %v8661, 1
      %v8776 = vsel %vm883, %v8773, %v8775
      %v8777 = vrot.slane %v8662, 1
      %v8778 = vsel %vm883, %v8775, %v8777
      %v8779 = vrot.slane %v8663, 1
      %v8780 = vsel %vm883, %v8777, %v8779
      %v8781 = vrot.slane %v8664, 1
      %v8782 = vsel %vm883, %v8779, %v8781
      %v8783 = vrot.slane %v8665, 1
      %v8784 = vsel %vm883, %v8781, %v8783
      %v8785 = vrot.slane %v8666, 1
      %v8786 = vsel %vm883, %v8783, %v8785
      %v8787 = vrot.slane %v8667, 1
      %v8788 = vsel %vm883, %v8785, %v8787
      %v8789 = vrot.slane %v8668, 1
      %v8790 = vsel %vm883, %v8787, %v8789
      %v8791 = vrot.slane %v8669, 1
      %v8792 = vsel %vm883, %v8789, %v8791
      %v8793 = vrot.slane %v8670, 1
      %v8794 = vsel %vm883, %v8791, %v8793
      %v8795 = vrot.slane %v8671, 1
      %v8796 = vsel %vm883, %v8793, %v8795
      %v8797 = vrot.slane %v8672, 1
      %v8798 = vsel %vm883, %v8795, %v8797
      %v8799 = vrot.slane %v8673, 1
      %v8800 = vsel %vm883, %v8797, %v8799
      %v8801 = vrot.slane %v8674, 1
      %v8802 = vsel %vm883, %v8799, %v8801
      %v8803 = vrot.slane %v8675, 1
      %v8804 = vsel %vm883, %v8801, %v8803
      %v8805 = vrot.slane %v8676, 1
      %v8806 = vsel %vm883, %v8803, %v8805
      %v8807 = vrot.slane %v8677, 1
      %v8808 = vsel %vm883, %v8805, %v8807
      %v8809 = vrot.slane %v8678, 1
      %v8810 = vsel %vm883, %v8807, %v8809
      %v8811 = vrot.slane %v8679, 1
      %v8812 = vsel %vm883, %v8809, %v8811
      %v8813 = vrot.slane %v8680, 1
      %v8814 = vsel %vm883, %v8811, %v8813
      %v8815 = vrot.slane %v8681, 1
      %v8816 = vsel %vm883, %v8813, %v8815
      %v8817 = vrot.slane %v8682, 1
      %v8818 = vsel %vm883, %v8815, %v8817
      %v8819 = vrot.slane %v8683, 1
      %v8820 = vsel %vm883, %v8817, %v8819
      %v8821 = vrot.slane %v8684, 1
      %v8822 = vsel %vm883, %v8819, %v8821
      %v8823 = vrot.slane %v8685, 1
      %v8824 = vsel %vm883, %v8821, %v8823
      %v8825 = vrot.slane %v8686, 1
      %v8826 = vsel %vm883, %v8823, %v8825
      %v8827 = vrot.slane %v8687, 1
      %v8828 = vsel %vm883, %v8825, %v8827
      %v8829 = vrot.slane %v8688, 1
      %v8830 = vsel %vm883, %v8827, %v8829
      %v8831 = vrot.slane %v8689, 1
      %v8832 = vsel %vm883, %v8829, %v8831
      %v8833 = vrot.slane %v8690, 1
      %v8834 = vsel %vm883, %v8831, %v8833
      %v8835 = vrot.slane %v8691, 1
      %v8836 = vsel %vm883, %v8833, %v8835
      %v8837 = vrot.slane %v8692, 1
      %v8838 = vsel %vm883, %v8835, %v8837
      %v8839 = vrot.slane %v8693, 1
      %v8840 = vsel %vm883, %v8837, %v8839
      %v8841 = vrot.slane %v8694, 1
      %v8842 = vsel %vm883, %v8839, %v8841
      %v8843 = vrot.slane %v8695, 1
      %v8844 = vsel %vm883, %v8841, %v8843
      %v8845 = vrot.slane %v8696, 1
      %v8846 = vsel %vm883, %v8843, %v8845
      %v8847 = vrot.slane %v8697, 1
      %v8848 = vsel %vm883, %v8845, %v8847
      %v8849 = vrot.slane %v8698, 1
      %v8850 = vsel %vm883, %v8847, %v8849
      %v8851 = vrot.slane %v8699, 1
      %v8852 = vsel %vm883, %v8849, %v8851
      %v8853 = vrot.slane %v8700, 1
      %v8854 = vsel %vm883, %v8851, %v8853
      %v8855 = vrot.slane %v8701, 1
      %v8856 = vsel %vm883, %v8853, %v8855
      %v8857 = vrot.slane %v8702, 1
      %v8858 = vsel %vm883, %v8855, %v8857
      %v8859 = vrot.slane %v8703, 1
      %v8860 = vsel %vm883, %v8857, %v8859
      %v8861 = vrot.slane %v8704, 1
      %v8862 = vsel %vm883, %v8859, %v8861
      %v8863 = vrot.slane %v8705, 1
      %v8864 = vsel %vm883, %v8861, %v8863
      %v8865 = vrot.slane %v8706, 1
      %v8866 = vsel %vm883, %v8863, %v8865
      %v8867 = vrot.slane %v8707, 1
      %v8868 = vsel %vm883, %v8865, %v8867
      %v8869 = vrot.slane %v8708, 1
      %v8870 = vsel %vm883, %v8867, %v8869
      %v8871 = vsel %vm883, %v8869, %v3700
      %8872 = vrot.lane.b32.xlu0 %v8764, 4
      %v8873 = vpop.permute.xlu0 %8872
      %8874 = vrot.lane.b32.xlu0 %v8766, 4
      %v8875 = vpop.permute.xlu0 %8874
      %8876 = vrot.lane.b32.xlu0 %v8768, 4
      %v8877 = vpop.permute.xlu0 %8876
      %8878 = vrot.lane.b32.xlu0 %v8770, 4
      %v8879 = vpop.permute.xlu0 %8878
      %8880 = vrot.lane.b32.xlu0 %v8772, 4
      %v8881 = vpop.permute.xlu0 %8880
      %8882 = vrot.lane.b32.xlu0 %v8774, 4
      %v8883 = vpop.permute.xlu0 %8882
      %8884 = vrot.lane.b32.xlu0 %v8776, 4
      %v8885 = vpop.permute.xlu0 %8884
      %8886 = vrot.lane.b32.xlu0 %v8778, 4
      %v8887 = vpop.permute.xlu0 %8886
      %8888 = vrot.lane.b32.xlu0 %v8780, 4
      %v8889 = vpop.permute.xlu0 %8888
      %8890 = vrot.lane.b32.xlu0 %v8782, 4
      %v8891 = vpop.permute.xlu0 %8890
      %8892 = vrot.lane.b32.xlu0 %v8784, 4
      %v8893 = vpop.permute.xlu0 %8892
      %8894 = vrot.lane.b32.xlu0 %v8786, 4
      %v8895 = vpop.permute.xlu0 %8894
      %8896 = vrot.lane.b32.xlu0 %v8788, 4
      %v8897 = vpop.permute.xlu0 %8896
      %8898 = vrot.lane.b32.xlu0 %v8790, 4
      %v8899 = vpop.permute.xlu0 %8898
      %8900 = vrot.lane.b32.xlu0 %v8792, 4
      %v8901 = vpop.permute.xlu0 %8900
      %8902 = vrot.lane.b32.xlu0 %v8794, 4
      %v8903 = vpop.permute.xlu0 %8902
      %8904 = vrot.lane.b32.xlu0 %v8796, 4
      %v8905 = vpop.permute.xlu0 %8904
      %8906 = vrot.lane.b32.xlu0 %v8798, 4
      %v8907 = vpop.permute.xlu0 %8906
      %8908 = vrot.lane.b32.xlu0 %v8800, 4
      %v8909 = vpop.permute.xlu0 %8908
      %8910 = vrot.lane.b32.xlu0 %v8802, 4
      %v8911 = vpop.permute.xlu0 %8910
      %8912 = vrot.lane.b32.xlu0 %v8804, 4
      %v8913 = vpop.permute.xlu0 %8912
      %8914 = vrot.lane.b32.xlu0 %v8806, 4
      %v8915 = vpop.permute.xlu0 %8914
      %8916 = vrot.lane.b32.xlu0 %v8808, 4
      %v8917 = vpop.permute.xlu0 %8916
      %8918 = vrot.lane.b32.xlu0 %v8810, 4
      %v8919 = vpop.permute.xlu0 %8918
      %8920 = vrot.lane.b32.xlu0 %v8812, 4
      %v8921 = vpop.permute.xlu0 %8920
      %8922 = vrot.lane.b32.xlu0 %v8814, 4
      %v8923 = vpop.permute.xlu0 %8922
      %8924 = vrot.lane.b32.xlu0 %v8816, 4
      %v8925 = vpop.permute.xlu0 %8924
      %8926 = vrot.lane.b32.xlu0 %v8818, 4
      %v8927 = vpop.permute.xlu0 %8926
      %8928 = vrot.lane.b32.xlu0 %v8820, 4
      %v8929 = vpop.permute.xlu0 %8928
      %8930 = vrot.lane.b32.xlu0 %v8822, 4
      %v8931 = vpop.permute.xlu0 %8930
      %8932 = vrot.lane.b32.xlu0 %v8824, 4
      %v8933 = vpop.permute.xlu0 %8932
      %8934 = vrot.lane.b32.xlu0 %v8826, 4
      %v8935 = vpop.permute.xlu0 %8934
      %8936 = vrot.lane.b32.xlu0 %v8828, 4
      %v8937 = vpop.permute.xlu0 %8936
      %8938 = vrot.lane.b32.xlu0 %v8830, 4
      %v8939 = vpop.permute.xlu0 %8938
      %8940 = vrot.lane.b32.xlu0 %v8832, 4
      %v8941 = vpop.permute.xlu0 %8940
      %8942 = vrot.lane.b32.xlu0 %v8834, 4
      %v8943 = vpop.permute.xlu0 %8942
      %8944 = vrot.lane.b32.xlu0 %v8836, 4
      %v8945 = vpop.permute.xlu0 %8944
      %8946 = vrot.lane.b32.xlu0 %v8838, 4
      %v8947 = vpop.permute.xlu0 %8946
      %8948 = vrot.lane.b32.xlu0 %v8840, 4
      %v8949 = vpop.permute.xlu0 %8948
      %8950 = vrot.lane.b32.xlu0 %v8842, 4
      %v8951 = vpop.permute.xlu0 %8950
      %8952 = vrot.lane.b32.xlu0 %v8844, 4
      %v8953 = vpop.permute.xlu0 %8952
      %8954 = vrot.lane.b32.xlu0 %v8846, 4
      %v8955 = vpop.permute.xlu0 %8954
      %8956 = vrot.lane.b32.xlu0 %v8848, 4
      %v8957 = vpop.permute.xlu0 %8956
      %8958 = vrot.lane.b32.xlu0 %v8850, 4
      %v8959 = vpop.permute.xlu0 %8958
      %8960 = vrot.lane.b32.xlu0 %v8852, 4
      %v8961 = vpop.permute.xlu0 %8960
      %8962 = vrot.lane.b32.xlu0 %v8854, 4
      %v8963 = vpop.permute.xlu0 %8962
      %8964 = vrot.lane.b32.xlu0 %v8856, 4
      %v8965 = vpop.permute.xlu0 %8964
      %8966 = vrot.lane.b32.xlu0 %v8858, 4
      %v8967 = vpop.permute.xlu0 %8966
      %8968 = vrot.lane.b32.xlu0 %v8860, 4
      %v8969 = vpop.permute.xlu0 %8968
      %8970 = vrot.lane.b32.xlu0 %v8862, 4
      %v8971 = vpop.permute.xlu0 %8970
      %8972 = vrot.lane.b32.xlu0 %v8864, 4
      %v8973 = vpop.permute.xlu0 %8972
      %8974 = vrot.lane.b32.xlu0 %v8866, 4
      %v8975 = vpop.permute.xlu0 %8974
      %8976 = vrot.lane.b32.xlu0 %v8868, 4
      %v8977 = vpop.permute.xlu0 %8976
      %8978 = vrot.lane.b32.xlu0 %v8870, 4
      %v8979 = vpop.permute.xlu0 %8978
      %8980 = vrot.lane.b32.xlu0 %v8871, 4
      %v8981 = vpop.permute.xlu0 %8980
      %v9037 = vrot.slane %v8655, 2
      %v9038 = vsel %vm1065, %v3982, %v9037
      %v9039 = vrot.slane %v8656, 2
      %v9040 = vsel %vm1065, %v9037, %v9039
      %v9041 = vrot.slane %v8657, 2
      %v9042 = vsel %vm1065, %v9039, %v9041
      %v9043 = vrot.slane %v8658, 2
      %v9044 = vsel %vm1065, %v9041, %v9043
      %v9045 = vrot.slane %v8659, 2
      %v9046 = vsel %vm1065, %v9043, %v9045
      %v9047 = vrot.slane %v8660, 2
      %v9048 = vsel %vm1065, %v9045, %v9047
      %v9049 = vrot.slane %v8661, 2
      %v9050 = vsel %vm1065, %v9047, %v9049
      %v9051 = vrot.slane %v8662, 2
      %v9052 = vsel %vm1065, %v9049, %v9051
      %v9053 = vrot.slane %v8663, 2
      %v9054 = vsel %vm1065, %v9051, %v9053
      %v9055 = vrot.slane %v8664, 2
      %v9056 = vsel %vm1065, %v9053, %v9055
      %v9057 = vrot.slane %v8665, 2
      %v9058 = vsel %vm1065, %v9055, %v9057
      %v9059 = vrot.slane %v8666, 2
      %v9060 = vsel %vm1065, %v9057, %v9059
      %v9061 = vrot.slane %v8667, 2
      %v9062 = vsel %vm1065, %v9059, %v9061
      %v9063 = vrot.slane %v8668, 2
      %v9064 = vsel %vm1065, %v9061, %v9063
      %v9065 = vrot.slane %v8669, 2
      %v9066 = vsel %vm1065, %v9063, %v9065
      %v9067 = vrot.slane %v8670, 2
      %v9068 = vsel %vm1065, %v9065, %v9067
      %v9069 = vrot.slane %v8671, 2
      %v9070 = vsel %vm1065, %v9067, %v9069
      %v9071 = vrot.slane %v8672, 2
      %v9072 = vsel %vm1065, %v9069, %v9071
      %v9073 = vrot.slane %v8673, 2
      %v9074 = vsel %vm1065, %v9071, %v9073
      %v9075 = vrot.slane %v8674, 2
      %v9076 = vsel %vm1065, %v9073, %v9075
      %v9077 = vrot.slane %v8675, 2
      %v9078 = vsel %vm1065, %v9075, %v9077
      %v9079 = vrot.slane %v8676, 2
      %v9080 = vsel %vm1065, %v9077, %v9079
      %v9081 = vrot.slane %v8677, 2
      %v9082 = vsel %vm1065, %v9079, %v9081
      %v9083 = vrot.slane %v8678, 2
      %v9084 = vsel %vm1065, %v9081, %v9083
      %v9085 = vrot.slane %v8679, 2
      %v9086 = vsel %vm1065, %v9083, %v9085
      %v9087 = vrot.slane %v8680, 2
      %v9088 = vsel %vm1065, %v9085, %v9087
      %v9089 = vrot.slane %v8681, 2
      %v9090 = vsel %vm1065, %v9087, %v9089
      %v9091 = vrot.slane %v8682, 2
      %v9092 = vsel %vm1065, %v9089, %v9091
      %v9093 = vrot.slane %v8683, 2
      %v9094 = vsel %vm1065, %v9091, %v9093
      %v9095 = vrot.slane %v8684, 2
      %v9096 = vsel %vm1065, %v9093, %v9095
      %v9097 = vrot.slane %v8685, 2
      %v9098 = vsel %vm1065, %v9095, %v9097
      %v9099 = vrot.slane %v8686, 2
      %v9100 = vsel %vm1065, %v9097, %v9099
      %v9101 = vrot.slane %v8687, 2
      %v9102 = vsel %vm1065, %v9099, %v9101
      %v9103 = vrot.slane %v8688, 2
      %v9104 = vsel %vm1065, %v9101, %v9103
      %v9105 = vrot.slane %v8689, 2
      %v9106 = vsel %vm1065, %v9103, %v9105
      %v9107 = vrot.slane %v8690, 2
      %v9108 = vsel %vm1065, %v9105, %v9107
      %v9109 = vrot.slane %v8691, 2
      %v9110 = vsel %vm1065, %v9107, %v9109
      %v9111 = vrot.slane %v8692, 2
      %v9112 = vsel %vm1065, %v9109, %v9111
      %v9113 = vrot.slane %v8693, 2
      %v9114 = vsel %vm1065, %v9111, %v9113
      %v9115 = vrot.slane %v8694, 2
      %v9116 = vsel %vm1065, %v9113, %v9115
      %v9117 = vrot.slane %v8695, 2
      %v9118 = vsel %vm1065, %v9115, %v9117
      %v9119 = vrot.slane %v8696, 2
      %v9120 = vsel %vm1065, %v9117, %v9119
      %v9121 = vrot.slane %v8697, 2
      %v9122 = vsel %vm1065, %v9119, %v9121
      %v9123 = vrot.slane %v8698, 2
      %v9124 = vsel %vm1065, %v9121, %v9123
      %v9125 = vrot.slane %v8699, 2
      %v9126 = vsel %vm1065, %v9123, %v9125
      %v9127 = vrot.slane %v8700, 2
      %v9128 = vsel %vm1065, %v9125, %v9127
      %v9129 = vrot.slane %v8701, 2
      %v9130 = vsel %vm1065, %v9127, %v9129
      %v9131 = vrot.slane %v8702, 2
      %v9132 = vsel %vm1065, %v9129, %v9131
      %v9133 = vrot.slane %v8703, 2
      %v9134 = vsel %vm1065, %v9131, %v9133
      %v9135 = vrot.slane %v8704, 2
      %v9136 = vsel %vm1065, %v9133, %v9135
      %v9137 = vrot.slane %v8705, 2
      %v9138 = vsel %vm1065, %v9135, %v9137
      %v9139 = vrot.slane %v8706, 2
      %v9140 = vsel %vm1065, %v9137, %v9139
      %v9141 = vrot.slane %v8707, 2
      %v9142 = vsel %vm1065, %v9139, %v9141
      %v9143 = vrot.slane %v8708, 2
      %v9144 = vsel %vm1065, %v9141, %v9143
      %v9145 = vsel %vm1065, %v9143, %v3982
      %9146 = vrot.lane.b32.xlu0 %v9038, 8
      %v9147 = vpop.permute.xlu0 %9146
      %9148 = vrot.lane.b32.xlu0 %v9040, 8
      %v9149 = vpop.permute.xlu0 %9148
      %9150 = vrot.lane.b32.xlu0 %v9042, 8
      %v9151 = vpop.permute.xlu0 %9150
      %9152 = vrot.lane.b32.xlu0 %v9044, 8
      %v9153 = vpop.permute.xlu0 %9152
      %9154 = vrot.lane.b32.xlu0 %v9046, 8
      %v9155 = vpop.permute.xlu0 %9154
      %9156 = vrot.lane.b32.xlu0 %v9048, 8
      %v9157 = vpop.permute.xlu0 %9156
      %9158 = vrot.lane.b32.xlu0 %v9050, 8
      %v9159 = vpop.permute.xlu0 %9158
      %9160 = vrot.lane.b32.xlu0 %v9052, 8
      %v9161 = vpop.permute.xlu0 %9160
      %9162 = vrot.lane.b32.xlu0 %v9054, 8
      %v9163 = vpop.permute.xlu0 %9162
      %9164 = vrot.lane.b32.xlu0 %v9056, 8
      %v9165 = vpop.permute.xlu0 %9164
      %9166 = vrot.lane.b32.xlu0 %v9058, 8
      %v9167 = vpop.permute.xlu0 %9166
      %9168 = vrot.lane.b32.xlu0 %v9060, 8
      %v9169 = vpop.permute.xlu0 %9168
      %9170 = vrot.lane.b32.xlu0 %v9062, 8
      %v9171 = vpop.permute.xlu0 %9170
      %9172 = vrot.lane.b32.xlu0 %v9064, 8
      %v9173 = vpop.permute.xlu0 %9172
      %9174 = vrot.lane.b32.xlu0 %v9066, 8
      %v9175 = vpop.permute.xlu0 %9174
      %9176 = vrot.lane.b32.xlu0 %v9068, 8
      %v9177 = vpop.permute.xlu0 %9176
      %9178 = vrot.lane.b32.xlu0 %v9070, 8
      %v9179 = vpop.permute.xlu0 %9178
      %9180 = vrot.lane.b32.xlu0 %v9072, 8
      %v9181 = vpop.permute.xlu0 %9180
      %9182 = vrot.lane.b32.xlu0 %v9074, 8
      %v9183 = vpop.permute.xlu0 %9182
      %9184 = vrot.lane.b32.xlu0 %v9076, 8
      %v9185 = vpop.permute.xlu0 %9184
      %9186 = vrot.lane.b32.xlu0 %v9078, 8
      %v9187 = vpop.permute.xlu0 %9186
      %9188 = vrot.lane.b32.xlu0 %v9080, 8
      %v9189 = vpop.permute.xlu0 %9188
      %9190 = vrot.lane.b32.xlu0 %v9082, 8
      %v9191 = vpop.permute.xlu0 %9190
      %9192 = vrot.lane.b32.xlu0 %v9084, 8
      %v9193 = vpop.permute.xlu0 %9192
      %9194 = vrot.lane.b32.xlu0 %v9086, 8
      %v9195 = vpop.permute.xlu0 %9194
      %9196 = vrot.lane.b32.xlu0 %v9088, 8
      %v9197 = vpop.permute.xlu0 %9196
      %9198 = vrot.lane.b32.xlu0 %v9090, 8
      %v9199 = vpop.permute.xlu0 %9198
      %9200 = vrot.lane.b32.xlu0 %v9092, 8
      %v9201 = vpop.permute.xlu0 %9200
      %9202 = vrot.lane.b32.xlu0 %v9094, 8
      %v9203 = vpop.permute.xlu0 %9202
      %9204 = vrot.lane.b32.xlu0 %v9096, 8
      %v9205 = vpop.permute.xlu0 %9204
      %9206 = vrot.lane.b32.xlu0 %v9098, 8
      %v9207 = vpop.permute.xlu0 %9206
      %9208 = vrot.lane.b32.xlu0 %v9100, 8
      %v9209 = vpop.permute.xlu0 %9208
      %9210 = vrot.lane.b32.xlu0 %v9102, 8
      %v9211 = vpop.permute.xlu0 %9210
      %9212 = vrot.lane.b32.xlu0 %v9104, 8
      %v9213 = vpop.permute.xlu0 %9212
      %9214 = vrot.lane.b32.xlu0 %v9106, 8
      %v9215 = vpop.permute.xlu0 %9214
      %9216 = vrot.lane.b32.xlu0 %v9108, 8
      %v9217 = vpop.permute.xlu0 %9216
      %9218 = vrot.lane.b32.xlu0 %v9110, 8
      %v9219 = vpop.permute.xlu0 %9218
      %9220 = vrot.lane.b32.xlu0 %v9112, 8
      %v9221 = vpop.permute.xlu0 %9220
      %9222 = vrot.lane.b32.xlu0 %v9114, 8
      %v9223 = vpop.permute.xlu0 %9222
      %9224 = vrot.lane.b32.xlu0 %v9116, 8
      %v9225 = vpop.permute.xlu0 %9224
      %9226 = vrot.lane.b32.xlu0 %v9118, 8
      %v9227 = vpop.permute.xlu0 %9226
      %9228 = vrot.lane.b32.xlu0 %v9120, 8
      %v9229 = vpop.permute.xlu0 %9228
      %9230 = vrot.lane.b32.xlu0 %v9122, 8
      %v9231 = vpop.permute.xlu0 %9230
      %9232 = vrot.lane.b32.xlu0 %v9124, 8
      %v9233 = vpop.permute.xlu0 %9232
      %9234 = vrot.lane.b32.xlu0 %v9126, 8
      %v9235 = vpop.permute.xlu0 %9234
      %9236 = vrot.lane.b32.xlu0 %v9128, 8
      %v9237 = vpop.permute.xlu0 %9236
      %9238 = vrot.lane.b32.xlu0 %v9130, 8
      %v9239 = vpop.permute.xlu0 %9238
      %9240 = vrot.lane.b32.xlu0 %v9132, 8
      %v9241 = vpop.permute.xlu0 %9240
      %9242 = vrot.lane.b32.xlu0 %v9134, 8
      %v9243 = vpop.permute.xlu0 %9242
      %9244 = vrot.lane.b32.xlu0 %v9136, 8
      %v9245 = vpop.permute.xlu0 %9244
      %9246 = vrot.lane.b32.xlu0 %v9138, 8
      %v9247 = vpop.permute.xlu0 %9246
      %9248 = vrot.lane.b32.xlu0 %v9140, 8
      %v9249 = vpop.permute.xlu0 %9248
      %9250 = vrot.lane.b32.xlu0 %v9142, 8
      %v9251 = vpop.permute.xlu0 %9250
      %9252 = vrot.lane.b32.xlu0 %v9144, 8
      %v9253 = vpop.permute.xlu0 %9252
      %9254 = vrot.lane.b32.xlu0 %v9145, 8
      %v9255 = vpop.permute.xlu0 %9254
      %v9311 = vsel %vm1432, 0.0, %v8873
      %v9312 = vsel %vm1432, %v8655, %v8875
      %v9313 = vsel %vm1432, %v8656, %v8877
      %v9314 = vsel %vm1432, %v8657, %v8879
      %v9315 = vsel %vm1432, %v8658, %v8881
      %v9316 = vsel %vm1432, %v8659, %v8883
      %v9317 = vsel %vm1432, %v8660, %v8885
      %v9318 = vsel %vm1432, %v8661, %v8887
      %v9319 = vsel %vm1432, %v8662, %v8889
      %v9320 = vsel %vm1432, %v8663, %v8891
      %v9321 = vsel %vm1432, %v8664, %v8893
      %v9322 = vsel %vm1432, %v8665, %v8895
      %v9323 = vsel %vm1432, %v8666, %v8897
      %v9324 = vsel %vm1432, %v8667, %v8899
      %v9325 = vsel %vm1432, %v8668, %v8901
      %v9326 = vsel %vm1432, %v8669, %v8903
      %v9327 = vsel %vm1432, %v8670, %v8905
      %v9328 = vsel %vm1432, %v8671, %v8907
      %v9329 = vsel %vm1432, %v8672, %v8909
      %v9330 = vsel %vm1432, %v8673, %v8911
      %v9331 = vsel %vm1432, %v8674, %v8913
      %v9332 = vsel %vm1432, %v8675, %v8915
      %v9333 = vsel %vm1432, %v8676, %v8917
      %v9334 = vsel %vm1432, %v8677, %v8919
      %v9335 = vsel %vm1432, %v8678, %v8921
      %v9336 = vsel %vm1432, %v8679, %v8923
      %v9337 = vsel %vm1432, %v8680, %v8925
      %v9338 = vsel %vm1432, %v8681, %v8927
      %v9339 = vsel %vm1432, %v8682, %v8929
      %v9340 = vsel %vm1432, %v8683, %v8931
      %v9341 = vsel %vm1432, %v8684, %v8933
      %v9342 = vsel %vm1432, %v8685, %v8935
      %v9343 = vsel %vm1432, %v8686, %v8937
      %v9344 = vsel %vm1432, %v8687, %v8939
      %v9345 = vsel %vm1432, %v8688, %v8941
      %v9346 = vsel %vm1432, %v8689, %v8943
      %v9347 = vsel %vm1432, %v8690, %v8945
      %v9348 = vsel %vm1432, %v8691, %v8947
      %v9349 = vsel %vm1432, %v8692, %v8949
      %v9350 = vsel %vm1432, %v8693, %v8951
      %v9351 = vsel %vm1432, %v8694, %v8953
      %v9352 = vsel %vm1432, %v8695, %v8955
      %v9353 = vsel %vm1432, %v8696, %v8957
      %v9354 = vsel %vm1432, %v8697, %v8959
      %v9355 = vsel %vm1432, %v8698, %v8961
      %v9356 = vsel %vm1432, %v8699, %v8963
      %v9357 = vsel %vm1432, %v8700, %v8965
      %v9358 = vsel %vm1432, %v8701, %v8967
      %v9359 = vsel %vm1432, %v8702, %v8969
      %v9360 = vsel %vm1432, %v8703, %v8971
      %v9361 = vsel %vm1432, %v8704, %v8973
      %v9362 = vsel %vm1432, %v8705, %v8975
      %v9363 = vsel %vm1432, %v8706, %v8977
      %v9364 = vsel %vm1432, %v8707, %v8979
      %v9365 = vsel %vm1432, %v8708, %v8981
      %v9366 = vsel %vm4321, %v9311, %v9147
      %v9367 = vsel %vm4321, %v9312, %v9149
      %v9368 = vsel %vm4321, %v9313, %v9151
      %v9369 = vsel %vm4321, %v9314, %v9153
      %v9370 = vsel %vm4321, %v9315, %v9155
      %v9371 = vsel %vm4321, %v9316, %v9157
      %v9372 = vsel %vm4321, %v9317, %v9159
      %v9373 = vsel %vm4321, %v9318, %v9161
      %v9374 = vsel %vm4321, %v9319, %v9163
      %v9375 = vsel %vm4321, %v9320, %v9165
      %v9376 = vsel %vm4321, %v9321, %v9167
      %v9377 = vsel %vm4321, %v9322, %v9169
      %v9378 = vsel %vm4321, %v9323, %v9171
      %v9379 = vsel %vm4321, %v9324, %v9173
      %v9380 = vsel %vm4321, %v9325, %v9175
      %v9381 = vsel %vm4321, %v9326, %v9177
      %v9382 = vsel %vm4321, %v9327, %v9179
      %v9383 = vsel %vm4321, %v9328, %v9181
      %v9384 = vsel %vm4321, %v9329, %v9183
      %v9385 = vsel %vm4321, %v9330, %v9185
      %v9386 = vsel %vm4321, %v9331, %v9187
      %v9387 = vsel %vm4321, %v9332, %v9189
      %v9388 = vsel %vm4321, %v9333, %v9191
      %v9389 = vsel %vm4321, %v9334, %v9193
      %v9390 = vsel %vm4321, %v9335, %v9195
      %v9391 = vsel %vm4321, %v9336, %v9197
      %v9392 = vsel %vm4321, %v9337, %v9199
      %v9393 = vsel %vm4321, %v9338, %v9201
      %v9394 = vsel %vm4321, %v9339, %v9203
      %v9395 = vsel %vm4321, %v9340, %v9205
      %v9396 = vsel %vm4321, %v9341, %v9207
      %v9397 = vsel %vm4321, %v9342, %v9209
      %v9398 = vsel %vm4321, %v9343, %v9211
      %v9399 = vsel %vm4321, %v9344, %v9213
      %v9400 = vsel %vm4321, %v9345, %v9215
      %v9401 = vsel %vm4321, %v9346, %v9217
      %v9402 = vsel %vm4321, %v9347, %v9219
      %v9403 = vsel %vm4321, %v9348, %v9221
      %v9404 = vsel %vm4321, %v9349, %v9223
      %v9405 = vsel %vm4321, %v9350, %v9225
      %v9406 = vsel %vm4321, %v9351, %v9227
      %v9407 = vsel %vm4321, %v9352, %v9229
      %v9408 = vsel %vm4321, %v9353, %v9231
      %v9409 = vsel %vm4321, %v9354, %v9233
      %v9410 = vsel %vm4321, %v9355, %v9235
      %v9411 = vsel %vm4321, %v9356, %v9237
      %v9412 = vsel %vm4321, %v9357, %v9239
      %v9413 = vsel %vm4321, %v9358, %v9241
      %v9414 = vsel %vm4321, %v9359, %v9243
      %v9415 = vsel %vm4321, %v9360, %v9245
      %v9416 = vsel %vm4321, %v9361, %v9247
      %v9417 = vsel %vm4321, %v9362, %v9249
      %v9418 = vsel %vm4321, %v9363, %v9251
      %v9419 = vsel %vm4321, %v9364, %v9253
      %v9420 = vsel %vm4321, %v9365, %v9255
      %9476 = vrot.lane.b32.xlu0 %v9366, 12
      %v9477 = vpop.permute.xlu0 %9476
      %9478 = vrot.lane.b32.xlu0 %v9367, 12
      %v9479 = vpop.permute.xlu0 %9478
      %9480 = vrot.lane.b32.xlu0 %v9368, 12
      %v9481 = vpop.permute.xlu0 %9480
      %9482 = vrot.lane.b32.xlu0 %v9369, 12
      %v9483 = vpop.permute.xlu0 %9482
      %9484 = vrot.lane.b32.xlu0 %v9370, 12
      %v9485 = vpop.permute.xlu0 %9484
      %9486 = vrot.lane.b32.xlu0 %v9371, 12
      %v9487 = vpop.permute.xlu0 %9486
      %9488 = vrot.lane.b32.xlu0 %v9372, 12
      %v9489 = vpop.permute.xlu0 %9488
      %9490 = vrot.lane.b32.xlu0 %v9373, 12
      %v9491 = vpop.permute.xlu0 %9490
      %9492 = vrot.lane.b32.xlu0 %v9374, 12
      %v9493 = vpop.permute.xlu0 %9492
      %9494 = vrot.lane.b32.xlu0 %v9375, 12
      %v9495 = vpop.permute.xlu0 %9494
      %9496 = vrot.lane.b32.xlu0 %v9376, 12
      %v9497 = vpop.permute.xlu0 %9496
      %9498 = vrot.lane.b32.xlu0 %v9377, 12
      %v9499 = vpop.permute.xlu0 %9498
      %9500 = vrot.lane.b32.xlu0 %v9378, 12
      %v9501 = vpop.permute.xlu0 %9500
      %9502 = vrot.lane.b32.xlu0 %v9379, 12
      %v9503 = vpop.permute.xlu0 %9502
      %9504 = vrot.lane.b32.xlu0 %v9380, 12
      %v9505 = vpop.permute.xlu0 %9504
      %9506 = vrot.lane.b32.xlu0 %v9381, 12
      %v9507 = vpop.permute.xlu0 %9506
      %9508 = vrot.lane.b32.xlu0 %v9382, 12
      %v9509 = vpop.permute.xlu0 %9508
      %9510 = vrot.lane.b32.xlu0 %v9383, 12
      %v9511 = vpop.permute.xlu0 %9510
      %9512 = vrot.lane.b32.xlu0 %v9384, 12
      %v9513 = vpop.permute.xlu0 %9512
      %9514 = vrot.lane.b32.xlu0 %v9385, 12
      %v9515 = vpop.permute.xlu0 %9514
      %9516 = vrot.lane.b32.xlu0 %v9386, 12
      %v9517 = vpop.permute.xlu0 %9516
      %9518 = vrot.lane.b32.xlu0 %v9387, 12
      %v9519 = vpop.permute.xlu0 %9518
      %9520 = vrot.lane.b32.xlu0 %v9388, 12
      %v9521 = vpop.permute.xlu0 %9520
      %9522 = vrot.lane.b32.xlu0 %v9389, 12
      %v9523 = vpop.permute.xlu0 %9522
      %9524 = vrot.lane.b32.xlu0 %v9390, 12
      %v9525 = vpop.permute.xlu0 %9524
      %9526 = vrot.lane.b32.xlu0 %v9391, 12
      %v9527 = vpop.permute.xlu0 %9526
      %9528 = vrot.lane.b32.xlu0 %v9392, 12
      %v9529 = vpop.permute.xlu0 %9528
      %9530 = vrot.lane.b32.xlu0 %v9393, 12
      %v9531 = vpop.permute.xlu0 %9530
      %9532 = vrot.lane.b32.xlu0 %v9394, 12
      %v9533 = vpop.permute.xlu0 %9532
      %9534 = vrot.lane.b32.xlu0 %v9395, 12
      %v9535 = vpop.permute.xlu0 %9534
      %9536 = vrot.lane.b32.xlu0 %v9396, 12
      %v9537 = vpop.permute.xlu0 %9536
      %9538 = vrot.lane.b32.xlu0 %v9397, 12
      %v9539 = vpop.permute.xlu0 %9538
      %9540 = vrot.lane.b32.xlu0 %v9398, 12
      %v9541 = vpop.permute.xlu0 %9540
      %9542 = vrot.lane.b32.xlu0 %v9399, 12
      %v9543 = vpop.permute.xlu0 %9542
      %9544 = vrot.lane.b32.xlu0 %v9400, 12
      %v9545 = vpop.permute.xlu0 %9544
      %9546 = vrot.lane.b32.xlu0 %v9401, 12
      %v9547 = vpop.permute.xlu0 %9546
      %9548 = vrot.lane.b32.xlu0 %v9402, 12
      %v9549 = vpop.permute.xlu0 %9548
      %9550 = vrot.lane.b32.xlu0 %v9403, 12
      %v9551 = vpop.permute.xlu0 %9550
      %9552 = vrot.lane.b32.xlu0 %v9404, 12
      %v9553 = vpop.permute.xlu0 %9552
      %9554 = vrot.lane.b32.xlu0 %v9405, 12
      %v9555 = vpop.permute.xlu0 %9554
      %9556 = vrot.lane.b32.xlu0 %v9406, 12
      %v9557 = vpop.permute.xlu0 %9556
      %9558 = vrot.lane.b32.xlu0 %v9407, 12
      %v9559 = vpop.permute.xlu0 %9558
      %9560 = vrot.lane.b32.xlu0 %v9408, 12
      %v9561 = vpop.permute.xlu0 %9560
      %9562 = vrot.lane.b32.xlu0 %v9409, 12
      %v9563 = vpop.permute.xlu0 %9562
      %9564 = vrot.lane.b32.xlu0 %v9410, 12
      %v9565 = vpop.permute.xlu0 %9564
      %9566 = vrot.lane.b32.xlu0 %v9411, 12
      %v9567 = vpop.permute.xlu0 %9566
      %9568 = vrot.lane.b32.xlu0 %v9412, 12
      %v9569 = vpop.permute.xlu0 %9568
      %9570 = vrot.lane.b32.xlu0 %v9413, 12
      %v9571 = vpop.permute.xlu0 %9570
      %9572 = vrot.lane.b32.xlu0 %v9414, 12
      %v9573 = vpop.permute.xlu0 %9572
      %9574 = vrot.lane.b32.xlu0 %v9415, 12
      %v9575 = vpop.permute.xlu0 %9574
      %9576 = vrot.lane.b32.xlu0 %v9416, 12
      %v9577 = vpop.permute.xlu0 %9576
      %9578 = vrot.lane.b32.xlu0 %v9417, 12
      %v9579 = vpop.permute.xlu0 %9578
      %9580 = vrot.lane.b32.xlu0 %v9418, 12
      %v9581 = vpop.permute.xlu0 %9580
      %9582 = vrot.lane.b32.xlu0 %v9419, 12
      %v9583 = vpop.permute.xlu0 %9582
      %9584 = vrot.lane.b32.xlu0 %v9420, 12
      %v9585 = vpop.permute.xlu0 %9584
      %9641 = vrot.lane.b32.xlu0 %v9369, 24
      %v9642 = vpop.permute.xlu0 %9641
      %9643 = vrot.lane.b32.xlu0 %v9370, 24
      %v9644 = vpop.permute.xlu0 %9643
      %9645 = vrot.lane.b32.xlu0 %v9371, 24
      %v9646 = vpop.permute.xlu0 %9645
      %9647 = vrot.lane.b32.xlu0 %v9372, 24
      %v9648 = vpop.permute.xlu0 %9647
      %9649 = vrot.lane.b32.xlu0 %v9373, 24
      %v9650 = vpop.permute.xlu0 %9649
      %9651 = vrot.lane.b32.xlu0 %v9374, 24
      %v9652 = vpop.permute.xlu0 %9651
      %9653 = vrot.lane.b32.xlu0 %v9375, 24
      %v9654 = vpop.permute.xlu0 %9653
      %9655 = vrot.lane.b32.xlu0 %v9376, 24
      %v9656 = vpop.permute.xlu0 %9655
      %9657 = vrot.lane.b32.xlu0 %v9377, 24
      %v9658 = vpop.permute.xlu0 %9657
      %9659 = vrot.lane.b32.xlu0 %v9378, 24
      %v9660 = vpop.permute.xlu0 %9659
      %9661 = vrot.lane.b32.xlu0 %v9379, 24
      %v9662 = vpop.permute.xlu0 %9661
      %9663 = vrot.lane.b32.xlu0 %v9380, 24
      %v9664 = vpop.permute.xlu0 %9663
      %9665 = vrot.lane.b32.xlu0 %v9381, 24
      %v9666 = vpop.permute.xlu0 %9665
      %9667 = vrot.lane.b32.xlu0 %v9382, 24
      %v9668 = vpop.permute.xlu0 %9667
      %9669 = vrot.lane.b32.xlu0 %v9383, 24
      %v9670 = vpop.permute.xlu0 %9669
      %9671 = vrot.lane.b32.xlu0 %v9384, 24
      %v9672 = vpop.permute.xlu0 %9671
      %9673 = vrot.lane.b32.xlu0 %v9385, 24
      %v9674 = vpop.permute.xlu0 %9673
      %9675 = vrot.lane.b32.xlu0 %v9386, 24
      %v9676 = vpop.permute.xlu0 %9675
      %9677 = vrot.lane.b32.xlu0 %v9387, 24
      %v9678 = vpop.permute.xlu0 %9677
      %9679 = vrot.lane.b32.xlu0 %v9388, 24
      %v9680 = vpop.permute.xlu0 %9679
      %9681 = vrot.lane.b32.xlu0 %v9389, 24
      %v9682 = vpop.permute.xlu0 %9681
      %9683 = vrot.lane.b32.xlu0 %v9390, 24
      %v9684 = vpop.permute.xlu0 %9683
      %9685 = vrot.lane.b32.xlu0 %v9391, 24
      %v9686 = vpop.permute.xlu0 %9685
      %9687 = vrot.lane.b32.xlu0 %v9392, 24
      %v9688 = vpop.permute.xlu0 %9687
      %9689 = vrot.lane.b32.xlu0 %v9393, 24
      %v9690 = vpop.permute.xlu0 %9689
      %9691 = vrot.lane.b32.xlu0 %v9394, 24
      %v9692 = vpop.permute.xlu0 %9691
      %9693 = vrot.lane.b32.xlu0 %v9395, 24
      %v9694 = vpop.permute.xlu0 %9693
      %9695 = vrot.lane.b32.xlu0 %v9396, 24
      %v9696 = vpop.permute.xlu0 %9695
      %9697 = vrot.lane.b32.xlu0 %v9397, 24
      %v9698 = vpop.permute.xlu0 %9697
      %9699 = vrot.lane.b32.xlu0 %v9398, 24
      %v9700 = vpop.permute.xlu0 %9699
      %9701 = vrot.lane.b32.xlu0 %v9399, 24
      %v9702 = vpop.permute.xlu0 %9701
      %9703 = vrot.lane.b32.xlu0 %v9400, 24
      %v9704 = vpop.permute.xlu0 %9703
      %9705 = vrot.lane.b32.xlu0 %v9401, 24
      %v9706 = vpop.permute.xlu0 %9705
      %9707 = vrot.lane.b32.xlu0 %v9402, 24
      %v9708 = vpop.permute.xlu0 %9707
      %9709 = vrot.lane.b32.xlu0 %v9403, 24
      %v9710 = vpop.permute.xlu0 %9709
      %9711 = vrot.lane.b32.xlu0 %v9404, 24
      %v9712 = vpop.permute.xlu0 %9711
      %9713 = vrot.lane.b32.xlu0 %v9405, 24
      %v9714 = vpop.permute.xlu0 %9713
      %9715 = vrot.lane.b32.xlu0 %v9406, 24
      %v9716 = vpop.permute.xlu0 %9715
      %9717 = vrot.lane.b32.xlu0 %v9407, 24
      %v9718 = vpop.permute.xlu0 %9717
      %9719 = vrot.lane.b32.xlu0 %v9408, 24
      %v9720 = vpop.permute.xlu0 %9719
      %9721 = vrot.lane.b32.xlu0 %v9409, 24
      %v9722 = vpop.permute.xlu0 %9721
      %9723 = vrot.lane.b32.xlu0 %v9410, 24
      %v9724 = vpop.permute.xlu0 %9723
      %9725 = vrot.lane.b32.xlu0 %v9411, 24
      %v9726 = vpop.permute.xlu0 %9725
      %9727 = vrot.lane.b32.xlu0 %v9412, 24
      %v9728 = vpop.permute.xlu0 %9727
      %9729 = vrot.lane.b32.xlu0 %v9413, 24
      %v9730 = vpop.permute.xlu0 %9729
      %9731 = vrot.lane.b32.xlu0 %v9414, 24
      %v9732 = vpop.permute.xlu0 %9731
      %9733 = vrot.lane.b32.xlu0 %v9415, 24
      %v9734 = vpop.permute.xlu0 %9733
      %9735 = vrot.lane.b32.xlu0 %v9416, 24
      %v9736 = vpop.permute.xlu0 %9735
      %9737 = vrot.lane.b32.xlu0 %v9417, 24
      %v9738 = vpop.permute.xlu0 %9737
      %9739 = vrot.lane.b32.xlu0 %v9418, 24
      %v9740 = vpop.permute.xlu0 %9739
      %9741 = vrot.lane.b32.xlu0 %v9419, 24
      %v9742 = vpop.permute.xlu0 %9741
      %9743 = vrot.lane.b32.xlu0 %v9420, 24
      %v9744 = vpop.permute.xlu0 %9743
      %v9797 = vsel %vm1938, %v4322, %v9477
      %v9798 = vsel %vm1938, %v4323, %v9479
      %v9799 = vsel %vm1938, %v4323, %v9481
      %v9800 = vsel %vm1938, %v9366, %v9483
      %v9801 = vsel %vm1938, %v9367, %v9485
      %v9802 = vsel %vm1938, %v9368, %v9487
      %v9803 = vsel %vm1938, %v9369, %v9489
      %v9804 = vsel %vm1938, %v9370, %v9491
      %v9805 = vsel %vm1938, %v9371, %v9493
      %v9806 = vsel %vm1938, %v9372, %v9495
      %v9807 = vsel %vm1938, %v9373, %v9497
      %v9808 = vsel %vm1938, %v9374, %v9499
      %v9809 = vsel %vm1938, %v9375, %v9501
      %v9810 = vsel %vm1938, %v9376, %v9503
      %v9811 = vsel %vm1938, %v9377, %v9505
      %v9812 = vsel %vm1938, %v9378, %v9507
      %v9813 = vsel %vm1938, %v9379, %v9509
      %v9814 = vsel %vm1938, %v9380, %v9511
      %v9815 = vsel %vm1938, %v9381, %v9513
      %v9816 = vsel %vm1938, %v9382, %v9515
      %v9817 = vsel %vm1938, %v9383, %v9517
      %v9818 = vsel %vm1938, %v9384, %v9519
      %v9819 = vsel %vm1938, %v9385, %v9521
      %v9820 = vsel %vm1938, %v9386, %v9523
      %v9821 = vsel %vm1938, %v9387, %v9525
      %v9822 = vsel %vm1938, %v9388, %v9527
      %v9823 = vsel %vm1938, %v9389, %v9529
      %v9824 = vsel %vm1938, %v9390, %v9531
      %v9825 = vsel %vm1938, %v9391, %v9533
      %v9826 = vsel %vm1938, %v9392, %v9535
      %v9827 = vsel %vm1938, %v9393, %v9537
      %v9828 = vsel %vm1938, %v9394, %v9539
      %v9829 = vsel %vm1938, %v9395, %v9541
      %v9830 = vsel %vm1938, %v9396, %v9543
      %v9831 = vsel %vm1938, %v9397, %v9545
      %v9832 = vsel %vm1938, %v9398, %v9547
      %v9833 = vsel %vm1938, %v9399, %v9549
      %v9834 = vsel %vm1938, %v9400, %v9551
      %v9835 = vsel %vm1938, %v9401, %v9553
      %v9836 = vsel %vm1938, %v9402, %v9555
      %v9837 = vsel %vm1938, %v9403, %v9557
      %v9838 = vsel %vm1938, %v9404, %v9559
      %v9839 = vsel %vm1938, %v9405, %v9561
      %v9840 = vsel %vm1938, %v9406, %v9563
      %v9841 = vsel %vm1938, %v9407, %v9565
      %v9842 = vsel %vm1938, %v9408, %v9567
      %v9843 = vsel %vm1938, %v9409, %v9569
      %v9844 = vsel %vm1938, %v9410, %v9571
      %v9845 = vsel %vm1938, %v9411, %v9573
      %v9846 = vsel %vm1938, %v9412, %v9575
      %v9847 = vsel %vm1938, %v9413, %v9577
      %v9848 = vsel %vm1938, %v9414, %v9579
      %v9849 = vsel %vm1938, %v9415, %v9581
      %v9850 = vsel %vm1938, %v9416, %v9583
      %v9851 = vsel %vm1938, %v9417, %v9585
      %v9852 = vsel %vm4819, %v9797, %v9642
      %v9853 = vsel %vm4819, %v9798, %v9644
      %v9854 = vsel %vm4819, %v9799, %v9646
      %v9855 = vsel %vm4819, %v9800, %v9648
      %v9856 = vsel %vm4819, %v9801, %v9650
      %v9857 = vsel %vm4819, %v9802, %v9652
      %v9858 = vsel %vm4819, %v9803, %v9654
      %v9859 = vsel %vm4819, %v9804, %v9656
      %v9860 = vsel %vm4819, %v9805, %v9658
      %v9861 = vsel %vm4819, %v9806, %v9660
      %v9862 = vsel %vm4819, %v9807, %v9662
      %v9863 = vsel %vm4819, %v9808, %v9664
      %v9864 = vsel %vm4819, %v9809, %v9666
      %v9865 = vsel %vm4819, %v9810, %v9668
      %v9866 = vsel %vm4819, %v9811, %v9670
      %v9867 = vsel %vm4819, %v9812, %v9672
      %v9868 = vsel %vm4819, %v9813, %v9674
      %v9869 = vsel %vm4819, %v9814, %v9676
      %v9870 = vsel %vm4819, %v9815, %v9678
      %v9871 = vsel %vm4819, %v9816, %v9680
      %v9872 = vsel %vm4819, %v9817, %v9682
      %v9873 = vsel %vm4819, %v9818, %v9684
      %v9874 = vsel %vm4819, %v9819, %v9686
      %v9875 = vsel %vm4819, %v9820, %v9688
      %v9876 = vsel %vm4819, %v9821, %v9690
      %v9877 = vsel %vm4819, %v9822, %v9692
      %v9878 = vsel %vm4819, %v9823, %v9694
      %v9879 = vsel %vm4819, %v9824, %v9696
      %v9880 = vsel %vm4819, %v9825, %v9698
      %v9881 = vsel %vm4819, %v9826, %v9700
      %v9882 = vsel %vm4819, %v9827, %v9702
      %v9883 = vsel %vm4819, %v9828, %v9704
      %v9884 = vsel %vm4819, %v9829, %v9706
      %v9885 = vsel %vm4819, %v9830, %v9708
      %v9886 = vsel %vm4819, %v9831, %v9710
      %v9887 = vsel %vm4819, %v9832, %v9712
      %v9888 = vsel %vm4819, %v9833, %v9714
      %v9889 = vsel %vm4819, %v9834, %v9716
      %v9890 = vsel %vm4819, %v9835, %v9718
      %v9891 = vsel %vm4819, %v9836, %v9720
      %v9892 = vsel %vm4819, %v9837, %v9722
      %v9893 = vsel %vm4819, %v9838, %v9724
      %v9894 = vsel %vm4819, %v9839, %v9726
      %v9895 = vsel %vm4819, %v9840, %v9728
      %v9896 = vsel %vm4819, %v9841, %v9730
      %v9897 = vsel %vm4819, %v9842, %v9732
      %v9898 = vsel %vm4819, %v9843, %v9734
      %v9899 = vsel %vm4819, %v9844, %v9736
      %v9900 = vsel %vm4819, %v9845, %v9738
      %v9901 = vsel %vm4819, %v9846, %v9740
      %v9902 = vsel %vm4819, %v9847, %v9742
      %v9903 = vsel %vm4819, %v9848, %v9744
      %v9904 = vsel %vm4819, %v9849, %v4707
      %v9905 = vsel %vm4819, %v9850, %v4707
      %v9906 = vsel %vm4819, %v9851, %v4709
      %v9907 = vpack.c.bf16 %v9853, %v9852
      %v9908 = vpack.c.bf16 %v9855, %v9854
      %v9909 = vpack.c.bf16 %v9857, %v9856
      %v9910 = vpack.c.bf16 %v9859, %v9858
      %v9911 = vpack.c.bf16 %v9861, %v9860
      %v9912 = vpack.c.bf16 %v9863, %v9862
      %v9913 = vpack.c.bf16 %v9865, %v9864
      %v9914 = vpack.c.bf16 %v9867, %v9866
      %v9915 = vpack.c.bf16 %v9869, %v9868
      %v9916 = vpack.c.bf16 %v9871, %v9870
      %v9917 = vpack.c.bf16 %v9873, %v9872
      %v9918 = vpack.c.bf16 %v9875, %v9874
      %v9919 = vpack.c.bf16 %v9877, %v9876
      %v9920 = vpack.c.bf16 %v9879, %v9878
      %v9921 = vpack.c.bf16 %v9881, %v9880
      %v9922 = vpack.c.bf16 %v9883, %v9882
      %v9923 = vpack.c.bf16 %v9885, %v9884
      %v9924 = vpack.c.bf16 %v9887, %v9886
      %v9925 = vpack.c.bf16 %v9889, %v9888
      %v9926 = vpack.c.bf16 %v9891, %v9890
      %v9927 = vpack.c.bf16 %v9893, %v9892
      %v9928 = vpack.c.bf16 %v9895, %v9894
      %v9929 = vpack.c.bf16 %v9897, %v9896
      %v9930 = vpack.c.bf16 %v9899, %v9898
      %v9931 = vpack.c.bf16 %v9901, %v9900
      %v9932 = vpack.c.bf16 %v9903, %v9902
      %v9933 = vpack.c.bf16 %v9905, %v9904
      %v9934 = vpack.c.bf16 %v9906, %v9906
      %v9935 = vld [vmem:[%s12] sm:$0xf]
      %v9936 = vld [vmem:[%s12 + $0x4] sm:$0xf]
      %v9937 = vld [vmem:[%s12 + $0x8] sm:$0xf]
      %v9938 = vld [vmem:[%s12 + $0xc] sm:$0xf]
      %v9939 = vld [vmem:[%s12 + $0x10] sm:$0x3]
      %v9940 = vld [vmem:[%s13] sm:$0x1]
      %v9942 = vlaneseq
      %v9943 = vshrl.u32 %v9942, 7
      %v9944 = vsub.s32 0, %v9943
      %v9945 = vrot.slane %v9940, %v9944
      %v9948 = vshrl.u32 %v9907, 16
      %v9950 = vrot.slane %v9948, 3
      %v9951 = vshll.u32 %v9907, 16
      %v9953 = vrot.slane %v9951, 4
      %v9954 = vor.u32 %v9950, %v9953
      %v9956 = vshrl.u32 %v9908, 16
      %v9958 = vrot.slane %v9956, 3
      %v9959 = vshll.u32 %v9908, 16
      %v9961 = vrot.slane %v9959, 4
      %v9962 = vor.u32 %v9958, %v9961
      %v9963 = vsel %vm2032, %v9954, %v9962
      %v9965 = vshrl.u32 %v9909, 16
      %v9967 = vrot.slane %v9965, 3
      %v9968 = vshll.u32 %v9909, 16
      %v9970 = vrot.slane %v9968, 4
      %v9971 = vor.u32 %v9967, %v9970
      %v9972 = vsel %vm2032, %v9962, %v9971
      %v9974 = vshrl.u32 %v9910, 16
      %v9976 = vrot.slane %v9974, 3
      %v9977 = vshll.u32 %v9910, 16
      %v9979 = vrot.slane %v9977, 4
      %v9980 = vor.u32 %v9976, %v9979
      %v9981 = vsel %vm2032, %v9971, %v9980
      %v9983 = vshrl.u32 %v9911, 16
      %v9985 = vrot.slane %v9983, 3
      %v9986 = vshll.u32 %v9911, 16
      %v9988 = vrot.slane %v9986, 4
      %v9989 = vor.u32 %v9985, %v9988
      %v9990 = vsel %vm2032, %v9980, %v9989
      %v9992 = vshrl.u32 %v9912, 16
      %v9994 = vrot.slane %v9992, 3
      %v9995 = vshll.u32 %v9912, 16
      %v9997 = vrot.slane %v9995, 4
      %v9998 = vor.u32 %v9994, %v9997
      %v9999 = vsel %vm2032, %v9989, %v9998
      %v10001 = vshrl.u32 %v9913, 16
      %v10003 = vrot.slane %v10001, 3
      %v10004 = vshll.u32 %v9913, 16
      %v10006 = vrot.slane %v10004, 4
      %v10007 = vor.u32 %v10003, %v10006
      %v10008 = vsel %vm2032, %v9998, %v10007
      %v10010 = vshrl.u32 %v9914, 16
      %v10012 = vrot.slane %v10010, 3
      %v10013 = vshll.u32 %v9914, 16
      %v10015 = vrot.slane %v10013, 4
      %v10016 = vor.u32 %v10012, %v10015
      %v10017 = vsel %vm2032, %v10007, %v10016
      %v10019 = vshrl.u32 %v9915, 16
      %v10021 = vrot.slane %v10019, 3
      %v10022 = vshll.u32 %v9915, 16
      %v10024 = vrot.slane %v10022, 4
      %v10025 = vor.u32 %v10021, %v10024
      %v10026 = vsel %vm2032, %v10016, %v10025
      %v10028 = vshrl.u32 %v9916, 16
      %v10030 = vrot.slane %v10028, 3
      %v10031 = vshll.u32 %v9916, 16
      %v10033 = vrot.slane %v10031, 4
      %v10034 = vor.u32 %v10030, %v10033
      %v10035 = vsel %vm2032, %v10025, %v10034
      %v10037 = vshrl.u32 %v9917, 16
      %v10039 = vrot.slane %v10037, 3
      %v10040 = vshll.u32 %v9917, 16
      %v10042 = vrot.slane %v10040, 4
      %v10043 = vor.u32 %v10039, %v10042
      %v10044 = vsel %vm2032, %v10034, %v10043
      %v10046 = vshrl.u32 %v9918, 16
      %v10048 = vrot.slane %v10046, 3
      %v10049 = vshll.u32 %v9918, 16
      %v10051 = vrot.slane %v10049, 4
      %v10052 = vor.u32 %v10048, %v10051
      %v10053 = vsel %vm2032, %v10043, %v10052
      %v10055 = vshrl.u32 %v9919, 16
      %v10057 = vrot.slane %v10055, 3
      %v10058 = vshll.u32 %v9919, 16
      %v10060 = vrot.slane %v10058, 4
      %v10061 = vor.u32 %v10057, %v10060
      %v10062 = vsel %vm2032, %v10052, %v10061
      %v10064 = vshrl.u32 %v9920, 16
      %v10066 = vrot.slane %v10064, 3
      %v10067 = vshll.u32 %v9920, 16
      %v10069 = vrot.slane %v10067, 4
      %v10070 = vor.u32 %v10066, %v10069
      %v10071 = vsel %vm2032, %v10061, %v10070
      %v10073 = vshrl.u32 %v9921, 16
      %v10075 = vrot.slane %v10073, 3
      %v10076 = vshll.u32 %v9921, 16
      %v10078 = vrot.slane %v10076, 4
      %v10079 = vor.u32 %v10075, %v10078
      %v10080 = vsel %vm2032, %v10070, %v10079
      %v10082 = vshrl.u32 %v9922, 16
      %v10084 = vrot.slane %v10082, 3
      %v10085 = vshll.u32 %v9922, 16
      %v10087 = vrot.slane %v10085, 4
      %v10088 = vor.u32 %v10084, %v10087
      %v10089 = vsel %vm2032, %v10079, %v10088
      %v10091 = vshrl.u32 %v9923, 16
      %v10093 = vrot.slane %v10091, 3
      %v10094 = vshll.u32 %v9923, 16
      %v10096 = vrot.slane %v10094, 4
      %v10097 = vor.u32 %v10093, %v10096
      %v10098 = vsel %vm2032, %v10088, %v10097
      %v10100 = vshrl.u32 %v9924, 16
      %v10102 = vrot.slane %v10100, 3
      %v10103 = vshll.u32 %v9924, 16
      %v10105 = vrot.slane %v10103, 4
      %v10106 = vor.u32 %v10102, %v10105
      %v10107 = vsel %vm2032, %v10097, %v10106
      %v10109 = vshrl.u32 %v9925, 16
      %v10111 = vrot.slane %v10109, 3
      %v10112 = vshll.u32 %v9925, 16
      %v10114 = vrot.slane %v10112, 4
      %v10115 = vor.u32 %v10111, %v10114
      %v10116 = vsel %vm2032, %v10106, %v10115
      %v10118 = vshrl.u32 %v9926, 16
      %v10120 = vrot.slane %v10118, 3
      %v10121 = vshll.u32 %v9926, 16
      %v10123 = vrot.slane %v10121, 4
      %v10124 = vor.u32 %v10120, %v10123
      %v10125 = vsel %vm2032, %v10115, %v10124
      %v10127 = vshrl.u32 %v9927, 16
      %v10129 = vrot.slane %v10127, 3
      %v10130 = vshll.u32 %v9927, 16
      %v10132 = vrot.slane %v10130, 4
      %v10133 = vor.u32 %v10129, %v10132
      %v10134 = vsel %vm2032, %v10124, %v10133
      %v10136 = vshrl.u32 %v9928, 16
      %v10138 = vrot.slane %v10136, 3
      %v10139 = vshll.u32 %v9928, 16
      %v10141 = vrot.slane %v10139, 4
      %v10142 = vor.u32 %v10138, %v10141
      %v10143 = vsel %vm2032, %v10133, %v10142
      %v10145 = vshrl.u32 %v9929, 16
      %v10147 = vrot.slane %v10145, 3
      %v10148 = vshll.u32 %v9929, 16
      %v10150 = vrot.slane %v10148, 4
      %v10151 = vor.u32 %v10147, %v10150
      %v10152 = vsel %vm2032, %v10142, %v10151
      %v10154 = vshrl.u32 %v9930, 16
      %v10156 = vrot.slane %v10154, 3
      %v10157 = vshll.u32 %v9930, 16
      %v10159 = vrot.slane %v10157, 4
      %v10160 = vor.u32 %v10156, %v10159
      %v10161 = vsel %vm2032, %v10151, %v10160
      %v10163 = vshrl.u32 %v9931, 16
      %v10165 = vrot.slane %v10163, 3
      %v10166 = vshll.u32 %v9931, 16
      %v10168 = vrot.slane %v10166, 4
      %v10169 = vor.u32 %v10165, %v10168
      %v10170 = vsel %vm2032, %v10160, %v10169
      %v10172 = vshrl.u32 %v9932, 16
      %v10174 = vrot.slane %v10172, 3
      %v10175 = vshll.u32 %v9932, 16
      %v10177 = vrot.slane %v10175, 4
      %v10178 = vor.u32 %v10174, %v10177
      %v10179 = vsel %vm2032, %v10169, %v10178
      %v10181 = vshrl.u32 %v9933, 16
      %v10183 = vrot.slane %v10181, 3
      %v10184 = vshll.u32 %v9933, 16
      %v10186 = vrot.slane %v10184, 4
      %v10187 = vor.u32 %v10183, %v10186
      %v10188 = vsel %vm2032, %v10178, %v10187
      %v10190 = vshrl.u32 %v9934, 16
      %v10192 = vrot.slane %v10190, 3
      %v10193 = vshll.u32 %v9934, 16
      %v10195 = vrot.slane %v10193, 4
      %v10196 = vor.u32 %v10192, %v10195
      %v10197 = vsel %vm2032, %v10187, %v10196
      %v10203 = vunpack.c.l.b16 %v9935
      %v10204 = vunpack.c.l.b16 %v9936
      %v10205 = vunpack.c.l.b16 %v9937
      %v10206 = vunpack.c.l.b16 %v9938
      %v10207 = vunpack.c.l.b16 %v9939
      %v10208 = vpack.c.b16 %v10204, %v10203
      %v10209 = vpack.c.b16 %v10206, %v10205
      %v10210 = vpack.c.b16 %v10207, %v10207
      %v10214 = vsel %vm5181, %v9963, 0
      %v10217 = vsel %vm5181, %v9972, 0
      %v10220 = vsel %vm5181, %v9981, 0
      %v10223 = vsel %vm5181, %v9990, 0
      %v10226 = vsel %vm5181, %v9999, 0
      %v10229 = vsel %vm5181, %v10008, 0
      %v10232 = vsel %vm5181, %v10017, 0
      %v10235 = vsel %vm5181, %v10026, 0
      %v10238 = vsel %vm5181, %v10035, 0
      %v10241 = vsel %vm5181, %v10044, 0
      %v10244 = vsel %vm5181, %v10053, 0
      %v10247 = vsel %vm5181, %v10062, 0
      %v10250 = vsel %vm5181, %v10071, 0
      %v10253 = vsel %vm5181, %v10080, 0
      %v10256 = vsel %vm5181, %v10089, 0
      %v10259 = vsel %vm5181, %v10098, 0
      %v10262 = vsel %vm5181, %v10107, 0
      %v10265 = vsel %vm5181, %v10116, 0
      %v10268 = vsel %vm5181, %v10125, 0
      %v10271 = vsel %vm5181, %v10134, 0
      %v10274 = vsel %vm5181, %v10143, 0
      %v10277 = vsel %vm5181, %v10152, 0
      %v10280 = vsel %vm5181, %v10161, 0
      %v10283 = vsel %vm5181, %v10170, 0
      %v10286 = vsel %vm5181, %v10179, 0
      %v10289 = vsel %vm5181, %v10188, 0
      %v10292 = vsel %vm5181, %v10197, 0
      %v10295 = vsel %vm2906, %v10210, 0
      %10297 = vmatprep.subr.bf16.mxu0 0
      %10298 = vmatpush1.bf16.msra.mxu0 %v10208
      %10299 = vmatprep.subr.bf16.mxu0 0
      %10300 = vmatpush1.bf16.msra.mxu0 %v10209
      %10301 = vmatprep.subr.bf16.mxu0 0
      %10302 = vmatpush1.bf16.msra.mxu0 %v10295
      %10303 = vmatprep.subr.bf16.mxu0 0
      %10304 = vmatpush1.bf16.msra.mxu0 0
      %10305 = vmatprep.subr.bf16.mxu0 0
      %10306 = vmatpush1.bf16.msra.mxu0 0
      %10307 = vmatprep.subr.bf16.mxu0 0
      %10308 = vmatpush1.bf16.msra.mxu0 0
      %10309 = vmatprep.subr.bf16.mxu0 0
      %10310 = vmatpush1.bf16.msra.mxu0 0
      %10311 = vmatprep.subr.bf16.mxu0 0
      %10312 = vmatpush1.bf16.msra.mxu0 0
      %10313 = vmatprep.subr.bf16.mxu0 0
      %10314 = vmatpush1.bf16.msra.mxu0 0
      %10315 = vmatprep.subr.bf16.mxu0 0
      %10316 = vmatpush1.bf16.msra.mxu0 0
      %10317 = vmatprep.subr.bf16.mxu0 0
      %10318 = vmatpush1.bf16.msra.mxu0 0
      %10319 = vmatprep.subr.bf16.mxu0 0
      %10320 = vmatpush1.bf16.msra.mxu0 0
      %10321 = vmatprep.subr.bf16.mxu0 0
      %10322 = vmatpush1.bf16.msra.mxu0 0
      %10323 = vmatprep.subr.bf16.mxu0 0
      %10324 = vmatpush1.bf16.msra.mxu0 0
      %10325 = vmatprep.subr.bf16.mxu0 0
      %10326 = vmatpush1.bf16.msra.mxu0 0
      %10327 = vmatprep.subr.bf16.mxu0 0
      %10328 = vmatpush1.bf16.msra.mxu0 0
      %10329 = vmatprep.mubr.bf16.mxu0 0
      %10330 = vmatmul.mubr.bf16.gmra.mrb[0].mxu0 %v10214
      %v10331 = vpop.f32.mrb[0].mxu0
      %v10332 = vadd.f32 %v9945, %v10331
      %v10333 = vpop.f32.mrb[0].mxu0
      %v10334 = vpop.f32.mrb[0].mxu0
      %v10335 = vadd.f32 %v9945, %v10334
      %v10336 = vpop.f32.mrb[0].mxu0
      %10337 = vmatprep.mubr.bf16.mxu0 0
      %10338 = vmatmul.mubr.bf16.gmra.mrb[0].mxu0 %v10217
      %v10339 = vpop.f32.mrb[0].mxu0
      %v10340 = vadd.f32 %v9945, %v10339
      %v10341 = vpop.f32.mrb[0].mxu0
      %v10342 = vpop.f32.mrb[0].mxu0
      %v10343 = vadd.f32 %v9945, %v10342
      %v10344 = vpop.f32.mrb[0].mxu0
      %10345 = vmatprep.mubr.bf16.mxu0 0
      %10346 = vmatmul.mubr.bf16.gmra.mrb[0].mxu0 %v10220
      %v10347 = vpop.f32.mrb[0].mxu0
      %v10348 = vadd.f32 %v9945, %v10347
      %v10349 = vpop.f32.mrb[0].mxu0
      %v10350 = vpop.f32.mrb[0].mxu0
      %v10351 = vadd.f32 %v9945, %v10350
      %v10352 = vpop.f32.mrb[0].mxu0
      %10353 = vmatprep.mubr.bf16.mxu0 0
      %10354 = vmatmul.mubr.bf16.gmra.mrb[0].mxu0 %v10223
      %v10355 = vpop.f32.mrb[0].mxu0
      %v10356 = vadd.f32 %v9945, %v10355
      %v10357 = vpop.f32.mrb[0].mxu0
      %v10358 = vpop.f32.mrb[0].mxu0
      %v10359 = vadd.f32 %v9945, %v10358
      %v10360 = vpop.f32.mrb[0].mxu0
      %10361 = vmatprep.mubr.bf16.mxu0 0
      %10362 = vmatmul.mubr.bf16.gmra.mrb[0].mxu0 %v10226
      %v10363 = vpop.f32.mrb[0].mxu0
      %v10364 = vadd.f32 %v9945, %v10363
      %v10365 = vpop.f32.mrb[0].mxu0
      %v10366 = vpop.f32.mrb[0].mxu0
      %v10367 = vadd.f32 %v9945, %v10366
      %v10368 = vpop.f32.mrb[0].mxu0
      %10369 = vmatprep.mubr.bf16.mxu0 0
      %10370 = vmatmul.mubr.bf16.gmra.mrb[0].mxu0 %v10229
      %v10371 = vpop.f32.mrb[0].mxu0
      %v10372 = vadd.f32 %v9945, %v10371
      %v10373 = vpop.f32.mrb[0].mxu0
      %v10374 = vpop.f32.mrb[0].mxu0
      %v10375 = vadd.f32 %v9945, %v10374
      %v10376 = vpop.f32.mrb[0].mxu0
      %10377 = vmatprep.mubr.bf16.mxu0 0
      %10378 = vmatmul.mubr.bf16.gmra.mrb[0].mxu0 %v10232
      %v10379 = vpop.f32.mrb[0].mxu0
      %v10380 = vadd.f32 %v9945, %v10379
      %v10381 = vpop.f32.mrb[0].mxu0
      %v10382 = vpop.f32.mrb[0].mxu0
      %v10383 = vadd.f32 %v9945, %v10382
      %v10384 = vpop.f32.mrb[0].mxu0
      %10385 = vmatprep.mubr.bf16.mxu0 0
      %10386 = vmatmul.mubr.bf16.gmra.mrb[0].mxu0 %v10235
      %v10387 = vpop.f32.mrb[0].mxu0
      %v10388 = vadd.f32 %v9945, %v10387
      %v10389 = vpop.f32.mrb[0].mxu0
      %v10390 = vpop.f32.mrb[0].mxu0
      %v10391 = vadd.f32 %v9945, %v10390
      %v10392 = vpop.f32.mrb[0].mxu0
      %10393 = vmatprep.mubr.bf16.mxu0 0
      %10394 = vmatmul.mubr.bf16.gmra.mrb[0].mxu0 %v10238
      %v10395 = vpop.f32.mrb[0].mxu0
      %v10396 = vadd.f32 %v9945, %v10395
      %v10397 = vpop.f32.mrb[0].mxu0
      %v10398 = vpop.f32.mrb[0].mxu0
      %v10399 = vadd.f32 %v9945, %v10398
      %v10400 = vpop.f32.mrb[0].mxu0
      %10401 = vmatprep.mubr.bf16.mxu0 0
      %10402 = vmatmul.mubr.bf16.gmra.mrb[0].mxu0 %v10241
      %v10403 = vpop.f32.mrb[0].mxu0
      %v10404 = vadd.f32 %v9945, %v10403
      %v10405 = vpop.f32.mrb[0].mxu0
      %v10406 = vpop.f32.mrb[0].mxu0
      %v10407 = vadd.f32 %v9945, %v10406
      %v10408 = vpop.f32.mrb[0].mxu0
      %10409 = vmatprep.mubr.bf16.mxu0 0
      %10410 = vmatmul.mubr.bf16.gmra.mrb[0].mxu0 %v10244
      %v10411 = vpop.f32.mrb[0].mxu0
      %v10412 = vadd.f32 %v9945, %v10411
      %v10413 = vpop.f32.mrb[0].mxu0
      %v10414 = vpop.f32.mrb[0].mxu0
      %v10415 = vadd.f32 %v9945, %v10414
      %v10416 = vpop.f32.mrb[0].mxu0
      %10417 = vmatprep.mubr.bf16.mxu0 0
      %10418 = vmatmul.mubr.bf16.gmra.mrb[0].mxu0 %v10247
      %v10419 = vpop.f32.mrb[0].mxu0
      %v10420 = vadd.f32 %v9945, %v10419
      %v10421 = vpop.f32.mrb[0].mxu0
      %v10422 = vpop.f32.mrb[0].mxu0
      %v10423 = vadd.f32 %v9945, %v10422
      %v10424 = vpop.f32.mrb[0].mxu0
      %10425 = vmatprep.mubr.bf16.mxu0 0
      %10426 = vmatmul.mubr.bf16.gmra.mrb[0].mxu0 %v10250
      %v10427 = vpop.f32.mrb[0].mxu0
      %v10428 = vadd.f32 %v9945, %v10427
      %v10429 = vpop.f32.mrb[0].mxu0
      %v10430 = vpop.f32.mrb[0].mxu0
      %v10431 = vadd.f32 %v9945, %v10430
      %v10432 = vpop.f32.mrb[0].mxu0
      %10433 = vmatprep.mubr.bf16.mxu0 0
      %10434 = vmatmul.mubr.bf16.gmra.mrb[0].mxu0 %v10253
      %v10435 = vpop.f32.mrb[0].mxu0
      %v10436 = vadd.f32 %v9945, %v10435
      %v10437 = vpop.f32.mrb[0].mxu0
      %v10438 = vpop.f32.mrb[0].mxu0
      %v10439 = vadd.f32 %v9945, %v10438
      %v10440 = vpop.f32.mrb[0].mxu0
      %10441 = vmatprep.mubr.bf16.mxu0 0
      %10442 = vmatmul.mubr.bf16.gmra.mrb[0].mxu0 %v10256
      %v10443 = vpop.f32.mrb[0].mxu0
      %v10444 = vadd.f32 %v9945, %v10443
      %v10445 = vpop.f32.mrb[0].mxu0
      %v10446 = vpop.f32.mrb[0].mxu0
      %v10447 = vadd.f32 %v9945, %v10446
      %v10448 = vpop.f32.mrb[0].mxu0
      %10449 = vmatprep.mubr.bf16.mxu0 0
      %10450 = vmatmul.mubr.bf16.gmra.mrb[0].mxu0 %v10259
      %v10451 = vpop.f32.mrb[0].mxu0
      %v10452 = vadd.f32 %v9945, %v10451
      %v10453 = vpop.f32.mrb[0].mxu0
      %v10454 = vpop.f32.mrb[0].mxu0
      %v10455 = vadd.f32 %v9945, %v10454
      %v10456 = vpop.f32.mrb[0].mxu0
      %10457 = vmatprep.mubr.bf16.mxu0 0
      %10458 = vmatmul.mubr.bf16.gmra.mrb[0].mxu0 %v10262
      %v10459 = vpop.f32.mrb[0].mxu0
      %v10460 = vadd.f32 %v9945, %v10459
      %v10461 = vpop.f32.mrb[0].mxu0
      %v10462 = vpop.f32.mrb[0].mxu0
      %v10463 = vadd.f32 %v9945, %v10462
      %v10464 = vpop.f32.mrb[0].mxu0
      %10465 = vmatprep.mubr.bf16.mxu0 0
      %10466 = vmatmul.mubr.bf16.gmra.mrb[0].mxu0 %v10265
      %v10467 = vpop.f32.mrb[0].mxu0
      %v10468 = vadd.f32 %v9945, %v10467
      %v10469 = vpop.f32.mrb[0].mxu0
      %v10470 = vpop.f32.mrb[0].mxu0
      %v10471 = vadd.f32 %v9945, %v10470
      %v10472 = vpop.f32.mrb[0].mxu0
      %10473 = vmatprep.mubr.bf16.mxu0 0
      %10474 = vmatmul.mubr.bf16.gmra.mrb[0].mxu0 %v10268
      %v10475 = vpop.f32.mrb[0].mxu0
      %v10476 = vadd.f32 %v9945, %v10475
      %v10477 = vpop.f32.mrb[0].mxu0
      %v10478 = vpop.f32.mrb[0].mxu0
      %v10479 = vadd.f32 %v9945, %v10478
      %v10480 = vpop.f32.mrb[0].mxu0
      %10481 = vmatprep.mubr.bf16.mxu0 0
      %10482 = vmatmul.mubr.bf16.gmra.mrb[0].mxu0 %v10271
      %v10483 = vpop.f32.mrb[0].mxu0
      %v10484 = vadd.f32 %v9945, %v10483
      %v10485 = vpop.f32.mrb[0].mxu0
      %v10486 = vpop.f32.mrb[0].mxu0
      %v10487 = vadd.f32 %v9945, %v10486
      %v10488 = vpop.f32.mrb[0].mxu0
      %10489 = vmatprep.mubr.bf16.mxu0 0
      %10490 = vmatmul.mubr.bf16.gmra.mrb[0].mxu0 %v10274
      %v10491 = vpop.f32.mrb[0].mxu0
      %v10492 = vadd.f32 %v9945, %v10491
      %v10493 = vpop.f32.mrb[0].mxu0
      %v10494 = vpop.f32.mrb[0].mxu0
      %v10495 = vadd.f32 %v9945, %v10494
      %v10496 = vpop.f32.mrb[0].mxu0
      %10497 = vmatprep.mubr.bf16.mxu0 0
      %10498 = vmatmul.mubr.bf16.gmra.mrb[0].mxu0 %v10277
      %v10499 = vpop.f32.mrb[0].mxu0
      %v10500 = vadd.f32 %v9945, %v10499
      %v10501 = vpop.f32.mrb[0].mxu0
      %v10502 = vpop.f32.mrb[0].mxu0
      %v10503 = vadd.f32 %v9945, %v10502
      %v10504 = vpop.f32.mrb[0].mxu0
      %10505 = vmatprep.mubr.bf16.mxu0 0
      %10506 = vmatmul.mubr.bf16.gmra.mrb[0].mxu0 %v10280
      %v10507 = vpop.f32.mrb[0].mxu0
      %v10508 = vadd.f32 %v9945, %v10507
      %v10509 = vpop.f32.mrb[0].mxu0
      %v10510 = vpop.f32.mrb[0].mxu0
      %v10511 = vadd.f32 %v9945, %v10510
      %v10512 = vpop.f32.mrb[0].mxu0
      %10513 = vmatprep.mubr.bf16.mxu0 0
      %10514 = vmatmul.mubr.bf16.gmra.mrb[0].mxu0 %v10283
      %v10515 = vpop.f32.mrb[0].mxu0
      %v10516 = vadd.f32 %v9945, %v10515
      %v10517 = vpop.f32.mrb[0].mxu0
      %v10518 = vpop.f32.mrb[0].mxu0
      %v10519 = vadd.f32 %v9945, %v10518
      %v10520 = vpop.f32.mrb[0].mxu0
      %10521 = vmatprep.mubr.bf16.mxu0 0
      %10522 = vmatmul.mubr.bf16.gmra.mrb[0].mxu0 %v10286
      %v10523 = vpop.f32.mrb[0].mxu0
      %v10524 = vadd.f32 %v9945, %v10523
      %v10525 = vpop.f32.mrb[0].mxu0
      %v10526 = vpop.f32.mrb[0].mxu0
      %v10527 = vadd.f32 %v9945, %v10526
      %v10528 = vpop.f32.mrb[0].mxu0
      %10529 = vmatprep.mubr.bf16.mxu0 0
      %10530 = vmatmul.mubr.bf16.gmra.mrb[0].mxu0 %v10289
      %v10531 = vpop.f32.mrb[0].mxu0
      %v10532 = vadd.f32 %v9945, %v10531
      %v10533 = vpop.f32.mrb[0].mxu0
      %v10534 = vpop.f32.mrb[0].mxu0
      %v10535 = vadd.f32 %v9945, %v10534
      %v10536 = vpop.f32.mrb[0].mxu0
      %10537 = vmatprep.mubr.bf16.mxu0 0
      %10538 = vmatmul.mubr.bf16.gmra.mrb[0].mxu0 %v10292
      %v10539 = vpop.f32.mrb[0].mxu0
      %v10540 = vadd.f32 %v9945, %v10539
      %v10541 = vpop.f32.mrb[0].mxu0
      %v10542 = vpop.f32.mrb[0].mxu0
      %v10543 = vadd.f32 %v9945, %v10542
      %v10544 = vpop.f32.mrb[0].mxu0
      %10545 = vdwg.mxu0
      %v10546 = vmul.f32 %v10332, 0.5
      %v10547 = vmul.f32 %v10335, 0.5
      %v10548 = vmul.f32 %v10340, 0.5
      %v10549 = vmul.f32 %v10343, 0.5
      %v10550 = vmul.f32 %v10348, 0.5
      %v10551 = vmul.f32 %v10351, 0.5
      %v10552 = vmul.f32 %v10356, 0.5
      %v10553 = vmul.f32 %v10359, 0.5
      %v10554 = vmul.f32 %v10364, 0.5
      %v10555 = vmul.f32 %v10367, 0.5
      %v10556 = vmul.f32 %v10372, 0.5
      %v10557 = vmul.f32 %v10375, 0.5
      %v10558 = vmul.f32 %v10380, 0.5
      %v10559 = vmul.f32 %v10383, 0.5
      %v10560 = vmul.f32 %v10388, 0.5
      %v10561 = vmul.f32 %v10391, 0.5
      %v10562 = vmul.f32 %v10396, 0.5
      %v10563 = vmul.f32 %v10399, 0.5
      %v10564 = vmul.f32 %v10404, 0.5
      %v10565 = vmul.f32 %v10407, 0.5
      %v10566 = vmul.f32 %v10412, 0.5
      %v10567 = vmul.f32 %v10415, 0.5
      %v10568 = vmul.f32 %v10420, 0.5
      %v10569 = vmul.f32 %v10423, 0.5
      %v10570 = vmul.f32 %v10428, 0.5
      %v10571 = vmul.f32 %v10431, 0.5
      %v10572 = vmul.f32 %v10436, 0.5
      %v10573 = vmul.f32 %v10439, 0.5
      %v10574 = vmul.f32 %v10444, 0.5
      %v10575 = vmul.f32 %v10447, 0.5
      %v10576 = vmul.f32 %v10452, 0.5
      %v10577 = vmul.f32 %v10455, 0.5
      %v10578 = vmul.f32 %v10460, 0.5
      %v10579 = vmul.f32 %v10463, 0.5
      %v10580 = vmul.f32 %v10468, 0.5
      %v10581 = vmul.f32 %v10471, 0.5
      %v10582 = vmul.f32 %v10476, 0.5
      %v10583 = vmul.f32 %v10479, 0.5
      %v10584 = vmul.f32 %v10484, 0.5
      %v10585 = vmul.f32 %v10487, 0.5
      %v10586 = vmul.f32 %v10492, 0.5
      %v10587 = vmul.f32 %v10495, 0.5
      %v10588 = vmul.f32 %v10500, 0.5
      %v10589 = vmul.f32 %v10503, 0.5
      %v10590 = vmul.f32 %v10508, 0.5
      %v10591 = vmul.f32 %v10511, 0.5
      %v10592 = vmul.f32 %v10516, 0.5
      %v10593 = vmul.f32 %v10519, 0.5
      %v10594 = vmul.f32 %v10524, 0.5
      %v10595 = vmul.f32 %v10527, 0.5
      %v10596 = vmul.f32 %v10532, 0.5
      %v10597 = vmul.f32 %v10535, 0.5
      %v10598 = vmul.f32 %v10540, 0.5
      %v10599 = vmul.f32 %v10543, 0.5
      %v10600 = vtanh.pop %v10546
      %v10601 = vtanh.pop %v10547
      %v10602 = vtanh.pop %v10548
      %v10603 = vtanh.pop %v10549
      %v10604 = vtanh.pop %v10550
      %v10605 = vtanh.pop %v10551
      %v10606 = vtanh.pop %v10552
      %v10607 = vtanh.pop %v10553
      %v10608 = vtanh.pop %v10554
      %v10609 = vtanh.pop %v10555
      %v10610 = vtanh.pop %v10556
      %v10611 = vtanh.pop %v10557
      %v10612 = vtanh.pop %v10558
      %v10613 = vtanh.pop %v10559
      %v10614 = vtanh.pop %v10560
      %v10615 = vtanh.pop %v10561
      %v10616 = vtanh.pop %v10562
      %v10617 = vtanh.pop %v10563
      %v10618 = vtanh.pop %v10564
      %v10619 = vtanh.pop %v10565
      %v10620 = vtanh.pop %v10566
      %v10621 = vtanh.pop %v10567
      %v10622 = vtanh.pop %v10568
      %v10623 = vtanh.pop %v10569
      %v10624 = vtanh.pop %v10570
      %v10625 = vtanh.pop %v10571
      %v10626 = vtanh.pop %v10572
      %v10627 = vtanh.pop %v10573
      %v10628 = vtanh.pop %v10574
      %v10629 = vtanh.pop %v10575
      %v10630 = vtanh.pop %v10576
      %v10631 = vtanh.pop %v10577
      %v10632 = vtanh.pop %v10578
      %v10633 = vtanh.pop %v10579
      %v10634 = vtanh.pop %v10580
      %v10635 = vtanh.pop %v10581
      %v10636 = vtanh.pop %v10582
      %v10637 = vtanh.pop %v10583
      %v10638 = vtanh.pop %v10584
      %v10639 = vtanh.pop %v10585
      %v10640 = vtanh.pop %v10586
      %v10641 = vtanh.pop %v10587
      %v10642 = vtanh.pop %v10588
      %v10643 = vtanh.pop %v10589
      %v10644 = vtanh.pop %v10590
      %v10645 = vtanh.pop %v10591
      %v10646 = vtanh.pop %v10592
      %v10647 = vtanh.pop %v10593
      %v10648 = vtanh.pop %v10594
      %v10649 = vtanh.pop %v10595
      %v10650 = vtanh.pop %v10596
      %v10651 = vtanh.pop %v10597
      %v10652 = vtanh.pop %v10598
      %v10653 = vtanh.pop %v10599
      %v10654 = vmul.f32 %v10600, 1.442695
      %v10655 = vpow.pop %v10654
      %v10656 = vmul.f32 %v10601, 1.442695
      %v10657 = vpow.pop %v10656
      %v10658 = vmul.f32 %v10602, 1.442695
      %v10659 = vpow.pop %v10658
      %v10660 = vmul.f32 %v10603, 1.442695
      %v10661 = vpow.pop %v10660
      %v10662 = vmul.f32 %v10604, 1.442695
      %v10663 = vpow.pop %v10662
      %v10664 = vmul.f32 %v10605, 1.442695
      %v10665 = vpow.pop %v10664
      %v10666 = vmul.f32 %v10606, 1.442695
      %v10667 = vpow.pop %v10666
      %v10668 = vmul.f32 %v10607, 1.442695
      %v10669 = vpow.pop %v10668
      %v10670 = vmul.f32 %v10608, 1.442695
      %v10671 = vpow.pop %v10670
      %v10672 = vmul.f32 %v10609, 1.442695
      %v10673 = vpow.pop %v10672
      %v10674 = vmul.f32 %v10610, 1.442695
      %v10675 = vpow.pop %v10674
      %v10676 = vmul.f32 %v10611, 1.442695
      %v10677 = vpow.pop %v10676
      %v10678 = vmul.f32 %v10612, 1.442695
      %v10679 = vpow.pop %v10678
      %v10680 = vmul.f32 %v10613, 1.442695
      %v10681 = vpow.pop %v10680
      %v10682 = vmul.f32 %v10614, 1.442695
      %v10683 = vpow.pop %v10682
      %v10684 = vmul.f32 %v10615, 1.442695
      %v10685 = vpow.pop %v10684
      %v10686 = vmul.f32 %v10616, 1.442695
      %v10687 = vpow.pop %v10686
      %v10688 = vmul.f32 %v10617, 1.442695
      %v10689 = vpow.pop %v10688
      %v10690 = vmul.f32 %v10618, 1.442695
      %v10691 = vpow.pop %v10690
      %v10692 = vmul.f32 %v10619, 1.442695
      %v10693 = vpow.pop %v10692
      %v10694 = vmul.f32 %v10620, 1.442695
      %v10695 = vpow.pop %v10694
      %v10696 = vmul.f32 %v10621, 1.442695
      %v10697 = vpow.pop %v10696
      %v10698 = vmul.f32 %v10622, 1.442695
      %v10699 = vpow.pop %v10698
      %v10700 = vmul.f32 %v10623, 1.442695
      %v10701 = vpow.pop %v10700
      %v10702 = vmul.f32 %v10624, 1.442695
      %v10703 = vpow.pop %v10702
      %v10704 = vmul.f32 %v10625, 1.442695
      %v10705 = vpow.pop %v10704
      %v10706 = vmul.f32 %v10626, 1.442695
      %v10707 = vpow.pop %v10706
      %v10708 = vmul.f32 %v10627, 1.442695
      %v10709 = vpow.pop %v10708
      %v10710 = vmul.f32 %v10628, 1.442695
      %v10711 = vpow.pop %v10710
      %v10712 = vmul.f32 %v10629, 1.442695
      %v10713 = vpow.pop %v10712
      %v10714 = vmul.f32 %v10630, 1.442695
      %v10715 = vpow.pop %v10714
      %v10716 = vmul.f32 %v10631, 1.442695
      %v10717 = vpow.pop %v10716
      %v10718 = vmul.f32 %v10632, 1.442695
      %v10719 = vpow.pop %v10718
      %v10720 = vmul.f32 %v10633, 1.442695
      %v10721 = vpow.pop %v10720
      %v10722 = vmul.f32 %v10634, 1.442695
      %v10723 = vpow.pop %v10722
      %v10724 = vmul.f32 %v10635, 1.442695
      %v10725 = vpow.pop %v10724
      %v10726 = vmul.f32 %v10636, 1.442695
      %v10727 = vpow.pop %v10726
      %v10728 = vmul.f32 %v10637, 1.442695
      %v10729 = vpow.pop %v10728
      %v10730 = vmul.f32 %v10638, 1.442695
      %v10731 = vpow.pop %v10730
      %v10732 = vmul.f32 %v10639, 1.442695
      %v10733 = vpow.pop %v10732
      %v10734 = vmul.f32 %v10640, 1.442695
      %v10735 = vpow.pop %v10734
      %v10736 = vmul.f32 %v10641, 1.442695
      %v10737 = vpow.pop %v10736
      %v10738 = vmul.f32 %v10642, 1.442695
      %v10739 = vpow.pop %v10738
      %v10740 = vmul.f32 %v10643, 1.442695
      %v10741 = vpow.pop %v10740
      %v10742 = vmul.f32 %v10644, 1.442695
      %v10743 = vpow.pop %v10742
      %v10744 = vmul.f32 %v10645, 1.442695
      %v10745 = vpow.pop %v10744
      %v10746 = vmul.f32 %v10646, 1.442695
      %v10747 = vpow.pop %v10746
      %v10748 = vmul.f32 %v10647, 1.442695
      %v10749 = vpow.pop %v10748
      %v10750 = vmul.f32 %v10648, 1.442695
      %v10751 = vpow.pop %v10750
      %v10752 = vmul.f32 %v10649, 1.442695
      %v10753 = vpow.pop %v10752
      %v10754 = vmul.f32 %v10650, 1.442695
      %v10755 = vpow.pop %v10754
      %v10756 = vmul.f32 %v10651, 1.442695
      %v10757 = vpow.pop %v10756
      %v10758 = vmul.f32 %v10652, 1.442695
      %v10759 = vpow.pop %v10758
      %v10760 = vmul.f32 %v10653, 1.442695
      %v10761 = vpow.pop %v10760
      %10816 = vrot.lane.b32.xlu0 %v10655, 2
      %v10817 = vpop.permute.xlu0 %10816
      %10818 = vrot.lane.b32.xlu0 %v10657, 2
      %v10819 = vpop.permute.xlu0 %10818
      %10820 = vrot.lane.b32.xlu0 %v10659, 2
      %v10821 = vpop.permute.xlu0 %10820
      %10822 = vrot.lane.b32.xlu0 %v10661, 2
      %v10823 = vpop.permute.xlu0 %10822
      %10824 = vrot.lane.b32.xlu0 %v10663, 2
      %v10825 = vpop.permute.xlu0 %10824
      %10826 = vrot.lane.b32.xlu0 %v10665, 2
      %v10827 = vpop.permute.xlu0 %10826
      %10828 = vrot.lane.b32.xlu0 %v10667, 2
      %v10829 = vpop.permute.xlu0 %10828
      %10830 = vrot.lane.b32.xlu0 %v10669, 2
      %v10831 = vpop.permute.xlu0 %10830
      %10832 = vrot.lane.b32.xlu0 %v10671, 2
      %v10833 = vpop.permute.xlu0 %10832
      %10834 = vrot.lane.b32.xlu0 %v10673, 2
      %v10835 = vpop.permute.xlu0 %10834
      %10836 = vrot.lane.b32.xlu0 %v10675, 2
      %v10837 = vpop.permute.xlu0 %10836
      %10838 = vrot.lane.b32.xlu0 %v10677, 2
      %v10839 = vpop.permute.xlu0 %10838
      %10840 = vrot.lane.b32.xlu0 %v10679, 2
      %v10841 = vpop.permute.xlu0 %10840
      %10842 = vrot.lane.b32.xlu0 %v10681, 2
      %v10843 = vpop.permute.xlu0 %10842
      %10844 = vrot.lane.b32.xlu0 %v10683, 2
      %v10845 = vpop.permute.xlu0 %10844
      %10846 = vrot.lane.b32.xlu0 %v10685, 2
      %v10847 = vpop.permute.xlu0 %10846
      %10848 = vrot.lane.b32.xlu0 %v10687, 2
      %v10849 = vpop.permute.xlu0 %10848
      %10850 = vrot.lane.b32.xlu0 %v10689, 2
      %v10851 = vpop.permute.xlu0 %10850
      %10852 = vrot.lane.b32.xlu0 %v10691, 2
      %v10853 = vpop.permute.xlu0 %10852
      %10854 = vrot.lane.b32.xlu0 %v10693, 2
      %v10855 = vpop.permute.xlu0 %10854
      %10856 = vrot.lane.b32.xlu0 %v10695, 2
      %v10857 = vpop.permute.xlu0 %10856
      %10858 = vrot.lane.b32.xlu0 %v10697, 2
      %v10859 = vpop.permute.xlu0 %10858
      %10860 = vrot.lane.b32.xlu0 %v10699, 2
      %v10861 = vpop.permute.xlu0 %10860
      %10862 = vrot.lane.b32.xlu0 %v10701, 2
      %v10863 = vpop.permute.xlu0 %10862
      %10864 = vrot.lane.b32.xlu0 %v10703, 2
      %v10865 = vpop.permute.xlu0 %10864
      %10866 = vrot.lane.b32.xlu0 %v10705, 2
      %v10867 = vpop.permute.xlu0 %10866
      %10868 = vrot.lane.b32.xlu0 %v10707, 2
      %v10869 = vpop.permute.xlu0 %10868
      %10870 = vrot.lane.b32.xlu0 %v10709, 2
      %v10871 = vpop.permute.xlu0 %10870
      %10872 = vrot.lane.b32.xlu0 %v10711, 2
      %v10873 = vpop.permute.xlu0 %10872
      %10874 = vrot.lane.b32.xlu0 %v10713, 2
      %v10875 = vpop.permute.xlu0 %10874
      %10876 = vrot.lane.b32.xlu0 %v10715, 2
      %v10877 = vpop.permute.xlu0 %10876
      %10878 = vrot.lane.b32.xlu0 %v10717, 2
      %v10879 = vpop.permute.xlu0 %10878
      %10880 = vrot.lane.b32.xlu0 %v10719, 2
      %v10881 = vpop.permute.xlu0 %10880
      %10882 = vrot.lane.b32.xlu0 %v10721, 2
      %v10883 = vpop.permute.xlu0 %10882
      %10884 = vrot.lane.b32.xlu0 %v10723, 2
      %v10885 = vpop.permute.xlu0 %10884
      %10886 = vrot.lane.b32.xlu0 %v10725, 2
      %v10887 = vpop.permute.xlu0 %10886
      %10888 = vrot.lane.b32.xlu0 %v10727, 2
      %v10889 = vpop.permute.xlu0 %10888
      %10890 = vrot.lane.b32.xlu0 %v10729, 2
      %v10891 = vpop.permute.xlu0 %10890
      %10892 = vrot.lane.b32.xlu0 %v10731, 2
      %v10893 = vpop.permute.xlu0 %10892
      %10894 = vrot.lane.b32.xlu0 %v10733, 2
      %v10895 = vpop.permute.xlu0 %10894
      %10896 = vrot.lane.b32.xlu0 %v10735, 2
      %v10897 = vpop.permute.xlu0 %10896
      %10898 = vrot.lane.b32.xlu0 %v10737, 2
      %v10899 = vpop.permute.xlu0 %10898
      %10900 = vrot.lane.b32.xlu0 %v10739, 2
      %v10901 = vpop.permute.xlu0 %10900
      %10902 = vrot.lane.b32.xlu0 %v10741, 2
      %v10903 = vpop.permute.xlu0 %10902
      %10904 = vrot.lane.b32.xlu0 %v10743, 2
      %v10905 = vpop.permute.xlu0 %10904
      %10906 = vrot.lane.b32.xlu0 %v10745, 2
      %v10907 = vpop.permute.xlu0 %10906
      %10908 = vrot.lane.b32.xlu0 %v10747, 2
      %v10909 = vpop.permute.xlu0 %10908
      %10910 = vrot.lane.b32.xlu0 %v10749, 2
      %v10911 = vpop.permute.xlu0 %10910
      %10912 = vrot.lane.b32.xlu0 %v10751, 2
      %v10913 = vpop.permute.xlu0 %10912
      %10914 = vrot.lane.b32.xlu0 %v10753, 2
      %v10915 = vpop.permute.xlu0 %10914
      %10916 = vrot.lane.b32.xlu0 %v10755, 2
      %v10917 = vpop.permute.xlu0 %10916
      %10918 = vrot.lane.b32.xlu0 %v10757, 2
      %v10919 = vpop.permute.xlu0 %10918
      %10920 = vrot.lane.b32.xlu0 %v10759, 2
      %v10921 = vpop.permute.xlu0 %10920
      %10922 = vrot.lane.b32.xlu0 %v10761, 2
      %v10923 = vpop.permute.xlu0 %10922
      %v10978 = vmul.f32 %v581, %v10817
      %v10979 = vmul.f32 %v582, %v10819
      %v10980 = vmul.f32 %v583, %v10821
      %v10981 = vmul.f32 %v584, %v10823
      %v10982 = vmul.f32 %v585, %v10825
      %v10983 = vmul.f32 %v586, %v10827
      %v10984 = vmul.f32 %v587, %v10829
      %v10985 = vmul.f32 %v588, %v10831
      %v10986 = vmul.f32 %v589, %v10833
      %v10987 = vmul.f32 %v590, %v10835
      %v10988 = vmul.f32 %v591, %v10837
      %v10989 = vmul.f32 %v592, %v10839
      %v10990 = vmul.f32 %v593, %v10841
      %v10991 = vmul.f32 %v594, %v10843
      %v10992 = vmul.f32 %v595, %v10845
      %v10993 = vmul.f32 %v596, %v10847
      %v10994 = vmul.f32 %v597, %v10849
      %v10995 = vmul.f32 %v598, %v10851
      %v10996 = vmul.f32 %v599, %v10853
      %v10997 = vmul.f32 %v600, %v10855
      %v10998 = vmul.f32 %v601, %v10857
      %v10999 = vmul.f32 %v602, %v10859
      %v11000 = vmul.f32 %v603, %v10861
      %v11001 = vmul.f32 %v604, %v10863
      %v11002 = vmul.f32 %v605, %v10865
      %v11003 = vmul.f32 %v606, %v10867
      %v11004 = vmul.f32 %v607, %v10869
      %v11005 = vmul.f32 %v608, %v10871
      %v11006 = vmul.f32 %v609, %v10873
      %v11007 = vmul.f32 %v610, %v10875
      %v11008 = vmul.f32 %v611, %v10877
      %v11009 = vmul.f32 %v612, %v10879
      %v11010 = vmul.f32 %v613, %v10881
      %v11011 = vmul.f32 %v614, %v10883
      %v11012 = vmul.f32 %v615, %v10885
      %v11013 = vmul.f32 %v616, %v10887
      %v11014 = vmul.f32 %v617, %v10889
      %v11015 = vmul.f32 %v618, %v10891
      %v11016 = vmul.f32 %v619, %v10893
      %v11017 = vmul.f32 %v620, %v10895
      %v11018 = vmul.f32 %v621, %v10897
      %v11019 = vmul.f32 %v622, %v10899
      %v11020 = vmul.f32 %v623, %v10901
      %v11021 = vmul.f32 %v624, %v10903
      %v11022 = vmul.f32 %v625, %v10905
      %v11023 = vmul.f32 %v626, %v10907
      %v11024 = vmul.f32 %v627, %v10909
      %v11025 = vmul.f32 %v628, %v10911
      %v11026 = vmul.f32 %v629, %v10913
      %v11027 = vmul.f32 %v630, %v10915
      %v11028 = vmul.f32 %v631, %v10917
      %v11029 = vmul.f32 %v632, %v10919
      %v11030 = vmul.f32 %v633, %v10921
      %v11031 = vmul.f32 %v634, %v10923
      %v11032 = vadd.f32 %v10978, %v10332
      %v11033 = vadd.f32 %v10979, %v10335
      %v11034 = vadd.f32 %v10980, %v10340
      %v11035 = vadd.f32 %v10981, %v10343
      %v11036 = vadd.f32 %v10982, %v10348
      %v11037 = vadd.f32 %v10983, %v10351
      %v11038 = vadd.f32 %v10984, %v10356
      %v11039 = vadd.f32 %v10985, %v10359
      %v11040 = vadd.f32 %v10986, %v10364
      %v11041 = vadd.f32 %v10987, %v10367
      %v11042 = vadd.f32 %v10988, %v10372
      %v11043 = vadd.f32 %v10989, %v10375
      %v11044 = vadd.f32 %v10990, %v10380
      %v11045 = vadd.f32 %v10991, %v10383
      %v11046 = vadd.f32 %v10992, %v10388
      %v11047 = vadd.f32 %v10993, %v10391
      %v11048 = vadd.f32 %v10994, %v10396
      %v11049 = vadd.f32 %v10995, %v10399
      %v11050 = vadd.f32 %v10996, %v10404
      %v11051 = vadd.f32 %v10997, %v10407
      %v11052 = vadd.f32 %v10998, %v10412
      %v11053 = vadd.f32 %v10999, %v10415
      %v11054 = vadd.f32 %v11000, %v10420
      %v11055 = vadd.f32 %v11001, %v10423
      %v11056 = vadd.f32 %v11002, %v10428
      %v11057 = vadd.f32 %v11003, %v10431
      %v11058 = vadd.f32 %v11004, %v10436
      %v11059 = vadd.f32 %v11005, %v10439
      %v11060 = vadd.f32 %v11006, %v10444
      %v11061 = vadd.f32 %v11007, %v10447
      %v11062 = vadd.f32 %v11008, %v10452
      %v11063 = vadd.f32 %v11009, %v10455
      %v11064 = vadd.f32 %v11010, %v10460
      %v11065 = vadd.f32 %v11011, %v10463
      %v11066 = vadd.f32 %v11012, %v10468
      %v11067 = vadd.f32 %v11013, %v10471
      %v11068 = vadd.f32 %v11014, %v10476
      %v11069 = vadd.f32 %v11015, %v10479
      %v11070 = vadd.f32 %v11016, %v10484
      %v11071 = vadd.f32 %v11017, %v10487
      %v11072 = vadd.f32 %v11018, %v10492
      %v11073 = vadd.f32 %v11019, %v10495
      %v11074 = vadd.f32 %v11020, %v10500
      %v11075 = vadd.f32 %v11021, %v10503
      %v11076 = vadd.f32 %v11022, %v10508
      %v11077 = vadd.f32 %v11023, %v10511
      %v11078 = vadd.f32 %v11024, %v10516
      %v11079 = vadd.f32 %v11025, %v10519
      %v11080 = vadd.f32 %v11026, %v10524
      %v11081 = vadd.f32 %v11027, %v10527
      %v11082 = vadd.f32 %v11028, %v10532
      %v11083 = vadd.f32 %v11029, %v10535
      %v11084 = vadd.f32 %v11030, %v10540
      %v11085 = vadd.f32 %v11031, %v10543
      %v11086 = vsel %vm1370, %v6001, %v11032
      %v11087 = vsel %vm1370, %v6002, %v11033
      %v11088 = vsel %vm1370, %v6003, %v11034
      %v11089 = vsel %vm1370, %v6004, %v11035
      %v11090 = vsel %vm1370, %v6005, %v11036
      %v11091 = vsel %vm1370, %v6006, %v11037
      %v11092 = vsel %vm1370, %v6007, %v11038
      %v11093 = vsel %vm1370, %v6008, %v11039
      %v11094 = vsel %vm1370, %v6009, %v11040
      %v11095 = vsel %vm1370, %v6010, %v11041
      %v11096 = vsel %vm1370, %v6011, %v11042
      %v11097 = vsel %vm1370, %v6012, %v11043
      %v11098 = vsel %vm1370, %v6013, %v11044
      %v11099 = vsel %vm1370, %v6014, %v11045
      %v11100 = vsel %vm1370, %v6015, %v11046
      %v11101 = vsel %vm1370, %v6016, %v11047
      %v11102 = vsel %vm1370, %v6017, %v11048
      %v11103 = vsel %vm1370, %v6018, %v11049
      %v11104 = vsel %vm1370, %v6019, %v11050
      %v11105 = vsel %vm1370, %v6020, %v11051
      %v11106 = vsel %vm1370, %v6021, %v11052
      %v11107 = vsel %vm1370, %v6022, %v11053
      %v11108 = vsel %vm1370, %v6023, %v11054
      %v11109 = vsel %vm1370, %v6024, %v11055
      %v11110 = vsel %vm1370, %v6025, %v11056
      %v11111 = vsel %vm1370, %v6026, %v11057
      %v11112 = vsel %vm1370, %v6027, %v11058
      %v11113 = vsel %vm1370, %v6028, %v11059
      %v11114 = vsel %vm1370, %v6029, %v11060
      %v11115 = vsel %vm1370, %v6030, %v11061
      %v11116 = vsel %vm1370, %v6031, %v11062
      %v11117 = vsel %vm1370, %v6032, %v11063
      %v11118 = vsel %vm1370, %v6033, %v11064
      %v11119 = vsel %vm1370, %v6034, %v11065
      %v11120 = vsel %vm1370, %v6035, %v11066
      %v11121 = vsel %vm1370, %v6036, %v11067
      %v11122 = vsel %vm1370, %v6037, %v11068
      %v11123 = vsel %vm1370, %v6038, %v11069
      %v11124 = vsel %vm1370, %v6039, %v11070
      %v11125 = vsel %vm1370, %v6040, %v11071
      %v11126 = vsel %vm1370, %v6041, %v11072
      %v11127 = vsel %vm1370, %v6042, %v11073
      %v11128 = vsel %vm1370, %v6043, %v11074
      %v11129 = vsel %vm1370, %v6044, %v11075
      %v11130 = vsel %vm1370, %v6045, %v11076
      %v11131 = vsel %vm1370, %v6046, %v11077
      %v11132 = vsel %vm1370, %v6047, %v11078
      %v11133 = vsel %vm1370, %v6048, %v11079
      %v11134 = vsel %vm1370, %v6049, %v11080
      %v11135 = vsel %vm1370, %v6050, %v11081
      %v11136 = vsel %vm1370, %v6051, %v11082
      %v11137 = vsel %vm1370, %v6052, %v11083
      %v11138 = vsel %vm1370, %v6053, %v11084
      %v11139 = vsel %vm1370, %v6054, %v11085
      %11140 = vst.msk [vmem:[%s467] sm:$0xff] %vm1432, %v11086
      %11141 = vst.msk [vmem:[%s467 + $0x8] sm:$0xff] %vm1432, %v11087
      %11142 = vst.msk [vmem:[%s467 + $0x10] sm:$0xff] %vm1432, %v11088
      %11143 = vst.msk [vmem:[%s467 + $0x18] sm:$0xff] %vm1432, %v11089
      %11144 = vst.msk [vmem:[%s467 + $0x20] sm:$0xff] %vm1432, %v11090
      %11145 = vst.msk [vmem:[%s467 + $0x28] sm:$0xff] %vm1432, %v11091
      %11146 = vst.msk [vmem:[%s467 + $0x30] sm:$0xff] %vm1432, %v11092
      %11147 = vst.msk [vmem:[%s467 + $0x38] sm:$0xff] %vm1432, %v11093
      %11148 = vst.msk [vmem:[%s467 + $0x40] sm:$0xff] %vm1432, %v11094
      %11149 = vst.msk [vmem:[%s467 + $0x48] sm:$0xff] %vm1432, %v11095
      %11150 = vst.msk [vmem:[%s467 + $0x50] sm:$0xff] %vm1432, %v11096
      %11151 = vst.msk [vmem:[%s467 + $0x58] sm:$0xff] %vm1432, %v11097
      %11152 = vst.msk [vmem:[%s467 + $0x60] sm:$0xff] %vm1432, %v11098
      %11153 = vst.msk [vmem:[%s467 + $0x68] sm:$0xff] %vm1432, %v11099
      %11154 = vst.msk [vmem:[%s467 + $0x70] sm:$0xff] %vm1432, %v11100
      %11155 = vst.msk [vmem:[%s467 + $0x78] sm:$0xff] %vm1432, %v11101
      %11156 = vst.msk [vmem:[%s467 + $0x80] sm:$0xff] %vm1432, %v11102
      %11157 = vst.msk [vmem:[%s467 + $0x88] sm:$0xff] %vm1432, %v11103
      %11158 = vst.msk [vmem:[%s467 + $0x90] sm:$0xff] %vm1432, %v11104
      %11159 = vst.msk [vmem:[%s467 + $0x98] sm:$0xff] %vm1432, %v11105
      %11160 = vst.msk [vmem:[%s467 + $0xa0] sm:$0xff] %vm1432, %v11106
      %11161 = vst.msk [vmem:[%s467 + $0xa8] sm:$0xff] %vm1432, %v11107
      %11162 = vst.msk [vmem:[%s467 + $0xb0] sm:$0xff] %vm1432, %v11108
      %11163 = vst.msk [vmem:[%s467 + $0xb8] sm:$0xff] %vm1432, %v11109
      %11164 = vst.msk [vmem:[%s467 + $0xc0] sm:$0xff] %vm1432, %v11110
      %11165 = vst.msk [vmem:[%s467 + $0xc8] sm:$0xff] %vm1432, %v11111
      %11166 = vst.msk [vmem:[%s467 + $0xd0] sm:$0xff] %vm1432, %v11112
      %11167 = vst.msk [vmem:[%s467 + $0xd8] sm:$0xff] %vm1432, %v11113
      %11168 = vst.msk [vmem:[%s467 + $0xe0] sm:$0xff] %vm1432, %v11114
      %11169 = vst.msk [vmem:[%s467 + $0xe8] sm:$0xff] %vm1432, %v11115
      %11170 = vst.msk [vmem:[%s467 + $0xf0] sm:$0xff] %vm1432, %v11116
      %11171 = vst.msk [vmem:[%s467 + $0xf8] sm:$0xff] %vm1432, %v11117
      %11172 = vst.msk [vmem:[%s467 + $0x100] sm:$0xff] %vm1432, %v11118
      %11173 = vst.msk [vmem:[%s467 + $0x108] sm:$0xff] %vm1432, %v11119
      %11174 = vst.msk [vmem:[%s467 + $0x110] sm:$0xff] %vm1432, %v11120
      %11175 = vst.msk [vmem:[%s467 + $0x118] sm:$0xff] %vm1432, %v11121
      %11176 = vst.msk [vmem:[%s467 + $0x120] sm:$0xff] %vm1432, %v11122
      %11177 = vst.msk [vmem:[%s467 + $0x128] sm:$0xff] %vm1432, %v11123
      %11178 = vst.msk [vmem:[%s467 + $0x130] sm:$0xff] %vm1432, %v11124
      %11179 = vst.msk [vmem:[%s467 + $0x138] sm:$0xff] %vm1432, %v11125
      %11180 = vst.msk [vmem:[%s467 + $0x140] sm:$0xff] %vm1432, %v11126
      %11181 = vst.msk [vmem:[%s467 + $0x148] sm:$0xff] %vm1432, %v11127
      %11182 = vst.msk [vmem:[%s467 + $0x150] sm:$0xff] %vm1432, %v11128
      %11183 = vst.msk [vmem:[%s467 + $0x158] sm:$0xff] %vm1432, %v11129
      %11184 = vst.msk [vmem:[%s467 + $0x160] sm:$0xff] %vm1432, %v11130
      %11185 = vst.msk [vmem:[%s467 + $0x168] sm:$0xff] %vm1432, %v11131
      %11186 = vst.msk [vmem:[%s467 + $0x170] sm:$0xff] %vm1432, %v11132
      %11187 = vst.msk [vmem:[%s467 + $0x178] sm:$0xff] %vm1432, %v11133
      %11188 = vst.msk [vmem:[%s467 + $0x180] sm:$0xff] %vm1432, %v11134
      %11189 = vst.msk [vmem:[%s467 + $0x188] sm:$0xff] %vm1432, %v11135
      %11190 = vst.msk [vmem:[%s467 + $0x190] sm:$0xff] %vm1432, %v11136
      %11191 = vst.msk [vmem:[%s467 + $0x198] sm:$0xff] %vm1432, %v11137
      %11192 = vst.msk [vmem:[%s467 + $0x1a0] sm:$0xff] %vm1432, %v11138
      %11193 = vst.msk [vmem:[%s467 + $0x1a8] sm:$0xff] %vm1432, %v11139
      %p11194 = scmp.lt.s32.totalorder %s25, 1
      %s11195 = scalar_select %p11194, %s25, 1
      %s11196 = smul.addr %s11195, 54
      %s11197 = smul.addr %s11196, 8
      %s11198 = scalar_lea.vmem %s14, %s11197
      // Predicated region
      $region77: #{coupling_layer_forward.1} parent=75 // pred_check
        %p11199 = pneg %p342
      $region78: #{coupling_layer_forward.1} parent=75 // pred_check_branch
        %11201 = sbr.rel (%p11199) target = $region80
      $region79: #{coupling_layer_forward.1} parent=75 // pred_region
        _
      $region80: #{coupling_layer_forward.1} parent=75 // pred_fallthru
        _
    $region76: #{coupling_layer_forward.1} parent=5 // pred_fallthru
      _
    %p11202 = scmp.le.s32.totalorder 2, %s20
    // Predicated region
    $region81: #{coupling_layer_forward.1} parent=5 // pred_check
      %p11203 = pneg %p11202
    $region82: #{coupling_layer_forward.1} parent=5 // pred_check_branch
      %11205 = sbr.rel (%p11203) target = $region84
    $region83: #{coupling_layer_forward.1} parent=5 // pred_region
      %s11206 = ssub.s32 %s20, 2
      // Predicated region
      $region85: #{coupling_layer_forward.1} parent=83 // pred_check
        %p11207 = pneg %p348
      $region86: #{coupling_layer_forward.1} parent=83 // pred_check_branch
        %11209 = sbr.rel (%p11207) target = $region88
      $region87: #{coupling_layer_forward.1} parent=83 // pred_region
        %p11210 = scmp.lt.s32.totalorder %s26, 1
        %s11211 = scalar_select %p11210, %s26, 1
        %s11212 = smul.addr %s11211, 54
        %s11213 = smul.addr %s11212, 8
        %s11214 = scalar_lea.vmem %s14, %s11213
      $region88: #{coupling_layer_forward.1} parent=83 // pred_fallthru
        _
    $region84: #{coupling_layer_forward.1} parent=5 // pred_fallthru
      _
  $region6: #{coupling_layer_forward.1} parent=0 // loop_footer
    %s24 = sadd.s32 1, %s20
  $region7: #{coupling_layer_forward.1} parent=0 // loop_footer_branch
    %19 = sbr.rel target = $region3
  $region8: #{coupling_layer_forward.1} parent=0 // loop_exit
    _

</llo_original>
